<compile_context>
chip_gen: v7x
topology: tpu7x:2x2x1
jax: 0.10.0
libtpu: 0.0.40
codegen_flags: <defaults>
</compile_context>

<pallas_src>
import math

import jax
import jax.numpy as jnp
from jax.experimental import pallas as pl
from jax.experimental.pallas import tpu as pltpu

# ----------------------------- model config ---------------------------------
BATCH       = 32         # batch size for the demo run
NUM_JOINTS  = 8          # num_joints
INPUT_DIM   = 2          # 2-D keypoints
EMBED_DIM   = 32         # embed_dim
HIDDEN_DIMS = (64, 48)   # hidden_dims
NUM_LAYERS  = 2          # num_layers
NUM_HEADS   = 4          # num_heads
HEAD_DIM    = EMBED_DIM // NUM_HEADS
FF_DIM      = HIDDEN_DIMS[0]
OUT_DIM     = HIDDEN_DIMS[-1]
LN_EPS      = 1e-5

# ----------------------------- kernel tiling ---------------------------------
TB      = 16                     # batch elements per grid step
M_TILE  = TB * NUM_JOINTS        # 128 rows -> fills the MXU M dimension
IN_PAD  = 16                     # input feature dim padded for a K=16 bf16 dot
OUT_PAD = 128                    # lane-dense output columns
LANES   = 128                    # packed slab width


def _round_up(n, m):
    return ((n + m - 1) // m) * m


# ------------------------- packed parameter layouts ---------------------------
def _build_w_layout():
    """bf16 matmul-weight slab: 16-row-aligned offsets (bf16 sublane tiling)."""
    layout = {}
    row = 0

    def add(name, rows, cols):
        nonlocal row
        layout[name] = (row, rows, cols)
        row += _round_up(rows, 16)

    add("w_in", IN_PAD, EMBED_DIM)                 # zero-padded input projection
    for l in range(NUM_LAYERS):
        add(f"wqkv_{l}", EMBED_DIM, 3 * EMBED_DIM)  # fused QKV (Q pre-scaled)
        add(f"wo_{l}", EMBED_DIM, EMBED_DIM)
        add(f"w1_{l}", EMBED_DIM, FF_DIM)
        add(f"w2_{l}", FF_DIM, EMBED_DIM)
    add("w_out", EMBED_DIM, OUT_PAD)               # zero-padded to 128 cols
    return layout, _round_up(row, 16)


def _build_v_layout():
    """f32 vector/constant slab: 8-row-aligned offsets."""
    layout = {}
    row = 0

    def add(name, rows, cols):
        nonlocal row
        layout[name] = (row, rows, cols)
        row += _round_up(rows, 8)

    add("pe_tiled", M_TILE, EMBED_DIM)             # PE pre-tiled over TB
    add("attn_bias", M_TILE, M_TILE)               # block-diagonal mask bias
    add("b_in", 1, EMBED_DIM)
    for l in range(NUM_LAYERS):
        add(f"ln1_g_{l}", 1, EMBED_DIM)
        add(f"ln1_b_{l}", 1, EMBED_DIM)
        add(f"bqkv_{l}", 1, 3 * EMBED_DIM)         # fused QKV bias (Q pre-scaled)
        add(f"bo_{l}", 1, EMBED_DIM)
        add(f"ln2_g_{l}", 1, EMBED_DIM)
        add(f"ln2_b_{l}", 1, EMBED_DIM)
        add(f"b1_{l}", 1, FF_DIM)
        add(f"b2_{l}", 1, EMBED_DIM)
    add("gf", 1, EMBED_DIM)
    add("bf", 1, EMBED_DIM)
    add("b_out", 1, OUT_PAD)
    return layout, _round_up(row, 8)


W_LAYOUT, W_ROWS = _build_w_layout()
V_LAYOUT, V_ROWS = _build_v_layout()


# ----------------------------- kernel helpers --------------------------------
def _layer_norm(x, g, b):
    mu = jnp.mean(x, axis=-1, keepdims=True)
    var = jnp.mean((x - mu) ** 2, axis=-1, keepdims=True)
    return (x - mu) * jax.lax.rsqrt(var + LN_EPS) * g + b


def _gelu(x):
    # tanh-approximate GELU (see TODO above)
    return 0.5 * x * (1.0 + jnp.tanh(0.7978845608028654 * (x + 0.044715 * x * x * x)))


def _bf16(x):
    return x.astype(jnp.bfloat16)


# ------------------------------- the kernel ----------------------------------
def _pose_encoder_kernel(x_ref, w_ref, v_ref, out_ref):
    def W(name):                                   # bf16 matmul weights
        off, rows, cols = W_LAYOUT[name]
        return w_ref[off:off + rows, 0:cols]

    def V(name):                                   # f32 vectors / constants
        off, rows, cols = V_LAYOUT[name]
        return v_ref[off:off + rows, 0:cols]

    # ---- input projection as one K=16 MXU dot (x zero-padded to 16 cols) ----
    x = x_ref[...]                                 # (M, IN_PAD) f32
    h = jnp.dot(_bf16(x), W("w_in"), preferred_element_type=jnp.float32)
    # ---- bias + positional encoding (dropout == identity in eval) ----
    h = h + V("b_in") + V("pe_tiled")              # (M, E) f32

    # precomputed block-diagonal additive mask (only attend inside own sample)
    attn_bias = V("attn_bias")                     # (M, M) f32

    for l in range(NUM_LAYERS):
        # ------------- self-attention sublayer (pre-norm) -------------
        xn = _layer_norm(h, V(f"ln1_g_{l}"), V(f"ln1_b_{l}"))
        qkv = (jnp.dot(_bf16(xn), W(f"wqkv_{l}"),
                       preferred_element_type=jnp.float32)
               + V(f"bqkv_{l}"))                   # (M, 3E) f32, Q pre-scaled
        qkv_b = _bf16(qkv)

        heads = []
        for hd in range(NUM_HEADS):
            lo = hd * HEAD_DIM
            qh = qkv_b[:, lo:lo + HEAD_DIM]                                   # (M, Dh)
            kh = qkv_b[:, EMBED_DIM + lo:EMBED_DIM + lo + HEAD_DIM]
            vh = qkv_b[:, 2 * EMBED_DIM + lo:2 * EMBED_DIM + lo + HEAD_DIM]

            logits = jax.lax.dot_general(
                qh, kh, (((1,), (1,)), ((), ())),
                preferred_element_type=jnp.float32)                          # (M, M) f32
            logits = logits + attn_bias
            m = jnp.max(logits, axis=-1, keepdims=True)
            e = jnp.exp(logits - m)                                           # f32
            inv = pl.reciprocal(jnp.sum(e, axis=-1, keepdims=True), approx=True)
            # normalize after the value matmul (fewer full-width f32 muls)
            head = jnp.dot(_bf16(e), vh, preferred_element_type=jnp.float32) * inv
            heads.append(head)                                                # (M, Dh) f32

        # single (M,E)x(E,E) output projection instead of 4 K=8 matmuls
        heads = jnp.concatenate(heads, axis=-1)                               # (M, E) f32
        attn = (jnp.dot(_bf16(heads), W(f"wo_{l}"),
                        preferred_element_type=jnp.float32)
                + V(f"bo_{l}"))
        h = h + attn                                  # residual (dropout == id)

        # ------------- feed-forward sublayer (pre-norm) -------------
        xn = _layer_norm(h, V(f"ln2_g_{l}"), V(f"ln2_b_{l}"))
        ff = (jnp.dot(_bf16(xn), W(f"w1_{l}"),
                      preferred_element_type=jnp.float32) + V(f"b1_{l}"))
        ff = _gelu(ff)
        ff = (jnp.dot(_bf16(ff), W(f"w2_{l}"),
                      preferred_element_type=jnp.float32) + V(f"b2_{l}"))
        h = h + ff

    # ---- final LayerNorm + lane-dense (128-col) output projection ----
    h = _layer_norm(h, V("gf"), V("bf"))
    out = jnp.dot(_bf16(h), W("w_out"), preferred_element_type=jnp.float32) + V("b_out")
    out_ref[...] = out.astype(out_ref.dtype)


# ------------------------------- wrapper -------------------------------------
def pose_encoder_forward(x, w_slab, v_slab):
    B, J, C = x.shape
    assert J == NUM_JOINTS and C == INPUT_DIM

    nb = pl.cdiv(B, TB)                 # >= 2 grid steps at BATCH=32 (v7x 2-TC)
    b_pad = nb * TB
    x_flat = x.reshape(B * J, C).astype(jnp.float32)
    x_flat = jnp.pad(x_flat, ((0, (b_pad - B) * J), (0, IN_PAD - C)))

    out_flat = pl.pallas_call(
        _pose_encoder_kernel,
        out_shape=jax.ShapeDtypeStruct((b_pad * J, OUT_PAD), jnp.float32),
        grid_spec=pltpu.PrefetchScalarGridSpec(
            num_scalar_prefetch=0,
            grid=(nb,),
            in_specs=[
                pl.BlockSpec((M_TILE, IN_PAD), lambda i: (i, 0)),
                # resident packed slabs: constant block index -> fetched once
                pl.BlockSpec((W_ROWS, LANES), lambda i: (0, 0)),
                pl.BlockSpec((V_ROWS, LANES), lambda i: (0, 0)),
            ],
            out_specs=pl.BlockSpec((M_TILE, OUT_PAD), lambda i: (i, 0)),
        ),
        compiler_params=pltpu.CompilerParams(
            dimension_semantics=("parallel",)),
    )(x_flat, w_slab, v_slab)

    return out_flat[: B * J, :OUT_DIM].reshape(B, J, OUT_DIM)


# ------------------------------ parameters -----------------------------------
def _sinusoidal_pe(max_len, d_model):
    pos = jnp.arange(max_len, dtype=jnp.float32)[:, None]
    div = jnp.exp(jnp.arange(0, d_model, 2, dtype=jnp.float32)
                  * (-math.log(10000.0) / d_model))
    pe = jnp.zeros((max_len, d_model), jnp.float32)
    pe = pe.at[:, 0::2].set(jnp.sin(pos * div))
    pe = pe.at[:, 1::2].set(jnp.cos(pos * div))
    return pe


def init_params(key):
    E, F, O = EMBED_DIM, FF_DIM, OUT_DIM
    keys = jax.random.split(key, 2 + 6 * NUM_LAYERS)

    def nrm(k, shape, scale=0.05):
        return (scale * jax.random.normal(k, shape)).astype(jnp.float32)

    ki = iter(range(len(keys)))
    params = {
        "w_in": nrm(keys[next(ki)], (INPUT_DIM, E)),
        "b_in": jnp.zeros((E,), jnp.float32),
        "gf": jnp.ones((E,), jnp.float32),
        "bf": jnp.zeros((E,), jnp.float32),
        "w_out": nrm(keys[next(ki)], (E, O)),
        "b_out": jnp.zeros((O,), jnp.float32),
        "layers": [],
    }
    for _ in range(NUM_LAYERS):
        params["layers"].append({
            "ln1_g": jnp.ones((E,), jnp.float32), "ln1_b": jnp.zeros((E,), jnp.float32),
            "wq": nrm(keys[next(ki)], (E, E)), "bq": jnp.zeros((E,), jnp.float32),
            "wk": nrm(keys[next(ki)], (E, E)), "bk": jnp.zeros((E,), jnp.float32),
            "wv": nrm(keys[next(ki)], (E, E)), "bv": jnp.zeros((E,), jnp.float32),
            "wo": nrm(keys[next(ki)], (E, E)), "bo": jnp.zeros((E,), jnp.float32),
            "ln2_g": jnp.ones((E,), jnp.float32), "ln2_b": jnp.zeros((E,), jnp.float32),
            "w1": nrm(keys[next(ki)], (E, F)), "b1": jnp.zeros((F,), jnp.float32),
            "w2": nrm(keys[next(ki)], (F, E)), "b2": jnp.zeros((E,), jnp.float32),
        })
    return params


def pack_params(params):
    """Fuse QKV (Q pre-scaled by 1/sqrt(Dh)), pre-tile PE, precompute the
    block-diagonal mask, zero-pad w_in/w_out, and pack everything into a bf16
    weight slab + an f32 vector slab."""
    E = EMBED_DIM
    scale = 1.0 / math.sqrt(HEAD_DIM)
    wbuf = jnp.zeros((W_ROWS, LANES), jnp.float32)
    vbuf = jnp.zeros((V_ROWS, LANES), jnp.float32)

    def put(buf, layout, name, arr, cols):
        off = layout[name][0]
        arr = jnp.asarray(arr, jnp.float32).reshape(-1, cols)
        return buf.at[off:off + arr.shape[0], 0:cols].set(arr)

    # ---- bf16 weight slab ----
    w_in_pad = jnp.zeros((IN_PAD, E), jnp.float32).at[:INPUT_DIM].set(params["w_in"])
    wbuf = put(wbuf, W_LAYOUT, "w_in", w_in_pad, E)
    for l, lp in enumerate(params["layers"]):
        wqkv = jnp.concatenate([lp["wq"] * scale, lp["wk"], lp["wv"]], axis=-1)
        wbuf = put(wbuf, W_LAYOUT, f"wqkv_{l}", wqkv, 3 * E)
        wbuf = put(wbuf, W_LAYOUT, f"wo_{l}", lp["wo"], E)
        wbuf = put(wbuf, W_LAYOUT, f"w1_{l}", lp["w1"], FF_DIM)
        wbuf = put(wbuf, W_LAYOUT, f"w2_{l}", lp["w2"], E)
    w_out_pad = jnp.zeros((E, OUT_PAD), jnp.float32).at[:, :OUT_DIM].set(params["w_out"])
    wbuf = put(wbuf, W_LAYOUT, "w_out", w_out_pad, OUT_PAD)

    # ---- f32 vector slab ----
    pe = _sinusoidal_pe(NUM_JOINTS, E)
    vbuf = put(vbuf, V_LAYOUT, "pe_tiled", jnp.tile(pe, (TB, 1)), E)
    blk = jnp.arange(M_TILE, dtype=jnp.int32) // NUM_JOINTS
    attn_bias = jnp.where(blk[:, None] == blk[None, :],
                          jnp.float32(0.0), jnp.float32(-1e30))
    vbuf = put(vbuf, V_LAYOUT, "attn_bias", attn_bias, M_TILE)
    vbuf = put(vbuf, V_LAYOUT, "b_in", params["b_in"], E)
    for l, lp in enumerate(params["layers"]):
        vbuf = put(vbuf, V_LAYOUT, f"ln1_g_{l}", lp["ln1_g"], E)
        vbuf = put(vbuf, V_LAYOUT, f"ln1_b_{l}", lp["ln1_b"], E)
        bqkv = jnp.concatenate([lp["bq"] * scale, lp["bk"], lp["bv"]], axis=-1)
        vbuf = put(vbuf, V_LAYOUT, f"bqkv_{l}", bqkv, 3 * E)
        vbuf = put(vbuf, V_LAYOUT, f"bo_{l}", lp["bo"], E)
        vbuf = put(vbuf, V_LAYOUT, f"ln2_g_{l}", lp["ln2_g"], E)
        vbuf = put(vbuf, V_LAYOUT, f"ln2_b_{l}", lp["ln2_b"], E)
        vbuf = put(vbuf, V_LAYOUT, f"b1_{l}", lp["b1"], FF_DIM)
        vbuf = put(vbuf, V_LAYOUT, f"b2_{l}", lp["b2"], E)
    vbuf = put(vbuf, V_LAYOUT, "gf", params["gf"], E)
    vbuf = put(vbuf, V_LAYOUT, "bf", params["bf"], E)
    b_out_pad = jnp.zeros((OUT_PAD,), jnp.float32).at[:OUT_DIM].set(params["b_out"])
    vbuf = put(vbuf, V_LAYOUT, "b_out", b_out_pad, OUT_PAD)

    return wbuf.astype(jnp.bfloat16), vbuf


# --------------------------------- main ---------------------------------------
if __name__ == "__main__":
    key = jax.random.PRNGKey(0)
    kx, kp = jax.random.split(key)
    x = jax.random.normal(kx, (BATCH, NUM_JOINTS, INPUT_DIM), jnp.float32)
    params = init_params(kp)
    w_slab, v_slab = pack_params(params)

    out = pose_encoder_forward(x, w_slab, v_slab)
    out = jax.block_until_ready(out)

    assert out.shape == (BATCH, NUM_JOINTS, OUT_DIM), out.shape
    assert bool(jnp.all(jnp.isfinite(out)))
    print("KERNEL_OK")
</pallas_src>

<mosaic_0001>
module attributes {stable_mosaic.version = 11 : i64} {
  func.func @_pose_encoder_kernel(%arg0: i32, %arg1: memref<128x16xf32, #tpu.memory_space<vmem>>, %arg2: memref<368x128xbf16, #tpu.memory_space<vmem>>, %arg3: memref<416x128xf32, #tpu.memory_space<vmem>>, %arg4: memref<128x128xf32, #tpu.memory_space<vmem>>) attributes {dimension_semantics = [#tpu.dimension_semantics<parallel>], iteration_bounds = array<i64: 2>, scalar_prefetch = 0 : i64, scratch_operands = 0 : i64, tpu.core_type = #tpu.core_type<tc>, window_params = [{transform_indices = @transform_0, window_bounds = array<i64: 128, 16>}, {pipeline_mode = #tpu.pipeline_mode<synchronous>, transform_indices = @transform_1, window_bounds = array<i64: 368, 128>}, {pipeline_mode = #tpu.pipeline_mode<synchronous>, transform_indices = @transform_2, window_bounds = array<i64: 416, 128>}, {transform_indices = @transform_3, window_bounds = array<i64: 128, 128>}]} {
    %c0 = arith.constant 0 : index
    %c0_0 = arith.constant 0 : index
    %0 = vector.load %arg1[%c0, %c0_0] : memref<128x16xf32, #tpu.memory_space<vmem>>, vector<128x16xf32>
    %1 = arith.truncf %0 : vector<128x16xf32> to vector<128x16xbf16>
    %c0_1 = arith.constant 0 : index
    %c0_2 = arith.constant 0 : index
    %2 = vector.load %arg2[%c0_1, %c0_2] : memref<368x128xbf16, #tpu.memory_space<vmem>>, vector<16x32xbf16>
    %cst = arith.constant dense<0.000000e+00> : vector<128x32xf32>
    %3 = tpu.matmul %1, %2, %cst {dimension_numbers = #tpu.dot_dimension_numbers<[1], [0], [0], [1], [0, 0, 1, 1], [], []>} : vector<128x16xbf16>, vector<16x32xbf16>, vector<128x32xf32> -> vector<128x32xf32>
    %c256 = arith.constant 256 : index
    %c0_3 = arith.constant 0 : index
    %4 = vector.load %arg3[%c256, %c0_3] : memref<416x128xf32, #tpu.memory_space<vmem>>, vector<1x32xf32>
    %5 = vector.broadcast %4 : vector<1x32xf32> to vector<128x32xf32>
    %6 = arith.addf %3, %5 : vector<128x32xf32>
    %c0_4 = arith.constant 0 : index
    %c0_5 = arith.constant 0 : index
    %7 = vector.load %arg3[%c0_4, %c0_5] : memref<416x128xf32, #tpu.memory_space<vmem>>, vector<128x32xf32>
    %8 = arith.addf %6, %7 : vector<128x32xf32>
    %c128 = arith.constant 128 : index
    %c0_6 = arith.constant 0 : index
    %9 = vector.load %arg3[%c128, %c0_6] : memref<416x128xf32, #tpu.memory_space<vmem>>, vector<128x128xf32>
    %c264 = arith.constant 264 : index
    %c0_7 = arith.constant 0 : index
    %10 = vector.load %arg3[%c264, %c0_7] : memref<416x128xf32, #tpu.memory_space<vmem>>, vector<1x32xf32>
    %c272 = arith.constant 272 : index
    %c0_8 = arith.constant 0 : index
    %11 = vector.load %arg3[%c272, %c0_8] : memref<416x128xf32, #tpu.memory_space<vmem>>, vector<1x32xf32>
    %cst_9 = arith.constant dense<0.000000e+00> : vector<128xf32>
    %12 = vector.multi_reduction <add>, %8, %cst_9 [1] : vector<128x32xf32> to vector<128xf32>
    %13 = vector.shape_cast %12 : vector<128xf32> to vector<128x1xf32>
    %cst_10 = arith.constant 3.200000e+01 : f32
    %14 = vector.broadcast %cst_10 : f32 to vector<128x1xf32>
    %15 = arith.divf %13, %14 : vector<128x1xf32>
    %16 = vector.broadcast %15 : vector<128x1xf32> to vector<128x32xf32>
    %17 = arith.subf %8, %16 : vector<128x32xf32>
    %18 = arith.mulf %17, %17 : vector<128x32xf32>
    %cst_11 = arith.constant dense<0.000000e+00> : vector<128xf32>
    %19 = vector.multi_reduction <add>, %18, %cst_11 [1] : vector<128x32xf32> to vector<128xf32>
    %20 = vector.shape_cast %19 : vector<128xf32> to vector<128x1xf32>
    %cst_12 = arith.constant 3.200000e+01 : f32
    %21 = vector.broadcast %cst_12 : f32 to vector<128x1xf32>
    %22 = arith.divf %20, %21 : vector<128x1xf32>
    %23 = vector.broadcast %15 : vector<128x1xf32> to vector<128x32xf32>
    %24 = arith.subf %8, %23 : vector<128x32xf32>
    %cst_13 = arith.constant 9.99999974E-6 : f32
    %25 = vector.broadcast %cst_13 : f32 to vector<128x1xf32>
    %26 = arith.addf %22, %25 : vector<128x1xf32>
    %27 = math.rsqrt %26 : vector<128x1xf32>
    %28 = vector.broadcast %27 : vector<128x1xf32> to vector<128x32xf32>
    %29 = arith.mulf %24, %28 : vector<128x32xf32>
    %30 = vector.broadcast %10 : vector<1x32xf32> to vector<128x32xf32>
    %31 = arith.mulf %29, %30 : vector<128x32xf32>
    %32 = vector.broadcast %11 : vector<1x32xf32> to vector<128x32xf32>
    %33 = arith.addf %31, %32 : vector<128x32xf32>
    %34 = arith.truncf %33 : vector<128x32xf32> to vector<128x32xbf16>
    %c16 = arith.constant 16 : index
    %c0_14 = arith.constant 0 : index
    %35 = vector.load %arg2[%c16, %c0_14] : memref<368x128xbf16, #tpu.memory_space<vmem>>, vector<32x96xbf16>
    %cst_15 = arith.constant dense<0.000000e+00> : vector<128x96xf32>
    %36 = tpu.matmul %34, %35, %cst_15 {dimension_numbers = #tpu.dot_dimension_numbers<[1], [0], [0], [1], [0, 0, 1, 1], [], []>} : vector<128x32xbf16>, vector<32x96xbf16>, vector<128x96xf32> -> vector<128x96xf32>
    %c280 = arith.constant 280 : index
    %c0_16 = arith.constant 0 : index
    %37 = vector.load %arg3[%c280, %c0_16] : memref<416x128xf32, #tpu.memory_space<vmem>>, vector<1x96xf32>
    %38 = vector.broadcast %37 : vector<1x96xf32> to vector<128x96xf32>
    %39 = arith.addf %36, %38 : vector<128x96xf32>
    %40 = arith.truncf %39 : vector<128x96xf32> to vector<128x96xbf16>
    %41 = vector.extract_strided_slice %40 {offsets = [0, 0], sizes = [128, 8], strides = [1, 1]} : vector<128x96xbf16> to vector<128x8xbf16>
    %42 = vector.extract_strided_slice %40 {offsets = [0, 32], sizes = [128, 8], strides = [1, 1]} : vector<128x96xbf16> to vector<128x8xbf16>
    %43 = vector.extract_strided_slice %40 {offsets = [0, 64], sizes = [128, 8], strides = [1, 1]} : vector<128x96xbf16> to vector<128x8xbf16>
    %cst_17 = arith.constant dense<0.000000e+00> : vector<128x128xf32>
    %44 = tpu.matmul %41, %42, %cst_17 {dimension_numbers = #tpu.dot_dimension_numbers<[1], [1], [0], [0], [0, 0, 1, 0], [], []>} : vector<128x8xbf16>, vector<128x8xbf16>, vector<128x128xf32> -> vector<128x128xf32>
    %45 = arith.addf %44, %9 : vector<128x128xf32>
    %cst_18 = arith.constant dense<0xFF800000> : vector<128xf32>
    %46 = vector.multi_reduction <maximumf>, %45, %cst_18 [1] : vector<128x128xf32> to vector<128xf32>
    %47 = vector.shape_cast %46 : vector<128xf32> to vector<128x1xf32>
    %48 = vector.broadcast %47 : vector<128x1xf32> to vector<128x128xf32>
    %49 = arith.subf %45, %48 : vector<128x128xf32>
    %50 = math.exp %49 : vector<128x128xf32>
    %cst_19 = arith.constant dense<0.000000e+00> : vector<128xf32>
    %51 = vector.multi_reduction <add>, %50, %cst_19 [1] : vector<128x128xf32> to vector<128xf32>
    %52 = vector.shape_cast %51 : vector<128xf32> to vector<128x1xf32>
    %53 = tpu.reciprocal %52 {approx = true} : vector<128x1xf32> -> vector<128x1xf32>
    %54 = arith.truncf %50 : vector<128x128xf32> to vector<128x128xbf16>
    %cst_20 = arith.constant dense<0.000000e+00> : vector<128x8xf32>
    %55 = tpu.matmul %54, %43, %cst_20 {dimension_numbers = #tpu.dot_dimension_numbers<[1], [0], [0], [1], [0, 0, 1, 1], [], []>} : vector<128x128xbf16>, vector<128x8xbf16>, vector<128x8xf32> -> vector<128x8xf32>
    %56 = vector.broadcast %53 : vector<128x1xf32> to vector<128x8xf32>
    %57 = arith.mulf %55, %56 : vector<128x8xf32>
    %58 = vector.extract_strided_slice %40 {offsets = [0, 8], sizes = [128, 8], strides = [1, 1]} : vector<128x96xbf16> to vector<128x8xbf16>
    %59 = vector.extract_strided_slice %40 {offsets = [0, 40], sizes = [128, 8], strides = [1, 1]} : vector<128x96xbf16> to vector<128x8xbf16>
    %60 = vector.extract_strided_slice %40 {offsets = [0, 72], sizes = [128, 8], strides = [1, 1]} : vector<128x96xbf16> to vector<128x8xbf16>
    %cst_21 = arith.constant dense<0.000000e+00> : vector<128x128xf32>
    %61 = tpu.matmul %58, %59, %cst_21 {dimension_numbers = #tpu.dot_dimension_numbers<[1], [1], [0], [0], [0, 0, 1, 0], [], []>} : vector<128x8xbf16>, vector<128x8xbf16>, vector<128x128xf32> -> vector<128x128xf32>
    %62 = arith.addf %61, %9 : vector<128x128xf32>
    %cst_22 = arith.constant dense<0xFF800000> : vector<128xf32>
    %63 = vector.multi_reduction <maximumf>, %62, %cst_22 [1] : vector<128x128xf32> to vector<128xf32>
    %64 = vector.shape_cast %63 : vector<128xf32> to vector<128x1xf32>
    %65 = vector.broadcast %64 : vector<128x1xf32> to vector<128x128xf32>
    %66 = arith.subf %62, %65 : vector<128x128xf32>
    %67 = math.exp %66 : vector<128x128xf32>
    %cst_23 = arith.constant dense<0.000000e+00> : vector<128xf32>
    %68 = vector.multi_reduction <add>, %67, %cst_23 [1] : vector<128x128xf32> to vector<128xf32>
    %69 = vector.shape_cast %68 : vector<128xf32> to vector<128x1xf32>
    %70 = tpu.reciprocal %69 {approx = true} : vector<128x1xf32> -> vector<128x1xf32>
    %71 = arith.truncf %67 : vector<128x128xf32> to vector<128x128xbf16>
    %cst_24 = arith.constant dense<0.000000e+00> : vector<128x8xf32>
    %72 = tpu.matmul %71, %60, %cst_24 {dimension_numbers = #tpu.dot_dimension_numbers<[1], [0], [0], [1], [0, 0, 1, 1], [], []>} : vector<128x128xbf16>, vector<128x8xbf16>, vector<128x8xf32> -> vector<128x8xf32>
    %73 = vector.broadcast %70 : vector<128x1xf32> to vector<128x8xf32>
    %74 = arith.mulf %72, %73 : vector<128x8xf32>
    %75 = vector.extract_strided_slice %40 {offsets = [0, 16], sizes = [128, 8], strides = [1, 1]} : vector<128x96xbf16> to vector<128x8xbf16>
    %76 = vector.extract_strided_slice %40 {offsets = [0, 48], sizes = [128, 8], strides = [1, 1]} : vector<128x96xbf16> to vector<128x8xbf16>
    %77 = vector.extract_strided_slice %40 {offsets = [0, 80], sizes = [128, 8], strides = [1, 1]} : vector<128x96xbf16> to vector<128x8xbf16>
    %cst_25 = arith.constant dense<0.000000e+00> : vector<128x128xf32>
    %78 = tpu.matmul %75, %76, %cst_25 {dimension_numbers = #tpu.dot_dimension_numbers<[1], [1], [0], [0], [0, 0, 1, 0], [], []>} : vector<128x8xbf16>, vector<128x8xbf16>, vector<128x128xf32> -> vector<128x128xf32>
    %79 = arith.addf %78, %9 : vector<128x128xf32>
    %cst_26 = arith.constant dense<0xFF800000> : vector<128xf32>
    %80 = vector.multi_reduction <maximumf>, %79, %cst_26 [1] : vector<128x128xf32> to vector<128xf32>
    %81 = vector.shape_cast %80 : vector<128xf32> to vector<128x1xf32>
    %82 = vector.broadcast %81 : vector<128x1xf32> to vector<128x128xf32>
    %83 = arith.subf %79, %82 : vector<128x128xf32>
    %84 = math.exp %83 : vector<128x128xf32>
    %cst_27 = arith.constant dense<0.000000e+00> : vector<128xf32>
    %85 = vector.multi_reduction <add>, %84, %cst_27 [1] : vector<128x128xf32> to vector<128xf32>
    %86 = vector.shape_cast %85 : vector<128xf32> to vector<128x1xf32>
    %87 = tpu.reciprocal %86 {approx = true} : vector<128x1xf32> -> vector<128x1xf32>
    %88 = arith.truncf %84 : vector<128x128xf32> to vector<128x128xbf16>
    %cst_28 = arith.constant dense<0.000000e+00> : vector<128x8xf32>
    %89 = tpu.matmul %88, %77, %cst_28 {dimension_numbers = #tpu.dot_dimension_numbers<[1], [0], [0], [1], [0, 0, 1, 1], [], []>} : vector<128x128xbf16>, vector<128x8xbf16>, vector<128x8xf32> -> vector<128x8xf32>
    %90 = vector.broadcast %87 : vector<128x1xf32> to vector<128x8xf32>
    %91 = arith.mulf %89, %90 : vector<128x8xf32>
    %92 = vector.extract_strided_slice %40 {offsets = [0, 24], sizes = [128, 8], strides = [1, 1]} : vector<128x96xbf16> to vector<128x8xbf16>
    %93 = vector.extract_strided_slice %40 {offsets = [0, 56], sizes = [128, 8], strides = [1, 1]} : vector<128x96xbf16> to vector<128x8xbf16>
    %94 = vector.extract_strided_slice %40 {offsets = [0, 88], sizes = [128, 8], strides = [1, 1]} : vector<128x96xbf16> to vector<128x8xbf16>
    %cst_29 = arith.constant dense<0.000000e+00> : vector<128x128xf32>
    %95 = tpu.matmul %92, %93, %cst_29 {dimension_numbers = #tpu.dot_dimension_numbers<[1], [1], [0], [0], [0, 0, 1, 0], [], []>} : vector<128x8xbf16>, vector<128x8xbf16>, vector<128x128xf32> -> vector<128x128xf32>
    %96 = arith.addf %95, %9 : vector<128x128xf32>
    %cst_30 = arith.constant dense<0xFF800000> : vector<128xf32>
    %97 = vector.multi_reduction <maximumf>, %96, %cst_30 [1] : vector<128x128xf32> to vector<128xf32>
    %98 = vector.shape_cast %97 : vector<128xf32> to vector<128x1xf32>
    %99 = vector.broadcast %98 : vector<128x1xf32> to vector<128x128xf32>
    %100 = arith.subf %96, %99 : vector<128x128xf32>
    %101 = math.exp %100 : vector<128x128xf32>
    %cst_31 = arith.constant dense<0.000000e+00> : vector<128xf32>
    %102 = vector.multi_reduction <add>, %101, %cst_31 [1] : vector<128x128xf32> to vector<128xf32>
    %103 = vector.shape_cast %102 : vector<128xf32> to vector<128x1xf32>
    %104 = tpu.reciprocal %103 {approx = true} : vector<128x1xf32> -> vector<128x1xf32>
    %105 = arith.truncf %101 : vector<128x128xf32> to vector<128x128xbf16>
    %cst_32 = arith.constant dense<0.000000e+00> : vector<128x8xf32>
    %106 = tpu.matmul %105, %94, %cst_32 {dimension_numbers = #tpu.dot_dimension_numbers<[1], [0], [0], [1], [0, 0, 1, 1], [], []>} : vector<128x128xbf16>, vector<128x8xbf16>, vector<128x8xf32> -> vector<128x8xf32>
    %107 = vector.broadcast %104 : vector<128x1xf32> to vector<128x8xf32>
    %108 = arith.mulf %106, %107 : vector<128x8xf32>
    %109 = tpu.concatenate %57, %74, %91, %108 in 1 : vector<128x8xf32>, vector<128x8xf32>, vector<128x8xf32>, vector<128x8xf32> -> vector<128x32xf32>
    %110 = arith.truncf %109 : vector<128x32xf32> to vector<128x32xbf16>
    %c48 = arith.constant 48 : index
    %c0_33 = arith.constant 0 : index
    %111 = vector.load %arg2[%c48, %c0_33] : memref<368x128xbf16, #tpu.memory_space<vmem>>, vector<32x32xbf16>
    %cst_34 = arith.constant dense<0.000000e+00> : vector<128x32xf32>
    %112 = tpu.matmul %110, %111, %cst_34 {dimension_numbers = #tpu.dot_dimension_numbers<[1], [0], [0], [1], [0, 0, 1, 1], [], []>} : vector<128x32xbf16>, vector<32x32xbf16>, vector<128x32xf32> -> vector<128x32xf32>
    %c288 = arith.constant 288 : index
    %c0_35 = arith.constant 0 : index
    %113 = vector.load %arg3[%c288, %c0_35] : memref<416x128xf32, #tpu.memory_space<vmem>>, vector<1x32xf32>
    %114 = vector.broadcast %113 : vector<1x32xf32> to vector<128x32xf32>
    %115 = arith.addf %112, %114 : vector<128x32xf32>
    %116 = arith.addf %8, %115 : vector<128x32xf32>
    %c296 = arith.constant 296 : index
    %c0_36 = arith.constant 0 : index
    %117 = vector.load %arg3[%c296, %c0_36] : memref<416x128xf32, #tpu.memory_space<vmem>>, vector<1x32xf32>
    %c304 = arith.constant 304 : index
    %c0_37 = arith.constant 0 : index
    %118 = vector.load %arg3[%c304, %c0_37] : memref<416x128xf32, #tpu.memory_space<vmem>>, vector<1x32xf32>
    %cst_38 = arith.constant dense<0.000000e+00> : vector<128xf32>
    %119 = vector.multi_reduction <add>, %116, %cst_38 [1] : vector<128x32xf32> to vector<128xf32>
    %120 = vector.shape_cast %119 : vector<128xf32> to vector<128x1xf32>
    %cst_39 = arith.constant 3.200000e+01 : f32
    %121 = vector.broadcast %cst_39 : f32 to vector<128x1xf32>
    %122 = arith.divf %120, %121 : vector<128x1xf32>
    %123 = vector.broadcast %122 : vector<128x1xf32> to vector<128x32xf32>
    %124 = arith.subf %116, %123 : vector<128x32xf32>
    %125 = arith.mulf %124, %124 : vector<128x32xf32>
    %cst_40 = arith.constant dense<0.000000e+00> : vector<128xf32>
    %126 = vector.multi_reduction <add>, %125, %cst_40 [1] : vector<128x32xf32> to vector<128xf32>
    %127 = vector.shape_cast %126 : vector<128xf32> to vector<128x1xf32>
    %cst_41 = arith.constant 3.200000e+01 : f32
    %128 = vector.broadcast %cst_41 : f32 to vector<128x1xf32>
    %129 = arith.divf %127, %128 : vector<128x1xf32>
    %130 = vector.broadcast %122 : vector<128x1xf32> to vector<128x32xf32>
    %131 = arith.subf %116, %130 : vector<128x32xf32>
    %cst_42 = arith.constant 9.99999974E-6 : f32
    %132 = vector.broadcast %cst_42 : f32 to vector<128x1xf32>
    %133 = arith.addf %129, %132 : vector<128x1xf32>
    %134 = math.rsqrt %133 : vector<128x1xf32>
    %135 = vector.broadcast %134 : vector<128x1xf32> to vector<128x32xf32>
    %136 = arith.mulf %131, %135 : vector<128x32xf32>
    %137 = vector.broadcast %117 : vector<1x32xf32> to vector<128x32xf32>
    %138 = arith.mulf %136, %137 : vector<128x32xf32>
    %139 = vector.broadcast %118 : vector<1x32xf32> to vector<128x32xf32>
    %140 = arith.addf %138, %139 : vector<128x32xf32>
    %141 = arith.truncf %140 : vector<128x32xf32> to vector<128x32xbf16>
    %c80 = arith.constant 80 : index
    %c0_43 = arith.constant 0 : index
    %142 = vector.load %arg2[%c80, %c0_43] : memref<368x128xbf16, #tpu.memory_space<vmem>>, vector<32x64xbf16>
    %cst_44 = arith.constant dense<0.000000e+00> : vector<128x64xf32>
    %143 = tpu.matmul %141, %142, %cst_44 {dimension_numbers = #tpu.dot_dimension_numbers<[1], [0], [0], [1], [0, 0, 1, 1], [], []>} : vector<128x32xbf16>, vector<32x64xbf16>, vector<128x64xf32> -> vector<128x64xf32>
    %c312 = arith.constant 312 : index
    %c0_45 = arith.constant 0 : index
    %144 = vector.load %arg3[%c312, %c0_45] : memref<416x128xf32, #tpu.memory_space<vmem>>, vector<1x64xf32>
    %145 = vector.broadcast %144 : vector<1x64xf32> to vector<128x64xf32>
    %146 = arith.addf %143, %145 : vector<128x64xf32>
    %cst_46 = arith.constant 5.000000e-01 : f32
    %147 = vector.broadcast %cst_46 : f32 to vector<128x64xf32>
    %148 = arith.mulf %147, %146 : vector<128x64xf32>
    %cst_47 = arith.constant 4.471500e-02 : f32
    %149 = vector.broadcast %cst_47 : f32 to vector<128x64xf32>
    %150 = arith.mulf %149, %146 : vector<128x64xf32>
    %151 = arith.mulf %150, %146 : vector<128x64xf32>
    %152 = arith.mulf %151, %146 : vector<128x64xf32>
    %153 = arith.addf %146, %152 : vector<128x64xf32>
    %cst_48 = arith.constant 0.797884583 : f32
    %154 = vector.broadcast %cst_48 : f32 to vector<128x64xf32>
    %155 = arith.mulf %154, %153 : vector<128x64xf32>
    %156 = math.tanh %155 : vector<128x64xf32>
    %cst_49 = arith.constant 1.000000e+00 : f32
    %157 = vector.broadcast %cst_49 : f32 to vector<128x64xf32>
    %158 = arith.addf %157, %156 : vector<128x64xf32>
    %159 = arith.mulf %148, %158 : vector<128x64xf32>
    %160 = arith.truncf %159 : vector<128x64xf32> to vector<128x64xbf16>
    %c112 = arith.constant 112 : index
    %c0_50 = arith.constant 0 : index
    %161 = vector.load %arg2[%c112, %c0_50] : memref<368x128xbf16, #tpu.memory_space<vmem>>, vector<64x32xbf16>
    %cst_51 = arith.constant dense<0.000000e+00> : vector<128x32xf32>
    %162 = tpu.matmul %160, %161, %cst_51 {dimension_numbers = #tpu.dot_dimension_numbers<[1], [0], [0], [1], [0, 0, 1, 1], [], []>} : vector<128x64xbf16>, vector<64x32xbf16>, vector<128x32xf32> -> vector<128x32xf32>
    %c320 = arith.constant 320 : index
    %c0_52 = arith.constant 0 : index
    %163 = vector.load %arg3[%c320, %c0_52] : memref<416x128xf32, #tpu.memory_space<vmem>>, vector<1x32xf32>
    %164 = vector.broadcast %163 : vector<1x32xf32> to vector<128x32xf32>
    %165 = arith.addf %162, %164 : vector<128x32xf32>
    %166 = arith.addf %116, %165 : vector<128x32xf32>
    %c328 = arith.constant 328 : index
    %c0_53 = arith.constant 0 : index
    %167 = vector.load %arg3[%c328, %c0_53] : memref<416x128xf32, #tpu.memory_space<vmem>>, vector<1x32xf32>
    %c336 = arith.constant 336 : index
    %c0_54 = arith.constant 0 : index
    %168 = vector.load %arg3[%c336, %c0_54] : memref<416x128xf32, #tpu.memory_space<vmem>>, vector<1x32xf32>
    %cst_55 = arith.constant dense<0.000000e+00> : vector<128xf32>
    %169 = vector.multi_reduction <add>, %166, %cst_55 [1] : vector<128x32xf32> to vector<128xf32>
    %170 = vector.shape_cast %169 : vector<128xf32> to vector<128x1xf32>
    %cst_56 = arith.constant 3.200000e+01 : f32
    %171 = vector.broadcast %cst_56 : f32 to vector<128x1xf32>
    %172 = arith.divf %170, %171 : vector<128x1xf32>
    %173 = vector.broadcast %172 : vector<128x1xf32> to vector<128x32xf32>
    %174 = arith.subf %166, %173 : vector<128x32xf32>
    %175 = arith.mulf %174, %174 : vector<128x32xf32>
    %cst_57 = arith.constant dense<0.000000e+00> : vector<128xf32>
    %176 = vector.multi_reduction <add>, %175, %cst_57 [1] : vector<128x32xf32> to vector<128xf32>
    %177 = vector.shape_cast %176 : vector<128xf32> to vector<128x1xf32>
    %cst_58 = arith.constant 3.200000e+01 : f32
    %178 = vector.broadcast %cst_58 : f32 to vector<128x1xf32>
    %179 = arith.divf %177, %178 : vector<128x1xf32>
    %180 = vector.broadcast %172 : vector<128x1xf32> to vector<128x32xf32>
    %181 = arith.subf %166, %180 : vector<128x32xf32>
    %cst_59 = arith.constant 9.99999974E-6 : f32
    %182 = vector.broadcast %cst_59 : f32 to vector<128x1xf32>
    %183 = arith.addf %179, %182 : vector<128x1xf32>
    %184 = math.rsqrt %183 : vector<128x1xf32>
    %185 = vector.broadcast %184 : vector<128x1xf32> to vector<128x32xf32>
    %186 = arith.mulf %181, %185 : vector<128x32xf32>
    %187 = vector.broadcast %167 : vector<1x32xf32> to vector<128x32xf32>
    %188 = arith.mulf %186, %187 : vector<128x32xf32>
    %189 = vector.broadcast %168 : vector<1x32xf32> to vector<128x32xf32>
    %190 = arith.addf %188, %189 : vector<128x32xf32>
    %191 = arith.truncf %190 : vector<128x32xf32> to vector<128x32xbf16>
    %c176 = arith.constant 176 : index
    %c0_60 = arith.constant 0 : index
    %192 = vector.load %arg2[%c176, %c0_60] : memref<368x128xbf16, #tpu.memory_space<vmem>>, vector<32x96xbf16>
    %cst_61 = arith.constant dense<0.000000e+00> : vector<128x96xf32>
    %193 = tpu.matmul %191, %192, %cst_61 {dimension_numbers = #tpu.dot_dimension_numbers<[1], [0], [0], [1], [0, 0, 1, 1], [], []>} : vector<128x32xbf16>, vector<32x96xbf16>, vector<128x96xf32> -> vector<128x96xf32>
    %c344 = arith.constant 344 : index
    %c0_62 = arith.constant 0 : index
    %194 = vector.load %arg3[%c344, %c0_62] : memref<416x128xf32, #tpu.memory_space<vmem>>, vector<1x96xf32>
    %195 = vector.broadcast %194 : vector<1x96xf32> to vector<128x96xf32>
    %196 = arith.addf %193, %195 : vector<128x96xf32>
    %197 = arith.truncf %196 : vector<128x96xf32> to vector<128x96xbf16>
    %198 = vector.extract_strided_slice %197 {offsets = [0, 0], sizes = [128, 8], strides = [1, 1]} : vector<128x96xbf16> to vector<128x8xbf16>
    %199 = vector.extract_strided_slice %197 {offsets = [0, 32], sizes = [128, 8], strides = [1, 1]} : vector<128x96xbf16> to vector<128x8xbf16>
    %200 = vector.extract_strided_slice %197 {offsets = [0, 64], sizes = [128, 8], strides = [1, 1]} : vector<128x96xbf16> to vector<128x8xbf16>
    %cst_63 = arith.constant dense<0.000000e+00> : vector<128x128xf32>
    %201 = tpu.matmul %198, %199, %cst_63 {dimension_numbers = #tpu.dot_dimension_numbers<[1], [1], [0], [0], [0, 0, 1, 0], [], []>} : vector<128x8xbf16>, vector<128x8xbf16>, vector<128x128xf32> -> vector<128x128xf32>
    %202 = arith.addf %201, %9 : vector<128x128xf32>
    %cst_64 = arith.constant dense<0xFF800000> : vector<128xf32>
    %203 = vector.multi_reduction <maximumf>, %202, %cst_64 [1] : vector<128x128xf32> to vector<128xf32>
    %204 = vector.shape_cast %203 : vector<128xf32> to vector<128x1xf32>
    %205 = vector.broadcast %204 : vector<128x1xf32> to vector<128x128xf32>
    %206 = arith.subf %202, %205 : vector<128x128xf32>
    %207 = math.exp %206 : vector<128x128xf32>
    %cst_65 = arith.constant dense<0.000000e+00> : vector<128xf32>
    %208 = vector.multi_reduction <add>, %207, %cst_65 [1] : vector<128x128xf32> to vector<128xf32>
    %209 = vector.shape_cast %208 : vector<128xf32> to vector<128x1xf32>
    %210 = tpu.reciprocal %209 {approx = true} : vector<128x1xf32> -> vector<128x1xf32>
    %211 = arith.truncf %207 : vector<128x128xf32> to vector<128x128xbf16>
    %cst_66 = arith.constant dense<0.000000e+00> : vector<128x8xf32>
    %212 = tpu.matmul %211, %200, %cst_66 {dimension_numbers = #tpu.dot_dimension_numbers<[1], [0], [0], [1], [0, 0, 1, 1], [], []>} : vector<128x128xbf16>, vector<128x8xbf16>, vector<128x8xf32> -> vector<128x8xf32>
    %213 = vector.broadcast %210 : vector<128x1xf32> to vector<128x8xf32>
    %214 = arith.mulf %212, %213 : vector<128x8xf32>
    %215 = vector.extract_strided_slice %197 {offsets = [0, 8], sizes = [128, 8], strides = [1, 1]} : vector<128x96xbf16> to vector<128x8xbf16>
    %216 = vector.extract_strided_slice %197 {offsets = [0, 40], sizes = [128, 8], strides = [1, 1]} : vector<128x96xbf16> to vector<128x8xbf16>
    %217 = vector.extract_strided_slice %197 {offsets = [0, 72], sizes = [128, 8], strides = [1, 1]} : vector<128x96xbf16> to vector<128x8xbf16>
    %cst_67 = arith.constant dense<0.000000e+00> : vector<128x128xf32>
    %218 = tpu.matmul %215, %216, %cst_67 {dimension_numbers = #tpu.dot_dimension_numbers<[1], [1], [0], [0], [0, 0, 1, 0], [], []>} : vector<128x8xbf16>, vector<128x8xbf16>, vector<128x128xf32> -> vector<128x128xf32>
    %219 = arith.addf %218, %9 : vector<128x128xf32>
    %cst_68 = arith.constant dense<0xFF800000> : vector<128xf32>
    %220 = vector.multi_reduction <maximumf>, %219, %cst_68 [1] : vector<128x128xf32> to vector<128xf32>
    %221 = vector.shape_cast %220 : vector<128xf32> to vector<128x1xf32>
    %222 = vector.broadcast %221 : vector<128x1xf32> to vector<128x128xf32>
    %223 = arith.subf %219, %222 : vector<128x128xf32>
    %224 = math.exp %223 : vector<128x128xf32>
    %cst_69 = arith.constant dense<0.000000e+00> : vector<128xf32>
    %225 = vector.multi_reduction <add>, %224, %cst_69 [1] : vector<128x128xf32> to vector<128xf32>
    %226 = vector.shape_cast %225 : vector<128xf32> to vector<128x1xf32>
    %227 = tpu.reciprocal %226 {approx = true} : vector<128x1xf32> -> vector<128x1xf32>
    %228 = arith.truncf %224 : vector<128x128xf32> to vector<128x128xbf16>
    %cst_70 = arith.constant dense<0.000000e+00> : vector<128x8xf32>
    %229 = tpu.matmul %228, %217, %cst_70 {dimension_numbers = #tpu.dot_dimension_numbers<[1], [0], [0], [1], [0, 0, 1, 1], [], []>} : vector<128x128xbf16>, vector<128x8xbf16>, vector<128x8xf32> -> vector<128x8xf32>
    %230 = vector.broadcast %227 : vector<128x1xf32> to vector<128x8xf32>
    %231 = arith.mulf %229, %230 : vector<128x8xf32>
    %232 = vector.extract_strided_slice %197 {offsets = [0, 16], sizes = [128, 8], strides = [1, 1]} : vector<128x96xbf16> to vector<128x8xbf16>
    %233 = vector.extract_strided_slice %197 {offsets = [0, 48], sizes = [128, 8], strides = [1, 1]} : vector<128x96xbf16> to vector<128x8xbf16>
    %234 = vector.extract_strided_slice %197 {offsets = [0, 80], sizes = [128, 8], strides = [1, 1]} : vector<128x96xbf16> to vector<128x8xbf16>
    %cst_71 = arith.constant dense<0.000000e+00> : vector<128x128xf32>
    %235 = tpu.matmul %232, %233, %cst_71 {dimension_numbers = #tpu.dot_dimension_numbers<[1], [1], [0], [0], [0, 0, 1, 0], [], []>} : vector<128x8xbf16>, vector<128x8xbf16>, vector<128x128xf32> -> vector<128x128xf32>
    %236 = arith.addf %235, %9 : vector<128x128xf32>
    %cst_72 = arith.constant dense<0xFF800000> : vector<128xf32>
    %237 = vector.multi_reduction <maximumf>, %236, %cst_72 [1] : vector<128x128xf32> to vector<128xf32>
    %238 = vector.shape_cast %237 : vector<128xf32> to vector<128x1xf32>
    %239 = vector.broadcast %238 : vector<128x1xf32> to vector<128x128xf32>
    %240 = arith.subf %236, %239 : vector<128x128xf32>
    %241 = math.exp %240 : vector<128x128xf32>
    %cst_73 = arith.constant dense<0.000000e+00> : vector<128xf32>
    %242 = vector.multi_reduction <add>, %241, %cst_73 [1] : vector<128x128xf32> to vector<128xf32>
    %243 = vector.shape_cast %242 : vector<128xf32> to vector<128x1xf32>
    %244 = tpu.reciprocal %243 {approx = true} : vector<128x1xf32> -> vector<128x1xf32>
    %245 = arith.truncf %241 : vector<128x128xf32> to vector<128x128xbf16>
    %cst_74 = arith.constant dense<0.000000e+00> : vector<128x8xf32>
    %246 = tpu.matmul %245, %234, %cst_74 {dimension_numbers = #tpu.dot_dimension_numbers<[1], [0], [0], [1], [0, 0, 1, 1], [], []>} : vector<128x128xbf16>, vector<128x8xbf16>, vector<128x8xf32> -> vector<128x8xf32>
    %247 = vector.broadcast %244 : vector<128x1xf32> to vector<128x8xf32>
    %248 = arith.mulf %246, %247 : vector<128x8xf32>
    %249 = vector.extract_strided_slice %197 {offsets = [0, 24], sizes = [128, 8], strides = [1, 1]} : vector<128x96xbf16> to vector<128x8xbf16>
    %250 = vector.extract_strided_slice %197 {offsets = [0, 56], sizes = [128, 8], strides = [1, 1]} : vector<128x96xbf16> to vector<128x8xbf16>
    %251 = vector.extract_strided_slice %197 {offsets = [0, 88], sizes = [128, 8], strides = [1, 1]} : vector<128x96xbf16> to vector<128x8xbf16>
    %cst_75 = arith.constant dense<0.000000e+00> : vector<128x128xf32>
    %252 = tpu.matmul %249, %250, %cst_75 {dimension_numbers = #tpu.dot_dimension_numbers<[1], [1], [0], [0], [0, 0, 1, 0], [], []>} : vector<128x8xbf16>, vector<128x8xbf16>, vector<128x128xf32> -> vector<128x128xf32>
    %253 = arith.addf %252, %9 : vector<128x128xf32>
    %cst_76 = arith.constant dense<0xFF800000> : vector<128xf32>
    %254 = vector.multi_reduction <maximumf>, %253, %cst_76 [1] : vector<128x128xf32> to vector<128xf32>
    %255 = vector.shape_cast %254 : vector<128xf32> to vector<128x1xf32>
    %256 = vector.broadcast %255 : vector<128x1xf32> to vector<128x128xf32>
    %257 = arith.subf %253, %256 : vector<128x128xf32>
    %258 = math.exp %257 : vector<128x128xf32>
    %cst_77 = arith.constant dense<0.000000e+00> : vector<128xf32>
    %259 = vector.multi_reduction <add>, %258, %cst_77 [1] : vector<128x128xf32> to vector<128xf32>
    %260 = vector.shape_cast %259 : vector<128xf32> to vector<128x1xf32>
    %261 = tpu.reciprocal %260 {approx = true} : vector<128x1xf32> -> vector<128x1xf32>
    %262 = arith.truncf %258 : vector<128x128xf32> to vector<128x128xbf16>
    %cst_78 = arith.constant dense<0.000000e+00> : vector<128x8xf32>
    %263 = tpu.matmul %262, %251, %cst_78 {dimension_numbers = #tpu.dot_dimension_numbers<[1], [0], [0], [1], [0, 0, 1, 1], [], []>} : vector<128x128xbf16>, vector<128x8xbf16>, vector<128x8xf32> -> vector<128x8xf32>
    %264 = vector.broadcast %261 : vector<128x1xf32> to vector<128x8xf32>
    %265 = arith.mulf %263, %264 : vector<128x8xf32>
    %266 = tpu.concatenate %214, %231, %248, %265 in 1 : vector<128x8xf32>, vector<128x8xf32>, vector<128x8xf32>, vector<128x8xf32> -> vector<128x32xf32>
    %267 = arith.truncf %266 : vector<128x32xf32> to vector<128x32xbf16>
    %c208 = arith.constant 208 : index
    %c0_79 = arith.constant 0 : index
    %268 = vector.load %arg2[%c208, %c0_79] : memref<368x128xbf16, #tpu.memory_space<vmem>>, vector<32x32xbf16>
    %cst_80 = arith.constant dense<0.000000e+00> : vector<128x32xf32>
    %269 = tpu.matmul %267, %268, %cst_80 {dimension_numbers = #tpu.dot_dimension_numbers<[1], [0], [0], [1], [0, 0, 1, 1], [], []>} : vector<128x32xbf16>, vector<32x32xbf16>, vector<128x32xf32> -> vector<128x32xf32>
    %c352 = arith.constant 352 : index
    %c0_81 = arith.constant 0 : index
    %270 = vector.load %arg3[%c352, %c0_81] : memref<416x128xf32, #tpu.memory_space<vmem>>, vector<1x32xf32>
    %271 = vector.broadcast %270 : vector<1x32xf32> to vector<128x32xf32>
    %272 = arith.addf %269, %271 : vector<128x32xf32>
    %273 = arith.addf %166, %272 : vector<128x32xf32>
    %c360 = arith.constant 360 : index
    %c0_82 = arith.constant 0 : index
    %274 = vector.load %arg3[%c360, %c0_82] : memref<416x128xf32, #tpu.memory_space<vmem>>, vector<1x32xf32>
    %c368 = arith.constant 368 : index
    %c0_83 = arith.constant 0 : index
    %275 = vector.load %arg3[%c368, %c0_83] : memref<416x128xf32, #tpu.memory_space<vmem>>, vector<1x32xf32>
    %cst_84 = arith.constant dense<0.000000e+00> : vector<128xf32>
    %276 = vector.multi_reduction <add>, %273, %cst_84 [1] : vector<128x32xf32> to vector<128xf32>
    %277 = vector.shape_cast %276 : vector<128xf32> to vector<128x1xf32>
    %cst_85 = arith.constant 3.200000e+01 : f32
    %278 = vector.broadcast %cst_85 : f32 to vector<128x1xf32>
    %279 = arith.divf %277, %278 : vector<128x1xf32>
    %280 = vector.broadcast %279 : vector<128x1xf32> to vector<128x32xf32>
    %281 = arith.subf %273, %280 : vector<128x32xf32>
    %282 = arith.mulf %281, %281 : vector<128x32xf32>
    %cst_86 = arith.constant dense<0.000000e+00> : vector<128xf32>
    %283 = vector.multi_reduction <add>, %282, %cst_86 [1] : vector<128x32xf32> to vector<128xf32>
    %284 = vector.shape_cast %283 : vector<128xf32> to vector<128x1xf32>
    %cst_87 = arith.constant 3.200000e+01 : f32
    %285 = vector.broadcast %cst_87 : f32 to vector<128x1xf32>
    %286 = arith.divf %284, %285 : vector<128x1xf32>
    %287 = vector.broadcast %279 : vector<128x1xf32> to vector<128x32xf32>
    %288 = arith.subf %273, %287 : vector<128x32xf32>
    %cst_88 = arith.constant 9.99999974E-6 : f32
    %289 = vector.broadcast %cst_88 : f32 to vector<128x1xf32>
    %290 = arith.addf %286, %289 : vector<128x1xf32>
    %291 = math.rsqrt %290 : vector<128x1xf32>
    %292 = vector.broadcast %291 : vector<128x1xf32> to vector<128x32xf32>
    %293 = arith.mulf %288, %292 : vector<128x32xf32>
    %294 = vector.broadcast %274 : vector<1x32xf32> to vector<128x32xf32>
    %295 = arith.mulf %293, %294 : vector<128x32xf32>
    %296 = vector.broadcast %275 : vector<1x32xf32> to vector<128x32xf32>
    %297 = arith.addf %295, %296 : vector<128x32xf32>
    %298 = arith.truncf %297 : vector<128x32xf32> to vector<128x32xbf16>
    %c240 = arith.constant 240 : index
    %c0_89 = arith.constant 0 : index
    %299 = vector.load %arg2[%c240, %c0_89] : memref<368x128xbf16, #tpu.memory_space<vmem>>, vector<32x64xbf16>
    %cst_90 = arith.constant dense<0.000000e+00> : vector<128x64xf32>
    %300 = tpu.matmul %298, %299, %cst_90 {dimension_numbers = #tpu.dot_dimension_numbers<[1], [0], [0], [1], [0, 0, 1, 1], [], []>} : vector<128x32xbf16>, vector<32x64xbf16>, vector<128x64xf32> -> vector<128x64xf32>
    %c376 = arith.constant 376 : index
    %c0_91 = arith.constant 0 : index
    %301 = vector.load %arg3[%c376, %c0_91] : memref<416x128xf32, #tpu.memory_space<vmem>>, vector<1x64xf32>
    %302 = vector.broadcast %301 : vector<1x64xf32> to vector<128x64xf32>
    %303 = arith.addf %300, %302 : vector<128x64xf32>
    %cst_92 = arith.constant 5.000000e-01 : f32
    %304 = vector.broadcast %cst_92 : f32 to vector<128x64xf32>
    %305 = arith.mulf %304, %303 : vector<128x64xf32>
    %cst_93 = arith.constant 4.471500e-02 : f32
    %306 = vector.broadcast %cst_93 : f32 to vector<128x64xf32>
    %307 = arith.mulf %306, %303 : vector<128x64xf32>
    %308 = arith.mulf %307, %303 : vector<128x64xf32>
    %309 = arith.mulf %308, %303 : vector<128x64xf32>
    %310 = arith.addf %303, %309 : vector<128x64xf32>
    %cst_94 = arith.constant 0.797884583 : f32
    %311 = vector.broadcast %cst_94 : f32 to vector<128x64xf32>
    %312 = arith.mulf %311, %310 : vector<128x64xf32>
    %313 = math.tanh %312 : vector<128x64xf32>
    %cst_95 = arith.constant 1.000000e+00 : f32
    %314 = vector.broadcast %cst_95 : f32 to vector<128x64xf32>
    %315 = arith.addf %314, %313 : vector<128x64xf32>
    %316 = arith.mulf %305, %315 : vector<128x64xf32>
    %317 = arith.truncf %316 : vector<128x64xf32> to vector<128x64xbf16>
    %c272_96 = arith.constant 272 : index
    %c0_97 = arith.constant 0 : index
    %318 = vector.load %arg2[%c272_96, %c0_97] : memref<368x128xbf16, #tpu.memory_space<vmem>>, vector<64x32xbf16>
    %cst_98 = arith.constant dense<0.000000e+00> : vector<128x32xf32>
    %319 = tpu.matmul %317, %318, %cst_98 {dimension_numbers = #tpu.dot_dimension_numbers<[1], [0], [0], [1], [0, 0, 1, 1], [], []>} : vector<128x64xbf16>, vector<64x32xbf16>, vector<128x32xf32> -> vector<128x32xf32>
    %c384 = arith.constant 384 : index
    %c0_99 = arith.constant 0 : index
    %320 = vector.load %arg3[%c384, %c0_99] : memref<416x128xf32, #tpu.memory_space<vmem>>, vector<1x32xf32>
    %321 = vector.broadcast %320 : vector<1x32xf32> to vector<128x32xf32>
    %322 = arith.addf %319, %321 : vector<128x32xf32>
    %323 = arith.addf %273, %322 : vector<128x32xf32>
    %c392 = arith.constant 392 : index
    %c0_100 = arith.constant 0 : index
    %324 = vector.load %arg3[%c392, %c0_100] : memref<416x128xf32, #tpu.memory_space<vmem>>, vector<1x32xf32>
    %c400 = arith.constant 400 : index
    %c0_101 = arith.constant 0 : index
    %325 = vector.load %arg3[%c400, %c0_101] : memref<416x128xf32, #tpu.memory_space<vmem>>, vector<1x32xf32>
    %cst_102 = arith.constant dense<0.000000e+00> : vector<128xf32>
    %326 = vector.multi_reduction <add>, %323, %cst_102 [1] : vector<128x32xf32> to vector<128xf32>
    %327 = vector.shape_cast %326 : vector<128xf32> to vector<128x1xf32>
    %cst_103 = arith.constant 3.200000e+01 : f32
    %328 = vector.broadcast %cst_103 : f32 to vector<128x1xf32>
    %329 = arith.divf %327, %328 : vector<128x1xf32>
    %330 = vector.broadcast %329 : vector<128x1xf32> to vector<128x32xf32>
    %331 = arith.subf %323, %330 : vector<128x32xf32>
    %332 = arith.mulf %331, %331 : vector<128x32xf32>
    %cst_104 = arith.constant dense<0.000000e+00> : vector<128xf32>
    %333 = vector.multi_reduction <add>, %332, %cst_104 [1] : vector<128x32xf32> to vector<128xf32>
    %334 = vector.shape_cast %333 : vector<128xf32> to vector<128x1xf32>
    %cst_105 = arith.constant 3.200000e+01 : f32
    %335 = vector.broadcast %cst_105 : f32 to vector<128x1xf32>
    %336 = arith.divf %334, %335 : vector<128x1xf32>
    %337 = vector.broadcast %329 : vector<128x1xf32> to vector<128x32xf32>
    %338 = arith.subf %323, %337 : vector<128x32xf32>
    %cst_106 = arith.constant 9.99999974E-6 : f32
    %339 = vector.broadcast %cst_106 : f32 to vector<128x1xf32>
    %340 = arith.addf %336, %339 : vector<128x1xf32>
    %341 = math.rsqrt %340 : vector<128x1xf32>
    %342 = vector.broadcast %341 : vector<128x1xf32> to vector<128x32xf32>
    %343 = arith.mulf %338, %342 : vector<128x32xf32>
    %344 = vector.broadcast %324 : vector<1x32xf32> to vector<128x32xf32>
    %345 = arith.mulf %343, %344 : vector<128x32xf32>
    %346 = vector.broadcast %325 : vector<1x32xf32> to vector<128x32xf32>
    %347 = arith.addf %345, %346 : vector<128x32xf32>
    %348 = arith.truncf %347 : vector<128x32xf32> to vector<128x32xbf16>
    %c336_107 = arith.constant 336 : index
    %c0_108 = arith.constant 0 : index
    %349 = vector.load %arg2[%c336_107, %c0_108] : memref<368x128xbf16, #tpu.memory_space<vmem>>, vector<32x128xbf16>
    %cst_109 = arith.constant dense<0.000000e+00> : vector<128x128xf32>
    %350 = tpu.matmul %348, %349, %cst_109 {dimension_numbers = #tpu.dot_dimension_numbers<[1], [0], [0], [1], [0, 0, 1, 1], [], []>} : vector<128x32xbf16>, vector<32x128xbf16>, vector<128x128xf32> -> vector<128x128xf32>
    %c408 = arith.constant 408 : index
    %c0_110 = arith.constant 0 : index
    %351 = vector.load %arg3[%c408, %c0_110] : memref<416x128xf32, #tpu.memory_space<vmem>>, vector<1x128xf32>
    %352 = vector.broadcast %351 : vector<1x128xf32> to vector<128x128xf32>
    %353 = arith.addf %350, %352 : vector<128x128xf32>
    %c0_111 = arith.constant 0 : index
    %c0_112 = arith.constant 0 : index
    %354 = vector.load %arg4[%c0_111, %c0_112] : memref<128x128xf32, #tpu.memory_space<vmem>>, vector<128x128xf32>
    tpu.vector_store %arg4[%c0_111, %c0_112], %353 {strides = array<i32>} : memref<128x128xf32, #tpu.memory_space<vmem>>, vector<128x128xf32>,
    return
  }
  func.func @transform_0(%arg0: i32) -> (i32, i32) {
    %c0_i32 = arith.constant 0 : i32
    %c0_i32_0 = arith.constant 0 : i32
    return %arg0, %c0_i32 : i32, i32
  }
  func.func @transform_1(%arg0: i32) -> (i32, i32) {
    %c0_i32 = arith.constant 0 : i32
    %c0_i32_0 = arith.constant 0 : i32
    %c0_i32_1 = arith.constant 0 : i32
    return %c0_i32, %c0_i32_0 : i32, i32
  }
  func.func @transform_2(%arg0: i32) -> (i32, i32) {
    %c0_i32 = arith.constant 0 : i32
    %c0_i32_0 = arith.constant 0 : i32
    %c0_i32_1 = arith.constant 0 : i32
    return %c0_i32, %c0_i32_0 : i32, i32
  }
  func.func @transform_3(%arg0: i32) -> (i32, i32) {
    %c0_i32 = arith.constant 0 : i32
    %c0_i32_0 = arith.constant 0 : i32
    return %arg0, %c0_i32 : i32, i32
  }
}

</mosaic_0001>

<llo_original>
// kernel: tpu_custom_call.1
$region0: #{tpu_custom_call.1}
  #allocation0 [shape = 'u32[]', space=smem, size = 0x4, offset = 0x4, fixed_abs, tag = 'smem constant byte address 0x4 - core index']
  #allocation1 [shape = 'u32[144,128]{1,0:T(1,128)}', space=vmem, size = 0x12000, scoped, tag = 'internal scratch']
  %s0 = inlined_call_operand.vmem [shape: f32[256,16], index: 0, kind: input, shape index: {}]
  %s1 = inlined_call_operand.vmem [shape: bf16[368,128], index: 1, kind: input, shape index: {}]
  %s2 = inlined_call_operand.hbm [shape: f32[416,128], index: 2, kind: input, shape index: {}]
  %s3 = inlined_call_operand.hbm [shape: f32[256,128], index: 3, kind: output, shape index: {}]
  %s4 = sld [smem:[#allocation0]]
  $region49: #{tpu_custom_call.1} parent=0
    _
  %s6 = ssub.s32 1, %s4
  %s7 = scalar_select 0, %s6, %s4
  $region1: #{tpu_custom_call.1} parent=0
    #allocation2 [shape = 'u8[212992]{0}', space=vmem, size = 0x34000, scoped, tag = 'input window, operand 2, single buffered']
    #allocation3 [shape = 's32[2]{0}', space=sflag, size = 0x8, scoped, tag = 'scoped memory for tpu_custom_call.1']
    #allocation4 [shape = 's32[2]{0}', space=sflag, size = 0x8, scoped, tag = 'scoped memory for tpu_custom_call.1']
    #allocation5 [shape = 'u8[131072]{0}', space=vmem, size = 0x20000, scoped, tag = 'output window, operand 0']
    %8 = vsyncpa [#allocation3], 0
    %9 = vsyncpa [#allocation4], 0
    %s10 = scalar_lea.sflag [#allocation4], 1
    %11 = vsyncpa %s10, 0
    loop: start=0, step=1, limit=4
    $region2: #{tpu_custom_call.1} parent=1 // loop_pre_header
      _
    $region3: #{tpu_custom_call.1} parent=1 // loop_header
      %s13 = sphi 0, %s17
      %p14 = scmp.ge.s32.totalorder %s13, 4
      %s23 = sphi 0, %s25
      %s26 = sphi 0, %s23
      %s27 = sphi 0, %s26
      %s43 = sphi 0, %s27
      %s47 = sphi 0, %s47
      %s49 = sphi 0, %s47
      %s50 = sphi 0, %s49
      %s64 = sphi 0, %s50
      %s68 = sphi 0, %s68
      %s70 = sphi 0, %s68
      %s71 = sphi 0, %s70
      %s85 = sphi 0, %s71
      %s91 = sphi 0, %s93
      %s94 = sphi 0, %s91
      %s95 = sphi 0, %s94
      %s111 = sphi 0, %s95
    $region4: #{tpu_custom_call.1} parent=1 // loop_header_branch
      %16 = sbr.rel (%p14) target = $region8
    $region5: #{tpu_custom_call.1} parent=1 // loop_body
      %s18 = ssub.s32 %s13, 1
      %s19 = ssub.s32 %s13, 2
      %s20 = sadd.s32 %s13, 1
      %s21 = ssub.s32 %s13, %s20
      %p22 = scmp.eq.s32.totalorder %s21, 0
      %s24 = sadd.s32 %s23, 1
      %s25 = scalar_select %p22, %s23, %s24
      %p28 = pneg %p22
      %p29 = scmp.eq.s32.totalorder %s13, 1
      %p30 = por %p28, %p29
      %p31 = scmp.ne.s32.totalorder %s23, %s26
      %p32 = scmp.eq.s32.totalorder %s13, 0
      %p33 = por %p31, %p32
      %p34 = scmp.ne.s32.totalorder %s23, %s26
      %p35 = scmp.eq.s32.totalorder %s18, 1
      %p36 = por %p34, %p35
      %p37 = scmp.ne.s32.totalorder %s26, %s27
      %p38 = scmp.eq.s32.totalorder %s18, 0
      %p39 = por %p37, %p38
      %p40 = scmp.ne.s32.totalorder %s26, %s27
      %p41 = scmp.eq.s32.totalorder %s19, 1
      %p42 = por %p40, %p41
      %p44 = scmp.ne.s32.totalorder %s27, %s43
      %p45 = scmp.eq.s32.totalorder %s19, 0
      %p46 = por %p44, %p45
      %s48 = sadd.s32 %s47, 1
      %p51 = scmp.eq.s32.totalorder %s13, 1
      %p52 = scmp.ne.s32.totalorder %s47, %s49
      %p53 = scmp.eq.s32.totalorder %s13, 0
      %p54 = por %p52, %p53
      %p55 = scmp.ne.s32.totalorder %s47, %s49
      %p56 = scmp.eq.s32.totalorder %s18, 1
      %p57 = por %p55, %p56
      %p58 = scmp.ne.s32.totalorder %s49, %s50
      %p59 = scmp.eq.s32.totalorder %s18, 0
      %p60 = por %p58, %p59
      %p61 = scmp.ne.s32.totalorder %s49, %s50
      %p62 = scmp.eq.s32.totalorder %s19, 1
      %p63 = por %p61, %p62
      %p65 = scmp.ne.s32.totalorder %s50, %s64
      %p66 = scmp.eq.s32.totalorder %s19, 0
      %p67 = por %p65, %p66
      %s69 = sadd.s32 %s68, 1
      %p72 = scmp.eq.s32.totalorder %s13, 1
      %p73 = scmp.ne.s32.totalorder %s68, %s70
      %p74 = scmp.eq.s32.totalorder %s13, 0
      %p75 = por %p73, %p74
      %p76 = scmp.ne.s32.totalorder %s68, %s70
      %p77 = scmp.eq.s32.totalorder %s18, 1
      %p78 = por %p76, %p77
      %p79 = scmp.ne.s32.totalorder %s70, %s71
      %p80 = scmp.eq.s32.totalorder %s18, 0
      %p81 = por %p79, %p80
      %p82 = scmp.ne.s32.totalorder %s70, %s71
      %p83 = scmp.eq.s32.totalorder %s19, 1
      %p84 = por %p82, %p83
      %p86 = scmp.ne.s32.totalorder %s71, %s85
      %p87 = scmp.eq.s32.totalorder %s19, 0
      %p88 = por %p86, %p87
      %s89 = ssub.s32 %s13, %s20
      %p90 = scmp.eq.s32.totalorder %s89, 0
      %s92 = sadd.s32 %s91, 1
      %s93 = scalar_select %p90, %s91, %s92
      %p96 = pneg %p90
      %p97 = scmp.eq.s32.totalorder %s13, 1
      %p98 = por %p96, %p97
      %p99 = scmp.ne.s32.totalorder %s91, %s94
      %p100 = scmp.eq.s32.totalorder %s13, 0
      %p101 = por %p99, %p100
      %p102 = scmp.ne.s32.totalorder %s91, %s94
      %p103 = scmp.eq.s32.totalorder %s18, 1
      %p104 = por %p102, %p103
      %p105 = scmp.ne.s32.totalorder %s94, %s95
      %p106 = scmp.eq.s32.totalorder %s18, 0
      %p107 = por %p105, %p106
      %p108 = scmp.ne.s32.totalorder %s94, %s95
      %p109 = scmp.eq.s32.totalorder %s19, 1
      %p110 = por %p108, %p109
      %p112 = scmp.ne.s32.totalorder %s95, %s111
      %p113 = scmp.eq.s32.totalorder %s19, 0
      %p114 = por %p112, %p113
      %p115 = scmp.le.s32.totalorder 1, %s13
      %p116 = scmp.lt.s32.totalorder %s13, 3
      %p117 = pnand %p115, %p116
      %p118 = pneg %p117
      // Predicated region
      $region9: #{tpu_custom_call.1} parent=5 // pred_check
        _
      $region10: #{tpu_custom_call.1} parent=5 // pred_check_branch
        %120 = sbr.rel (%p117) target = $region12
      $region11: #{tpu_custom_call.1} parent=5 // pred_region
        %s121 = ssub.s32 %s13, 1
        // Predicated region
        $region13: #{tpu_custom_call.1} parent=11 // pred_check
          %p122 = pneg %p60
        $region14: #{tpu_custom_call.1} parent=11 // pred_check_branch
          %124 = sbr.rel (%p122) target = $region16
        $region15: #{tpu_custom_call.1} parent=11 // pred_region
          _
        $region16: #{tpu_custom_call.1} parent=11 // pred_fallthru
          _
        // Predicated region
        $region17: #{tpu_custom_call.1} parent=11 // pred_check
          %p125 = pneg %p81
        $region18: #{tpu_custom_call.1} parent=11 // pred_check_branch
          %127 = sbr.rel (%p125) target = $region20
        $region19: #{tpu_custom_call.1} parent=11 // pred_region
          %s129 = ssub.s32 6656, 6656
          %130 = vsyncadd [#allocation3], %s129
          %s131 = sshll.u32 [#allocation2], 4
          %s132 = int_to_ptr.vmem [resolvable:$true] %s131
          %137 = dma.hbm_to_vmem [thread:$0]  %s2, 6656, %s132, [#allocation3], 128, 128, 8
        $region20: #{tpu_custom_call.1} parent=11 // pred_fallthru
          _
      $region12: #{tpu_custom_call.1} parent=5 // pred_fallthru
        _
      %p138 = scmp.lt.s32.totalorder %s13, 2
      // Predicated region
      $region21: #{tpu_custom_call.1} parent=5 // pred_check
        %p139 = pneg %p138
      $region22: #{tpu_custom_call.1} parent=5 // pred_check_branch
        %141 = sbr.rel (%p139) target = $region24
      $region23: #{tpu_custom_call.1} parent=5 // pred_region
        // Predicated region
        $region25: #{tpu_custom_call.1} parent=23 // pred_check
          %p142 = pneg %p33
        $region26: #{tpu_custom_call.1} parent=23 // pred_check_branch
          %144 = sbr.rel (%p142) target = $region28
        $region27: #{tpu_custom_call.1} parent=23 // pred_region
          %s145 = smul.u32 16, %s13
          %p146 = scmp.lt.s32.totalorder %s145, 31
          %s147 = scalar_select %p146, %s145, 31
          %s148 = smul.addr %s147, 8
          %s149 = scalar_lea.vmem %s0, %s148
          %s150 = smul.u32 16, %s13
        $region28: #{tpu_custom_call.1} parent=23 // pred_fallthru
          _
      $region24: #{tpu_custom_call.1} parent=5 // pred_fallthru
        _
      %p151 = scmp.le.s32.totalorder 1, %s13
      %p152 = scmp.lt.s32.totalorder %s13, 3
      %p153 = pnand %p151, %p152
      %p154 = pneg %p153
      // Predicated region
      $region29: #{tpu_custom_call.1} parent=5 // pred_check
        _
      $region30: #{tpu_custom_call.1} parent=5 // pred_check_branch
        %156 = sbr.rel (%p153) target = $region32
      $region31: #{tpu_custom_call.1} parent=5 // pred_region
        %s157 = ssub.s32 %s13, 1
        // Predicated region
        $region33: #{tpu_custom_call.1} parent=31 // pred_check
          %p158 = pneg %p81
        $region34: #{tpu_custom_call.1} parent=31 // pred_check_branch
          %160 = sbr.rel (%p158) target = $region36
        $region35: #{tpu_custom_call.1} parent=31 // pred_region
          %161 = dma.done [#allocation3], 6656
        $region36: #{tpu_custom_call.1} parent=31 // pred_fallthru
          _
        %s162 = smul.u32 16, %s18
        %p163 = scmp.lt.s32.totalorder %s162, 31
        %s164 = scalar_select %p163, %s162, 31
        %s165 = smul.addr %s164, 8
        %s166 = scalar_lea.vmem %s0, %s165
        %p167 = pneg %p39
        %p168 = pneg %p36
        %p169 = pneg %p60
        %p170 = pneg %p57
        %p171 = pneg %p81
        %p172 = pneg %p78
        %p173 = pneg %p107
        %p174 = pneg %p104
        %s175 = sand.u32 %s94, 1
        %s176 = scalar_lea.sflag [#allocation4], %s175
        %s177 = sand.u32 %s94, 1
        %s178 = smul.addr %s177, 128
        %s179 = scalar_lea.vmem [#allocation5], %s178
        %s180 = smul.u32 16, %s18
        %p181 = scmp.lt.s32.totalorder %s180, 31
        %s182 = scalar_select %p181, %s180, 31
        %s183 = smul.addr %s182, 8
        %s184 = scalar_lea.vmem %s0, %s183
        %s185 = smul.u32 16, %s18
        %s186 = smul.u32 16, %s18
        %v188 = vld [vmem:[%s184] sm:$0xff]
        %v189 = vld [vmem:[%s184 + $0x8] sm:$0xff]
        %v190 = vld [vmem:[%s184 + $0x10] sm:$0xff]
        %v191 = vld [vmem:[%s184 + $0x18] sm:$0xff]
        %v192 = vld [vmem:[%s184 + $0x20] sm:$0xff]
        %v193 = vld [vmem:[%s184 + $0x28] sm:$0xff]
        %v194 = vld [vmem:[%s184 + $0x30] sm:$0xff]
        %v195 = vld [vmem:[%s184 + $0x38] sm:$0xff]
        %v196 = vld [vmem:[%s184 + $0x40] sm:$0xff]
        %v197 = vld [vmem:[%s184 + $0x48] sm:$0xff]
        %v198 = vld [vmem:[%s184 + $0x50] sm:$0xff]
        %v199 = vld [vmem:[%s184 + $0x58] sm:$0xff]
        %v200 = vld [vmem:[%s184 + $0x60] sm:$0xff]
        %v201 = vld [vmem:[%s184 + $0x68] sm:$0xff]
        %v202 = vld [vmem:[%s184 + $0x70] sm:$0xff]
        %v203 = vld [vmem:[%s184 + $0x78] sm:$0xff]
        %v204 = vpack.c.bf16 %v189, %v188
        %v205 = vpack.c.bf16 %v191, %v190
        %v206 = vpack.c.bf16 %v193, %v192
        %v207 = vpack.c.bf16 %v195, %v194
        %v208 = vpack.c.bf16 %v197, %v196
        %v209 = vpack.c.bf16 %v199, %v198
        %v210 = vpack.c.bf16 %v201, %v200
        %v211 = vpack.c.bf16 %v203, %v202
        %v212 = vld [vmem:[%s1] sm:$0xf]
        %v213 = vld [vmem:[%s1 + $0x4] sm:$0xf]
        %v214 = vld [vmem:[#allocation2 + $0x100] sm:$0x1]
        %v215 = vlaneseq
        %v216 = vshrl.u32 %v215, 7
        %v217 = vsub.s32 0, %v216
        %v218 = vrot.slane %v214, %v217
        %v221 = vunpack.c.l.b16 %v212
        %v222 = vunpack.c.l.b16 %v213
        %v223 = vpack.c.b16 %v222, %v221
        %vm225 = vcmask 130048
        %v227 = vsel %vm225, %v204, 0
        %v230 = vsel %vm225, %v205, 0
        %v233 = vsel %vm225, %v206, 0
        %v236 = vsel %vm225, %v207, 0
        %v239 = vsel %vm225, %v208, 0
        %v242 = vsel %vm225, %v209, 0
        %v245 = vsel %vm225, %v210, 0
        %v248 = vsel %vm225, %v211, 0
        %250 = vmatprep.subr.bf16.mxu0 0
        %251 = vmatpush1.bf16.msra.mxu0 %v223
        %252 = vmatprep.subr.bf16.mxu0 0
        %253 = vmatpush1.bf16.msra.mxu0 0
        %254 = vmatprep.subr.bf16.mxu0 0
        %255 = vmatpush1.bf16.msra.mxu0 0
        %256 = vmatprep.subr.bf16.mxu0 0
        %257 = vmatpush1.bf16.msra.mxu0 0
        %258 = vmatprep.subr.bf16.mxu0 0
        %259 = vmatpush1.bf16.msra.mxu0 0
        %260 = vmatprep.subr.bf16.mxu0 0
        %261 = vmatpush1.bf16.msra.mxu0 0
        %262 = vmatprep.subr.bf16.mxu0 0
        %263 = vmatpush1.bf16.msra.mxu0 0
        %264 = vmatprep.subr.bf16.mxu0 0
        %265 = vmatpush1.bf16.msra.mxu0 0
        %266 = vmatprep.subr.bf16.mxu0 0
        %267 = vmatpush1.bf16.msra.mxu0 0
        %268 = vmatprep.subr.bf16.mxu0 0
        %269 = vmatpush1.bf16.msra.mxu0 0
        %270 = vmatprep.subr.bf16.mxu0 0
        %271 = vmatpush1.bf16.msra.mxu0 0
        %272 = vmatprep.subr.bf16.mxu0 0
        %273 = vmatpush1.bf16.msra.mxu0 0
        %274 = vmatprep.subr.bf16.mxu0 0
        %275 = vmatpush1.bf16.msra.mxu0 0
        %276 = vmatprep.subr.bf16.mxu0 0
        %277 = vmatpush1.bf16.msra.mxu0 0
        %278 = vmatprep.subr.bf16.mxu0 0
        %279 = vmatpush1.bf16.msra.mxu0 0
        %280 = vmatprep.subr.bf16.mxu0 0
        %281 = vmatpush1.bf16.msra.mxu0 0
        %282 = vmatprep.mubr.bf16.mxu0 0
        %283 = vmatmul.mubr.bf16.gmra.mrb[0].mxu0 %v227
        %v284 = vpop.f32.mrb[0].mxu0
        %v285 = vadd.f32 %v218, %v284
        %v286 = vpop.f32.mrb[0].mxu0
        %v287 = vpop.f32.mrb[0].mxu0
        %v288 = vadd.f32 %v218, %v287
        %v289 = vpop.f32.mrb[0].mxu0
        %290 = vmatprep.mubr.bf16.mxu0 0
        %291 = vmatmul.mubr.bf16.gmra.mrb[0].mxu0 %v230
        %v292 = vpop.f32.mrb[0].mxu0
        %v293 = vadd.f32 %v218, %v292
        %v294 = vpop.f32.mrb[0].mxu0
        %v295 = vpop.f32.mrb[0].mxu0
        %v296 = vadd.f32 %v218, %v295
        %v297 = vpop.f32.mrb[0].mxu0
        %298 = vmatprep.mubr.bf16.mxu0 0
        %299 = vmatmul.mubr.bf16.gmra.mrb[0].mxu0 %v233
        %v300 = vpop.f32.mrb[0].mxu0
        %v301 = vadd.f32 %v218, %v300
        %v302 = vpop.f32.mrb[0].mxu0
        %v303 = vpop.f32.mrb[0].mxu0
        %v304 = vadd.f32 %v218, %v303
        %v305 = vpop.f32.mrb[0].mxu0
        %306 = vmatprep.mubr.bf16.mxu0 0
        %307 = vmatmul.mubr.bf16.gmra.mrb[0].mxu0 %v236
        %v308 = vpop.f32.mrb[0].mxu0
        %v309 = vadd.f32 %v218, %v308
        %v310 = vpop.f32.mrb[0].mxu0
        %v311 = vpop.f32.mrb[0].mxu0
        %v312 = vadd.f32 %v218, %v311
        %v313 = vpop.f32.mrb[0].mxu0
        %314 = vmatprep.mubr.bf16.mxu0 0
        %315 = vmatmul.mubr.bf16.gmra.mrb[0].mxu0 %v239
        %v316 = vpop.f32.mrb[0].mxu0
        %v317 = vadd.f32 %v218, %v316
        %v318 = vpop.f32.mrb[0].mxu0
        %v319 = vpop.f32.mrb[0].mxu0
        %v320 = vadd.f32 %v218, %v319
        %v321 = vpop.f32.mrb[0].mxu0
        %322 = vmatprep.mubr.bf16.mxu0 0
        %323 = vmatmul.mubr.bf16.gmra.mrb[0].mxu0 %v242
        %v324 = vpop.f32.mrb[0].mxu0
        %v325 = vadd.f32 %v218, %v324
        %v326 = vpop.f32.mrb[0].mxu0
        %v327 = vpop.f32.mrb[0].mxu0
        %v328 = vadd.f32 %v218, %v327
        %v329 = vpop.f32.mrb[0].mxu0
        %330 = vmatprep.mubr.bf16.mxu0 0
        %331 = vmatmul.mubr.bf16.gmra.mrb[0].mxu0 %v245
        %v332 = vpop.f32.mrb[0].mxu0
        %v333 = vadd.f32 %v218, %v332
        %v334 = vpop.f32.mrb[0].mxu0
        %v335 = vpop.f32.mrb[0].mxu0
        %v336 = vadd.f32 %v218, %v335
        %v337 = vpop.f32.mrb[0].mxu0
        %338 = vmatprep.mubr.bf16.mxu0 0
        %339 = vmatmul.mubr.bf16.gmra.mrb[0].mxu0 %v248
        %v340 = vpop.f32.mrb[0].mxu0
        %v341 = vadd.f32 %v218, %v340
        %v342 = vpop.f32.mrb[0].mxu0
        %v343 = vpop.f32.mrb[0].mxu0
        %v344 = vadd.f32 %v218, %v343
        %v345 = vpop.f32.mrb[0].mxu0
        %346 = vdwg.mxu0
        %v347 = vld [vmem:[#allocation2] sm:$0xff]
        %v348 = vld [vmem:[#allocation2 + $0x8] sm:$0xff]
        %v349 = vld [vmem:[#allocation2 + $0x10] sm:$0xff]
        %v350 = vld [vmem:[#allocation2 + $0x18] sm:$0xff]
        %v351 = vld [vmem:[#allocation2 + $0x20] sm:$0xff]
        %v352 = vld [vmem:[#allocation2 + $0x28] sm:$0xff]
        %v353 = vld [vmem:[#allocation2 + $0x30] sm:$0xff]
        %v354 = vld [vmem:[#allocation2 + $0x38] sm:$0xff]
        %v355 = vld [vmem:[#allocation2 + $0x40] sm:$0xff]
        %v356 = vld [vmem:[#allocation2 + $0x48] sm:$0xff]
        %v357 = vld [vmem:[#allocation2 + $0x50] sm:$0xff]
        %v358 = vld [vmem:[#allocation2 + $0x58] sm:$0xff]
        %v359 = vld [vmem:[#allocation2 + $0x60] sm:$0xff]
        %v360 = vld [vmem:[#allocation2 + $0x68] sm:$0xff]
        %v361 = vld [vmem:[#allocation2 + $0x70] sm:$0xff]
        %v362 = vld [vmem:[#allocation2 + $0x78] sm:$0xff]
        %v363 = vadd.f32 %v285, %v347
        %v364 = vadd.f32 %v288, %v348
        %v365 = vadd.f32 %v293, %v349
        %v366 = vadd.f32 %v296, %v350
        %v367 = vadd.f32 %v301, %v351
        %v368 = vadd.f32 %v304, %v352
        %v369 = vadd.f32 %v309, %v353
        %v370 = vadd.f32 %v312, %v354
        %v371 = vadd.f32 %v317, %v355
        %v372 = vadd.f32 %v320, %v356
        %v373 = vadd.f32 %v325, %v357
        %v374 = vadd.f32 %v328, %v358
        %v375 = vadd.f32 %v333, %v359
        %v376 = vadd.f32 %v336, %v360
        %v377 = vadd.f32 %v341, %v361
        %v378 = vadd.f32 %v344, %v362
        %v379 = vld [vmem:[#allocation2 + $0x80] sm:$0xff]
        %v380 = vld [vmem:[#allocation2 + $0x88] sm:$0xff]
        %v381 = vld [vmem:[#allocation2 + $0x90] sm:$0xff]
        %v382 = vld [vmem:[#allocation2 + $0x98] sm:$0xff]
        %v383 = vld [vmem:[#allocation2 + $0xa0] sm:$0xff]
        %v384 = vld [vmem:[#allocation2 + $0xa8] sm:$0xff]
        %v385 = vld [vmem:[#allocation2 + $0xb0] sm:$0xff]
        %v386 = vld [vmem:[#allocation2 + $0xb8] sm:$0xff]
        %v387 = vld [vmem:[#allocation2 + $0xc0] sm:$0xff]
        %v388 = vld [vmem:[#allocation2 + $0xc8] sm:$0xff]
        %v389 = vld [vmem:[#allocation2 + $0xd0] sm:$0xff]
        %v390 = vld [vmem:[#allocation2 + $0xd8] sm:$0xff]
        %v391 = vld [vmem:[#allocation2 + $0xe0] sm:$0xff]
        %v392 = vld [vmem:[#allocation2 + $0xe8] sm:$0xff]
        %v393 = vld [vmem:[#allocation2 + $0xf0] sm:$0xff]
        %v394 = vld [vmem:[#allocation2 + $0xf8] sm:$0xff]
        %v395 = vld [vmem:[#allocation2 + $0x108] sm:$0x1]
        %v396 = vld [vmem:[#allocation2 + $0x110] sm:$0x1]
        %vm397 = vcmask 261120
        %v398 = vsel %vm397, %v363, 0.0
        %399 = vadd.xlane.f32.xlu0 %v398
        %v400 = vpop.xlane.xlu0 %399
        %v401 = vsel %vm397, %v364, 0.0
        %402 = vadd.xlane.f32.xlu0 %v401
        %v403 = vpop.xlane.xlu0 %402
        %v404 = vsel %vm397, %v365, 0.0
        %405 = vadd.xlane.f32.xlu0 %v404
        %v406 = vpop.xlane.xlu0 %405
        %v407 = vsel %vm397, %v366, 0.0
        %408 = vadd.xlane.f32.xlu0 %v407
        %v409 = vpop.xlane.xlu0 %408
        %v410 = vsel %vm397, %v367, 0.0
        %411 = vadd.xlane.f32.xlu0 %v410
        %v412 = vpop.xlane.xlu0 %411
        %v413 = vsel %vm397, %v368, 0.0
        %414 = vadd.xlane.f32.xlu0 %v413
        %v415 = vpop.xlane.xlu0 %414
        %v416 = vsel %vm397, %v369, 0.0
        %417 = vadd.xlane.f32.xlu0 %v416
        %v418 = vpop.xlane.xlu0 %417
        %v419 = vsel %vm397, %v370, 0.0
        %420 = vadd.xlane.f32.xlu0 %v419
        %v421 = vpop.xlane.xlu0 %420
        %v422 = vsel %vm397, %v371, 0.0
        %423 = vadd.xlane.f32.xlu0 %v422
        %v424 = vpop.xlane.xlu0 %423
        %v425 = vsel %vm397, %v372, 0.0
        %426 = vadd.xlane.f32.xlu0 %v425
        %v427 = vpop.xlane.xlu0 %426
        %v428 = vsel %vm397, %v373, 0.0
        %429 = vadd.xlane.f32.xlu0 %v428
        %v430 = vpop.xlane.xlu0 %429
        %v431 = vsel %vm397, %v374, 0.0
        %432 = vadd.xlane.f32.xlu0 %v431
        %v433 = vpop.xlane.xlu0 %432
        %v434 = vsel %vm397, %v375, 0.0
        %435 = vadd.xlane.f32.xlu0 %v434
        %v436 = vpop.xlane.xlu0 %435
        %v437 = vsel %vm397, %v376, 0.0
        %438 = vadd.xlane.f32.xlu0 %v437
        %v439 = vpop.xlane.xlu0 %438
        %v440 = vsel %vm397, %v377, 0.0
        %441 = vadd.xlane.f32.xlu0 %v440
        %v442 = vpop.xlane.xlu0 %441
        %v443 = vsel %vm397, %v378, 0.0
        %444 = vadd.xlane.f32.xlu0 %v443
        %v445 = vpop.xlane.xlu0 %444
        %v446 = vrcp.pop 32.0
        %v447 = vmul.f32 %v400, %v446
        %v448 = vmul.f32 %v403, %v446
        %v449 = vmul.f32 %v406, %v446
        %v450 = vmul.f32 %v409, %v446
        %v451 = vmul.f32 %v412, %v446
        %v452 = vmul.f32 %v415, %v446
        %v453 = vmul.f32 %v418, %v446
        %v454 = vmul.f32 %v421, %v446
        %v455 = vmul.f32 %v424, %v446
        %v456 = vmul.f32 %v427, %v446
        %v457 = vmul.f32 %v430, %v446
        %v458 = vmul.f32 %v433, %v446
        %v459 = vmul.f32 %v436, %v446
        %v460 = vmul.f32 %v439, %v446
        %v461 = vmul.f32 %v442, %v446
        %v462 = vmul.f32 %v445, %v446
        %v463 = vsub.f32 %v363, %v447
        %v464 = vsub.f32 %v364, %v448
        %v465 = vsub.f32 %v365, %v449
        %v466 = vsub.f32 %v366, %v450
        %v467 = vsub.f32 %v367, %v451
        %v468 = vsub.f32 %v368, %v452
        %v469 = vsub.f32 %v369, %v453
        %v470 = vsub.f32 %v370, %v454
        %v471 = vsub.f32 %v371, %v455
        %v472 = vsub.f32 %v372, %v456
        %v473 = vsub.f32 %v373, %v457
        %v474 = vsub.f32 %v374, %v458
        %v475 = vsub.f32 %v375, %v459
        %v476 = vsub.f32 %v376, %v460
        %v477 = vsub.f32 %v377, %v461
        %v478 = vsub.f32 %v378, %v462
        %v479 = vmul.f32 %v463, %v463
        %v480 = vmul.f32 %v464, %v464
        %v481 = vmul.f32 %v465, %v465
        %v482 = vmul.f32 %v466, %v466
        %v483 = vmul.f32 %v467, %v467
        %v484 = vmul.f32 %v468, %v468
        %v485 = vmul.f32 %v469, %v469
        %v486 = vmul.f32 %v470, %v470
        %v487 = vmul.f32 %v471, %v471
        %v488 = vmul.f32 %v472, %v472
        %v489 = vmul.f32 %v473, %v473
        %v490 = vmul.f32 %v474, %v474
        %v491 = vmul.f32 %v475, %v475
        %v492 = vmul.f32 %v476, %v476
        %v493 = vmul.f32 %v477, %v477
        %v494 = vmul.f32 %v478, %v478
        %v495 = vsel %vm397, %v479, 0.0
        %496 = vadd.xlane.f32.xlu0 %v495
        %v497 = vpop.xlane.xlu0 %496
        %v498 = vsel %vm397, %v480, 0.0
        %499 = vadd.xlane.f32.xlu0 %v498
        %v500 = vpop.xlane.xlu0 %499
        %v501 = vsel %vm397, %v481, 0.0
        %502 = vadd.xlane.f32.xlu0 %v501
        %v503 = vpop.xlane.xlu0 %502
        %v504 = vsel %vm397, %v482, 0.0
        %505 = vadd.xlane.f32.xlu0 %v504
        %v506 = vpop.xlane.xlu0 %505
        %v507 = vsel %vm397, %v483, 0.0
        %508 = vadd.xlane.f32.xlu0 %v507
        %v509 = vpop.xlane.xlu0 %508
        %v510 = vsel %vm397, %v484, 0.0
        %511 = vadd.xlane.f32.xlu0 %v510
        %v512 = vpop.xlane.xlu0 %511
        %v513 = vsel %vm397, %v485, 0.0
        %514 = vadd.xlane.f32.xlu0 %v513
        %v515 = vpop.xlane.xlu0 %514
        %v516 = vsel %vm397, %v486, 0.0
        %517 = vadd.xlane.f32.xlu0 %v516
        %v518 = vpop.xlane.xlu0 %517
        %v519 = vsel %vm397, %v487, 0.0
        %520 = vadd.xlane.f32.xlu0 %v519
        %v521 = vpop.xlane.xlu0 %520
        %v522 = vsel %vm397, %v488, 0.0
        %523 = vadd.xlane.f32.xlu0 %v522
        %v524 = vpop.xlane.xlu0 %523
        %v525 = vsel %vm397, %v489, 0.0
        %526 = vadd.xlane.f32.xlu0 %v525
        %v527 = vpop.xlane.xlu0 %526
        %v528 = vsel %vm397, %v490, 0.0
        %529 = vadd.xlane.f32.xlu0 %v528
        %v530 = vpop.xlane.xlu0 %529
        %v531 = vsel %vm397, %v491, 0.0
        %532 = vadd.xlane.f32.xlu0 %v531
        %v533 = vpop.xlane.xlu0 %532
        %v534 = vsel %vm397, %v492, 0.0
        %535 = vadd.xlane.f32.xlu0 %v534
        %v536 = vpop.xlane.xlu0 %535
        %v537 = vsel %vm397, %v493, 0.0
        %538 = vadd.xlane.f32.xlu0 %v537
        %v539 = vpop.xlane.xlu0 %538
        %v540 = vsel %vm397, %v494, 0.0
        %541 = vadd.xlane.f32.xlu0 %v540
        %v542 = vpop.xlane.xlu0 %541
        %v543 = vmul.f32 %v497, %v446
        %v544 = vmul.f32 %v500, %v446
        %v545 = vmul.f32 %v503, %v446
        %v546 = vmul.f32 %v506, %v446
        %v547 = vmul.f32 %v509, %v446
        %v548 = vmul.f32 %v512, %v446
        %v549 = vmul.f32 %v515, %v446
        %v550 = vmul.f32 %v518, %v446
        %v551 = vmul.f32 %v521, %v446
        %v552 = vmul.f32 %v524, %v446
        %v553 = vmul.f32 %v527, %v446
        %v554 = vmul.f32 %v530, %v446
        %v555 = vmul.f32 %v533, %v446
        %v556 = vmul.f32 %v536, %v446
        %v557 = vmul.f32 %v539, %v446
        %v558 = vmul.f32 %v542, %v446
        %v559 = vadd.f32 %v543, 1e-05
        %v560 = vadd.f32 %v544, 1e-05
        %v561 = vadd.f32 %v545, 1e-05
        %v562 = vadd.f32 %v546, 1e-05
        %v563 = vadd.f32 %v547, 1e-05
        %v564 = vadd.f32 %v548, 1e-05
        %v565 = vadd.f32 %v549, 1e-05
        %v566 = vadd.f32 %v550, 1e-05
        %v567 = vadd.f32 %v551, 1e-05
        %v568 = vadd.f32 %v552, 1e-05
        %v569 = vadd.f32 %v553, 1e-05
        %v570 = vadd.f32 %v554, 1e-05
        %v571 = vadd.f32 %v555, 1e-05
        %v572 = vadd.f32 %v556, 1e-05
        %v573 = vadd.f32 %v557, 1e-05
        %v574 = vadd.f32 %v558, 1e-05
        %v575 = vrsqrt.pop %v559
        %v576 = vrsqrt.pop %v560
        %v577 = vrsqrt.pop %v561
        %v578 = vrsqrt.pop %v562
        %v579 = vrsqrt.pop %v563
        %v580 = vrsqrt.pop %v564
        %v581 = vrsqrt.pop %v565
        %v582 = vrsqrt.pop %v566
        %v583 = vrsqrt.pop %v567
        %v584 = vrsqrt.pop %v568
        %v585 = vrsqrt.pop %v569
        %v586 = vrsqrt.pop %v570
        %v587 = vrsqrt.pop %v571
        %v588 = vrsqrt.pop %v572
        %v589 = vrsqrt.pop %v573
        %v590 = vrsqrt.pop %v574
        %v591 = vmul.f32 %v463, %v575
        %v592 = vmul.f32 %v464, %v576
        %v593 = vmul.f32 %v465, %v577
        %v594 = vmul.f32 %v466, %v578
        %v595 = vmul.f32 %v467, %v579
        %v596 = vmul.f32 %v468, %v580
        %v597 = vmul.f32 %v469, %v581
        %v598 = vmul.f32 %v470, %v582
        %v599 = vmul.f32 %v471, %v583
        %v600 = vmul.f32 %v472, %v584
        %v601 = vmul.f32 %v473, %v585
        %v602 = vmul.f32 %v474, %v586
        %v603 = vmul.f32 %v475, %v587
        %v604 = vmul.f32 %v476, %v588
        %v605 = vmul.f32 %v477, %v589
        %v606 = vmul.f32 %v478, %v590
        %v607 = vlaneseq
        %v608 = vshrl.u32 %v607, 7
        %v609 = vsub.s32 0, %v608
        %v610 = vrot.slane %v395, %v609
        %v611 = vmul.f32 %v591, %v610
        %v612 = vmul.f32 %v592, %v610
        %v613 = vmul.f32 %v593, %v610
        %v614 = vmul.f32 %v594, %v610
        %v615 = vmul.f32 %v595, %v610
        %v616 = vmul.f32 %v596, %v610
        %v617 = vmul.f32 %v597, %v610
        %v618 = vmul.f32 %v598, %v610
        %v619 = vmul.f32 %v599, %v610
        %v620 = vmul.f32 %v600, %v610
        %v621 = vmul.f32 %v601, %v610
        %v622 = vmul.f32 %v602, %v610
        %v623 = vmul.f32 %v603, %v610
        %v624 = vmul.f32 %v604, %v610
        %v625 = vmul.f32 %v605, %v610
        %v626 = vmul.f32 %v606, %v610
        %v627 = vlaneseq
        %v628 = vshrl.u32 %v627, 7
        %v629 = vsub.s32 0, %v628
        %v630 = vrot.slane %v396, %v629
        %v631 = vadd.f32 %v611, %v630
        %v632 = vadd.f32 %v612, %v630
        %v633 = vadd.f32 %v613, %v630
        %v634 = vadd.f32 %v614, %v630
        %v635 = vadd.f32 %v615, %v630
        %v636 = vadd.f32 %v616, %v630
        %v637 = vadd.f32 %v617, %v630
        %v638 = vadd.f32 %v618, %v630
        %v639 = vadd.f32 %v619, %v630
        %v640 = vadd.f32 %v620, %v630
        %v641 = vadd.f32 %v621, %v630
        %v642 = vadd.f32 %v622, %v630
        %v643 = vadd.f32 %v623, %v630
        %v644 = vadd.f32 %v624, %v630
        %v645 = vadd.f32 %v625, %v630
        %v646 = vadd.f32 %v626, %v630
        %v647 = vpack.c.bf16 %v632, %v631
        %v648 = vpack.c.bf16 %v634, %v633
        %v649 = vpack.c.bf16 %v636, %v635
        %v650 = vpack.c.bf16 %v638, %v637
        %v651 = vpack.c.bf16 %v640, %v639
        %v652 = vpack.c.bf16 %v642, %v641
        %v653 = vpack.c.bf16 %v644, %v643
        %v654 = vpack.c.bf16 %v646, %v645
        %v655 = vld [vmem:[%s1 + $0x8] sm:$0xf]
        %v656 = vld [vmem:[%s1 + $0xc] sm:$0xf]
        %v657 = vld [vmem:[%s1 + $0x10] sm:$0xf]
        %v658 = vld [vmem:[%s1 + $0x14] sm:$0xf]
        %v659 = vld [vmem:[#allocation2 + $0x118] sm:$0x1]
        %v660 = vlaneseq
        %v661 = vshrl.u32 %v660, 7
        %v662 = vsub.s32 0, %v661
        %v663 = vrot.slane %v659, %v662
        %v668 = vunpack.c.l.b16 %v655
        %v669 = vunpack.c.l.b16 %v656
        %v670 = vunpack.c.l.b16 %v657
        %v671 = vunpack.c.l.b16 %v658
        %v672 = vpack.c.b16 %v669, %v668
        %v673 = vpack.c.b16 %v671, %v670
        %v677 = vsel %vm397, %v647, 0
        %v680 = vsel %vm397, %v648, 0
        %v683 = vsel %vm397, %v649, 0
        %v686 = vsel %vm397, %v650, 0
        %v689 = vsel %vm397, %v651, 0
        %v692 = vsel %vm397, %v652, 0
        %v695 = vsel %vm397, %v653, 0
        %v698 = vsel %vm397, %v654, 0
        %700 = vmatprep.subr.bf16.mxu0 0
        %701 = vmatpush1.bf16.msra.mxu0 %v672
        %702 = vmatprep.subr.bf16.mxu0 0
        %703 = vmatpush1.bf16.msra.mxu0 %v673
        %704 = vmatprep.subr.bf16.mxu0 0
        %705 = vmatpush1.bf16.msra.mxu0 0
        %706 = vmatprep.subr.bf16.mxu0 0
        %707 = vmatpush1.bf16.msra.mxu0 0
        %708 = vmatprep.subr.bf16.mxu0 0
        %709 = vmatpush1.bf16.msra.mxu0 0
        %710 = vmatprep.subr.bf16.mxu0 0
        %711 = vmatpush1.bf16.msra.mxu0 0
        %712 = vmatprep.subr.bf16.mxu0 0
        %713 = vmatpush1.bf16.msra.mxu0 0
        %714 = vmatprep.subr.bf16.mxu0 0
        %715 = vmatpush1.bf16.msra.mxu0 0
        %716 = vmatprep.subr.bf16.mxu0 0
        %717 = vmatpush1.bf16.msra.mxu0 0
        %718 = vmatprep.subr.bf16.mxu0 0
        %719 = vmatpush1.bf16.msra.mxu0 0
        %720 = vmatprep.subr.bf16.mxu0 0
        %721 = vmatpush1.bf16.msra.mxu0 0
        %722 = vmatprep.subr.bf16.mxu0 0
        %723 = vmatpush1.bf16.msra.mxu0 0
        %724 = vmatprep.subr.bf16.mxu0 0
        %725 = vmatpush1.bf16.msra.mxu0 0
        %726 = vmatprep.subr.bf16.mxu0 0
        %727 = vmatpush1.bf16.msra.mxu0 0
        %728 = vmatprep.subr.bf16.mxu0 0
        %729 = vmatpush1.bf16.msra.mxu0 0
        %730 = vmatprep.subr.bf16.mxu0 0
        %731 = vmatpush1.bf16.msra.mxu0 0
        %732 = vmatprep.mubr.bf16.mxu0 0
        %733 = vmatmul.mubr.bf16.gmra.mrb[0].mxu0 %v677
        %v734 = vpop.f32.mrb[0].mxu0
        %v735 = vadd.f32 %v663, %v734
        %v736 = vpop.f32.mrb[0].mxu0
        %v737 = vpop.f32.mrb[0].mxu0
        %v738 = vadd.f32 %v663, %v737
        %v739 = vpop.f32.mrb[0].mxu0
        %740 = vmatprep.mubr.bf16.mxu0 0
        %741 = vmatmul.mubr.bf16.gmra.mrb[0].mxu0 %v680
        %v742 = vpop.f32.mrb[0].mxu0
        %v743 = vadd.f32 %v663, %v742
        %v744 = vpop.f32.mrb[0].mxu0
        %v745 = vpop.f32.mrb[0].mxu0
        %v746 = vadd.f32 %v663, %v745
        %v747 = vpop.f32.mrb[0].mxu0
        %748 = vmatprep.mubr.bf16.mxu0 0
        %749 = vmatmul.mubr.bf16.gmra.mrb[0].mxu0 %v683
        %v750 = vpop.f32.mrb[0].mxu0
        %v751 = vadd.f32 %v663, %v750
        %v752 = vpop.f32.mrb[0].mxu0
        %v753 = vpop.f32.mrb[0].mxu0
        %v754 = vadd.f32 %v663, %v753
        %v755 = vpop.f32.mrb[0].mxu0
        %756 = vmatprep.mubr.bf16.mxu0 0
        %757 = vmatmul.mubr.bf16.gmra.mrb[0].mxu0 %v686
        %v758 = vpop.f32.mrb[0].mxu0
        %v759 = vadd.f32 %v663, %v758
        %v760 = vpop.f32.mrb[0].mxu0
        %v761 = vpop.f32.mrb[0].mxu0
        %v762 = vadd.f32 %v663, %v761
        %v763 = vpop.f32.mrb[0].mxu0
        %764 = vmatprep.mubr.bf16.mxu0 0
        %765 = vmatmul.mubr.bf16.gmra.mrb[0].mxu0 %v689
        %v766 = vpop.f32.mrb[0].mxu0
        %v767 = vadd.f32 %v663, %v766
        %v768 = vpop.f32.mrb[0].mxu0
        %v769 = vpop.f32.mrb[0].mxu0
        %v770 = vadd.f32 %v663, %v769
        %v771 = vpop.f32.mrb[0].mxu0
        %772 = vmatprep.mubr.bf16.mxu0 0
        %773 = vmatmul.mubr.bf16.gmra.mrb[0].mxu0 %v692
        %v774 = vpop.f32.mrb[0].mxu0
        %v775 = vadd.f32 %v663, %v774
        %v776 = vpop.f32.mrb[0].mxu0
        %v777 = vpop.f32.mrb[0].mxu0
        %v778 = vadd.f32 %v663, %v777
        %v779 = vpop.f32.mrb[0].mxu0
        %780 = vmatprep.mubr.bf16.mxu0 0
        %781 = vmatmul.mubr.bf16.gmra.mrb[0].mxu0 %v695
        %v782 = vpop.f32.mrb[0].mxu0
        %v783 = vadd.f32 %v663, %v782
        %v784 = vpop.f32.mrb[0].mxu0
        %v785 = vpop.f32.mrb[0].mxu0
        %v786 = vadd.f32 %v663, %v785
        %v787 = vpop.f32.mrb[0].mxu0
        %788 = vmatprep.mubr.bf16.mxu0 0
        %789 = vmatmul.mubr.bf16.gmra.mrb[0].mxu0 %v698
        %v790 = vpop.f32.mrb[0].mxu0
        %v791 = vadd.f32 %v663, %v790
        %v792 = vpop.f32.mrb[0].mxu0
        %v793 = vpop.f32.mrb[0].mxu0
        %v794 = vadd.f32 %v663, %v793
        %v795 = vpop.f32.mrb[0].mxu0
        %796 = vdwg.mxu0
        %v797 = vpack.c.bf16 %v738, %v735
        %v798 = vpack.c.bf16 %v746, %v743
        %v799 = vpack.c.bf16 %v754, %v751
        %v800 = vpack.c.bf16 %v762, %v759
        %v801 = vpack.c.bf16 %v770, %v767
        %v802 = vpack.c.bf16 %v778, %v775
        %v803 = vpack.c.bf16 %v786, %v783
        %v804 = vpack.c.bf16 %v794, %v791
        %813 = vrot.lane.b32.xlu0 %v797, 96
        %v814 = vpop.permute.xlu0 %813
        %815 = vrot.lane.b32.xlu0 %v798, 96
        %v816 = vpop.permute.xlu0 %815
        %817 = vrot.lane.b32.xlu0 %v799, 96
        %v818 = vpop.permute.xlu0 %817
        %819 = vrot.lane.b32.xlu0 %v800, 96
        %v820 = vpop.permute.xlu0 %819
        %821 = vrot.lane.b32.xlu0 %v801, 96
        %v822 = vpop.permute.xlu0 %821
        %823 = vrot.lane.b32.xlu0 %v802, 96
        %v824 = vpop.permute.xlu0 %823
        %825 = vrot.lane.b32.xlu0 %v803, 96
        %v826 = vpop.permute.xlu0 %825
        %827 = vrot.lane.b32.xlu0 %v804, 96
        %v828 = vpop.permute.xlu0 %827
        %vm829 = vcmask 64512
        %v831 = vsel %vm829, %v797, 0
        %v834 = vsel %vm829, %v798, 0
        %v837 = vsel %vm829, %v799, 0
        %v840 = vsel %vm829, %v800, 0
        %v843 = vsel %vm829, %v801, 0
        %v846 = vsel %vm829, %v802, 0
        %v849 = vsel %vm829, %v803, 0
        %v852 = vsel %vm829, %v804, 0
        %v855 = vsel %vm829, %v814, 0
        %v858 = vsel %vm829, %v816, 0
        %v861 = vsel %vm829, %v818, 0
        %v864 = vsel %vm829, %v820, 0
        %v867 = vsel %vm829, %v822, 0
        %v870 = vsel %vm829, %v824, 0
        %v873 = vsel %vm829, %v826, 0
        %v876 = vsel %vm829, %v828, 0
        %878 = vmatprep.subr.bf16.mxu0 0
        %879 = vmatpush1.bf16.xpose.msra.mxu0 %v855
        %880 = vmatprep.subr.bf16.mxu0 0
        %881 = vmatpush1.bf16.xpose.msra.mxu0 %v858
        %882 = vmatprep.subr.bf16.mxu0 0
        %883 = vmatpush1.bf16.xpose.msra.mxu0 %v861
        %884 = vmatprep.subr.bf16.mxu0 0
        %885 = vmatpush1.bf16.xpose.msra.mxu0 %v864
        %886 = vmatprep.subr.bf16.mxu0 0
        %887 = vmatpush1.bf16.xpose.msra.mxu0 %v867
        %888 = vmatprep.subr.bf16.mxu0 0
        %889 = vmatpush1.bf16.xpose.msra.mxu0 %v870
        %890 = vmatprep.subr.bf16.mxu0 0
        %891 = vmatpush1.bf16.xpose.msra.mxu0 %v873
        %892 = vmatprep.subr.bf16.mxu0 0
        %893 = vmatpush1.bf16.xpose.msra.mxu0 %v876
        %894 = vmatprep.subr.bf16.mxu0 0
        %895 = vmatpush1.bf16.xpose.msra.mxu0 0
        %896 = vmatprep.subr.bf16.mxu0 0
        %897 = vmatpush1.bf16.xpose.msra.mxu0 0
        %898 = vmatprep.subr.bf16.mxu0 0
        %899 = vmatpush1.bf16.xpose.msra.mxu0 0
        %900 = vmatprep.subr.bf16.mxu0 0
        %901 = vmatpush1.bf16.xpose.msra.mxu0 0
        %902 = vmatprep.subr.bf16.mxu0 0
        %903 = vmatpush1.bf16.xpose.msra.mxu0 0
        %904 = vmatprep.subr.bf16.mxu0 0
        %905 = vmatpush1.bf16.xpose.msra.mxu0 0
        %906 = vmatprep.subr.bf16.mxu0 0
        %907 = vmatpush1.bf16.xpose.msra.mxu0 0
        %908 = vmatprep.subr.bf16.mxu0 0
        %909 = vmatpush1.bf16.xpose.msra.mxu0 0
        %910 = vmatprep.mubr.bf16.mxu0 0
        %911 = vmatmul.mubr.bf16.gmra.mrb[0].mxu0 %v831
        %v912 = vpop.f32.mrb[0].mxu0
        %v913 = vadd.f32 %v379, %v912
        %v914 = vpop.f32.mrb[0].mxu0
        %v915 = vpop.f32.mrb[0].mxu0
        %v916 = vadd.f32 %v380, %v915
        %v917 = vpop.f32.mrb[0].mxu0
        %918 = vmatprep.mubr.bf16.mxu0 0
        %919 = vmatmul.mubr.bf16.gmra.mrb[0].mxu0 %v834
        %v920 = vpop.f32.mrb[0].mxu0
        %v921 = vadd.f32 %v381, %v920
        %v922 = vpop.f32.mrb[0].mxu0
        %v923 = vpop.f32.mrb[0].mxu0
        %v924 = vadd.f32 %v382, %v923
        %v925 = vpop.f32.mrb[0].mxu0
        %926 = vmatprep.mubr.bf16.mxu0 0
        %927 = vmatmul.mubr.bf16.gmra.mrb[0].mxu0 %v837
        %v928 = vpop.f32.mrb[0].mxu0
        %v929 = vadd.f32 %v383, %v928
        %v930 = vpop.f32.mrb[0].mxu0
        %v931 = vpop.f32.mrb[0].mxu0
        %v932 = vadd.f32 %v384, %v931
        %v933 = vpop.f32.mrb[0].mxu0
        %934 = vmatprep.mubr.bf16.mxu0 0
        %935 = vmatmul.mubr.bf16.gmra.mrb[0].mxu0 %v840
        %v936 = vpop.f32.mrb[0].mxu0
        %v937 = vadd.f32 %v385, %v936
        %v938 = vpop.f32.mrb[0].mxu0
        %v939 = vpop.f32.mrb[0].mxu0
        %v940 = vadd.f32 %v386, %v939
        %v941 = vpop.f32.mrb[0].mxu0
        %942 = vmatprep.mubr.bf16.mxu0 0
        %943 = vmatmul.mubr.bf16.gmra.mrb[0].mxu0 %v843
        %v944 = vpop.f32.mrb[0].mxu0
        %v945 = vadd.f32 %v387, %v944
        %v946 = vpop.f32.mrb[0].mxu0
        %v947 = vpop.f32.mrb[0].mxu0
        %v948 = vadd.f32 %v388, %v947
        %v949 = vpop.f32.mrb[0].mxu0
        %950 = vmatprep.mubr.bf16.mxu0 0
        %951 = vmatmul.mubr.bf16.gmra.mrb[0].mxu0 %v846
        %v952 = vpop.f32.mrb[0].mxu0
        %v953 = vadd.f32 %v389, %v952
        %v954 = vpop.f32.mrb[0].mxu0
        %v955 = vpop.f32.mrb[0].mxu0
        %v956 = vadd.f32 %v390, %v955
        %v957 = vpop.f32.mrb[0].mxu0
        %958 = vmatprep.mubr.bf16.mxu0 0
        %959 = vmatmul.mubr.bf16.gmra.mrb[0].mxu0 %v849
        %v960 = vpop.f32.mrb[0].mxu0
        %v961 = vadd.f32 %v391, %v960
        %v962 = vpop.f32.mrb[0].mxu0
        %v963 = vpop.f32.mrb[0].mxu0
        %v964 = vadd.f32 %v392, %v963
        %v965 = vpop.f32.mrb[0].mxu0
        %966 = vmatprep.mubr.bf16.mxu0 0
        %967 = vmatmul.mubr.bf16.gmra.mrb[0].mxu0 %v852
        %v968 = vpop.f32.mrb[0].mxu0
        %v969 = vadd.f32 %v393, %v968
        %v970 = vpop.f32.mrb[0].mxu0
        %v971 = vpop.f32.mrb[0].mxu0
        %v972 = vadd.f32 %v394, %v971
        %v973 = vpop.f32.mrb[0].mxu0
        %974 = vdwg.mxu0
        %975 = vmax.xlane.f32.xlu0 %v913
        %v976 = vpop.xlane.xlu0 %975
        %977 = vmax.xlane.f32.xlu0 %v916
        %v978 = vpop.xlane.xlu0 %977
        %979 = vmax.xlane.f32.xlu0 %v921
        %v980 = vpop.xlane.xlu0 %979
        %981 = vmax.xlane.f32.xlu0 %v924
        %v982 = vpop.xlane.xlu0 %981
        %983 = vmax.xlane.f32.xlu0 %v929
        %v984 = vpop.xlane.xlu0 %983
        %985 = vmax.xlane.f32.xlu0 %v932
        %v986 = vpop.xlane.xlu0 %985
        %987 = vmax.xlane.f32.xlu0 %v937
        %v988 = vpop.xlane.xlu0 %987
        %989 = vmax.xlane.f32.xlu0 %v940
        %v990 = vpop.xlane.xlu0 %989
        %991 = vmax.xlane.f32.xlu0 %v945
        %v992 = vpop.xlane.xlu0 %991
        %993 = vmax.xlane.f32.xlu0 %v948
        %v994 = vpop.xlane.xlu0 %993
        %995 = vmax.xlane.f32.xlu0 %v953
        %v996 = vpop.xlane.xlu0 %995
        %997 = vmax.xlane.f32.xlu0 %v956
        %v998 = vpop.xlane.xlu0 %997
        %999 = vmax.xlane.f32.xlu0 %v961
        %v1000 = vpop.xlane.xlu0 %999
        %1001 = vmax.xlane.f32.xlu0 %v964
        %v1002 = vpop.xlane.xlu0 %1001
        %1003 = vmax.xlane.f32.xlu0 %v969
        %v1004 = vpop.xlane.xlu0 %1003
        %1005 = vmax.xlane.f32.xlu0 %v972
        %v1006 = vpop.xlane.xlu0 %1005
        %v1007 = vsub.f32 %v913, %v976
        %v1008 = vsub.f32 %v916, %v978
        %v1009 = vsub.f32 %v921, %v980
        %v1010 = vsub.f32 %v924, %v982
        %v1011 = vsub.f32 %v929, %v984
        %v1012 = vsub.f32 %v932, %v986
        %v1013 = vsub.f32 %v937, %v988
        %v1014 = vsub.f32 %v940, %v990
        %v1015 = vsub.f32 %v945, %v992
        %v1016 = vsub.f32 %v948, %v994
        %v1017 = vsub.f32 %v953, %v996
        %v1018 = vsub.f32 %v956, %v998
        %v1019 = vsub.f32 %v961, %v1000
        %v1020 = vsub.f32 %v964, %v1002
        %v1021 = vsub.f32 %v969, %v1004
        %v1022 = vsub.f32 %v972, %v1006
        %v1023 = vmul.f32 %v1007, 1.442695
        %v1024 = vpow.pop %v1023
        %v1025 = vmul.f32 %v1008, 1.442695
        %v1026 = vpow.pop %v1025
        %v1027 = vmul.f32 %v1009, 1.442695
        %v1028 = vpow.pop %v1027
        %v1029 = vmul.f32 %v1010, 1.442695
        %v1030 = vpow.pop %v1029
        %v1031 = vmul.f32 %v1011, 1.442695
        %v1032 = vpow.pop %v1031
        %v1033 = vmul.f32 %v1012, 1.442695
        %v1034 = vpow.pop %v1033
        %v1035 = vmul.f32 %v1013, 1.442695
        %v1036 = vpow.pop %v1035
        %v1037 = vmul.f32 %v1014, 1.442695
        %v1038 = vpow.pop %v1037
        %v1039 = vmul.f32 %v1015, 1.442695
        %v1040 = vpow.pop %v1039
        %v1041 = vmul.f32 %v1016, 1.442695
        %v1042 = vpow.pop %v1041
        %v1043 = vmul.f32 %v1017, 1.442695
        %v1044 = vpow.pop %v1043
        %v1045 = vmul.f32 %v1018, 1.442695
        %v1046 = vpow.pop %v1045
        %v1047 = vmul.f32 %v1019, 1.442695
        %v1048 = vpow.pop %v1047
        %v1049 = vmul.f32 %v1020, 1.442695
        %v1050 = vpow.pop %v1049
        %v1051 = vmul.f32 %v1021, 1.442695
        %v1052 = vpow.pop %v1051
        %v1053 = vmul.f32 %v1022, 1.442695
        %v1054 = vpow.pop %v1053
        %1055 = vadd.xlane.f32.xlu0 %v1024
        %v1056 = vpop.xlane.xlu0 %1055
        %1057 = vadd.xlane.f32.xlu0 %v1026
        %v1058 = vpop.xlane.xlu0 %1057
        %1059 = vadd.xlane.f32.xlu0 %v1028
        %v1060 = vpop.xlane.xlu0 %1059
        %1061 = vadd.xlane.f32.xlu0 %v1030
        %v1062 = vpop.xlane.xlu0 %1061
        %1063 = vadd.xlane.f32.xlu0 %v1032
        %v1064 = vpop.xlane.xlu0 %1063
        %1065 = vadd.xlane.f32.xlu0 %v1034
        %v1066 = vpop.xlane.xlu0 %1065
        %1067 = vadd.xlane.f32.xlu0 %v1036
        %v1068 = vpop.xlane.xlu0 %1067
        %1069 = vadd.xlane.f32.xlu0 %v1038
        %v1070 = vpop.xlane.xlu0 %1069
        %1071 = vadd.xlane.f32.xlu0 %v1040
        %v1072 = vpop.xlane.xlu0 %1071
        %1073 = vadd.xlane.f32.xlu0 %v1042
        %v1074 = vpop.xlane.xlu0 %1073
        %1075 = vadd.xlane.f32.xlu0 %v1044
        %v1076 = vpop.xlane.xlu0 %1075
        %1077 = vadd.xlane.f32.xlu0 %v1046
        %v1078 = vpop.xlane.xlu0 %1077
        %1079 = vadd.xlane.f32.xlu0 %v1048
        %v1080 = vpop.xlane.xlu0 %1079
        %1081 = vadd.xlane.f32.xlu0 %v1050
        %v1082 = vpop.xlane.xlu0 %1081
        %1083 = vadd.xlane.f32.xlu0 %v1052
        %v1084 = vpop.xlane.xlu0 %1083
        %1085 = vadd.xlane.f32.xlu0 %v1054
        %v1086 = vpop.xlane.xlu0 %1085
        %v1087 = vrcp.pop %v1056
        %v1088 = vrcp.pop %v1058
        %v1089 = vrcp.pop %v1060
        %v1090 = vrcp.pop %v1062
        %v1091 = vrcp.pop %v1064
        %v1092 = vrcp.pop %v1066
        %v1093 = vrcp.pop %v1068
        %v1094 = vrcp.pop %v1070
        %v1095 = vrcp.pop %v1072
        %v1096 = vrcp.pop %v1074
        %v1097 = vrcp.pop %v1076
        %v1098 = vrcp.pop %v1078
        %v1099 = vrcp.pop %v1080
        %v1100 = vrcp.pop %v1082
        %v1101 = vrcp.pop %v1084
        %v1102 = vrcp.pop %v1086
        %v1103 = vpack.c.bf16 %v1026, %v1024
        %v1104 = vpack.c.bf16 %v1030, %v1028
        %v1105 = vpack.c.bf16 %v1034, %v1032
        %v1106 = vpack.c.bf16 %v1038, %v1036
        %v1107 = vpack.c.bf16 %v1042, %v1040
        %v1108 = vpack.c.bf16 %v1046, %v1044
        %v1109 = vpack.c.bf16 %v1050, %v1048
        %v1110 = vpack.c.bf16 %v1054, %v1052
        %1111 = vrot.lane.b32.xlu0 %v797, 64
        %v1112 = vpop.permute.xlu0 %1111
        %1113 = vrot.lane.b32.xlu0 %v798, 64
        %v1114 = vpop.permute.xlu0 %1113
        %1115 = vrot.lane.b32.xlu0 %v799, 64
        %v1116 = vpop.permute.xlu0 %1115
        %1117 = vrot.lane.b32.xlu0 %v800, 64
        %v1118 = vpop.permute.xlu0 %1117
        %1119 = vrot.lane.b32.xlu0 %v801, 64
        %v1120 = vpop.permute.xlu0 %1119
        %1121 = vrot.lane.b32.xlu0 %v802, 64
        %v1122 = vpop.permute.xlu0 %1121
        %1123 = vrot.lane.b32.xlu0 %v803, 64
        %v1124 = vpop.permute.xlu0 %1123
        %1125 = vrot.lane.b32.xlu0 %v804, 64
        %v1126 = vpop.permute.xlu0 %1125
        %1135 = vmatprep.subr.bf16.mxu0 0
        %1136 = vmatpush1.bf16.msra.mxu0 %v1112
        %1137 = vmatprep.subr.bf16.mxu0 0
        %1138 = vmatpush1.bf16.msra.mxu0 %v1114
        %1139 = vmatprep.subr.bf16.mxu0 0
        %1140 = vmatpush1.bf16.msra.mxu0 %v1116
        %1141 = vmatprep.subr.bf16.mxu0 0
        %1142 = vmatpush1.bf16.msra.mxu0 %v1118
        %1143 = vmatprep.subr.bf16.mxu0 0
        %1144 = vmatpush1.bf16.msra.mxu0 %v1120
        %1145 = vmatprep.subr.bf16.mxu0 0
        %1146 = vmatpush1.bf16.msra.mxu0 %v1122
        %1147 = vmatprep.subr.bf16.mxu0 0
        %1148 = vmatpush1.bf16.msra.mxu0 %v1124
        %1149 = vmatprep.subr.bf16.mxu0 0
        %1150 = vmatpush1.bf16.msra.mxu0 %v1126
        %1151 = vmatprep.subr.bf16.mxu0 0
        %1152 = vmatpush1.bf16.msra.mxu0 0
        %1153 = vmatprep.subr.bf16.mxu0 0
        %1154 = vmatpush1.bf16.msra.mxu0 0
        %1155 = vmatprep.subr.bf16.mxu0 0
        %1156 = vmatpush1.bf16.msra.mxu0 0
        %1157 = vmatprep.subr.bf16.mxu0 0
        %1158 = vmatpush1.bf16.msra.mxu0 0
        %1159 = vmatprep.subr.bf16.mxu0 0
        %1160 = vmatpush1.bf16.msra.mxu0 0
        %1161 = vmatprep.subr.bf16.mxu0 0
        %1162 = vmatpush1.bf16.msra.mxu0 0
        %1163 = vmatprep.subr.bf16.mxu0 0
        %1164 = vmatpush1.bf16.msra.mxu0 0
        %1165 = vmatprep.subr.bf16.mxu0 0
        %1166 = vmatpush1.bf16.msra.mxu0 0
        %1167 = vmatprep.mubr.bf16.mxu0 0
        %1168 = vmatmul.mubr.bf16.gmra.mrb[0].mxu0 %v1103
        %v1169 = vpop.f32.mrb[0].mxu0
        %v1170 = vadd.f32 0.0, %v1169
        %v1171 = vpop.f32.mrb[0].mxu0
        %v1172 = vpop.f32.mrb[0].mxu0
        %v1173 = vadd.f32 0.0, %v1172
        %v1174 = vpop.f32.mrb[0].mxu0
        %1175 = vmatprep.mubr.bf16.mxu0 0
        %1176 = vmatmul.mubr.bf16.gmra.mrb[0].mxu0 %v1104
        %v1177 = vpop.f32.mrb[0].mxu0
        %v1178 = vadd.f32 0.0, %v1177
        %v1179 = vpop.f32.mrb[0].mxu0
        %v1180 = vpop.f32.mrb[0].mxu0
        %v1181 = vadd.f32 0.0, %v1180
        %v1182 = vpop.f32.mrb[0].mxu0
        %1183 = vmatprep.mubr.bf16.mxu0 0
        %1184 = vmatmul.mubr.bf16.gmra.mrb[0].mxu0 %v1105
        %v1185 = vpop.f32.mrb[0].mxu0
        %v1186 = vadd.f32 0.0, %v1185
        %v1187 = vpop.f32.mrb[0].mxu0
        %v1188 = vpop.f32.mrb[0].mxu0
        %v1189 = vadd.f32 0.0, %v1188
        %v1190 = vpop.f32.mrb[0].mxu0
        %1191 = vmatprep.mubr.bf16.mxu0 0
        %1192 = vmatmul.mubr.bf16.gmra.mrb[0].mxu0 %v1106
        %v1193 = vpop.f32.mrb[0].mxu0
        %v1194 = vadd.f32 0.0, %v1193
        %v1195 = vpop.f32.mrb[0].mxu0
        %v1196 = vpop.f32.mrb[0].mxu0
        %v1197 = vadd.f32 0.0, %v1196
        %v1198 = vpop.f32.mrb[0].mxu0
        %1199 = vmatprep.mubr.bf16.mxu0 0
        %1200 = vmatmul.mubr.bf16.gmra.mrb[0].mxu0 %v1107
        %v1201 = vpop.f32.mrb[0].mxu0
        %v1202 = vadd.f32 0.0, %v1201
        %v1203 = vpop.f32.mrb[0].mxu0
        %v1204 = vpop.f32.mrb[0].mxu0
        %v1205 = vadd.f32 0.0, %v1204
        %v1206 = vpop.f32.mrb[0].mxu0
        %1207 = vmatprep.mubr.bf16.mxu0 0
        %1208 = vmatmul.mubr.bf16.gmra.mrb[0].mxu0 %v1108
        %v1209 = vpop.f32.mrb[0].mxu0
        %v1210 = vadd.f32 0.0, %v1209
        %v1211 = vpop.f32.mrb[0].mxu0
        %v1212 = vpop.f32.mrb[0].mxu0
        %v1213 = vadd.f32 0.0, %v1212
        %v1214 = vpop.f32.mrb[0].mxu0
        %1215 = vmatprep.mubr.bf16.mxu0 0
        %1216 = vmatmul.mubr.bf16.gmra.mrb[0].mxu0 %v1109
        %v1217 = vpop.f32.mrb[0].mxu0
        %v1218 = vadd.f32 0.0, %v1217
        %v1219 = vpop.f32.mrb[0].mxu0
        %v1220 = vpop.f32.mrb[0].mxu0
        %v1221 = vadd.f32 0.0, %v1220
        %v1222 = vpop.f32.mrb[0].mxu0
        %1223 = vmatprep.mubr.bf16.mxu0 0
        %1224 = vmatmul.mubr.bf16.gmra.mrb[0].mxu0 %v1110
        %v1225 = vpop.f32.mrb[0].mxu0
        %v1226 = vadd.f32 0.0, %v1225
        %v1227 = vpop.f32.mrb[0].mxu0
        %v1228 = vpop.f32.mrb[0].mxu0
        %v1229 = vadd.f32 0.0, %v1228
        %v1230 = vpop.f32.mrb[0].mxu0
        %1231 = vdwg.mxu0
        %v1232 = vmul.f32 %v1170, %v1087
        %v1233 = vmul.f32 %v1173, %v1088
        %v1234 = vmul.f32 %v1178, %v1089
        %v1235 = vmul.f32 %v1181, %v1090
        %v1236 = vmul.f32 %v1186, %v1091
        %v1237 = vmul.f32 %v1189, %v1092
        %v1238 = vmul.f32 %v1194, %v1093
        %v1239 = vmul.f32 %v1197, %v1094
        %v1240 = vmul.f32 %v1202, %v1095
        %v1241 = vmul.f32 %v1205, %v1096
        %v1242 = vmul.f32 %v1210, %v1097
        %v1243 = vmul.f32 %v1213, %v1098
        %v1244 = vmul.f32 %v1218, %v1099
        %v1245 = vmul.f32 %v1221, %v1100
        %v1246 = vmul.f32 %v1226, %v1101
        %v1247 = vmul.f32 %v1229, %v1102
        %1248 = vrot.lane.b32.xlu0 %v797, 120
        %v1249 = vpop.permute.xlu0 %1248
        %1250 = vrot.lane.b32.xlu0 %v798, 120
        %v1251 = vpop.permute.xlu0 %1250
        %1252 = vrot.lane.b32.xlu0 %v799, 120
        %v1253 = vpop.permute.xlu0 %1252
        %1254 = vrot.lane.b32.xlu0 %v800, 120
        %v1255 = vpop.permute.xlu0 %1254
        %1256 = vrot.lane.b32.xlu0 %v801, 120
        %v1257 = vpop.permute.xlu0 %1256
        %1258 = vrot.lane.b32.xlu0 %v802, 120
        %v1259 = vpop.permute.xlu0 %1258
        %1260 = vrot.lane.b32.xlu0 %v803, 120
        %v1261 = vpop.permute.xlu0 %1260
        %1262 = vrot.lane.b32.xlu0 %v804, 120
        %v1263 = vpop.permute.xlu0 %1262
        %1264 = vrot.lane.b32.xlu0 %v797, 88
        %v1265 = vpop.permute.xlu0 %1264
        %1266 = vrot.lane.b32.xlu0 %v798, 88
        %v1267 = vpop.permute.xlu0 %1266
        %1268 = vrot.lane.b32.xlu0 %v799, 88
        %v1269 = vpop.permute.xlu0 %1268
        %1270 = vrot.lane.b32.xlu0 %v800, 88
        %v1271 = vpop.permute.xlu0 %1270
        %1272 = vrot.lane.b32.xlu0 %v801, 88
        %v1273 = vpop.permute.xlu0 %1272
        %1274 = vrot.lane.b32.xlu0 %v802, 88
        %v1275 = vpop.permute.xlu0 %1274
        %1276 = vrot.lane.b32.xlu0 %v803, 88
        %v1277 = vpop.permute.xlu0 %1276
        %1278 = vrot.lane.b32.xlu0 %v804, 88
        %v1279 = vpop.permute.xlu0 %1278
        %v1281 = vsel %vm829, %v1249, 0
        %v1284 = vsel %vm829, %v1251, 0
        %v1287 = vsel %vm829, %v1253, 0
        %v1290 = vsel %vm829, %v1255, 0
        %v1293 = vsel %vm829, %v1257, 0
        %v1296 = vsel %vm829, %v1259, 0
        %v1299 = vsel %vm829, %v1261, 0
        %v1302 = vsel %vm829, %v1263, 0
        %v1305 = vsel %vm829, %v1265, 0
        %v1308 = vsel %vm829, %v1267, 0
        %v1311 = vsel %vm829, %v1269, 0
        %v1314 = vsel %vm829, %v1271, 0
        %v1317 = vsel %vm829, %v1273, 0
        %v1320 = vsel %vm829, %v1275, 0
        %v1323 = vsel %vm829, %v1277, 0
        %v1326 = vsel %vm829, %v1279, 0
        %1328 = vmatprep.subr.bf16.mxu0 0
        %1329 = vmatpush1.bf16.xpose.msra.mxu0 %v1305
        %1330 = vmatprep.subr.bf16.mxu0 0
        %1331 = vmatpush1.bf16.xpose.msra.mxu0 %v1308
        %1332 = vmatprep.subr.bf16.mxu0 0
        %1333 = vmatpush1.bf16.xpose.msra.mxu0 %v1311
        %1334 = vmatprep.subr.bf16.mxu0 0
        %1335 = vmatpush1.bf16.xpose.msra.mxu0 %v1314
        %1336 = vmatprep.subr.bf16.mxu0 0
        %1337 = vmatpush1.bf16.xpose.msra.mxu0 %v1317
        %1338 = vmatprep.subr.bf16.mxu0 0
        %1339 = vmatpush1.bf16.xpose.msra.mxu0 %v1320
        %1340 = vmatprep.subr.bf16.mxu0 0
        %1341 = vmatpush1.bf16.xpose.msra.mxu0 %v1323
        %1342 = vmatprep.subr.bf16.mxu0 0
        %1343 = vmatpush1.bf16.xpose.msra.mxu0 %v1326
        %1344 = vmatprep.subr.bf16.mxu0 0
        %1345 = vmatpush1.bf16.xpose.msra.mxu0 0
        %1346 = vmatprep.subr.bf16.mxu0 0
        %1347 = vmatpush1.bf16.xpose.msra.mxu0 0
        %1348 = vmatprep.subr.bf16.mxu0 0
        %1349 = vmatpush1.bf16.xpose.msra.mxu0 0
        %1350 = vmatprep.subr.bf16.mxu0 0
        %1351 = vmatpush1.bf16.xpose.msra.mxu0 0
        %1352 = vmatprep.subr.bf16.mxu0 0
        %1353 = vmatpush1.bf16.xpose.msra.mxu0 0
        %1354 = vmatprep.subr.bf16.mxu0 0
        %1355 = vmatpush1.bf16.xpose.msra.mxu0 0
        %1356 = vmatprep.subr.bf16.mxu0 0
        %1357 = vmatpush1.bf16.xpose.msra.mxu0 0
        %1358 = vmatprep.subr.bf16.mxu0 0
        %1359 = vmatpush1.bf16.xpose.msra.mxu0 0
        %1360 = vmatprep.mubr.bf16.mxu0 0
        %1361 = vmatmul.mubr.bf16.gmra.mrb[0].mxu0 %v1281
        %v1362 = vpop.f32.mrb[0].mxu0
        %v1363 = vadd.f32 %v379, %v1362
        %v1364 = vpop.f32.mrb[0].mxu0
        %v1365 = vpop.f32.mrb[0].mxu0
        %v1366 = vadd.f32 %v380, %v1365
        %v1367 = vpop.f32.mrb[0].mxu0
        %1368 = vmatprep.mubr.bf16.mxu0 0
        %1369 = vmatmul.mubr.bf16.gmra.mrb[0].mxu0 %v1284
        %v1370 = vpop.f32.mrb[0].mxu0
        %v1371 = vadd.f32 %v381, %v1370
        %v1372 = vpop.f32.mrb[0].mxu0
        %v1373 = vpop.f32.mrb[0].mxu0
        %v1374 = vadd.f32 %v382, %v1373
        %v1375 = vpop.f32.mrb[0].mxu0
        %1376 = vmatprep.mubr.bf16.mxu0 0
        %1377 = vmatmul.mubr.bf16.gmra.mrb[0].mxu0 %v1287
        %v1378 = vpop.f32.mrb[0].mxu0
        %v1379 = vadd.f32 %v383, %v1378
        %v1380 = vpop.f32.mrb[0].mxu0
        %v1381 = vpop.f32.mrb[0].mxu0
        %v1382 = vadd.f32 %v384, %v1381
        %v1383 = vpop.f32.mrb[0].mxu0
        %1384 = vmatprep.mubr.bf16.mxu0 0
        %1385 = vmatmul.mubr.bf16.gmra.mrb[0].mxu0 %v1290
        %v1386 = vpop.f32.mrb[0].mxu0
        %v1387 = vadd.f32 %v385, %v1386
        %v1388 = vpop.f32.mrb[0].mxu0
        %v1389 = vpop.f32.mrb[0].mxu0
        %v1390 = vadd.f32 %v386, %v1389
        %v1391 = vpop.f32.mrb[0].mxu0
        %1392 = vmatprep.mubr.bf16.mxu0 0
        %1393 = vmatmul.mubr.bf16.gmra.mrb[0].mxu0 %v1293
        %v1394 = vpop.f32.mrb[0].mxu0
        %v1395 = vadd.f32 %v387, %v1394
        %v1396 = vpop.f32.mrb[0].mxu0
        %v1397 = vpop.f32.mrb[0].mxu0
        %v1398 = vadd.f32 %v388, %v1397
        %v1399 = vpop.f32.mrb[0].mxu0
        %1400 = vmatprep.mubr.bf16.mxu0 0
        %1401 = vmatmul.mubr.bf16.gmra.mrb[0].mxu0 %v1296
        %v1402 = vpop.f32.mrb[0].mxu0
        %v1403 = vadd.f32 %v389, %v1402
        %v1404 = vpop.f32.mrb[0].mxu0
        %v1405 = vpop.f32.mrb[0].mxu0
        %v1406 = vadd.f32 %v390, %v1405
        %v1407 = vpop.f32.mrb[0].mxu0
        %1408 = vmatprep.mubr.bf16.mxu0 0
        %1409 = vmatmul.mubr.bf16.gmra.mrb[0].mxu0 %v1299
        %v1410 = vpop.f32.mrb[0].mxu0
        %v1411 = vadd.f32 %v391, %v1410
        %v1412 = vpop.f32.mrb[0].mxu0
        %v1413 = vpop.f32.mrb[0].mxu0
        %v1414 = vadd.f32 %v392, %v1413
        %v1415 = vpop.f32.mrb[0].mxu0
        %1416 = vmatprep.mubr.bf16.mxu0 0
        %1417 = vmatmul.mubr.bf16.gmra.mrb[0].mxu0 %v1302
        %v1418 = vpop.f32.mrb[0].mxu0
        %v1419 = vadd.f32 %v393, %v1418
        %v1420 = vpop.f32.mrb[0].mxu0
        %v1421 = vpop.f32.mrb[0].mxu0
        %v1422 = vadd.f32 %v394, %v1421
        %v1423 = vpop.f32.mrb[0].mxu0
        %1424 = vdwg.mxu0
        %1425 = vmax.xlane.f32.xlu0 %v1363
        %v1426 = vpop.xlane.xlu0 %1425
        %1427 = vmax.xlane.f32.xlu0 %v1366
        %v1428 = vpop.xlane.xlu0 %1427
        %1429 = vmax.xlane.f32.xlu0 %v1371
        %v1430 = vpop.xlane.xlu0 %1429
        %1431 = vmax.xlane.f32.xlu0 %v1374
        %v1432 = vpop.xlane.xlu0 %1431
        %1433 = vmax.xlane.f32.xlu0 %v1379
        %v1434 = vpop.xlane.xlu0 %1433
        %1435 = vmax.xlane.f32.xlu0 %v1382
        %v1436 = vpop.xlane.xlu0 %1435
        %1437 = vmax.xlane.f32.xlu0 %v1387
        %v1438 = vpop.xlane.xlu0 %1437
        %1439 = vmax.xlane.f32.xlu0 %v1390
        %v1440 = vpop.xlane.xlu0 %1439
        %1441 = vmax.xlane.f32.xlu0 %v1395
        %v1442 = vpop.xlane.xlu0 %1441
        %1443 = vmax.xlane.f32.xlu0 %v1398
        %v1444 = vpop.xlane.xlu0 %1443
        %1445 = vmax.xlane.f32.xlu0 %v1403
        %v1446 = vpop.xlane.xlu0 %1445
        %1447 = vmax.xlane.f32.xlu0 %v1406
        %v1448 = vpop.xlane.xlu0 %1447
        %1449 = vmax.xlane.f32.xlu0 %v1411
        %v1450 = vpop.xlane.xlu0 %1449
        %1451 = vmax.xlane.f32.xlu0 %v1414
        %v1452 = vpop.xlane.xlu0 %1451
        %1453 = vmax.xlane.f32.xlu0 %v1419
        %v1454 = vpop.xlane.xlu0 %1453
        %1455 = vmax.xlane.f32.xlu0 %v1422
        %v1456 = vpop.xlane.xlu0 %1455
        %v1457 = vsub.f32 %v1363, %v1426
        %v1458 = vsub.f32 %v1366, %v1428
        %v1459 = vsub.f32 %v1371, %v1430
        %v1460 = vsub.f32 %v1374, %v1432
        %v1461 = vsub.f32 %v1379, %v1434
        %v1462 = vsub.f32 %v1382, %v1436
        %v1463 = vsub.f32 %v1387, %v1438
        %v1464 = vsub.f32 %v1390, %v1440
        %v1465 = vsub.f32 %v1395, %v1442
        %v1466 = vsub.f32 %v1398, %v1444
        %v1467 = vsub.f32 %v1403, %v1446
        %v1468 = vsub.f32 %v1406, %v1448
        %v1469 = vsub.f32 %v1411, %v1450
        %v1470 = vsub.f32 %v1414, %v1452
        %v1471 = vsub.f32 %v1419, %v1454
        %v1472 = vsub.f32 %v1422, %v1456
        %v1473 = vmul.f32 %v1457, 1.442695
        %v1474 = vpow.pop %v1473
        %v1475 = vmul.f32 %v1458, 1.442695
        %v1476 = vpow.pop %v1475
        %v1477 = vmul.f32 %v1459, 1.442695
        %v1478 = vpow.pop %v1477
        %v1479 = vmul.f32 %v1460, 1.442695
        %v1480 = vpow.pop %v1479
        %v1481 = vmul.f32 %v1461, 1.442695
        %v1482 = vpow.pop %v1481
        %v1483 = vmul.f32 %v1462, 1.442695
        %v1484 = vpow.pop %v1483
        %v1485 = vmul.f32 %v1463, 1.442695
        %v1486 = vpow.pop %v1485
        %v1487 = vmul.f32 %v1464, 1.442695
        %v1488 = vpow.pop %v1487
        %v1489 = vmul.f32 %v1465, 1.442695
        %v1490 = vpow.pop %v1489
        %v1491 = vmul.f32 %v1466, 1.442695
        %v1492 = vpow.pop %v1491
        %v1493 = vmul.f32 %v1467, 1.442695
        %v1494 = vpow.pop %v1493
        %v1495 = vmul.f32 %v1468, 1.442695
        %v1496 = vpow.pop %v1495
        %v1497 = vmul.f32 %v1469, 1.442695
        %v1498 = vpow.pop %v1497
        %v1499 = vmul.f32 %v1470, 1.442695
        %v1500 = vpow.pop %v1499
        %v1501 = vmul.f32 %v1471, 1.442695
        %v1502 = vpow.pop %v1501
        %v1503 = vmul.f32 %v1472, 1.442695
        %v1504 = vpow.pop %v1503
        %1505 = vadd.xlane.f32.xlu0 %v1474
        %v1506 = vpop.xlane.xlu0 %1505
        %1507 = vadd.xlane.f32.xlu0 %v1476
        %v1508 = vpop.xlane.xlu0 %1507
        %1509 = vadd.xlane.f32.xlu0 %v1478
        %v1510 = vpop.xlane.xlu0 %1509
        %1511 = vadd.xlane.f32.xlu0 %v1480
        %v1512 = vpop.xlane.xlu0 %1511
        %1513 = vadd.xlane.f32.xlu0 %v1482
        %v1514 = vpop.xlane.xlu0 %1513
        %1515 = vadd.xlane.f32.xlu0 %v1484
        %v1516 = vpop.xlane.xlu0 %1515
        %1517 = vadd.xlane.f32.xlu0 %v1486
        %v1518 = vpop.xlane.xlu0 %1517
        %1519 = vadd.xlane.f32.xlu0 %v1488
        %v1520 = vpop.xlane.xlu0 %1519
        %1521 = vadd.xlane.f32.xlu0 %v1490
        %v1522 = vpop.xlane.xlu0 %1521
        %1523 = vadd.xlane.f32.xlu0 %v1492
        %v1524 = vpop.xlane.xlu0 %1523
        %1525 = vadd.xlane.f32.xlu0 %v1494
        %v1526 = vpop.xlane.xlu0 %1525
        %1527 = vadd.xlane.f32.xlu0 %v1496
        %v1528 = vpop.xlane.xlu0 %1527
        %1529 = vadd.xlane.f32.xlu0 %v1498
        %v1530 = vpop.xlane.xlu0 %1529
        %1531 = vadd.xlane.f32.xlu0 %v1500
        %v1532 = vpop.xlane.xlu0 %1531
        %1533 = vadd.xlane.f32.xlu0 %v1502
        %v1534 = vpop.xlane.xlu0 %1533
        %1535 = vadd.xlane.f32.xlu0 %v1504
        %v1536 = vpop.xlane.xlu0 %1535
        %v1537 = vrcp.pop %v1506
        %v1538 = vrcp.pop %v1508
        %v1539 = vrcp.pop %v1510
        %v1540 = vrcp.pop %v1512
        %v1541 = vrcp.pop %v1514
        %v1542 = vrcp.pop %v1516
        %v1543 = vrcp.pop %v1518
        %v1544 = vrcp.pop %v1520
        %v1545 = vrcp.pop %v1522
        %v1546 = vrcp.pop %v1524
        %v1547 = vrcp.pop %v1526
        %v1548 = vrcp.pop %v1528
        %v1549 = vrcp.pop %v1530
        %v1550 = vrcp.pop %v1532
        %v1551 = vrcp.pop %v1534
        %v1552 = vrcp.pop %v1536
        %v1553 = vpack.c.bf16 %v1476, %v1474
        %v1554 = vpack.c.bf16 %v1480, %v1478
        %v1555 = vpack.c.bf16 %v1484, %v1482
        %v1556 = vpack.c.bf16 %v1488, %v1486
        %v1557 = vpack.c.bf16 %v1492, %v1490
        %v1558 = vpack.c.bf16 %v1496, %v1494
        %v1559 = vpack.c.bf16 %v1500, %v1498
        %v1560 = vpack.c.bf16 %v1504, %v1502
        %1561 = vrot.lane.b32.xlu0 %v797, 56
        %v1562 = vpop.permute.xlu0 %1561
        %1563 = vrot.lane.b32.xlu0 %v798, 56
        %v1564 = vpop.permute.xlu0 %1563
        %1565 = vrot.lane.b32.xlu0 %v799, 56
        %v1566 = vpop.permute.xlu0 %1565
        %1567 = vrot.lane.b32.xlu0 %v800, 56
        %v1568 = vpop.permute.xlu0 %1567
        %1569 = vrot.lane.b32.xlu0 %v801, 56
        %v1570 = vpop.permute.xlu0 %1569
        %1571 = vrot.lane.b32.xlu0 %v802, 56
        %v1572 = vpop.permute.xlu0 %1571
        %1573 = vrot.lane.b32.xlu0 %v803, 56
        %v1574 = vpop.permute.xlu0 %1573
        %1575 = vrot.lane.b32.xlu0 %v804, 56
        %v1576 = vpop.permute.xlu0 %1575
        %1585 = vmatprep.subr.bf16.mxu0 0
        %1586 = vmatpush1.bf16.msra.mxu0 %v1562
        %1587 = vmatprep.subr.bf16.mxu0 0
        %1588 = vmatpush1.bf16.msra.mxu0 %v1564
        %1589 = vmatprep.subr.bf16.mxu0 0
        %1590 = vmatpush1.bf16.msra.mxu0 %v1566
        %1591 = vmatprep.subr.bf16.mxu0 0
        %1592 = vmatpush1.bf16.msra.mxu0 %v1568
        %1593 = vmatprep.subr.bf16.mxu0 0
        %1594 = vmatpush1.bf16.msra.mxu0 %v1570
        %1595 = vmatprep.subr.bf16.mxu0 0
        %1596 = vmatpush1.bf16.msra.mxu0 %v1572
        %1597 = vmatprep.subr.bf16.mxu0 0
        %1598 = vmatpush1.bf16.msra.mxu0 %v1574
        %1599 = vmatprep.subr.bf16.mxu0 0
        %1600 = vmatpush1.bf16.msra.mxu0 %v1576
        %1601 = vmatprep.subr.bf16.mxu0 0
        %1602 = vmatpush1.bf16.msra.mxu0 0
        %1603 = vmatprep.subr.bf16.mxu0 0
        %1604 = vmatpush1.bf16.msra.mxu0 0
        %1605 = vmatprep.subr.bf16.mxu0 0
        %1606 = vmatpush1.bf16.msra.mxu0 0
        %1607 = vmatprep.subr.bf16.mxu0 0
        %1608 = vmatpush1.bf16.msra.mxu0 0
        %1609 = vmatprep.subr.bf16.mxu0 0
        %1610 = vmatpush1.bf16.msra.mxu0 0
        %1611 = vmatprep.subr.bf16.mxu0 0
        %1612 = vmatpush1.bf16.msra.mxu0 0
        %1613 = vmatprep.subr.bf16.mxu0 0
        %1614 = vmatpush1.bf16.msra.mxu0 0
        %1615 = vmatprep.subr.bf16.mxu0 0
        %1616 = vmatpush1.bf16.msra.mxu0 0
        %1617 = vmatprep.mubr.bf16.mxu0 0
        %1618 = vmatmul.mubr.bf16.gmra.mrb[0].mxu0 %v1553
        %v1619 = vpop.f32.mrb[0].mxu0
        %v1620 = vadd.f32 0.0, %v1619
        %v1621 = vpop.f32.mrb[0].mxu0
        %v1622 = vpop.f32.mrb[0].mxu0
        %v1623 = vadd.f32 0.0, %v1622
        %v1624 = vpop.f32.mrb[0].mxu0
        %1625 = vmatprep.mubr.bf16.mxu0 0
        %1626 = vmatmul.mubr.bf16.gmra.mrb[0].mxu0 %v1554
        %v1627 = vpop.f32.mrb[0].mxu0
        %v1628 = vadd.f32 0.0, %v1627
        %v1629 = vpop.f32.mrb[0].mxu0
        %v1630 = vpop.f32.mrb[0].mxu0
        %v1631 = vadd.f32 0.0, %v1630
        %v1632 = vpop.f32.mrb[0].mxu0
        %1633 = vmatprep.mubr.bf16.mxu0 0
        %1634 = vmatmul.mubr.bf16.gmra.mrb[0].mxu0 %v1555
        %v1635 = vpop.f32.mrb[0].mxu0
        %v1636 = vadd.f32 0.0, %v1635
        %v1637 = vpop.f32.mrb[0].mxu0
        %v1638 = vpop.f32.mrb[0].mxu0
        %v1639 = vadd.f32 0.0, %v1638
        %v1640 = vpop.f32.mrb[0].mxu0
        %1641 = vmatprep.mubr.bf16.mxu0 0
        %1642 = vmatmul.mubr.bf16.gmra.mrb[0].mxu0 %v1556
        %v1643 = vpop.f32.mrb[0].mxu0
        %v1644 = vadd.f32 0.0, %v1643
        %v1645 = vpop.f32.mrb[0].mxu0
        %v1646 = vpop.f32.mrb[0].mxu0
        %v1647 = vadd.f32 0.0, %v1646
        %v1648 = vpop.f32.mrb[0].mxu0
        %1649 = vmatprep.mubr.bf16.mxu0 0
        %1650 = vmatmul.mubr.bf16.gmra.mrb[0].mxu0 %v1557
        %v1651 = vpop.f32.mrb[0].mxu0
        %v1652 = vadd.f32 0.0, %v1651
        %v1653 = vpop.f32.mrb[0].mxu0
        %v1654 = vpop.f32.mrb[0].mxu0
        %v1655 = vadd.f32 0.0, %v1654
        %v1656 = vpop.f32.mrb[0].mxu0
        %1657 = vmatprep.mubr.bf16.mxu0 0
        %1658 = vmatmul.mubr.bf16.gmra.mrb[0].mxu0 %v1558
        %v1659 = vpop.f32.mrb[0].mxu0
        %v1660 = vadd.f32 0.0, %v1659
        %v1661 = vpop.f32.mrb[0].mxu0
        %v1662 = vpop.f32.mrb[0].mxu0
        %v1663 = vadd.f32 0.0, %v1662
        %v1664 = vpop.f32.mrb[0].mxu0
        %1665 = vmatprep.mubr.bf16.mxu0 0
        %1666 = vmatmul.mubr.bf16.gmra.mrb[0].mxu0 %v1559
        %v1667 = vpop.f32.mrb[0].mxu0
        %v1668 = vadd.f32 0.0, %v1667
        %v1669 = vpop.f32.mrb[0].mxu0
        %v1670 = vpop.f32.mrb[0].mxu0
        %v1671 = vadd.f32 0.0, %v1670
        %v1672 = vpop.f32.mrb[0].mxu0
        %1673 = vmatprep.mubr.bf16.mxu0 0
        %1674 = vmatmul.mubr.bf16.gmra.mrb[0].mxu0 %v1560
        %v1675 = vpop.f32.mrb[0].mxu0
        %v1676 = vadd.f32 0.0, %v1675
        %v1677 = vpop.f32.mrb[0].mxu0
        %v1678 = vpop.f32.mrb[0].mxu0
        %v1679 = vadd.f32 0.0, %v1678
        %v1680 = vpop.f32.mrb[0].mxu0
        %1681 = vdwg.mxu0
        %v1682 = vmul.f32 %v1620, %v1537
        %v1683 = vmul.f32 %v1623, %v1538
        %v1684 = vmul.f32 %v1628, %v1539
        %v1685 = vmul.f32 %v1631, %v1540
        %v1686 = vmul.f32 %v1636, %v1541
        %v1687 = vmul.f32 %v1639, %v1542
        %v1688 = vmul.f32 %v1644, %v1543
        %v1689 = vmul.f32 %v1647, %v1544
        %v1690 = vmul.f32 %v1652, %v1545
        %v1691 = vmul.f32 %v1655, %v1546
        %v1692 = vmul.f32 %v1660, %v1547
        %v1693 = vmul.f32 %v1663, %v1548
        %v1694 = vmul.f32 %v1668, %v1549
        %v1695 = vmul.f32 %v1671, %v1550
        %v1696 = vmul.f32 %v1676, %v1551
        %v1697 = vmul.f32 %v1679, %v1552
        %1698 = vrot.lane.b32.xlu0 %v797, 112
        %v1699 = vpop.permute.xlu0 %1698
        %1700 = vrot.lane.b32.xlu0 %v798, 112
        %v1701 = vpop.permute.xlu0 %1700
        %1702 = vrot.lane.b32.xlu0 %v799, 112
        %v1703 = vpop.permute.xlu0 %1702
        %1704 = vrot.lane.b32.xlu0 %v800, 112
        %v1705 = vpop.permute.xlu0 %1704
        %1706 = vrot.lane.b32.xlu0 %v801, 112
        %v1707 = vpop.permute.xlu0 %1706
        %1708 = vrot.lane.b32.xlu0 %v802, 112
        %v1709 = vpop.permute.xlu0 %1708
        %1710 = vrot.lane.b32.xlu0 %v803, 112
        %v1711 = vpop.permute.xlu0 %1710
        %1712 = vrot.lane.b32.xlu0 %v804, 112
        %v1713 = vpop.permute.xlu0 %1712
        %1714 = vrot.lane.b32.xlu0 %v797, 80
        %v1715 = vpop.permute.xlu0 %1714
        %1716 = vrot.lane.b32.xlu0 %v798, 80
        %v1717 = vpop.permute.xlu0 %1716
        %1718 = vrot.lane.b32.xlu0 %v799, 80
        %v1719 = vpop.permute.xlu0 %1718
        %1720 = vrot.lane.b32.xlu0 %v800, 80
        %v1721 = vpop.permute.xlu0 %1720
        %1722 = vrot.lane.b32.xlu0 %v801, 80
        %v1723 = vpop.permute.xlu0 %1722
        %1724 = vrot.lane.b32.xlu0 %v802, 80
        %v1725 = vpop.permute.xlu0 %1724
        %1726 = vrot.lane.b32.xlu0 %v803, 80
        %v1727 = vpop.permute.xlu0 %1726
        %1728 = vrot.lane.b32.xlu0 %v804, 80
        %v1729 = vpop.permute.xlu0 %1728
        %v1731 = vsel %vm829, %v1699, 0
        %v1734 = vsel %vm829, %v1701, 0
        %v1737 = vsel %vm829, %v1703, 0
        %v1740 = vsel %vm829, %v1705, 0
        %v1743 = vsel %vm829, %v1707, 0
        %v1746 = vsel %vm829, %v1709, 0
        %v1749 = vsel %vm829, %v1711, 0
        %v1752 = vsel %vm829, %v1713, 0
        %v1755 = vsel %vm829, %v1715, 0
        %v1758 = vsel %vm829, %v1717, 0
        %v1761 = vsel %vm829, %v1719, 0
        %v1764 = vsel %vm829, %v1721, 0
        %v1767 = vsel %vm829, %v1723, 0
        %v1770 = vsel %vm829, %v1725, 0
        %v1773 = vsel %vm829, %v1727, 0
        %v1776 = vsel %vm829, %v1729, 0
        %1778 = vmatprep.subr.bf16.mxu0 0
        %1779 = vmatpush1.bf16.xpose.msra.mxu0 %v1755
        %1780 = vmatprep.subr.bf16.mxu0 0
        %1781 = vmatpush1.bf16.xpose.msra.mxu0 %v1758
        %1782 = vmatprep.subr.bf16.mxu0 0
        %1783 = vmatpush1.bf16.xpose.msra.mxu0 %v1761
        %1784 = vmatprep.subr.bf16.mxu0 0
        %1785 = vmatpush1.bf16.xpose.msra.mxu0 %v1764
        %1786 = vmatprep.subr.bf16.mxu0 0
        %1787 = vmatpush1.bf16.xpose.msra.mxu0 %v1767
        %1788 = vmatprep.subr.bf16.mxu0 0
        %1789 = vmatpush1.bf16.xpose.msra.mxu0 %v1770
        %1790 = vmatprep.subr.bf16.mxu0 0
        %1791 = vmatpush1.bf16.xpose.msra.mxu0 %v1773
        %1792 = vmatprep.subr.bf16.mxu0 0
        %1793 = vmatpush1.bf16.xpose.msra.mxu0 %v1776
        %1794 = vmatprep.subr.bf16.mxu0 0
        %1795 = vmatpush1.bf16.xpose.msra.mxu0 0
        %1796 = vmatprep.subr.bf16.mxu0 0
        %1797 = vmatpush1.bf16.xpose.msra.mxu0 0
        %1798 = vmatprep.subr.bf16.mxu0 0
        %1799 = vmatpush1.bf16.xpose.msra.mxu0 0
        %1800 = vmatprep.subr.bf16.mxu0 0
        %1801 = vmatpush1.bf16.xpose.msra.mxu0 0
        %1802 = vmatprep.subr.bf16.mxu0 0
        %1803 = vmatpush1.bf16.xpose.msra.mxu0 0
        %1804 = vmatprep.subr.bf16.mxu0 0
        %1805 = vmatpush1.bf16.xpose.msra.mxu0 0
        %1806 = vmatprep.subr.bf16.mxu0 0
        %1807 = vmatpush1.bf16.xpose.msra.mxu0 0
        %1808 = vmatprep.subr.bf16.mxu0 0
        %1809 = vmatpush1.bf16.xpose.msra.mxu0 0
        %1810 = vmatprep.mubr.bf16.mxu0 0
        %1811 = vmatmul.mubr.bf16.gmra.mrb[0].mxu0 %v1731
        %v1812 = vpop.f32.mrb[0].mxu0
        %v1813 = vadd.f32 %v379, %v1812
        %v1814 = vpop.f32.mrb[0].mxu0
        %v1815 = vpop.f32.mrb[0].mxu0
        %v1816 = vadd.f32 %v380, %v1815
        %v1817 = vpop.f32.mrb[0].mxu0
        %1818 = vmatprep.mubr.bf16.mxu0 0
        %1819 = vmatmul.mubr.bf16.gmra.mrb[0].mxu0 %v1734
        %v1820 = vpop.f32.mrb[0].mxu0
        %v1821 = vadd.f32 %v381, %v1820
        %v1822 = vpop.f32.mrb[0].mxu0
        %v1823 = vpop.f32.mrb[0].mxu0
        %v1824 = vadd.f32 %v382, %v1823
        %v1825 = vpop.f32.mrb[0].mxu0
        %1826 = vmatprep.mubr.bf16.mxu0 0
        %1827 = vmatmul.mubr.bf16.gmra.mrb[0].mxu0 %v1737
        %v1828 = vpop.f32.mrb[0].mxu0
        %v1829 = vadd.f32 %v383, %v1828
        %v1830 = vpop.f32.mrb[0].mxu0
        %v1831 = vpop.f32.mrb[0].mxu0
        %v1832 = vadd.f32 %v384, %v1831
        %v1833 = vpop.f32.mrb[0].mxu0
        %1834 = vmatprep.mubr.bf16.mxu0 0
        %1835 = vmatmul.mubr.bf16.gmra.mrb[0].mxu0 %v1740
        %v1836 = vpop.f32.mrb[0].mxu0
        %v1837 = vadd.f32 %v385, %v1836
        %v1838 = vpop.f32.mrb[0].mxu0
        %v1839 = vpop.f32.mrb[0].mxu0
        %v1840 = vadd.f32 %v386, %v1839
        %v1841 = vpop.f32.mrb[0].mxu0
        %1842 = vmatprep.mubr.bf16.mxu0 0
        %1843 = vmatmul.mubr.bf16.gmra.mrb[0].mxu0 %v1743
        %v1844 = vpop.f32.mrb[0].mxu0
        %v1845 = vadd.f32 %v387, %v1844
        %v1846 = vpop.f32.mrb[0].mxu0
        %v1847 = vpop.f32.mrb[0].mxu0
        %v1848 = vadd.f32 %v388, %v1847
        %v1849 = vpop.f32.mrb[0].mxu0
        %1850 = vmatprep.mubr.bf16.mxu0 0
        %1851 = vmatmul.mubr.bf16.gmra.mrb[0].mxu0 %v1746
        %v1852 = vpop.f32.mrb[0].mxu0
        %v1853 = vadd.f32 %v389, %v1852
        %v1854 = vpop.f32.mrb[0].mxu0
        %v1855 = vpop.f32.mrb[0].mxu0
        %v1856 = vadd.f32 %v390, %v1855
        %v1857 = vpop.f32.mrb[0].mxu0
        %1858 = vmatprep.mubr.bf16.mxu0 0
        %1859 = vmatmul.mubr.bf16.gmra.mrb[0].mxu0 %v1749
        %v1860 = vpop.f32.mrb[0].mxu0
        %v1861 = vadd.f32 %v391, %v1860
        %v1862 = vpop.f32.mrb[0].mxu0
        %v1863 = vpop.f32.mrb[0].mxu0
        %v1864 = vadd.f32 %v392, %v1863
        %v1865 = vpop.f32.mrb[0].mxu0
        %1866 = vmatprep.mubr.bf16.mxu0 0
        %1867 = vmatmul.mubr.bf16.gmra.mrb[0].mxu0 %v1752
        %v1868 = vpop.f32.mrb[0].mxu0
        %v1869 = vadd.f32 %v393, %v1868
        %v1870 = vpop.f32.mrb[0].mxu0
        %v1871 = vpop.f32.mrb[0].mxu0
        %v1872 = vadd.f32 %v394, %v1871
        %v1873 = vpop.f32.mrb[0].mxu0
        %1874 = vdwg.mxu0
        %1875 = vmax.xlane.f32.xlu0 %v1813
        %v1876 = vpop.xlane.xlu0 %1875
        %1877 = vmax.xlane.f32.xlu0 %v1816
        %v1878 = vpop.xlane.xlu0 %1877
        %1879 = vmax.xlane.f32.xlu0 %v1821
        %v1880 = vpop.xlane.xlu0 %1879
        %1881 = vmax.xlane.f32.xlu0 %v1824
        %v1882 = vpop.xlane.xlu0 %1881
        %1883 = vmax.xlane.f32.xlu0 %v1829
        %v1884 = vpop.xlane.xlu0 %1883
        %1885 = vmax.xlane.f32.xlu0 %v1832
        %v1886 = vpop.xlane.xlu0 %1885
        %1887 = vmax.xlane.f32.xlu0 %v1837
        %v1888 = vpop.xlane.xlu0 %1887
        %1889 = vmax.xlane.f32.xlu0 %v1840
        %v1890 = vpop.xlane.xlu0 %1889
        %1891 = vmax.xlane.f32.xlu0 %v1845
        %v1892 = vpop.xlane.xlu0 %1891
        %1893 = vmax.xlane.f32.xlu0 %v1848
        %v1894 = vpop.xlane.xlu0 %1893
        %1895 = vmax.xlane.f32.xlu0 %v1853
        %v1896 = vpop.xlane.xlu0 %1895
        %1897 = vmax.xlane.f32.xlu0 %v1856
        %v1898 = vpop.xlane.xlu0 %1897
        %1899 = vmax.xlane.f32.xlu0 %v1861
        %v1900 = vpop.xlane.xlu0 %1899
        %1901 = vmax.xlane.f32.xlu0 %v1864
        %v1902 = vpop.xlane.xlu0 %1901
        %1903 = vmax.xlane.f32.xlu0 %v1869
        %v1904 = vpop.xlane.xlu0 %1903
        %1905 = vmax.xlane.f32.xlu0 %v1872
        %v1906 = vpop.xlane.xlu0 %1905
        %v1907 = vsub.f32 %v1813, %v1876
        %v1908 = vsub.f32 %v1816, %v1878
        %v1909 = vsub.f32 %v1821, %v1880
        %v1910 = vsub.f32 %v1824, %v1882
        %v1911 = vsub.f32 %v1829, %v1884
        %v1912 = vsub.f32 %v1832, %v1886
        %v1913 = vsub.f32 %v1837, %v1888
        %v1914 = vsub.f32 %v1840, %v1890
        %v1915 = vsub.f32 %v1845, %v1892
        %v1916 = vsub.f32 %v1848, %v1894
        %v1917 = vsub.f32 %v1853, %v1896
        %v1918 = vsub.f32 %v1856, %v1898
        %v1919 = vsub.f32 %v1861, %v1900
        %v1920 = vsub.f32 %v1864, %v1902
        %v1921 = vsub.f32 %v1869, %v1904
        %v1922 = vsub.f32 %v1872, %v1906
        %v1923 = vmul.f32 %v1907, 1.442695
        %v1924 = vpow.pop %v1923
        %v1925 = vmul.f32 %v1908, 1.442695
        %v1926 = vpow.pop %v1925
        %v1927 = vmul.f32 %v1909, 1.442695
        %v1928 = vpow.pop %v1927
        %v1929 = vmul.f32 %v1910, 1.442695
        %v1930 = vpow.pop %v1929
        %v1931 = vmul.f32 %v1911, 1.442695
        %v1932 = vpow.pop %v1931
        %v1933 = vmul.f32 %v1912, 1.442695
        %v1934 = vpow.pop %v1933
        %v1935 = vmul.f32 %v1913, 1.442695
        %v1936 = vpow.pop %v1935
        %v1937 = vmul.f32 %v1914, 1.442695
        %v1938 = vpow.pop %v1937
        %v1939 = vmul.f32 %v1915, 1.442695
        %v1940 = vpow.pop %v1939
        %v1941 = vmul.f32 %v1916, 1.442695
        %v1942 = vpow.pop %v1941
        %v1943 = vmul.f32 %v1917, 1.442695
        %v1944 = vpow.pop %v1943
        %v1945 = vmul.f32 %v1918, 1.442695
        %v1946 = vpow.pop %v1945
        %v1947 = vmul.f32 %v1919, 1.442695
        %v1948 = vpow.pop %v1947
        %v1949 = vmul.f32 %v1920, 1.442695
        %v1950 = vpow.pop %v1949
        %v1951 = vmul.f32 %v1921, 1.442695
        %v1952 = vpow.pop %v1951
        %v1953 = vmul.f32 %v1922, 1.442695
        %v1954 = vpow.pop %v1953
        %1955 = vadd.xlane.f32.xlu0 %v1924
        %v1956 = vpop.xlane.xlu0 %1955
        %1957 = vadd.xlane.f32.xlu0 %v1926
        %v1958 = vpop.xlane.xlu0 %1957
        %1959 = vadd.xlane.f32.xlu0 %v1928
        %v1960 = vpop.xlane.xlu0 %1959
        %1961 = vadd.xlane.f32.xlu0 %v1930
        %v1962 = vpop.xlane.xlu0 %1961
        %1963 = vadd.xlane.f32.xlu0 %v1932
        %v1964 = vpop.xlane.xlu0 %1963
        %1965 = vadd.xlane.f32.xlu0 %v1934
        %v1966 = vpop.xlane.xlu0 %1965
        %1967 = vadd.xlane.f32.xlu0 %v1936
        %v1968 = vpop.xlane.xlu0 %1967
        %1969 = vadd.xlane.f32.xlu0 %v1938
        %v1970 = vpop.xlane.xlu0 %1969
        %1971 = vadd.xlane.f32.xlu0 %v1940
        %v1972 = vpop.xlane.xlu0 %1971
        %1973 = vadd.xlane.f32.xlu0 %v1942
        %v1974 = vpop.xlane.xlu0 %1973
        %1975 = vadd.xlane.f32.xlu0 %v1944
        %v1976 = vpop.xlane.xlu0 %1975
        %1977 = vadd.xlane.f32.xlu0 %v1946
        %v1978 = vpop.xlane.xlu0 %1977
        %1979 = vadd.xlane.f32.xlu0 %v1948
        %v1980 = vpop.xlane.xlu0 %1979
        %1981 = vadd.xlane.f32.xlu0 %v1950
        %v1982 = vpop.xlane.xlu0 %1981
        %1983 = vadd.xlane.f32.xlu0 %v1952
        %v1984 = vpop.xlane.xlu0 %1983
        %1985 = vadd.xlane.f32.xlu0 %v1954
        %v1986 = vpop.xlane.xlu0 %1985
        %v1987 = vrcp.pop %v1956
        %v1988 = vrcp.pop %v1958
        %v1989 = vrcp.pop %v1960
        %v1990 = vrcp.pop %v1962
        %v1991 = vrcp.pop %v1964
        %v1992 = vrcp.pop %v1966
        %v1993 = vrcp.pop %v1968
        %v1994 = vrcp.pop %v1970
        %v1995 = vrcp.pop %v1972
        %v1996 = vrcp.pop %v1974
        %v1997 = vrcp.pop %v1976
        %v1998 = vrcp.pop %v1978
        %v1999 = vrcp.pop %v1980
        %v2000 = vrcp.pop %v1982
        %v2001 = vrcp.pop %v1984
        %v2002 = vrcp.pop %v1986
        %v2003 = vpack.c.bf16 %v1926, %v1924
        %v2004 = vpack.c.bf16 %v1930, %v1928
        %v2005 = vpack.c.bf16 %v1934, %v1932
        %v2006 = vpack.c.bf16 %v1938, %v1936
        %v2007 = vpack.c.bf16 %v1942, %v1940
        %v2008 = vpack.c.bf16 %v1946, %v1944
        %v2009 = vpack.c.bf16 %v1950, %v1948
        %v2010 = vpack.c.bf16 %v1954, %v1952
        %2011 = vrot.lane.b32.xlu0 %v797, 48
        %v2012 = vpop.permute.xlu0 %2011
        %2013 = vrot.lane.b32.xlu0 %v798, 48
        %v2014 = vpop.permute.xlu0 %2013
        %2015 = vrot.lane.b32.xlu0 %v799, 48
        %v2016 = vpop.permute.xlu0 %2015
        %2017 = vrot.lane.b32.xlu0 %v800, 48
        %v2018 = vpop.permute.xlu0 %2017
        %2019 = vrot.lane.b32.xlu0 %v801, 48
        %v2020 = vpop.permute.xlu0 %2019
        %2021 = vrot.lane.b32.xlu0 %v802, 48
        %v2022 = vpop.permute.xlu0 %2021
        %2023 = vrot.lane.b32.xlu0 %v803, 48
        %v2024 = vpop.permute.xlu0 %2023
        %2025 = vrot.lane.b32.xlu0 %v804, 48
        %v2026 = vpop.permute.xlu0 %2025
        %2035 = vmatprep.subr.bf16.mxu0 0
        %2036 = vmatpush1.bf16.msra.mxu0 %v2012
        %2037 = vmatprep.subr.bf16.mxu0 0
        %2038 = vmatpush1.bf16.msra.mxu0 %v2014
        %2039 = vmatprep.subr.bf16.mxu0 0
        %2040 = vmatpush1.bf16.msra.mxu0 %v2016
        %2041 = vmatprep.subr.bf16.mxu0 0
        %2042 = vmatpush1.bf16.msra.mxu0 %v2018
        %2043 = vmatprep.subr.bf16.mxu0 0
        %2044 = vmatpush1.bf16.msra.mxu0 %v2020
        %2045 = vmatprep.subr.bf16.mxu0 0
        %2046 = vmatpush1.bf16.msra.mxu0 %v2022
        %2047 = vmatprep.subr.bf16.mxu0 0
        %2048 = vmatpush1.bf16.msra.mxu0 %v2024
        %2049 = vmatprep.subr.bf16.mxu0 0
        %2050 = vmatpush1.bf16.msra.mxu0 %v2026
        %2051 = vmatprep.subr.bf16.mxu0 0
        %2052 = vmatpush1.bf16.msra.mxu0 0
        %2053 = vmatprep.subr.bf16.mxu0 0
        %2054 = vmatpush1.bf16.msra.mxu0 0
        %2055 = vmatprep.subr.bf16.mxu0 0
        %2056 = vmatpush1.bf16.msra.mxu0 0
        %2057 = vmatprep.subr.bf16.mxu0 0
        %2058 = vmatpush1.bf16.msra.mxu0 0
        %2059 = vmatprep.subr.bf16.mxu0 0
        %2060 = vmatpush1.bf16.msra.mxu0 0
        %2061 = vmatprep.subr.bf16.mxu0 0
        %2062 = vmatpush1.bf16.msra.mxu0 0
        %2063 = vmatprep.subr.bf16.mxu0 0
        %2064 = vmatpush1.bf16.msra.mxu0 0
        %2065 = vmatprep.subr.bf16.mxu0 0
        %2066 = vmatpush1.bf16.msra.mxu0 0
        %2067 = vmatprep.mubr.bf16.mxu0 0
        %2068 = vmatmul.mubr.bf16.gmra.mrb[0].mxu0 %v2003
        %v2069 = vpop.f32.mrb[0].mxu0
        %v2070 = vadd.f32 0.0, %v2069
        %v2071 = vpop.f32.mrb[0].mxu0
        %v2072 = vpop.f32.mrb[0].mxu0
        %v2073 = vadd.f32 0.0, %v2072
        %v2074 = vpop.f32.mrb[0].mxu0
        %2075 = vmatprep.mubr.bf16.mxu0 0
        %2076 = vmatmul.mubr.bf16.gmra.mrb[0].mxu0 %v2004
        %v2077 = vpop.f32.mrb[0].mxu0
        %v2078 = vadd.f32 0.0, %v2077
        %v2079 = vpop.f32.mrb[0].mxu0
        %v2080 = vpop.f32.mrb[0].mxu0
        %v2081 = vadd.f32 0.0, %v2080
        %v2082 = vpop.f32.mrb[0].mxu0
        %2083 = vmatprep.mubr.bf16.mxu0 0
        %2084 = vmatmul.mubr.bf16.gmra.mrb[0].mxu0 %v2005
        %v2085 = vpop.f32.mrb[0].mxu0
        %v2086 = vadd.f32 0.0, %v2085
        %v2087 = vpop.f32.mrb[0].mxu0
        %v2088 = vpop.f32.mrb[0].mxu0
        %v2089 = vadd.f32 0.0, %v2088
        %v2090 = vpop.f32.mrb[0].mxu0
        %2091 = vmatprep.mubr.bf16.mxu0 0
        %2092 = vmatmul.mubr.bf16.gmra.mrb[0].mxu0 %v2006
        %v2093 = vpop.f32.mrb[0].mxu0
        %v2094 = vadd.f32 0.0, %v2093
        %v2095 = vpop.f32.mrb[0].mxu0
        %v2096 = vpop.f32.mrb[0].mxu0
        %v2097 = vadd.f32 0.0, %v2096
        %v2098 = vpop.f32.mrb[0].mxu0
        %2099 = vmatprep.mubr.bf16.mxu0 0
        %2100 = vmatmul.mubr.bf16.gmra.mrb[0].mxu0 %v2007
        %v2101 = vpop.f32.mrb[0].mxu0
        %v2102 = vadd.f32 0.0, %v2101
        %v2103 = vpop.f32.mrb[0].mxu0
        %v2104 = vpop.f32.mrb[0].mxu0
        %v2105 = vadd.f32 0.0, %v2104
        %v2106 = vpop.f32.mrb[0].mxu0
        %2107 = vmatprep.mubr.bf16.mxu0 0
        %2108 = vmatmul.mubr.bf16.gmra.mrb[0].mxu0 %v2008
        %v2109 = vpop.f32.mrb[0].mxu0
        %v2110 = vadd.f32 0.0, %v2109
        %v2111 = vpop.f32.mrb[0].mxu0
        %v2112 = vpop.f32.mrb[0].mxu0
        %v2113 = vadd.f32 0.0, %v2112
        %v2114 = vpop.f32.mrb[0].mxu0
        %2115 = vmatprep.mubr.bf16.mxu0 0
        %2116 = vmatmul.mubr.bf16.gmra.mrb[0].mxu0 %v2009
        %v2117 = vpop.f32.mrb[0].mxu0
        %v2118 = vadd.f32 0.0, %v2117
        %v2119 = vpop.f32.mrb[0].mxu0
        %v2120 = vpop.f32.mrb[0].mxu0
        %v2121 = vadd.f32 0.0, %v2120
        %v2122 = vpop.f32.mrb[0].mxu0
        %2123 = vmatprep.mubr.bf16.mxu0 0
        %2124 = vmatmul.mubr.bf16.gmra.mrb[0].mxu0 %v2010
        %v2125 = vpop.f32.mrb[0].mxu0
        %v2126 = vadd.f32 0.0, %v2125
        %v2127 = vpop.f32.mrb[0].mxu0
        %v2128 = vpop.f32.mrb[0].mxu0
        %v2129 = vadd.f32 0.0, %v2128
        %v2130 = vpop.f32.mrb[0].mxu0
        %2131 = vdwg.mxu0
        %v2132 = vmul.f32 %v2070, %v1987
        %v2133 = vmul.f32 %v2073, %v1988
        %v2134 = vmul.f32 %v2078, %v1989
        %v2135 = vmul.f32 %v2081, %v1990
        %v2136 = vmul.f32 %v2086, %v1991
        %v2137 = vmul.f32 %v2089, %v1992
        %v2138 = vmul.f32 %v2094, %v1993
        %v2139 = vmul.f32 %v2097, %v1994
        %v2140 = vmul.f32 %v2102, %v1995
        %v2141 = vmul.f32 %v2105, %v1996
        %v2142 = vmul.f32 %v2110, %v1997
        %v2143 = vmul.f32 %v2113, %v1998
        %v2144 = vmul.f32 %v2118, %v1999
        %v2145 = vmul.f32 %v2121, %v2000
        %v2146 = vmul.f32 %v2126, %v2001
        %v2147 = vmul.f32 %v2129, %v2002
        %2148 = vrot.lane.b32.xlu0 %v797, 104
        %v2149 = vpop.permute.xlu0 %2148
        %2150 = vrot.lane.b32.xlu0 %v798, 104
        %v2151 = vpop.permute.xlu0 %2150
        %2152 = vrot.lane.b32.xlu0 %v799, 104
        %v2153 = vpop.permute.xlu0 %2152
        %2154 = vrot.lane.b32.xlu0 %v800, 104
        %v2155 = vpop.permute.xlu0 %2154
        %2156 = vrot.lane.b32.xlu0 %v801, 104
        %v2157 = vpop.permute.xlu0 %2156
        %2158 = vrot.lane.b32.xlu0 %v802, 104
        %v2159 = vpop.permute.xlu0 %2158
        %2160 = vrot.lane.b32.xlu0 %v803, 104
        %v2161 = vpop.permute.xlu0 %2160
        %2162 = vrot.lane.b32.xlu0 %v804, 104
        %v2163 = vpop.permute.xlu0 %2162
        %2164 = vrot.lane.b32.xlu0 %v797, 72
        %v2165 = vpop.permute.xlu0 %2164
        %2166 = vrot.lane.b32.xlu0 %v798, 72
        %v2167 = vpop.permute.xlu0 %2166
        %2168 = vrot.lane.b32.xlu0 %v799, 72
        %v2169 = vpop.permute.xlu0 %2168
        %2170 = vrot.lane.b32.xlu0 %v800, 72
        %v2171 = vpop.permute.xlu0 %2170
        %2172 = vrot.lane.b32.xlu0 %v801, 72
        %v2173 = vpop.permute.xlu0 %2172
        %2174 = vrot.lane.b32.xlu0 %v802, 72
        %v2175 = vpop.permute.xlu0 %2174
        %2176 = vrot.lane.b32.xlu0 %v803, 72
        %v2177 = vpop.permute.xlu0 %2176
        %2178 = vrot.lane.b32.xlu0 %v804, 72
        %v2179 = vpop.permute.xlu0 %2178
        %v2181 = vsel %vm829, %v2149, 0
        %v2184 = vsel %vm829, %v2151, 0
        %v2187 = vsel %vm829, %v2153, 0
        %v2190 = vsel %vm829, %v2155, 0
        %v2193 = vsel %vm829, %v2157, 0
        %v2196 = vsel %vm829, %v2159, 0
        %v2199 = vsel %vm829, %v2161, 0
        %v2202 = vsel %vm829, %v2163, 0
        %v2205 = vsel %vm829, %v2165, 0
        %v2208 = vsel %vm829, %v2167, 0
        %v2211 = vsel %vm829, %v2169, 0
        %v2214 = vsel %vm829, %v2171, 0
        %v2217 = vsel %vm829, %v2173, 0
        %v2220 = vsel %vm829, %v2175, 0
        %v2223 = vsel %vm829, %v2177, 0
        %v2226 = vsel %vm829, %v2179, 0
        %2228 = vmatprep.subr.bf16.mxu0 0
        %2229 = vmatpush1.bf16.xpose.msra.mxu0 %v2205
        %2230 = vmatprep.subr.bf16.mxu0 0
        %2231 = vmatpush1.bf16.xpose.msra.mxu0 %v2208
        %2232 = vmatprep.subr.bf16.mxu0 0
        %2233 = vmatpush1.bf16.xpose.msra.mxu0 %v2211
        %2234 = vmatprep.subr.bf16.mxu0 0
        %2235 = vmatpush1.bf16.xpose.msra.mxu0 %v2214
        %2236 = vmatprep.subr.bf16.mxu0 0
        %2237 = vmatpush1.bf16.xpose.msra.mxu0 %v2217
        %2238 = vmatprep.subr.bf16.mxu0 0
        %2239 = vmatpush1.bf16.xpose.msra.mxu0 %v2220
        %2240 = vmatprep.subr.bf16.mxu0 0
        %2241 = vmatpush1.bf16.xpose.msra.mxu0 %v2223
        %2242 = vmatprep.subr.bf16.mxu0 0
        %2243 = vmatpush1.bf16.xpose.msra.mxu0 %v2226
        %2244 = vmatprep.subr.bf16.mxu0 0
        %2245 = vmatpush1.bf16.xpose.msra.mxu0 0
        %2246 = vmatprep.subr.bf16.mxu0 0
        %2247 = vmatpush1.bf16.xpose.msra.mxu0 0
        %2248 = vmatprep.subr.bf16.mxu0 0
        %2249 = vmatpush1.bf16.xpose.msra.mxu0 0
        %2250 = vmatprep.subr.bf16.mxu0 0
        %2251 = vmatpush1.bf16.xpose.msra.mxu0 0
        %2252 = vmatprep.subr.bf16.mxu0 0
        %2253 = vmatpush1.bf16.xpose.msra.mxu0 0
        %2254 = vmatprep.subr.bf16.mxu0 0
        %2255 = vmatpush1.bf16.xpose.msra.mxu0 0
        %2256 = vmatprep.subr.bf16.mxu0 0
        %2257 = vmatpush1.bf16.xpose.msra.mxu0 0
        %2258 = vmatprep.subr.bf16.mxu0 0
        %2259 = vmatpush1.bf16.xpose.msra.mxu0 0
        %2260 = vmatprep.mubr.bf16.mxu0 0
        %2261 = vmatmul.mubr.bf16.gmra.mrb[0].mxu0 %v2181
        %v2262 = vpop.f32.mrb[0].mxu0
        %v2263 = vadd.f32 %v379, %v2262
        %v2264 = vpop.f32.mrb[0].mxu0
        %v2265 = vpop.f32.mrb[0].mxu0
        %v2266 = vadd.f32 %v380, %v2265
        %v2267 = vpop.f32.mrb[0].mxu0
        %2268 = vmatprep.mubr.bf16.mxu0 0
        %2269 = vmatmul.mubr.bf16.gmra.mrb[0].mxu0 %v2184
        %v2270 = vpop.f32.mrb[0].mxu0
        %v2271 = vadd.f32 %v381, %v2270
        %v2272 = vpop.f32.mrb[0].mxu0
        %v2273 = vpop.f32.mrb[0].mxu0
        %v2274 = vadd.f32 %v382, %v2273
        %v2275 = vpop.f32.mrb[0].mxu0
        %2276 = vmatprep.mubr.bf16.mxu0 0
        %2277 = vmatmul.mubr.bf16.gmra.mrb[0].mxu0 %v2187
        %v2278 = vpop.f32.mrb[0].mxu0
        %v2279 = vadd.f32 %v383, %v2278
        %v2280 = vpop.f32.mrb[0].mxu0
        %v2281 = vpop.f32.mrb[0].mxu0
        %v2282 = vadd.f32 %v384, %v2281
        %v2283 = vpop.f32.mrb[0].mxu0
        %2284 = vmatprep.mubr.bf16.mxu0 0
        %2285 = vmatmul.mubr.bf16.gmra.mrb[0].mxu0 %v2190
        %v2286 = vpop.f32.mrb[0].mxu0
        %v2287 = vadd.f32 %v385, %v2286
        %v2288 = vpop.f32.mrb[0].mxu0
        %v2289 = vpop.f32.mrb[0].mxu0
        %v2290 = vadd.f32 %v386, %v2289
        %v2291 = vpop.f32.mrb[0].mxu0
        %2292 = vmatprep.mubr.bf16.mxu0 0
        %2293 = vmatmul.mubr.bf16.gmra.mrb[0].mxu0 %v2193
        %v2294 = vpop.f32.mrb[0].mxu0
        %v2295 = vadd.f32 %v387, %v2294
        %v2296 = vpop.f32.mrb[0].mxu0
        %v2297 = vpop.f32.mrb[0].mxu0
        %v2298 = vadd.f32 %v388, %v2297
        %v2299 = vpop.f32.mrb[0].mxu0
        %2300 = vmatprep.mubr.bf16.mxu0 0
        %2301 = vmatmul.mubr.bf16.gmra.mrb[0].mxu0 %v2196
        %v2302 = vpop.f32.mrb[0].mxu0
        %v2303 = vadd.f32 %v389, %v2302
        %v2304 = vpop.f32.mrb[0].mxu0
        %v2305 = vpop.f32.mrb[0].mxu0
        %v2306 = vadd.f32 %v390, %v2305
        %v2307 = vpop.f32.mrb[0].mxu0
        %2308 = vmatprep.mubr.bf16.mxu0 0
        %2309 = vmatmul.mubr.bf16.gmra.mrb[0].mxu0 %v2199
        %v2310 = vpop.f32.mrb[0].mxu0
        %v2311 = vadd.f32 %v391, %v2310
        %v2312 = vpop.f32.mrb[0].mxu0
        %v2313 = vpop.f32.mrb[0].mxu0
        %v2314 = vadd.f32 %v392, %v2313
        %v2315 = vpop.f32.mrb[0].mxu0
        %2316 = vmatprep.mubr.bf16.mxu0 0
        %2317 = vmatmul.mubr.bf16.gmra.mrb[0].mxu0 %v2202
        %v2318 = vpop.f32.mrb[0].mxu0
        %v2319 = vadd.f32 %v393, %v2318
        %v2320 = vpop.f32.mrb[0].mxu0
        %v2321 = vpop.f32.mrb[0].mxu0
        %v2322 = vadd.f32 %v394, %v2321
        %v2323 = vpop.f32.mrb[0].mxu0
        %2324 = vdwg.mxu0
        %2325 = vmax.xlane.f32.xlu0 %v2263
        %v2326 = vpop.xlane.xlu0 %2325
        %2327 = vmax.xlane.f32.xlu0 %v2266
        %v2328 = vpop.xlane.xlu0 %2327
        %2329 = vmax.xlane.f32.xlu0 %v2271
        %v2330 = vpop.xlane.xlu0 %2329
        %2331 = vmax.xlane.f32.xlu0 %v2274
        %v2332 = vpop.xlane.xlu0 %2331
        %2333 = vmax.xlane.f32.xlu0 %v2279
        %v2334 = vpop.xlane.xlu0 %2333
        %2335 = vmax.xlane.f32.xlu0 %v2282
        %v2336 = vpop.xlane.xlu0 %2335
        %2337 = vmax.xlane.f32.xlu0 %v2287
        %v2338 = vpop.xlane.xlu0 %2337
        %2339 = vmax.xlane.f32.xlu0 %v2290
        %v2340 = vpop.xlane.xlu0 %2339
        %2341 = vmax.xlane.f32.xlu0 %v2295
        %v2342 = vpop.xlane.xlu0 %2341
        %2343 = vmax.xlane.f32.xlu0 %v2298
        %v2344 = vpop.xlane.xlu0 %2343
        %2345 = vmax.xlane.f32.xlu0 %v2303
        %v2346 = vpop.xlane.xlu0 %2345
        %2347 = vmax.xlane.f32.xlu0 %v2306
        %v2348 = vpop.xlane.xlu0 %2347
        %2349 = vmax.xlane.f32.xlu0 %v2311
        %v2350 = vpop.xlane.xlu0 %2349
        %2351 = vmax.xlane.f32.xlu0 %v2314
        %v2352 = vpop.xlane.xlu0 %2351
        %2353 = vmax.xlane.f32.xlu0 %v2319
        %v2354 = vpop.xlane.xlu0 %2353
        %2355 = vmax.xlane.f32.xlu0 %v2322
        %v2356 = vpop.xlane.xlu0 %2355
        %v2357 = vsub.f32 %v2263, %v2326
        %v2358 = vsub.f32 %v2266, %v2328
        %v2359 = vsub.f32 %v2271, %v2330
        %v2360 = vsub.f32 %v2274, %v2332
        %v2361 = vsub.f32 %v2279, %v2334
        %v2362 = vsub.f32 %v2282, %v2336
        %v2363 = vsub.f32 %v2287, %v2338
        %v2364 = vsub.f32 %v2290, %v2340
        %v2365 = vsub.f32 %v2295, %v2342
        %v2366 = vsub.f32 %v2298, %v2344
        %v2367 = vsub.f32 %v2303, %v2346
        %v2368 = vsub.f32 %v2306, %v2348
        %v2369 = vsub.f32 %v2311, %v2350
        %v2370 = vsub.f32 %v2314, %v2352
        %v2371 = vsub.f32 %v2319, %v2354
        %v2372 = vsub.f32 %v2322, %v2356
        %v2373 = vmul.f32 %v2357, 1.442695
        %v2374 = vpow.pop %v2373
        %v2375 = vmul.f32 %v2358, 1.442695
        %v2376 = vpow.pop %v2375
        %v2377 = vmul.f32 %v2359, 1.442695
        %v2378 = vpow.pop %v2377
        %v2379 = vmul.f32 %v2360, 1.442695
        %v2380 = vpow.pop %v2379
        %v2381 = vmul.f32 %v2361, 1.442695
        %v2382 = vpow.pop %v2381
        %v2383 = vmul.f32 %v2362, 1.442695
        %v2384 = vpow.pop %v2383
        %v2385 = vmul.f32 %v2363, 1.442695
        %v2386 = vpow.pop %v2385
        %v2387 = vmul.f32 %v2364, 1.442695
        %v2388 = vpow.pop %v2387
        %v2389 = vmul.f32 %v2365, 1.442695
        %v2390 = vpow.pop %v2389
        %v2391 = vmul.f32 %v2366, 1.442695
        %v2392 = vpow.pop %v2391
        %v2393 = vmul.f32 %v2367, 1.442695
        %v2394 = vpow.pop %v2393
        %v2395 = vmul.f32 %v2368, 1.442695
        %v2396 = vpow.pop %v2395
        %v2397 = vmul.f32 %v2369, 1.442695
        %v2398 = vpow.pop %v2397
        %v2399 = vmul.f32 %v2370, 1.442695
        %v2400 = vpow.pop %v2399
        %v2401 = vmul.f32 %v2371, 1.442695
        %v2402 = vpow.pop %v2401
        %v2403 = vmul.f32 %v2372, 1.442695
        %v2404 = vpow.pop %v2403
        %2405 = vadd.xlane.f32.xlu0 %v2374
        %v2406 = vpop.xlane.xlu0 %2405
        %2407 = vadd.xlane.f32.xlu0 %v2376
        %v2408 = vpop.xlane.xlu0 %2407
        %2409 = vadd.xlane.f32.xlu0 %v2378
        %v2410 = vpop.xlane.xlu0 %2409
        %2411 = vadd.xlane.f32.xlu0 %v2380
        %v2412 = vpop.xlane.xlu0 %2411
        %2413 = vadd.xlane.f32.xlu0 %v2382
        %v2414 = vpop.xlane.xlu0 %2413
        %2415 = vadd.xlane.f32.xlu0 %v2384
        %v2416 = vpop.xlane.xlu0 %2415
        %2417 = vadd.xlane.f32.xlu0 %v2386
        %v2418 = vpop.xlane.xlu0 %2417
        %2419 = vadd.xlane.f32.xlu0 %v2388
        %v2420 = vpop.xlane.xlu0 %2419
        %2421 = vadd.xlane.f32.xlu0 %v2390
        %v2422 = vpop.xlane.xlu0 %2421
        %2423 = vadd.xlane.f32.xlu0 %v2392
        %v2424 = vpop.xlane.xlu0 %2423
        %2425 = vadd.xlane.f32.xlu0 %v2394
        %v2426 = vpop.xlane.xlu0 %2425
        %2427 = vadd.xlane.f32.xlu0 %v2396
        %v2428 = vpop.xlane.xlu0 %2427
        %2429 = vadd.xlane.f32.xlu0 %v2398
        %v2430 = vpop.xlane.xlu0 %2429
        %2431 = vadd.xlane.f32.xlu0 %v2400
        %v2432 = vpop.xlane.xlu0 %2431
        %2433 = vadd.xlane.f32.xlu0 %v2402
        %v2434 = vpop.xlane.xlu0 %2433
        %2435 = vadd.xlane.f32.xlu0 %v2404
        %v2436 = vpop.xlane.xlu0 %2435
        %v2437 = vrcp.pop %v2406
        %v2438 = vrcp.pop %v2408
        %v2439 = vrcp.pop %v2410
        %v2440 = vrcp.pop %v2412
        %v2441 = vrcp.pop %v2414
        %v2442 = vrcp.pop %v2416
        %v2443 = vrcp.pop %v2418
        %v2444 = vrcp.pop %v2420
        %v2445 = vrcp.pop %v2422
        %v2446 = vrcp.pop %v2424
        %v2447 = vrcp.pop %v2426
        %v2448 = vrcp.pop %v2428
        %v2449 = vrcp.pop %v2430
        %v2450 = vrcp.pop %v2432
        %v2451 = vrcp.pop %v2434
        %v2452 = vrcp.pop %v2436
        %v2453 = vpack.c.bf16 %v2376, %v2374
        %v2454 = vpack.c.bf16 %v2380, %v2378
        %v2455 = vpack.c.bf16 %v2384, %v2382
        %v2456 = vpack.c.bf16 %v2388, %v2386
        %v2457 = vpack.c.bf16 %v2392, %v2390
        %v2458 = vpack.c.bf16 %v2396, %v2394
        %v2459 = vpack.c.bf16 %v2400, %v2398
        %v2460 = vpack.c.bf16 %v2404, %v2402
        %2461 = vrot.lane.b32.xlu0 %v797, 40
        %v2462 = vpop.permute.xlu0 %2461
        %2463 = vrot.lane.b32.xlu0 %v798, 40
        %v2464 = vpop.permute.xlu0 %2463
        %2465 = vrot.lane.b32.xlu0 %v799, 40
        %v2466 = vpop.permute.xlu0 %2465
        %2467 = vrot.lane.b32.xlu0 %v800, 40
        %v2468 = vpop.permute.xlu0 %2467
        %2469 = vrot.lane.b32.xlu0 %v801, 40
        %v2470 = vpop.permute.xlu0 %2469
        %2471 = vrot.lane.b32.xlu0 %v802, 40
        %v2472 = vpop.permute.xlu0 %2471
        %2473 = vrot.lane.b32.xlu0 %v803, 40
        %v2474 = vpop.permute.xlu0 %2473
        %2475 = vrot.lane.b32.xlu0 %v804, 40
        %v2476 = vpop.permute.xlu0 %2475
        %2485 = vmatprep.subr.bf16.mxu0 0
        %2486 = vmatpush1.bf16.msra.mxu0 %v2462
        %2487 = vmatprep.subr.bf16.mxu0 0
        %2488 = vmatpush1.bf16.msra.mxu0 %v2464
        %2489 = vmatprep.subr.bf16.mxu0 0
        %2490 = vmatpush1.bf16.msra.mxu0 %v2466
        %2491 = vmatprep.subr.bf16.mxu0 0
        %2492 = vmatpush1.bf16.msra.mxu0 %v2468
        %2493 = vmatprep.subr.bf16.mxu0 0
        %2494 = vmatpush1.bf16.msra.mxu0 %v2470
        %2495 = vmatprep.subr.bf16.mxu0 0
        %2496 = vmatpush1.bf16.msra.mxu0 %v2472
        %2497 = vmatprep.subr.bf16.mxu0 0
        %2498 = vmatpush1.bf16.msra.mxu0 %v2474
        %2499 = vmatprep.subr.bf16.mxu0 0
        %2500 = vmatpush1.bf16.msra.mxu0 %v2476
        %2501 = vmatprep.subr.bf16.mxu0 0
        %2502 = vmatpush1.bf16.msra.mxu0 0
        %2503 = vmatprep.subr.bf16.mxu0 0
        %2504 = vmatpush1.bf16.msra.mxu0 0
        %2505 = vmatprep.subr.bf16.mxu0 0
        %2506 = vmatpush1.bf16.msra.mxu0 0
        %2507 = vmatprep.subr.bf16.mxu0 0
        %2508 = vmatpush1.bf16.msra.mxu0 0
        %2509 = vmatprep.subr.bf16.mxu0 0
        %2510 = vmatpush1.bf16.msra.mxu0 0
        %2511 = vmatprep.subr.bf16.mxu0 0
        %2512 = vmatpush1.bf16.msra.mxu0 0
        %2513 = vmatprep.subr.bf16.mxu0 0
        %2514 = vmatpush1.bf16.msra.mxu0 0
        %2515 = vmatprep.subr.bf16.mxu0 0
        %2516 = vmatpush1.bf16.msra.mxu0 0
        %2517 = vmatprep.mubr.bf16.mxu0 0
        %2518 = vmatmul.mubr.bf16.gmra.mrb[0].mxu0 %v2453
        %v2519 = vpop.f32.mrb[0].mxu0
        %v2520 = vadd.f32 0.0, %v2519
        %v2521 = vpop.f32.mrb[0].mxu0
        %v2522 = vpop.f32.mrb[0].mxu0
        %v2523 = vadd.f32 0.0, %v2522
        %v2524 = vpop.f32.mrb[0].mxu0
        %2525 = vmatprep.mubr.bf16.mxu0 0
        %2526 = vmatmul.mubr.bf16.gmra.mrb[0].mxu0 %v2454
        %v2527 = vpop.f32.mrb[0].mxu0
        %v2528 = vadd.f32 0.0, %v2527
        %v2529 = vpop.f32.mrb[0].mxu0
        %v2530 = vpop.f32.mrb[0].mxu0
        %v2531 = vadd.f32 0.0, %v2530
        %v2532 = vpop.f32.mrb[0].mxu0
        %2533 = vmatprep.mubr.bf16.mxu0 0
        %2534 = vmatmul.mubr.bf16.gmra.mrb[0].mxu0 %v2455
        %v2535 = vpop.f32.mrb[0].mxu0
        %v2536 = vadd.f32 0.0, %v2535
        %v2537 = vpop.f32.mrb[0].mxu0
        %v2538 = vpop.f32.mrb[0].mxu0
        %v2539 = vadd.f32 0.0, %v2538
        %v2540 = vpop.f32.mrb[0].mxu0
        %2541 = vmatprep.mubr.bf16.mxu0 0
        %2542 = vmatmul.mubr.bf16.gmra.mrb[0].mxu0 %v2456
        %v2543 = vpop.f32.mrb[0].mxu0
        %v2544 = vadd.f32 0.0, %v2543
        %v2545 = vpop.f32.mrb[0].mxu0
        %v2546 = vpop.f32.mrb[0].mxu0
        %v2547 = vadd.f32 0.0, %v2546
        %v2548 = vpop.f32.mrb[0].mxu0
        %2549 = vmatprep.mubr.bf16.mxu0 0
        %2550 = vmatmul.mubr.bf16.gmra.mrb[0].mxu0 %v2457
        %v2551 = vpop.f32.mrb[0].mxu0
        %v2552 = vadd.f32 0.0, %v2551
        %v2553 = vpop.f32.mrb[0].mxu0
        %v2554 = vpop.f32.mrb[0].mxu0
        %v2555 = vadd.f32 0.0, %v2554
        %v2556 = vpop.f32.mrb[0].mxu0
        %2557 = vmatprep.mubr.bf16.mxu0 0
        %2558 = vmatmul.mubr.bf16.gmra.mrb[0].mxu0 %v2458
        %v2559 = vpop.f32.mrb[0].mxu0
        %v2560 = vadd.f32 0.0, %v2559
        %v2561 = vpop.f32.mrb[0].mxu0
        %v2562 = vpop.f32.mrb[0].mxu0
        %v2563 = vadd.f32 0.0, %v2562
        %v2564 = vpop.f32.mrb[0].mxu0
        %2565 = vmatprep.mubr.bf16.mxu0 0
        %2566 = vmatmul.mubr.bf16.gmra.mrb[0].mxu0 %v2459
        %v2567 = vpop.f32.mrb[0].mxu0
        %v2568 = vadd.f32 0.0, %v2567
        %v2569 = vpop.f32.mrb[0].mxu0
        %v2570 = vpop.f32.mrb[0].mxu0
        %v2571 = vadd.f32 0.0, %v2570
        %v2572 = vpop.f32.mrb[0].mxu0
        %2573 = vmatprep.mubr.bf16.mxu0 0
        %2574 = vmatmul.mubr.bf16.gmra.mrb[0].mxu0 %v2460
        %v2575 = vpop.f32.mrb[0].mxu0
        %v2576 = vadd.f32 0.0, %v2575
        %v2577 = vpop.f32.mrb[0].mxu0
        %v2578 = vpop.f32.mrb[0].mxu0
        %v2579 = vadd.f32 0.0, %v2578
        %v2580 = vpop.f32.mrb[0].mxu0
        %2581 = vdwg.mxu0
        %v2582 = vmul.f32 %v2520, %v2437
        %v2583 = vmul.f32 %v2523, %v2438
        %v2584 = vmul.f32 %v2528, %v2439
        %v2585 = vmul.f32 %v2531, %v2440
        %v2586 = vmul.f32 %v2536, %v2441
        %v2587 = vmul.f32 %v2539, %v2442
        %v2588 = vmul.f32 %v2544, %v2443
        %v2589 = vmul.f32 %v2547, %v2444
        %v2590 = vmul.f32 %v2552, %v2445
        %v2591 = vmul.f32 %v2555, %v2446
        %v2592 = vmul.f32 %v2560, %v2447
        %v2593 = vmul.f32 %v2563, %v2448
        %v2594 = vmul.f32 %v2568, %v2449
        %v2595 = vmul.f32 %v2571, %v2450
        %v2596 = vmul.f32 %v2576, %v2451
        %v2597 = vmul.f32 %v2579, %v2452
        %2614 = vrot.lane.b32.xlu0 %v1682, 8
        %v2615 = vpop.permute.xlu0 %2614
        %2616 = vrot.lane.b32.xlu0 %v1683, 8
        %v2617 = vpop.permute.xlu0 %2616
        %2618 = vrot.lane.b32.xlu0 %v1684, 8
        %v2619 = vpop.permute.xlu0 %2618
        %2620 = vrot.lane.b32.xlu0 %v1685, 8
        %v2621 = vpop.permute.xlu0 %2620
        %2622 = vrot.lane.b32.xlu0 %v1686, 8
        %v2623 = vpop.permute.xlu0 %2622
        %2624 = vrot.lane.b32.xlu0 %v1687, 8
        %v2625 = vpop.permute.xlu0 %2624
        %2626 = vrot.lane.b32.xlu0 %v1688, 8
        %v2627 = vpop.permute.xlu0 %2626
        %2628 = vrot.lane.b32.xlu0 %v1689, 8
        %v2629 = vpop.permute.xlu0 %2628
        %2630 = vrot.lane.b32.xlu0 %v1690, 8
        %v2631 = vpop.permute.xlu0 %2630
        %2632 = vrot.lane.b32.xlu0 %v1691, 8
        %v2633 = vpop.permute.xlu0 %2632
        %2634 = vrot.lane.b32.xlu0 %v1692, 8
        %v2635 = vpop.permute.xlu0 %2634
        %2636 = vrot.lane.b32.xlu0 %v1693, 8
        %v2637 = vpop.permute.xlu0 %2636
        %2638 = vrot.lane.b32.xlu0 %v1694, 8
        %v2639 = vpop.permute.xlu0 %2638
        %2640 = vrot.lane.b32.xlu0 %v1695, 8
        %v2641 = vpop.permute.xlu0 %2640
        %2642 = vrot.lane.b32.xlu0 %v1696, 8
        %v2643 = vpop.permute.xlu0 %2642
        %2644 = vrot.lane.b32.xlu0 %v1697, 8
        %v2645 = vpop.permute.xlu0 %2644
        %2678 = vrot.lane.b32.xlu0 %v2132, 16
        %v2679 = vpop.permute.xlu0 %2678
        %2680 = vrot.lane.b32.xlu0 %v2133, 16
        %v2681 = vpop.permute.xlu0 %2680
        %2682 = vrot.lane.b32.xlu0 %v2134, 16
        %v2683 = vpop.permute.xlu0 %2682
        %2684 = vrot.lane.b32.xlu0 %v2135, 16
        %v2685 = vpop.permute.xlu0 %2684
        %2686 = vrot.lane.b32.xlu0 %v2136, 16
        %v2687 = vpop.permute.xlu0 %2686
        %2688 = vrot.lane.b32.xlu0 %v2137, 16
        %v2689 = vpop.permute.xlu0 %2688
        %2690 = vrot.lane.b32.xlu0 %v2138, 16
        %v2691 = vpop.permute.xlu0 %2690
        %2692 = vrot.lane.b32.xlu0 %v2139, 16
        %v2693 = vpop.permute.xlu0 %2692
        %2694 = vrot.lane.b32.xlu0 %v2140, 16
        %v2695 = vpop.permute.xlu0 %2694
        %2696 = vrot.lane.b32.xlu0 %v2141, 16
        %v2697 = vpop.permute.xlu0 %2696
        %2698 = vrot.lane.b32.xlu0 %v2142, 16
        %v2699 = vpop.permute.xlu0 %2698
        %2700 = vrot.lane.b32.xlu0 %v2143, 16
        %v2701 = vpop.permute.xlu0 %2700
        %2702 = vrot.lane.b32.xlu0 %v2144, 16
        %v2703 = vpop.permute.xlu0 %2702
        %2704 = vrot.lane.b32.xlu0 %v2145, 16
        %v2705 = vpop.permute.xlu0 %2704
        %2706 = vrot.lane.b32.xlu0 %v2146, 16
        %v2707 = vpop.permute.xlu0 %2706
        %2708 = vrot.lane.b32.xlu0 %v2147, 16
        %v2709 = vpop.permute.xlu0 %2708
        %2742 = vrot.lane.b32.xlu0 %v2582, 24
        %v2743 = vpop.permute.xlu0 %2742
        %2744 = vrot.lane.b32.xlu0 %v2583, 24
        %v2745 = vpop.permute.xlu0 %2744
        %2746 = vrot.lane.b32.xlu0 %v2584, 24
        %v2747 = vpop.permute.xlu0 %2746
        %2748 = vrot.lane.b32.xlu0 %v2585, 24
        %v2749 = vpop.permute.xlu0 %2748
        %2750 = vrot.lane.b32.xlu0 %v2586, 24
        %v2751 = vpop.permute.xlu0 %2750
        %2752 = vrot.lane.b32.xlu0 %v2587, 24
        %v2753 = vpop.permute.xlu0 %2752
        %2754 = vrot.lane.b32.xlu0 %v2588, 24
        %v2755 = vpop.permute.xlu0 %2754
        %2756 = vrot.lane.b32.xlu0 %v2589, 24
        %v2757 = vpop.permute.xlu0 %2756
        %2758 = vrot.lane.b32.xlu0 %v2590, 24
        %v2759 = vpop.permute.xlu0 %2758
        %2760 = vrot.lane.b32.xlu0 %v2591, 24
        %v2761 = vpop.permute.xlu0 %2760
        %2762 = vrot.lane.b32.xlu0 %v2592, 24
        %v2763 = vpop.permute.xlu0 %2762
        %2764 = vrot.lane.b32.xlu0 %v2593, 24
        %v2765 = vpop.permute.xlu0 %2764
        %2766 = vrot.lane.b32.xlu0 %v2594, 24
        %v2767 = vpop.permute.xlu0 %2766
        %2768 = vrot.lane.b32.xlu0 %v2595, 24
        %v2769 = vpop.permute.xlu0 %2768
        %2770 = vrot.lane.b32.xlu0 %v2596, 24
        %v2771 = vpop.permute.xlu0 %2770
        %2772 = vrot.lane.b32.xlu0 %v2597, 24
        %v2773 = vpop.permute.xlu0 %2772
        %v2790 = vsel %vm829, %v1232, %v2615
        %v2791 = vsel %vm829, %v1233, %v2617
        %v2792 = vsel %vm829, %v1234, %v2619
        %v2793 = vsel %vm829, %v1235, %v2621
        %v2794 = vsel %vm829, %v1236, %v2623
        %v2795 = vsel %vm829, %v1237, %v2625
        %v2796 = vsel %vm829, %v1238, %v2627
        %v2797 = vsel %vm829, %v1239, %v2629
        %v2798 = vsel %vm829, %v1240, %v2631
        %v2799 = vsel %vm829, %v1241, %v2633
        %v2800 = vsel %vm829, %v1242, %v2635
        %v2801 = vsel %vm829, %v1243, %v2637
        %v2802 = vsel %vm829, %v1244, %v2639
        %v2803 = vsel %vm829, %v1245, %v2641
        %v2804 = vsel %vm829, %v1246, %v2643
        %v2805 = vsel %vm829, %v1247, %v2645
        %v2806 = vsel %vm225, %v2790, %v2679
        %v2807 = vsel %vm225, %v2791, %v2681
        %v2808 = vsel %vm225, %v2792, %v2683
        %v2809 = vsel %vm225, %v2793, %v2685
        %v2810 = vsel %vm225, %v2794, %v2687
        %v2811 = vsel %vm225, %v2795, %v2689
        %v2812 = vsel %vm225, %v2796, %v2691
        %v2813 = vsel %vm225, %v2797, %v2693
        %v2814 = vsel %vm225, %v2798, %v2695
        %v2815 = vsel %vm225, %v2799, %v2697
        %v2816 = vsel %vm225, %v2800, %v2699
        %v2817 = vsel %vm225, %v2801, %v2701
        %v2818 = vsel %vm225, %v2802, %v2703
        %v2819 = vsel %vm225, %v2803, %v2705
        %v2820 = vsel %vm225, %v2804, %v2707
        %v2821 = vsel %vm225, %v2805, %v2709
        %vm2822 = vcmask 195584
        %v2823 = vsel %vm2822, %v2806, %v2743
        %v2824 = vsel %vm2822, %v2807, %v2745
        %v2825 = vsel %vm2822, %v2808, %v2747
        %v2826 = vsel %vm2822, %v2809, %v2749
        %v2827 = vsel %vm2822, %v2810, %v2751
        %v2828 = vsel %vm2822, %v2811, %v2753
        %v2829 = vsel %vm2822, %v2812, %v2755
        %v2830 = vsel %vm2822, %v2813, %v2757
        %v2831 = vsel %vm2822, %v2814, %v2759
        %v2832 = vsel %vm2822, %v2815, %v2761
        %v2833 = vsel %vm2822, %v2816, %v2763
        %v2834 = vsel %vm2822, %v2817, %v2765
        %v2835 = vsel %vm2822, %v2818, %v2767
        %v2836 = vsel %vm2822, %v2819, %v2769
        %v2837 = vsel %vm2822, %v2820, %v2771
        %v2838 = vsel %vm2822, %v2821, %v2773
        %v2839 = vpack.c.bf16 %v2824, %v2823
        %v2840 = vpack.c.bf16 %v2826, %v2825
        %v2841 = vpack.c.bf16 %v2828, %v2827
        %v2842 = vpack.c.bf16 %v2830, %v2829
        %v2843 = vpack.c.bf16 %v2832, %v2831
        %v2844 = vpack.c.bf16 %v2834, %v2833
        %v2845 = vpack.c.bf16 %v2836, %v2835
        %v2846 = vpack.c.bf16 %v2838, %v2837
        %v2847 = vld [vmem:[%s1 + $0x18] sm:$0xf]
        %v2848 = vld [vmem:[%s1 + $0x1c] sm:$0xf]
        %v2849 = vld [vmem:[%s1 + $0x20] sm:$0xf]
        %v2850 = vld [vmem:[%s1 + $0x24] sm:$0xf]
        %v2851 = vld [vmem:[#allocation2 + $0x120] sm:$0x1]
        %v2852 = vlaneseq
        %v2853 = vshrl.u32 %v2852, 7
        %v2854 = vsub.s32 0, %v2853
        %v2855 = vrot.slane %v2851, %v2854
        %v2860 = vunpack.c.l.b16 %v2847
        %v2861 = vunpack.c.l.b16 %v2848
        %v2862 = vunpack.c.l.b16 %v2849
        %v2863 = vunpack.c.l.b16 %v2850
        %v2864 = vpack.c.b16 %v2861, %v2860
        %v2865 = vpack.c.b16 %v2863, %v2862
        %v2869 = vsel %vm397, %v2839, 0
        %v2872 = vsel %vm397, %v2840, 0
        %v2875 = vsel %vm397, %v2841, 0
        %v2878 = vsel %vm397, %v2842, 0
        %v2881 = vsel %vm397, %v2843, 0
        %v2884 = vsel %vm397, %v2844, 0
        %v2887 = vsel %vm397, %v2845, 0
        %v2890 = vsel %vm397, %v2846, 0
        %2892 = vmatprep.subr.bf16.mxu0 0
        %2893 = vmatpush1.bf16.msra.mxu0 %v2864
        %2894 = vmatprep.subr.bf16.mxu0 0
        %2895 = vmatpush1.bf16.msra.mxu0 %v2865
        %2896 = vmatprep.subr.bf16.mxu0 0
        %2897 = vmatpush1.bf16.msra.mxu0 0
        %2898 = vmatprep.subr.bf16.mxu0 0
        %2899 = vmatpush1.bf16.msra.mxu0 0
        %2900 = vmatprep.subr.bf16.mxu0 0
        %2901 = vmatpush1.bf16.msra.mxu0 0
        %2902 = vmatprep.subr.bf16.mxu0 0
        %2903 = vmatpush1.bf16.msra.mxu0 0
        %2904 = vmatprep.subr.bf16.mxu0 0
        %2905 = vmatpush1.bf16.msra.mxu0 0
        %2906 = vmatprep.subr.bf16.mxu0 0
        %2907 = vmatpush1.bf16.msra.mxu0 0
        %2908 = vmatprep.subr.bf16.mxu0 0
        %2909 = vmatpush1.bf16.msra.mxu0 0
        %2910 = vmatprep.subr.bf16.mxu0 0
        %2911 = vmatpush1.bf16.msra.mxu0 0
        %2912 = vmatprep.subr.bf16.mxu0 0
        %2913 = vmatpush1.bf16.msra.mxu0 0
        %2914 = vmatprep.subr.bf16.mxu0 0
        %2915 = vmatpush1.bf16.msra.mxu0 0
        %2916 = vmatprep.subr.bf16.mxu0 0
        %2917 = vmatpush1.bf16.msra.mxu0 0
        %2918 = vmatprep.subr.bf16.mxu0 0
        %2919 = vmatpush1.bf16.msra.mxu0 0
        %2920 = vmatprep.subr.bf16.mxu0 0
        %2921 = vmatpush1.bf16.msra.mxu0 0
        %2922 = vmatprep.subr.bf16.mxu0 0
        %2923 = vmatpush1.bf16.msra.mxu0 0
        %2924 = vmatprep.mubr.bf16.mxu0 0
        %2925 = vmatmul.mubr.bf16.gmra.mrb[0].mxu0 %v2869
        %v2926 = vpop.f32.mrb[0].mxu0
        %v2927 = vadd.f32 %v2855, %v2926
        %v2928 = vpop.f32.mrb[0].mxu0
        %v2929 = vpop.f32.mrb[0].mxu0
        %v2930 = vadd.f32 %v2855, %v2929
        %v2931 = vpop.f32.mrb[0].mxu0
        %2932 = vmatprep.mubr.bf16.mxu0 0
        %2933 = vmatmul.mubr.bf16.gmra.mrb[0].mxu0 %v2872
        %v2934 = vpop.f32.mrb[0].mxu0
        %v2935 = vadd.f32 %v2855, %v2934
        %v2936 = vpop.f32.mrb[0].mxu0
        %v2937 = vpop.f32.mrb[0].mxu0
        %v2938 = vadd.f32 %v2855, %v2937
        %v2939 = vpop.f32.mrb[0].mxu0
        %2940 = vmatprep.mubr.bf16.mxu0 0
        %2941 = vmatmul.mubr.bf16.gmra.mrb[0].mxu0 %v2875
        %v2942 = vpop.f32.mrb[0].mxu0
        %v2943 = vadd.f32 %v2855, %v2942
        %v2944 = vpop.f32.mrb[0].mxu0
        %v2945 = vpop.f32.mrb[0].mxu0
        %v2946 = vadd.f32 %v2855, %v2945
        %v2947 = vpop.f32.mrb[0].mxu0
        %2948 = vmatprep.mubr.bf16.mxu0 0
        %2949 = vmatmul.mubr.bf16.gmra.mrb[0].mxu0 %v2878
        %v2950 = vpop.f32.mrb[0].mxu0
        %v2951 = vadd.f32 %v2855, %v2950
        %v2952 = vpop.f32.mrb[0].mxu0
        %v2953 = vpop.f32.mrb[0].mxu0
        %v2954 = vadd.f32 %v2855, %v2953
        %v2955 = vpop.f32.mrb[0].mxu0
        %2956 = vmatprep.mubr.bf16.mxu0 0
        %2957 = vmatmul.mubr.bf16.gmra.mrb[0].mxu0 %v2881
        %v2958 = vpop.f32.mrb[0].mxu0
        %v2959 = vadd.f32 %v2855, %v2958
        %v2960 = vpop.f32.mrb[0].mxu0
        %v2961 = vpop.f32.mrb[0].mxu0
        %v2962 = vadd.f32 %v2855, %v2961
        %v2963 = vpop.f32.mrb[0].mxu0
        %2964 = vmatprep.mubr.bf16.mxu0 0
        %2965 = vmatmul.mubr.bf16.gmra.mrb[0].mxu0 %v2884
        %v2966 = vpop.f32.mrb[0].mxu0
        %v2967 = vadd.f32 %v2855, %v2966
        %v2968 = vpop.f32.mrb[0].mxu0
        %v2969 = vpop.f32.mrb[0].mxu0
        %v2970 = vadd.f32 %v2855, %v2969
        %v2971 = vpop.f32.mrb[0].mxu0
        %2972 = vmatprep.mubr.bf16.mxu0 0
        %2973 = vmatmul.mubr.bf16.gmra.mrb[0].mxu0 %v2887
        %v2974 = vpop.f32.mrb[0].mxu0
        %v2975 = vadd.f32 %v2855, %v2974
        %v2976 = vpop.f32.mrb[0].mxu0
        %v2977 = vpop.f32.mrb[0].mxu0
        %v2978 = vadd.f32 %v2855, %v2977
        %v2979 = vpop.f32.mrb[0].mxu0
        %2980 = vmatprep.mubr.bf16.mxu0 0
        %2981 = vmatmul.mubr.bf16.gmra.mrb[0].mxu0 %v2890
        %v2982 = vpop.f32.mrb[0].mxu0
        %v2983 = vadd.f32 %v2855, %v2982
        %v2984 = vpop.f32.mrb[0].mxu0
        %v2985 = vpop.f32.mrb[0].mxu0
        %v2986 = vadd.f32 %v2855, %v2985
        %v2987 = vpop.f32.mrb[0].mxu0
        %2988 = vdwg.mxu0
        %v2989 = vadd.f32 %v363, %v2927
        %v2990 = vadd.f32 %v364, %v2930
        %v2991 = vadd.f32 %v365, %v2935
        %v2992 = vadd.f32 %v366, %v2938
        %v2993 = vadd.f32 %v367, %v2943
        %v2994 = vadd.f32 %v368, %v2946
        %v2995 = vadd.f32 %v369, %v2951
        %v2996 = vadd.f32 %v370, %v2954
        %v2997 = vadd.f32 %v371, %v2959
        %v2998 = vadd.f32 %v372, %v2962
        %v2999 = vadd.f32 %v373, %v2967
        %v3000 = vadd.f32 %v374, %v2970
        %v3001 = vadd.f32 %v375, %v2975
        %v3002 = vadd.f32 %v376, %v2978
        %v3003 = vadd.f32 %v377, %v2983
        %v3004 = vadd.f32 %v378, %v2986
        %v3005 = vld [vmem:[#allocation2 + $0x128] sm:$0x1]
        %v3006 = vld [vmem:[#allocation2 + $0x130] sm:$0x1]
        %v3007 = vsel %vm397, %v2989, 0.0
        %3008 = vadd.xlane.f32.xlu0 %v3007
        %v3009 = vpop.xlane.xlu0 %3008
        %v3010 = vsel %vm397, %v2990, 0.0
        %3011 = vadd.xlane.f32.xlu0 %v3010
        %v3012 = vpop.xlane.xlu0 %3011
        %v3013 = vsel %vm397, %v2991, 0.0
        %3014 = vadd.xlane.f32.xlu0 %v3013
        %v3015 = vpop.xlane.xlu0 %3014
        %v3016 = vsel %vm397, %v2992, 0.0
        %3017 = vadd.xlane.f32.xlu0 %v3016
        %v3018 = vpop.xlane.xlu0 %3017
        %v3019 = vsel %vm397, %v2993, 0.0
        %3020 = vadd.xlane.f32.xlu0 %v3019
        %v3021 = vpop.xlane.xlu0 %3020
        %v3022 = vsel %vm397, %v2994, 0.0
        %3023 = vadd.xlane.f32.xlu0 %v3022
        %v3024 = vpop.xlane.xlu0 %3023
        %v3025 = vsel %vm397, %v2995, 0.0
        %3026 = vadd.xlane.f32.xlu0 %v3025
        %v3027 = vpop.xlane.xlu0 %3026
        %v3028 = vsel %vm397, %v2996, 0.0
        %3029 = vadd.xlane.f32.xlu0 %v3028
        %v3030 = vpop.xlane.xlu0 %3029
        %v3031 = vsel %vm397, %v2997, 0.0
        %3032 = vadd.xlane.f32.xlu0 %v3031
        %v3033 = vpop.xlane.xlu0 %3032
        %v3034 = vsel %vm397, %v2998, 0.0
        %3035 = vadd.xlane.f32.xlu0 %v3034
        %v3036 = vpop.xlane.xlu0 %3035
        %v3037 = vsel %vm397, %v2999, 0.0
        %3038 = vadd.xlane.f32.xlu0 %v3037
        %v3039 = vpop.xlane.xlu0 %3038
        %v3040 = vsel %vm397, %v3000, 0.0
        %3041 = vadd.xlane.f32.xlu0 %v3040
        %v3042 = vpop.xlane.xlu0 %3041
        %v3043 = vsel %vm397, %v3001, 0.0
        %3044 = vadd.xlane.f32.xlu0 %v3043
        %v3045 = vpop.xlane.xlu0 %3044
        %v3046 = vsel %vm397, %v3002, 0.0
        %3047 = vadd.xlane.f32.xlu0 %v3046
        %v3048 = vpop.xlane.xlu0 %3047
        %v3049 = vsel %vm397, %v3003, 0.0
        %3050 = vadd.xlane.f32.xlu0 %v3049
        %v3051 = vpop.xlane.xlu0 %3050
        %v3052 = vsel %vm397, %v3004, 0.0
        %3053 = vadd.xlane.f32.xlu0 %v3052
        %v3054 = vpop.xlane.xlu0 %3053
        %v3055 = vmul.f32 %v3009, %v446
        %v3056 = vmul.f32 %v3012, %v446
        %v3057 = vmul.f32 %v3015, %v446
        %v3058 = vmul.f32 %v3018, %v446
        %v3059 = vmul.f32 %v3021, %v446
        %v3060 = vmul.f32 %v3024, %v446
        %v3061 = vmul.f32 %v3027, %v446
        %v3062 = vmul.f32 %v3030, %v446
        %v3063 = vmul.f32 %v3033, %v446
        %v3064 = vmul.f32 %v3036, %v446
        %v3065 = vmul.f32 %v3039, %v446
        %v3066 = vmul.f32 %v3042, %v446
        %v3067 = vmul.f32 %v3045, %v446
        %v3068 = vmul.f32 %v3048, %v446
        %v3069 = vmul.f32 %v3051, %v446
        %v3070 = vmul.f32 %v3054, %v446
        %v3071 = vsub.f32 %v2989, %v3055
        %v3072 = vsub.f32 %v2990, %v3056
        %v3073 = vsub.f32 %v2991, %v3057
        %v3074 = vsub.f32 %v2992, %v3058
        %v3075 = vsub.f32 %v2993, %v3059
        %v3076 = vsub.f32 %v2994, %v3060
        %v3077 = vsub.f32 %v2995, %v3061
        %v3078 = vsub.f32 %v2996, %v3062
        %v3079 = vsub.f32 %v2997, %v3063
        %v3080 = vsub.f32 %v2998, %v3064
        %v3081 = vsub.f32 %v2999, %v3065
        %v3082 = vsub.f32 %v3000, %v3066
        %v3083 = vsub.f32 %v3001, %v3067
        %v3084 = vsub.f32 %v3002, %v3068
        %v3085 = vsub.f32 %v3003, %v3069
        %v3086 = vsub.f32 %v3004, %v3070
        %v3087 = vmul.f32 %v3071, %v3071
        %v3088 = vmul.f32 %v3072, %v3072
        %v3089 = vmul.f32 %v3073, %v3073
        %v3090 = vmul.f32 %v3074, %v3074
        %v3091 = vmul.f32 %v3075, %v3075
        %v3092 = vmul.f32 %v3076, %v3076
        %v3093 = vmul.f32 %v3077, %v3077
        %v3094 = vmul.f32 %v3078, %v3078
        %v3095 = vmul.f32 %v3079, %v3079
        %v3096 = vmul.f32 %v3080, %v3080
        %v3097 = vmul.f32 %v3081, %v3081
        %v3098 = vmul.f32 %v3082, %v3082
        %v3099 = vmul.f32 %v3083, %v3083
        %v3100 = vmul.f32 %v3084, %v3084
        %v3101 = vmul.f32 %v3085, %v3085
        %v3102 = vmul.f32 %v3086, %v3086
        %v3103 = vsel %vm397, %v3087, 0.0
        %3104 = vadd.xlane.f32.xlu0 %v3103
        %v3105 = vpop.xlane.xlu0 %3104
        %v3106 = vsel %vm397, %v3088, 0.0
        %3107 = vadd.xlane.f32.xlu0 %v3106
        %v3108 = vpop.xlane.xlu0 %3107
        %v3109 = vsel %vm397, %v3089, 0.0
        %3110 = vadd.xlane.f32.xlu0 %v3109
        %v3111 = vpop.xlane.xlu0 %3110
        %v3112 = vsel %vm397, %v3090, 0.0
        %3113 = vadd.xlane.f32.xlu0 %v3112
        %v3114 = vpop.xlane.xlu0 %3113
        %v3115 = vsel %vm397, %v3091, 0.0
        %3116 = vadd.xlane.f32.xlu0 %v3115
        %v3117 = vpop.xlane.xlu0 %3116
        %v3118 = vsel %vm397, %v3092, 0.0
        %3119 = vadd.xlane.f32.xlu0 %v3118
        %v3120 = vpop.xlane.xlu0 %3119
        %v3121 = vsel %vm397, %v3093, 0.0
        %3122 = vadd.xlane.f32.xlu0 %v3121
        %v3123 = vpop.xlane.xlu0 %3122
        %v3124 = vsel %vm397, %v3094, 0.0
        %3125 = vadd.xlane.f32.xlu0 %v3124
        %v3126 = vpop.xlane.xlu0 %3125
        %v3127 = vsel %vm397, %v3095, 0.0
        %3128 = vadd.xlane.f32.xlu0 %v3127
        %v3129 = vpop.xlane.xlu0 %3128
        %v3130 = vsel %vm397, %v3096, 0.0
        %3131 = vadd.xlane.f32.xlu0 %v3130
        %v3132 = vpop.xlane.xlu0 %3131
        %v3133 = vsel %vm397, %v3097, 0.0
        %3134 = vadd.xlane.f32.xlu0 %v3133
        %v3135 = vpop.xlane.xlu0 %3134
        %v3136 = vsel %vm397, %v3098, 0.0
        %3137 = vadd.xlane.f32.xlu0 %v3136
        %v3138 = vpop.xlane.xlu0 %3137
        %v3139 = vsel %vm397, %v3099, 0.0
        %3140 = vadd.xlane.f32.xlu0 %v3139
        %v3141 = vpop.xlane.xlu0 %3140
        %v3142 = vsel %vm397, %v3100, 0.0
        %3143 = vadd.xlane.f32.xlu0 %v3142
        %v3144 = vpop.xlane.xlu0 %3143
        %v3145 = vsel %vm397, %v3101, 0.0
        %3146 = vadd.xlane.f32.xlu0 %v3145
        %v3147 = vpop.xlane.xlu0 %3146
        %v3148 = vsel %vm397, %v3102, 0.0
        %3149 = vadd.xlane.f32.xlu0 %v3148
        %v3150 = vpop.xlane.xlu0 %3149
        %v3151 = vmul.f32 %v3105, %v446
        %v3152 = vmul.f32 %v3108, %v446
        %v3153 = vmul.f32 %v3111, %v446
        %v3154 = vmul.f32 %v3114, %v446
        %v3155 = vmul.f32 %v3117, %v446
        %v3156 = vmul.f32 %v3120, %v446
        %v3157 = vmul.f32 %v3123, %v446
        %v3158 = vmul.f32 %v3126, %v446
        %v3159 = vmul.f32 %v3129, %v446
        %v3160 = vmul.f32 %v3132, %v446
        %v3161 = vmul.f32 %v3135, %v446
        %v3162 = vmul.f32 %v3138, %v446
        %v3163 = vmul.f32 %v3141, %v446
        %v3164 = vmul.f32 %v3144, %v446
        %v3165 = vmul.f32 %v3147, %v446
        %v3166 = vmul.f32 %v3150, %v446
        %v3167 = vadd.f32 %v3151, 1e-05
        %v3168 = vadd.f32 %v3152, 1e-05
        %v3169 = vadd.f32 %v3153, 1e-05
        %v3170 = vadd.f32 %v3154, 1e-05
        %v3171 = vadd.f32 %v3155, 1e-05
        %v3172 = vadd.f32 %v3156, 1e-05
        %v3173 = vadd.f32 %v3157, 1e-05
        %v3174 = vadd.f32 %v3158, 1e-05
        %v3175 = vadd.f32 %v3159, 1e-05
        %v3176 = vadd.f32 %v3160, 1e-05
        %v3177 = vadd.f32 %v3161, 1e-05
        %v3178 = vadd.f32 %v3162, 1e-05
        %v3179 = vadd.f32 %v3163, 1e-05
        %v3180 = vadd.f32 %v3164, 1e-05
        %v3181 = vadd.f32 %v3165, 1e-05
        %v3182 = vadd.f32 %v3166, 1e-05
        %v3183 = vrsqrt.pop %v3167
        %v3184 = vrsqrt.pop %v3168
        %v3185 = vrsqrt.pop %v3169
        %v3186 = vrsqrt.pop %v3170
        %v3187 = vrsqrt.pop %v3171
        %v3188 = vrsqrt.pop %v3172
        %v3189 = vrsqrt.pop %v3173
        %v3190 = vrsqrt.pop %v3174
        %v3191 = vrsqrt.pop %v3175
        %v3192 = vrsqrt.pop %v3176
        %v3193 = vrsqrt.pop %v3177
        %v3194 = vrsqrt.pop %v3178
        %v3195 = vrsqrt.pop %v3179
        %v3196 = vrsqrt.pop %v3180
        %v3197 = vrsqrt.pop %v3181
        %v3198 = vrsqrt.pop %v3182
        %v3199 = vmul.f32 %v3071, %v3183
        %v3200 = vmul.f32 %v3072, %v3184
        %v3201 = vmul.f32 %v3073, %v3185
        %v3202 = vmul.f32 %v3074, %v3186
        %v3203 = vmul.f32 %v3075, %v3187
        %v3204 = vmul.f32 %v3076, %v3188
        %v3205 = vmul.f32 %v3077, %v3189
        %v3206 = vmul.f32 %v3078, %v3190
        %v3207 = vmul.f32 %v3079, %v3191
        %v3208 = vmul.f32 %v3080, %v3192
        %v3209 = vmul.f32 %v3081, %v3193
        %v3210 = vmul.f32 %v3082, %v3194
        %v3211 = vmul.f32 %v3083, %v3195
        %v3212 = vmul.f32 %v3084, %v3196
        %v3213 = vmul.f32 %v3085, %v3197
        %v3214 = vmul.f32 %v3086, %v3198
        %v3215 = vlaneseq
        %v3216 = vshrl.u32 %v3215, 7
        %v3217 = vsub.s32 0, %v3216
        %v3218 = vrot.slane %v3005, %v3217
        %v3219 = vmul.f32 %v3199, %v3218
        %v3220 = vmul.f32 %v3200, %v3218
        %v3221 = vmul.f32 %v3201, %v3218
        %v3222 = vmul.f32 %v3202, %v3218
        %v3223 = vmul.f32 %v3203, %v3218
        %v3224 = vmul.f32 %v3204, %v3218
        %v3225 = vmul.f32 %v3205, %v3218
        %v3226 = vmul.f32 %v3206, %v3218
        %v3227 = vmul.f32 %v3207, %v3218
        %v3228 = vmul.f32 %v3208, %v3218
        %v3229 = vmul.f32 %v3209, %v3218
        %v3230 = vmul.f32 %v3210, %v3218
        %v3231 = vmul.f32 %v3211, %v3218
        %v3232 = vmul.f32 %v3212, %v3218
        %v3233 = vmul.f32 %v3213, %v3218
        %v3234 = vmul.f32 %v3214, %v3218
        %v3235 = vlaneseq
        %v3236 = vshrl.u32 %v3235, 7
        %v3237 = vsub.s32 0, %v3236
        %v3238 = vrot.slane %v3006, %v3237
        %v3239 = vadd.f32 %v3219, %v3238
        %v3240 = vadd.f32 %v3220, %v3238
        %v3241 = vadd.f32 %v3221, %v3238
        %v3242 = vadd.f32 %v3222, %v3238
        %v3243 = vadd.f32 %v3223, %v3238
        %v3244 = vadd.f32 %v3224, %v3238
        %v3245 = vadd.f32 %v3225, %v3238
        %v3246 = vadd.f32 %v3226, %v3238
        %v3247 = vadd.f32 %v3227, %v3238
        %v3248 = vadd.f32 %v3228, %v3238
        %v3249 = vadd.f32 %v3229, %v3238
        %v3250 = vadd.f32 %v3230, %v3238
        %v3251 = vadd.f32 %v3231, %v3238
        %v3252 = vadd.f32 %v3232, %v3238
        %v3253 = vadd.f32 %v3233, %v3238
        %v3254 = vadd.f32 %v3234, %v3238
        %v3255 = vpack.c.bf16 %v3240, %v3239
        %v3256 = vpack.c.bf16 %v3242, %v3241
        %v3257 = vpack.c.bf16 %v3244, %v3243
        %v3258 = vpack.c.bf16 %v3246, %v3245
        %v3259 = vpack.c.bf16 %v3248, %v3247
        %v3260 = vpack.c.bf16 %v3250, %v3249
        %v3261 = vpack.c.bf16 %v3252, %v3251
        %v3262 = vpack.c.bf16 %v3254, %v3253
        %v3263 = vld [vmem:[%s1 + $0x28] sm:$0xf]
        %v3264 = vld [vmem:[%s1 + $0x2c] sm:$0xf]
        %v3265 = vld [vmem:[%s1 + $0x30] sm:$0xf]
        %v3266 = vld [vmem:[%s1 + $0x34] sm:$0xf]
        %v3267 = vld [vmem:[#allocation2 + $0x138] sm:$0x1]
        %v3268 = vlaneseq
        %v3269 = vshrl.u32 %v3268, 7
        %v3270 = vsub.s32 0, %v3269
        %v3271 = vrot.slane %v3267, %v3270
        %v3276 = vunpack.c.l.b16 %v3263
        %v3277 = vunpack.c.l.b16 %v3264
        %v3278 = vunpack.c.l.b16 %v3265
        %v3279 = vunpack.c.l.b16 %v3266
        %v3280 = vpack.c.b16 %v3277, %v3276
        %v3281 = vpack.c.b16 %v3279, %v3278
        %v3285 = vsel %vm397, %v3255, 0
        %v3288 = vsel %vm397, %v3256, 0
        %v3291 = vsel %vm397, %v3257, 0
        %v3294 = vsel %vm397, %v3258, 0
        %v3297 = vsel %vm397, %v3259, 0
        %v3300 = vsel %vm397, %v3260, 0
        %v3303 = vsel %vm397, %v3261, 0
        %v3306 = vsel %vm397, %v3262, 0
        %3308 = vmatprep.subr.bf16.mxu0 0
        %3309 = vmatpush1.bf16.msra.mxu0 %v3280
        %3310 = vmatprep.subr.bf16.mxu0 0
        %3311 = vmatpush1.bf16.msra.mxu0 %v3281
        %3312 = vmatprep.subr.bf16.mxu0 0
        %3313 = vmatpush1.bf16.msra.mxu0 0
        %3314 = vmatprep.subr.bf16.mxu0 0
        %3315 = vmatpush1.bf16.msra.mxu0 0
        %3316 = vmatprep.subr.bf16.mxu0 0
        %3317 = vmatpush1.bf16.msra.mxu0 0
        %3318 = vmatprep.subr.bf16.mxu0 0
        %3319 = vmatpush1.bf16.msra.mxu0 0
        %3320 = vmatprep.subr.bf16.mxu0 0
        %3321 = vmatpush1.bf16.msra.mxu0 0
        %3322 = vmatprep.subr.bf16.mxu0 0
        %3323 = vmatpush1.bf16.msra.mxu0 0
        %3324 = vmatprep.subr.bf16.mxu0 0
        %3325 = vmatpush1.bf16.msra.mxu0 0
        %3326 = vmatprep.subr.bf16.mxu0 0
        %3327 = vmatpush1.bf16.msra.mxu0 0
        %3328 = vmatprep.subr.bf16.mxu0 0
        %3329 = vmatpush1.bf16.msra.mxu0 0
        %3330 = vmatprep.subr.bf16.mxu0 0
        %3331 = vmatpush1.bf16.msra.mxu0 0
        %3332 = vmatprep.subr.bf16.mxu0 0
        %3333 = vmatpush1.bf16.msra.mxu0 0
        %3334 = vmatprep.subr.bf16.mxu0 0
        %3335 = vmatpush1.bf16.msra.mxu0 0
        %3336 = vmatprep.subr.bf16.mxu0 0
        %3337 = vmatpush1.bf16.msra.mxu0 0
        %3338 = vmatprep.subr.bf16.mxu0 0
        %3339 = vmatpush1.bf16.msra.mxu0 0
        %3340 = vmatprep.mubr.bf16.mxu0 0
        %3341 = vmatmul.mubr.bf16.gmra.mrb[0].mxu0 %v3285
        %v3342 = vpop.f32.mrb[0].mxu0
        %v3343 = vadd.f32 %v3271, %v3342
        %v3344 = vpop.f32.mrb[0].mxu0
        %v3345 = vpop.f32.mrb[0].mxu0
        %v3346 = vadd.f32 %v3271, %v3345
        %v3347 = vpop.f32.mrb[0].mxu0
        %3348 = vmatprep.mubr.bf16.mxu0 0
        %3349 = vmatmul.mubr.bf16.gmra.mrb[0].mxu0 %v3288
        %v3350 = vpop.f32.mrb[0].mxu0
        %v3351 = vadd.f32 %v3271, %v3350
        %v3352 = vpop.f32.mrb[0].mxu0
        %v3353 = vpop.f32.mrb[0].mxu0
        %v3354 = vadd.f32 %v3271, %v3353
        %v3355 = vpop.f32.mrb[0].mxu0
        %3356 = vmatprep.mubr.bf16.mxu0 0
        %3357 = vmatmul.mubr.bf16.gmra.mrb[0].mxu0 %v3291
        %v3358 = vpop.f32.mrb[0].mxu0
        %v3359 = vadd.f32 %v3271, %v3358
        %v3360 = vpop.f32.mrb[0].mxu0
        %v3361 = vpop.f32.mrb[0].mxu0
        %v3362 = vadd.f32 %v3271, %v3361
        %v3363 = vpop.f32.mrb[0].mxu0
        %3364 = vmatprep.mubr.bf16.mxu0 0
        %3365 = vmatmul.mubr.bf16.gmra.mrb[0].mxu0 %v3294
        %v3366 = vpop.f32.mrb[0].mxu0
        %v3367 = vadd.f32 %v3271, %v3366
        %v3368 = vpop.f32.mrb[0].mxu0
        %v3369 = vpop.f32.mrb[0].mxu0
        %v3370 = vadd.f32 %v3271, %v3369
        %v3371 = vpop.f32.mrb[0].mxu0
        %3372 = vmatprep.mubr.bf16.mxu0 0
        %3373 = vmatmul.mubr.bf16.gmra.mrb[0].mxu0 %v3297
        %v3374 = vpop.f32.mrb[0].mxu0
        %v3375 = vadd.f32 %v3271, %v3374
        %v3376 = vpop.f32.mrb[0].mxu0
        %v3377 = vpop.f32.mrb[0].mxu0
        %v3378 = vadd.f32 %v3271, %v3377
        %v3379 = vpop.f32.mrb[0].mxu0
        %3380 = vmatprep.mubr.bf16.mxu0 0
        %3381 = vmatmul.mubr.bf16.gmra.mrb[0].mxu0 %v3300
        %v3382 = vpop.f32.mrb[0].mxu0
        %v3383 = vadd.f32 %v3271, %v3382
        %v3384 = vpop.f32.mrb[0].mxu0
        %v3385 = vpop.f32.mrb[0].mxu0
        %v3386 = vadd.f32 %v3271, %v3385
        %v3387 = vpop.f32.mrb[0].mxu0
        %3388 = vmatprep.mubr.bf16.mxu0 0
        %3389 = vmatmul.mubr.bf16.gmra.mrb[0].mxu0 %v3303
        %v3390 = vpop.f32.mrb[0].mxu0
        %v3391 = vadd.f32 %v3271, %v3390
        %v3392 = vpop.f32.mrb[0].mxu0
        %v3393 = vpop.f32.mrb[0].mxu0
        %v3394 = vadd.f32 %v3271, %v3393
        %v3395 = vpop.f32.mrb[0].mxu0
        %3396 = vmatprep.mubr.bf16.mxu0 0
        %3397 = vmatmul.mubr.bf16.gmra.mrb[0].mxu0 %v3306
        %v3398 = vpop.f32.mrb[0].mxu0
        %v3399 = vadd.f32 %v3271, %v3398
        %v3400 = vpop.f32.mrb[0].mxu0
        %v3401 = vpop.f32.mrb[0].mxu0
        %v3402 = vadd.f32 %v3271, %v3401
        %v3403 = vpop.f32.mrb[0].mxu0
        %3404 = vdwg.mxu0
        %v3405 = vmul.f32 %v3343, 0.5
        %v3406 = vmul.f32 %v3346, 0.5
        %v3407 = vmul.f32 %v3351, 0.5
        %v3408 = vmul.f32 %v3354, 0.5
        %v3409 = vmul.f32 %v3359, 0.5
        %v3410 = vmul.f32 %v3362, 0.5
        %v3411 = vmul.f32 %v3367, 0.5
        %v3412 = vmul.f32 %v3370, 0.5
        %v3413 = vmul.f32 %v3375, 0.5
        %v3414 = vmul.f32 %v3378, 0.5
        %v3415 = vmul.f32 %v3383, 0.5
        %v3416 = vmul.f32 %v3386, 0.5
        %v3417 = vmul.f32 %v3391, 0.5
        %v3418 = vmul.f32 %v3394, 0.5
        %v3419 = vmul.f32 %v3399, 0.5
        %v3420 = vmul.f32 %v3402, 0.5
        %v3421 = vmul.f32 %v3343, 0.044715
        %v3422 = vmul.f32 %v3346, 0.044715
        %v3423 = vmul.f32 %v3351, 0.044715
        %v3424 = vmul.f32 %v3354, 0.044715
        %v3425 = vmul.f32 %v3359, 0.044715
        %v3426 = vmul.f32 %v3362, 0.044715
        %v3427 = vmul.f32 %v3367, 0.044715
        %v3428 = vmul.f32 %v3370, 0.044715
        %v3429 = vmul.f32 %v3375, 0.044715
        %v3430 = vmul.f32 %v3378, 0.044715
        %v3431 = vmul.f32 %v3383, 0.044715
        %v3432 = vmul.f32 %v3386, 0.044715
        %v3433 = vmul.f32 %v3391, 0.044715
        %v3434 = vmul.f32 %v3394, 0.044715
        %v3435 = vmul.f32 %v3399, 0.044715
        %v3436 = vmul.f32 %v3402, 0.044715
        %v3437 = vmul.f32 %v3421, %v3343
        %v3438 = vmul.f32 %v3422, %v3346
        %v3439 = vmul.f32 %v3423, %v3351
        %v3440 = vmul.f32 %v3424, %v3354
        %v3441 = vmul.f32 %v3425, %v3359
        %v3442 = vmul.f32 %v3426, %v3362
        %v3443 = vmul.f32 %v3427, %v3367
        %v3444 = vmul.f32 %v3428, %v3370
        %v3445 = vmul.f32 %v3429, %v3375
        %v3446 = vmul.f32 %v3430, %v3378
        %v3447 = vmul.f32 %v3431, %v3383
        %v3448 = vmul.f32 %v3432, %v3386
        %v3449 = vmul.f32 %v3433, %v3391
        %v3450 = vmul.f32 %v3434, %v3394
        %v3451 = vmul.f32 %v3435, %v3399
        %v3452 = vmul.f32 %v3436, %v3402
        %v3453 = vmul.f32 %v3437, %v3343
        %v3454 = vmul.f32 %v3438, %v3346
        %v3455 = vmul.f32 %v3439, %v3351
        %v3456 = vmul.f32 %v3440, %v3354
        %v3457 = vmul.f32 %v3441, %v3359
        %v3458 = vmul.f32 %v3442, %v3362
        %v3459 = vmul.f32 %v3443, %v3367
        %v3460 = vmul.f32 %v3444, %v3370
        %v3461 = vmul.f32 %v3445, %v3375
        %v3462 = vmul.f32 %v3446, %v3378
        %v3463 = vmul.f32 %v3447, %v3383
        %v3464 = vmul.f32 %v3448, %v3386
        %v3465 = vmul.f32 %v3449, %v3391
        %v3466 = vmul.f32 %v3450, %v3394
        %v3467 = vmul.f32 %v3451, %v3399
        %v3468 = vmul.f32 %v3452, %v3402
        %v3469 = vadd.f32 %v3343, %v3453
        %v3470 = vadd.f32 %v3346, %v3454
        %v3471 = vadd.f32 %v3351, %v3455
        %v3472 = vadd.f32 %v3354, %v3456
        %v3473 = vadd.f32 %v3359, %v3457
        %v3474 = vadd.f32 %v3362, %v3458
        %v3475 = vadd.f32 %v3367, %v3459
        %v3476 = vadd.f32 %v3370, %v3460
        %v3477 = vadd.f32 %v3375, %v3461
        %v3478 = vadd.f32 %v3378, %v3462
        %v3479 = vadd.f32 %v3383, %v3463
        %v3480 = vadd.f32 %v3386, %v3464
        %v3481 = vadd.f32 %v3391, %v3465
        %v3482 = vadd.f32 %v3394, %v3466
        %v3483 = vadd.f32 %v3399, %v3467
        %v3484 = vadd.f32 %v3402, %v3468
        %v3485 = vmul.f32 %v3469, 0.7978846
        %v3486 = vmul.f32 %v3470, 0.7978846
        %v3487 = vmul.f32 %v3471, 0.7978846
        %v3488 = vmul.f32 %v3472, 0.7978846
        %v3489 = vmul.f32 %v3473, 0.7978846
        %v3490 = vmul.f32 %v3474, 0.7978846
        %v3491 = vmul.f32 %v3475, 0.7978846
        %v3492 = vmul.f32 %v3476, 0.7978846
        %v3493 = vmul.f32 %v3477, 0.7978846
        %v3494 = vmul.f32 %v3478, 0.7978846
        %v3495 = vmul.f32 %v3479, 0.7978846
        %v3496 = vmul.f32 %v3480, 0.7978846
        %v3497 = vmul.f32 %v3481, 0.7978846
        %v3498 = vmul.f32 %v3482, 0.7978846
        %v3499 = vmul.f32 %v3483, 0.7978846
        %v3500 = vmul.f32 %v3484, 0.7978846
        %v3501 = vtanh.pop %v3485
        %v3502 = vtanh.pop %v3486
        %v3503 = vtanh.pop %v3487
        %v3504 = vtanh.pop %v3488
        %v3505 = vtanh.pop %v3489
        %v3506 = vtanh.pop %v3490
        %v3507 = vtanh.pop %v3491
        %v3508 = vtanh.pop %v3492
        %v3509 = vtanh.pop %v3493
        %v3510 = vtanh.pop %v3494
        %v3511 = vtanh.pop %v3495
        %v3512 = vtanh.pop %v3496
        %v3513 = vtanh.pop %v3497
        %v3514 = vtanh.pop %v3498
        %v3515 = vtanh.pop %v3499
        %v3516 = vtanh.pop %v3500
        %v3517 = vadd.f32 %v3501, 1.0
        %v3518 = vadd.f32 %v3502, 1.0
        %v3519 = vadd.f32 %v3503, 1.0
        %v3520 = vadd.f32 %v3504, 1.0
        %v3521 = vadd.f32 %v3505, 1.0
        %v3522 = vadd.f32 %v3506, 1.0
        %v3523 = vadd.f32 %v3507, 1.0
        %v3524 = vadd.f32 %v3508, 1.0
        %v3525 = vadd.f32 %v3509, 1.0
        %v3526 = vadd.f32 %v3510, 1.0
        %v3527 = vadd.f32 %v3511, 1.0
        %v3528 = vadd.f32 %v3512, 1.0
        %v3529 = vadd.f32 %v3513, 1.0
        %v3530 = vadd.f32 %v3514, 1.0
        %v3531 = vadd.f32 %v3515, 1.0
        %v3532 = vadd.f32 %v3516, 1.0
        %v3533 = vmul.f32 %v3405, %v3517
        %v3534 = vmul.f32 %v3406, %v3518
        %v3535 = vmul.f32 %v3407, %v3519
        %v3536 = vmul.f32 %v3408, %v3520
        %v3537 = vmul.f32 %v3409, %v3521
        %v3538 = vmul.f32 %v3410, %v3522
        %v3539 = vmul.f32 %v3411, %v3523
        %v3540 = vmul.f32 %v3412, %v3524
        %v3541 = vmul.f32 %v3413, %v3525
        %v3542 = vmul.f32 %v3414, %v3526
        %v3543 = vmul.f32 %v3415, %v3527
        %v3544 = vmul.f32 %v3416, %v3528
        %v3545 = vmul.f32 %v3417, %v3529
        %v3546 = vmul.f32 %v3418, %v3530
        %v3547 = vmul.f32 %v3419, %v3531
        %v3548 = vmul.f32 %v3420, %v3532
        %v3549 = vpack.c.bf16 %v3534, %v3533
        %v3550 = vpack.c.bf16 %v3536, %v3535
        %v3551 = vpack.c.bf16 %v3538, %v3537
        %v3552 = vpack.c.bf16 %v3540, %v3539
        %v3553 = vpack.c.bf16 %v3542, %v3541
        %v3554 = vpack.c.bf16 %v3544, %v3543
        %v3555 = vpack.c.bf16 %v3546, %v3545
        %v3556 = vpack.c.bf16 %v3548, %v3547
        %v3557 = vld [vmem:[%s1 + $0x38] sm:$0xf]
        %v3558 = vld [vmem:[%s1 + $0x3c] sm:$0xf]
        %v3559 = vld [vmem:[%s1 + $0x40] sm:$0xf]
        %v3560 = vld [vmem:[%s1 + $0x44] sm:$0xf]
        %v3561 = vld [vmem:[%s1 + $0x48] sm:$0xf]
        %v3562 = vld [vmem:[%s1 + $0x4c] sm:$0xf]
        %v3563 = vld [vmem:[%s1 + $0x50] sm:$0xf]
        %v3564 = vld [vmem:[%s1 + $0x54] sm:$0xf]
        %v3565 = vld [vmem:[#allocation2 + $0x140] sm:$0x1]
        %v3566 = vlaneseq
        %v3567 = vshrl.u32 %v3566, 7
        %v3568 = vsub.s32 0, %v3567
        %v3569 = vrot.slane %v3565, %v3568
        %v3578 = vunpack.c.l.b16 %v3557
        %v3579 = vunpack.c.l.b16 %v3558
        %v3580 = vunpack.c.l.b16 %v3559
        %v3581 = vunpack.c.l.b16 %v3560
        %v3582 = vunpack.c.l.b16 %v3561
        %v3583 = vunpack.c.l.b16 %v3562
        %v3584 = vunpack.c.l.b16 %v3563
        %v3585 = vunpack.c.l.b16 %v3564
        %v3586 = vpack.c.b16 %v3579, %v3578
        %v3587 = vpack.c.b16 %v3581, %v3580
        %v3588 = vpack.c.b16 %v3583, %v3582
        %v3589 = vpack.c.b16 %v3585, %v3584
        %vm3594 = vcmask 523264
        %v3596 = vsel %vm3594, %v3549, 0
        %v3599 = vsel %vm3594, %v3550, 0
        %v3602 = vsel %vm3594, %v3551, 0
        %v3605 = vsel %vm3594, %v3552, 0
        %v3608 = vsel %vm3594, %v3553, 0
        %v3611 = vsel %vm3594, %v3554, 0
        %v3614 = vsel %vm3594, %v3555, 0
        %v3617 = vsel %vm3594, %v3556, 0
        %3619 = vmatprep.subr.bf16.mxu0 0
        %3620 = vmatpush1.bf16.msra.mxu0 %v3586
        %3621 = vmatprep.subr.bf16.mxu0 0
        %3622 = vmatpush1.bf16.msra.mxu0 %v3587
        %3623 = vmatprep.subr.bf16.mxu0 0
        %3624 = vmatpush1.bf16.msra.mxu0 %v3588
        %3625 = vmatprep.subr.bf16.mxu0 0
        %3626 = vmatpush1.bf16.msra.mxu0 %v3589
        %3627 = vmatprep.subr.bf16.mxu0 0
        %3628 = vmatpush1.bf16.msra.mxu0 0
        %3629 = vmatprep.subr.bf16.mxu0 0
        %3630 = vmatpush1.bf16.msra.mxu0 0
        %3631 = vmatprep.subr.bf16.mxu0 0
        %3632 = vmatpush1.bf16.msra.mxu0 0
        %3633 = vmatprep.subr.bf16.mxu0 0
        %3634 = vmatpush1.bf16.msra.mxu0 0
        %3635 = vmatprep.subr.bf16.mxu0 0
        %3636 = vmatpush1.bf16.msra.mxu0 0
        %3637 = vmatprep.subr.bf16.mxu0 0
        %3638 = vmatpush1.bf16.msra.mxu0 0
        %3639 = vmatprep.subr.bf16.mxu0 0
        %3640 = vmatpush1.bf16.msra.mxu0 0
        %3641 = vmatprep.subr.bf16.mxu0 0
        %3642 = vmatpush1.bf16.msra.mxu0 0
        %3643 = vmatprep.subr.bf16.mxu0 0
        %3644 = vmatpush1.bf16.msra.mxu0 0
        %3645 = vmatprep.subr.bf16.mxu0 0
        %3646 = vmatpush1.bf16.msra.mxu0 0
        %3647 = vmatprep.subr.bf16.mxu0 0
        %3648 = vmatpush1.bf16.msra.mxu0 0
        %3649 = vmatprep.subr.bf16.mxu0 0
        %3650 = vmatpush1.bf16.msra.mxu0 0
        %3651 = vmatprep.mubr.bf16.mxu0 0
        %3652 = vmatmul.mubr.bf16.gmra.mrb[0].mxu0 %v3596
        %v3653 = vpop.f32.mrb[0].mxu0
        %v3654 = vadd.f32 %v3569, %v3653
        %v3655 = vpop.f32.mrb[0].mxu0
        %v3656 = vpop.f32.mrb[0].mxu0
        %v3657 = vadd.f32 %v3569, %v3656
        %v3658 = vpop.f32.mrb[0].mxu0
        %3659 = vmatprep.mubr.bf16.mxu0 0
        %3660 = vmatmul.mubr.bf16.gmra.mrb[0].mxu0 %v3599
        %v3661 = vpop.f32.mrb[0].mxu0
        %v3662 = vadd.f32 %v3569, %v3661
        %v3663 = vpop.f32.mrb[0].mxu0
        %v3664 = vpop.f32.mrb[0].mxu0
        %v3665 = vadd.f32 %v3569, %v3664
        %v3666 = vpop.f32.mrb[0].mxu0
        %3667 = vmatprep.mubr.bf16.mxu0 0
        %3668 = vmatmul.mubr.bf16.gmra.mrb[0].mxu0 %v3602
        %v3669 = vpop.f32.mrb[0].mxu0
        %v3670 = vadd.f32 %v3569, %v3669
        %v3671 = vpop.f32.mrb[0].mxu0
        %v3672 = vpop.f32.mrb[0].mxu0
        %v3673 = vadd.f32 %v3569, %v3672
        %v3674 = vpop.f32.mrb[0].mxu0
        %3675 = vmatprep.mubr.bf16.mxu0 0
        %3676 = vmatmul.mubr.bf16.gmra.mrb[0].mxu0 %v3605
        %v3677 = vpop.f32.mrb[0].mxu0
        %v3678 = vadd.f32 %v3569, %v3677
        %v3679 = vpop.f32.mrb[0].mxu0
        %v3680 = vpop.f32.mrb[0].mxu0
        %v3681 = vadd.f32 %v3569, %v3680
        %v3682 = vpop.f32.mrb[0].mxu0
        %3683 = vmatprep.mubr.bf16.mxu0 0
        %3684 = vmatmul.mubr.bf16.gmra.mrb[0].mxu0 %v3608
        %v3685 = vpop.f32.mrb[0].mxu0
        %v3686 = vadd.f32 %v3569, %v3685
        %v3687 = vpop.f32.mrb[0].mxu0
        %v3688 = vpop.f32.mrb[0].mxu0
        %v3689 = vadd.f32 %v3569, %v3688
        %v3690 = vpop.f32.mrb[0].mxu0
        %3691 = vmatprep.mubr.bf16.mxu0 0
        %3692 = vmatmul.mubr.bf16.gmra.mrb[0].mxu0 %v3611
        %v3693 = vpop.f32.mrb[0].mxu0
        %v3694 = vadd.f32 %v3569, %v3693
        %v3695 = vpop.f32.mrb[0].mxu0
        %v3696 = vpop.f32.mrb[0].mxu0
        %v3697 = vadd.f32 %v3569, %v3696
        %v3698 = vpop.f32.mrb[0].mxu0
        %3699 = vmatprep.mubr.bf16.mxu0 0
        %3700 = vmatmul.mubr.bf16.gmra.mrb[0].mxu0 %v3614
        %v3701 = vpop.f32.mrb[0].mxu0
        %v3702 = vadd.f32 %v3569, %v3701
        %v3703 = vpop.f32.mrb[0].mxu0
        %v3704 = vpop.f32.mrb[0].mxu0
        %v3705 = vadd.f32 %v3569, %v3704
        %v3706 = vpop.f32.mrb[0].mxu0
        %3707 = vmatprep.mubr.bf16.mxu0 0
        %3708 = vmatmul.mubr.bf16.gmra.mrb[0].mxu0 %v3617
        %v3709 = vpop.f32.mrb[0].mxu0
        %v3710 = vadd.f32 %v3569, %v3709
        %v3711 = vpop.f32.mrb[0].mxu0
        %v3712 = vpop.f32.mrb[0].mxu0
        %v3713 = vadd.f32 %v3569, %v3712
        %v3714 = vpop.f32.mrb[0].mxu0
        %3715 = vdwg.mxu0
        %v3716 = vadd.f32 %v2989, %v3654
        %v3717 = vadd.f32 %v2990, %v3657
        %v3718 = vadd.f32 %v2991, %v3662
        %v3719 = vadd.f32 %v2992, %v3665
        %v3720 = vadd.f32 %v2993, %v3670
        %v3721 = vadd.f32 %v2994, %v3673
        %v3722 = vadd.f32 %v2995, %v3678
        %v3723 = vadd.f32 %v2996, %v3681
        %v3724 = vadd.f32 %v2997, %v3686
        %v3725 = vadd.f32 %v2998, %v3689
        %v3726 = vadd.f32 %v2999, %v3694
        %v3727 = vadd.f32 %v3000, %v3697
        %v3728 = vadd.f32 %v3001, %v3702
        %v3729 = vadd.f32 %v3002, %v3705
        %v3730 = vadd.f32 %v3003, %v3710
        %v3731 = vadd.f32 %v3004, %v3713
        %v3732 = vld [vmem:[#allocation2 + $0x148] sm:$0x1]
        %v3733 = vld [vmem:[#allocation2 + $0x150] sm:$0x1]
        %v3734 = vsel %vm397, %v3716, 0.0
        %3735 = vadd.xlane.f32.xlu0 %v3734
        %v3736 = vpop.xlane.xlu0 %3735
        %v3737 = vsel %vm397, %v3717, 0.0
        %3738 = vadd.xlane.f32.xlu0 %v3737
        %v3739 = vpop.xlane.xlu0 %3738
        %v3740 = vsel %vm397, %v3718, 0.0
        %3741 = vadd.xlane.f32.xlu0 %v3740
        %v3742 = vpop.xlane.xlu0 %3741
        %v3743 = vsel %vm397, %v3719, 0.0
        %3744 = vadd.xlane.f32.xlu0 %v3743
        %v3745 = vpop.xlane.xlu0 %3744
        %v3746 = vsel %vm397, %v3720, 0.0
        %3747 = vadd.xlane.f32.xlu0 %v3746
        %v3748 = vpop.xlane.xlu0 %3747
        %v3749 = vsel %vm397, %v3721, 0.0
        %3750 = vadd.xlane.f32.xlu0 %v3749
        %v3751 = vpop.xlane.xlu0 %3750
        %v3752 = vsel %vm397, %v3722, 0.0
        %3753 = vadd.xlane.f32.xlu0 %v3752
        %v3754 = vpop.xlane.xlu0 %3753
        %v3755 = vsel %vm397, %v3723, 0.0
        %3756 = vadd.xlane.f32.xlu0 %v3755
        %v3757 = vpop.xlane.xlu0 %3756
        %v3758 = vsel %vm397, %v3724, 0.0
        %3759 = vadd.xlane.f32.xlu0 %v3758
        %v3760 = vpop.xlane.xlu0 %3759
        %v3761 = vsel %vm397, %v3725, 0.0
        %3762 = vadd.xlane.f32.xlu0 %v3761
        %v3763 = vpop.xlane.xlu0 %3762
        %v3764 = vsel %vm397, %v3726, 0.0
        %3765 = vadd.xlane.f32.xlu0 %v3764
        %v3766 = vpop.xlane.xlu0 %3765
        %v3767 = vsel %vm397, %v3727, 0.0
        %3768 = vadd.xlane.f32.xlu0 %v3767
        %v3769 = vpop.xlane.xlu0 %3768
        %v3770 = vsel %vm397, %v3728, 0.0
        %3771 = vadd.xlane.f32.xlu0 %v3770
        %v3772 = vpop.xlane.xlu0 %3771
        %v3773 = vsel %vm397, %v3729, 0.0
        %3774 = vadd.xlane.f32.xlu0 %v3773
        %v3775 = vpop.xlane.xlu0 %3774
        %v3776 = vsel %vm397, %v3730, 0.0
        %3777 = vadd.xlane.f32.xlu0 %v3776
        %v3778 = vpop.xlane.xlu0 %3777
        %v3779 = vsel %vm397, %v3731, 0.0
        %3780 = vadd.xlane.f32.xlu0 %v3779
        %v3781 = vpop.xlane.xlu0 %3780
        %v3782 = vmul.f32 %v3736, %v446
        %v3783 = vmul.f32 %v3739, %v446
        %v3784 = vmul.f32 %v3742, %v446
        %v3785 = vmul.f32 %v3745, %v446
        %v3786 = vmul.f32 %v3748, %v446
        %v3787 = vmul.f32 %v3751, %v446
        %v3788 = vmul.f32 %v3754, %v446
        %v3789 = vmul.f32 %v3757, %v446
        %v3790 = vmul.f32 %v3760, %v446
        %v3791 = vmul.f32 %v3763, %v446
        %v3792 = vmul.f32 %v3766, %v446
        %v3793 = vmul.f32 %v3769, %v446
        %v3794 = vmul.f32 %v3772, %v446
        %v3795 = vmul.f32 %v3775, %v446
        %v3796 = vmul.f32 %v3778, %v446
        %v3797 = vmul.f32 %v3781, %v446
        %v3798 = vsub.f32 %v3716, %v3782
        %v3799 = vsub.f32 %v3717, %v3783
        %v3800 = vsub.f32 %v3718, %v3784
        %v3801 = vsub.f32 %v3719, %v3785
        %v3802 = vsub.f32 %v3720, %v3786
        %v3803 = vsub.f32 %v3721, %v3787
        %v3804 = vsub.f32 %v3722, %v3788
        %v3805 = vsub.f32 %v3723, %v3789
        %v3806 = vsub.f32 %v3724, %v3790
        %v3807 = vsub.f32 %v3725, %v3791
        %v3808 = vsub.f32 %v3726, %v3792
        %v3809 = vsub.f32 %v3727, %v3793
        %v3810 = vsub.f32 %v3728, %v3794
        %v3811 = vsub.f32 %v3729, %v3795
        %v3812 = vsub.f32 %v3730, %v3796
        %v3813 = vsub.f32 %v3731, %v3797
        %v3814 = vmul.f32 %v3798, %v3798
        %v3815 = vmul.f32 %v3799, %v3799
        %v3816 = vmul.f32 %v3800, %v3800
        %v3817 = vmul.f32 %v3801, %v3801
        %v3818 = vmul.f32 %v3802, %v3802
        %v3819 = vmul.f32 %v3803, %v3803
        %v3820 = vmul.f32 %v3804, %v3804
        %v3821 = vmul.f32 %v3805, %v3805
        %v3822 = vmul.f32 %v3806, %v3806
        %v3823 = vmul.f32 %v3807, %v3807
        %v3824 = vmul.f32 %v3808, %v3808
        %v3825 = vmul.f32 %v3809, %v3809
        %v3826 = vmul.f32 %v3810, %v3810
        %v3827 = vmul.f32 %v3811, %v3811
        %v3828 = vmul.f32 %v3812, %v3812
        %v3829 = vmul.f32 %v3813, %v3813
        %v3830 = vsel %vm397, %v3814, 0.0
        %3831 = vadd.xlane.f32.xlu0 %v3830
        %v3832 = vpop.xlane.xlu0 %3831
        %v3833 = vsel %vm397, %v3815, 0.0
        %3834 = vadd.xlane.f32.xlu0 %v3833
        %v3835 = vpop.xlane.xlu0 %3834
        %v3836 = vsel %vm397, %v3816, 0.0
        %3837 = vadd.xlane.f32.xlu0 %v3836
        %v3838 = vpop.xlane.xlu0 %3837
        %v3839 = vsel %vm397, %v3817, 0.0
        %3840 = vadd.xlane.f32.xlu0 %v3839
        %v3841 = vpop.xlane.xlu0 %3840
        %v3842 = vsel %vm397, %v3818, 0.0
        %3843 = vadd.xlane.f32.xlu0 %v3842
        %v3844 = vpop.xlane.xlu0 %3843
        %v3845 = vsel %vm397, %v3819, 0.0
        %3846 = vadd.xlane.f32.xlu0 %v3845
        %v3847 = vpop.xlane.xlu0 %3846
        %v3848 = vsel %vm397, %v3820, 0.0
        %3849 = vadd.xlane.f32.xlu0 %v3848
        %v3850 = vpop.xlane.xlu0 %3849
        %v3851 = vsel %vm397, %v3821, 0.0
        %3852 = vadd.xlane.f32.xlu0 %v3851
        %v3853 = vpop.xlane.xlu0 %3852
        %v3854 = vsel %vm397, %v3822, 0.0
        %3855 = vadd.xlane.f32.xlu0 %v3854
        %v3856 = vpop.xlane.xlu0 %3855
        %v3857 = vsel %vm397, %v3823, 0.0
        %3858 = vadd.xlane.f32.xlu0 %v3857
        %v3859 = vpop.xlane.xlu0 %3858
        %v3860 = vsel %vm397, %v3824, 0.0
        %3861 = vadd.xlane.f32.xlu0 %v3860
        %v3862 = vpop.xlane.xlu0 %3861
        %v3863 = vsel %vm397, %v3825, 0.0
        %3864 = vadd.xlane.f32.xlu0 %v3863
        %v3865 = vpop.xlane.xlu0 %3864
        %v3866 = vsel %vm397, %v3826, 0.0
        %3867 = vadd.xlane.f32.xlu0 %v3866
        %v3868 = vpop.xlane.xlu0 %3867
        %v3869 = vsel %vm397, %v3827, 0.0
        %3870 = vadd.xlane.f32.xlu0 %v3869
        %v3871 = vpop.xlane.xlu0 %3870
        %v3872 = vsel %vm397, %v3828, 0.0
        %3873 = vadd.xlane.f32.xlu0 %v3872
        %v3874 = vpop.xlane.xlu0 %3873
        %v3875 = vsel %vm397, %v3829, 0.0
        %3876 = vadd.xlane.f32.xlu0 %v3875
        %v3877 = vpop.xlane.xlu0 %3876
        %v3878 = vmul.f32 %v3832, %v446
        %v3879 = vmul.f32 %v3835, %v446
        %v3880 = vmul.f32 %v3838, %v446
        %v3881 = vmul.f32 %v3841, %v446
        %v3882 = vmul.f32 %v3844, %v446
        %v3883 = vmul.f32 %v3847, %v446
        %v3884 = vmul.f32 %v3850, %v446
        %v3885 = vmul.f32 %v3853, %v446
        %v3886 = vmul.f32 %v3856, %v446
        %v3887 = vmul.f32 %v3859, %v446
        %v3888 = vmul.f32 %v3862, %v446
        %v3889 = vmul.f32 %v3865, %v446
        %v3890 = vmul.f32 %v3868, %v446
        %v3891 = vmul.f32 %v3871, %v446
        %v3892 = vmul.f32 %v3874, %v446
        %v3893 = vmul.f32 %v3877, %v446
        %v3894 = vadd.f32 %v3878, 1e-05
        %v3895 = vadd.f32 %v3879, 1e-05
        %v3896 = vadd.f32 %v3880, 1e-05
        %v3897 = vadd.f32 %v3881, 1e-05
        %v3898 = vadd.f32 %v3882, 1e-05
        %v3899 = vadd.f32 %v3883, 1e-05
        %v3900 = vadd.f32 %v3884, 1e-05
        %v3901 = vadd.f32 %v3885, 1e-05
        %v3902 = vadd.f32 %v3886, 1e-05
        %v3903 = vadd.f32 %v3887, 1e-05
        %v3904 = vadd.f32 %v3888, 1e-05
        %v3905 = vadd.f32 %v3889, 1e-05
        %v3906 = vadd.f32 %v3890, 1e-05
        %v3907 = vadd.f32 %v3891, 1e-05
        %v3908 = vadd.f32 %v3892, 1e-05
        %v3909 = vadd.f32 %v3893, 1e-05
        %v3910 = vrsqrt.pop %v3894
        %v3911 = vrsqrt.pop %v3895
        %v3912 = vrsqrt.pop %v3896
        %v3913 = vrsqrt.pop %v3897
        %v3914 = vrsqrt.pop %v3898
        %v3915 = vrsqrt.pop %v3899
        %v3916 = vrsqrt.pop %v3900
        %v3917 = vrsqrt.pop %v3901
        %v3918 = vrsqrt.pop %v3902
        %v3919 = vrsqrt.pop %v3903
        %v3920 = vrsqrt.pop %v3904
        %v3921 = vrsqrt.pop %v3905
        %v3922 = vrsqrt.pop %v3906
        %v3923 = vrsqrt.pop %v3907
        %v3924 = vrsqrt.pop %v3908
        %v3925 = vrsqrt.pop %v3909
        %v3926 = vmul.f32 %v3798, %v3910
        %v3927 = vmul.f32 %v3799, %v3911
        %v3928 = vmul.f32 %v3800, %v3912
        %v3929 = vmul.f32 %v3801, %v3913
        %v3930 = vmul.f32 %v3802, %v3914
        %v3931 = vmul.f32 %v3803, %v3915
        %v3932 = vmul.f32 %v3804, %v3916
        %v3933 = vmul.f32 %v3805, %v3917
        %v3934 = vmul.f32 %v3806, %v3918
        %v3935 = vmul.f32 %v3807, %v3919
        %v3936 = vmul.f32 %v3808, %v3920
        %v3937 = vmul.f32 %v3809, %v3921
        %v3938 = vmul.f32 %v3810, %v3922
        %v3939 = vmul.f32 %v3811, %v3923
        %v3940 = vmul.f32 %v3812, %v3924
        %v3941 = vmul.f32 %v3813, %v3925
        %v3942 = vlaneseq
        %v3943 = vshrl.u32 %v3942, 7
        %v3944 = vsub.s32 0, %v3943
        %v3945 = vrot.slane %v3732, %v3944
        %v3946 = vmul.f32 %v3926, %v3945
        %v3947 = vmul.f32 %v3927, %v3945
        %v3948 = vmul.f32 %v3928, %v3945
        %v3949 = vmul.f32 %v3929, %v3945
        %v3950 = vmul.f32 %v3930, %v3945
        %v3951 = vmul.f32 %v3931, %v3945
        %v3952 = vmul.f32 %v3932, %v3945
        %v3953 = vmul.f32 %v3933, %v3945
        %v3954 = vmul.f32 %v3934, %v3945
        %v3955 = vmul.f32 %v3935, %v3945
        %v3956 = vmul.f32 %v3936, %v3945
        %v3957 = vmul.f32 %v3937, %v3945
        %v3958 = vmul.f32 %v3938, %v3945
        %v3959 = vmul.f32 %v3939, %v3945
        %v3960 = vmul.f32 %v3940, %v3945
        %v3961 = vmul.f32 %v3941, %v3945
        %v3962 = vlaneseq
        %v3963 = vshrl.u32 %v3962, 7
        %v3964 = vsub.s32 0, %v3963
        %v3965 = vrot.slane %v3733, %v3964
        %v3966 = vadd.f32 %v3946, %v3965
        %v3967 = vadd.f32 %v3947, %v3965
        %v3968 = vadd.f32 %v3948, %v3965
        %v3969 = vadd.f32 %v3949, %v3965
        %v3970 = vadd.f32 %v3950, %v3965
        %v3971 = vadd.f32 %v3951, %v3965
        %v3972 = vadd.f32 %v3952, %v3965
        %v3973 = vadd.f32 %v3953, %v3965
        %v3974 = vadd.f32 %v3954, %v3965
        %v3975 = vadd.f32 %v3955, %v3965
        %v3976 = vadd.f32 %v3956, %v3965
        %v3977 = vadd.f32 %v3957, %v3965
        %v3978 = vadd.f32 %v3958, %v3965
        %v3979 = vadd.f32 %v3959, %v3965
        %v3980 = vadd.f32 %v3960, %v3965
        %v3981 = vadd.f32 %v3961, %v3965
        %v3982 = vpack.c.bf16 %v3967, %v3966
        %v3983 = vpack.c.bf16 %v3969, %v3968
        %v3984 = vpack.c.bf16 %v3971, %v3970
        %v3985 = vpack.c.bf16 %v3973, %v3972
        %v3986 = vpack.c.bf16 %v3975, %v3974
        %v3987 = vpack.c.bf16 %v3977, %v3976
        %v3988 = vpack.c.bf16 %v3979, %v3978
        %v3989 = vpack.c.bf16 %v3981, %v3980
        %v3990 = vld [vmem:[%s1 + $0x58] sm:$0xf]
        %v3991 = vld [vmem:[%s1 + $0x5c] sm:$0xf]
        %v3992 = vld [vmem:[%s1 + $0x60] sm:$0xf]
        %v3993 = vld [vmem:[%s1 + $0x64] sm:$0xf]
        %v3994 = vld [vmem:[#allocation2 + $0x158] sm:$0x1]
        %v3995 = vlaneseq
        %v3996 = vshrl.u32 %v3995, 7
        %v3997 = vsub.s32 0, %v3996
        %v3998 = vrot.slane %v3994, %v3997
        %v4003 = vunpack.c.l.b16 %v3990
        %v4004 = vunpack.c.l.b16 %v3991
        %v4005 = vunpack.c.l.b16 %v3992
        %v4006 = vunpack.c.l.b16 %v3993
        %v4007 = vpack.c.b16 %v4004, %v4003
        %v4008 = vpack.c.b16 %v4006, %v4005
        %v4012 = vsel %vm397, %v3982, 0
        %v4015 = vsel %vm397, %v3983, 0
        %v4018 = vsel %vm397, %v3984, 0
        %v4021 = vsel %vm397, %v3985, 0
        %v4024 = vsel %vm397, %v3986, 0
        %v4027 = vsel %vm397, %v3987, 0
        %v4030 = vsel %vm397, %v3988, 0
        %v4033 = vsel %vm397, %v3989, 0
        %4035 = vmatprep.subr.bf16.mxu0 0
        %4036 = vmatpush1.bf16.msra.mxu0 %v4007
        %4037 = vmatprep.subr.bf16.mxu0 0
        %4038 = vmatpush1.bf16.msra.mxu0 %v4008
        %4039 = vmatprep.subr.bf16.mxu0 0
        %4040 = vmatpush1.bf16.msra.mxu0 0
        %4041 = vmatprep.subr.bf16.mxu0 0
        %4042 = vmatpush1.bf16.msra.mxu0 0
        %4043 = vmatprep.subr.bf16.mxu0 0
        %4044 = vmatpush1.bf16.msra.mxu0 0
        %4045 = vmatprep.subr.bf16.mxu0 0
        %4046 = vmatpush1.bf16.msra.mxu0 0
        %4047 = vmatprep.subr.bf16.mxu0 0
        %4048 = vmatpush1.bf16.msra.mxu0 0
        %4049 = vmatprep.subr.bf16.mxu0 0
        %4050 = vmatpush1.bf16.msra.mxu0 0
        %4051 = vmatprep.subr.bf16.mxu0 0
        %4052 = vmatpush1.bf16.msra.mxu0 0
        %4053 = vmatprep.subr.bf16.mxu0 0
        %4054 = vmatpush1.bf16.msra.mxu0 0
        %4055 = vmatprep.subr.bf16.mxu0 0
        %4056 = vmatpush1.bf16.msra.mxu0 0
        %4057 = vmatprep.subr.bf16.mxu0 0
        %4058 = vmatpush1.bf16.msra.mxu0 0
        %4059 = vmatprep.subr.bf16.mxu0 0
        %4060 = vmatpush1.bf16.msra.mxu0 0
        %4061 = vmatprep.subr.bf16.mxu0 0
        %4062 = vmatpush1.bf16.msra.mxu0 0
        %4063 = vmatprep.subr.bf16.mxu0 0
        %4064 = vmatpush1.bf16.msra.mxu0 0
        %4065 = vmatprep.subr.bf16.mxu0 0
        %4066 = vmatpush1.bf16.msra.mxu0 0
        %4067 = vmatprep.mubr.bf16.mxu0 0
        %4068 = vmatmul.mubr.bf16.gmra.mrb[0].mxu0 %v4012
        %v4069 = vpop.f32.mrb[0].mxu0
        %v4070 = vadd.f32 %v3998, %v4069
        %v4071 = vpop.f32.mrb[0].mxu0
        %v4072 = vpop.f32.mrb[0].mxu0
        %v4073 = vadd.f32 %v3998, %v4072
        %v4074 = vpop.f32.mrb[0].mxu0
        %4075 = vmatprep.mubr.bf16.mxu0 0
        %4076 = vmatmul.mubr.bf16.gmra.mrb[0].mxu0 %v4015
        %v4077 = vpop.f32.mrb[0].mxu0
        %v4078 = vadd.f32 %v3998, %v4077
        %v4079 = vpop.f32.mrb[0].mxu0
        %v4080 = vpop.f32.mrb[0].mxu0
        %v4081 = vadd.f32 %v3998, %v4080
        %v4082 = vpop.f32.mrb[0].mxu0
        %4083 = vmatprep.mubr.bf16.mxu0 0
        %4084 = vmatmul.mubr.bf16.gmra.mrb[0].mxu0 %v4018
        %v4085 = vpop.f32.mrb[0].mxu0
        %v4086 = vadd.f32 %v3998, %v4085
        %v4087 = vpop.f32.mrb[0].mxu0
        %v4088 = vpop.f32.mrb[0].mxu0
        %v4089 = vadd.f32 %v3998, %v4088
        %v4090 = vpop.f32.mrb[0].mxu0
        %4091 = vmatprep.mubr.bf16.mxu0 0
        %4092 = vmatmul.mubr.bf16.gmra.mrb[0].mxu0 %v4021
        %v4093 = vpop.f32.mrb[0].mxu0
        %v4094 = vadd.f32 %v3998, %v4093
        %v4095 = vpop.f32.mrb[0].mxu0
        %v4096 = vpop.f32.mrb[0].mxu0
        %v4097 = vadd.f32 %v3998, %v4096
        %v4098 = vpop.f32.mrb[0].mxu0
        %4099 = vmatprep.mubr.bf16.mxu0 0
        %4100 = vmatmul.mubr.bf16.gmra.mrb[0].mxu0 %v4024
        %v4101 = vpop.f32.mrb[0].mxu0
        %v4102 = vadd.f32 %v3998, %v4101
        %v4103 = vpop.f32.mrb[0].mxu0
        %v4104 = vpop.f32.mrb[0].mxu0
        %v4105 = vadd.f32 %v3998, %v4104
        %v4106 = vpop.f32.mrb[0].mxu0
        %4107 = vmatprep.mubr.bf16.mxu0 0
        %4108 = vmatmul.mubr.bf16.gmra.mrb[0].mxu0 %v4027
        %v4109 = vpop.f32.mrb[0].mxu0
        %v4110 = vadd.f32 %v3998, %v4109
        %v4111 = vpop.f32.mrb[0].mxu0
        %v4112 = vpop.f32.mrb[0].mxu0
        %v4113 = vadd.f32 %v3998, %v4112
        %v4114 = vpop.f32.mrb[0].mxu0
        %4115 = vmatprep.mubr.bf16.mxu0 0
        %4116 = vmatmul.mubr.bf16.gmra.mrb[0].mxu0 %v4030
        %v4117 = vpop.f32.mrb[0].mxu0
        %v4118 = vadd.f32 %v3998, %v4117
        %v4119 = vpop.f32.mrb[0].mxu0
        %v4120 = vpop.f32.mrb[0].mxu0
        %v4121 = vadd.f32 %v3998, %v4120
        %v4122 = vpop.f32.mrb[0].mxu0
        %4123 = vmatprep.mubr.bf16.mxu0 0
        %4124 = vmatmul.mubr.bf16.gmra.mrb[0].mxu0 %v4033
        %v4125 = vpop.f32.mrb[0].mxu0
        %v4126 = vadd.f32 %v3998, %v4125
        %v4127 = vpop.f32.mrb[0].mxu0
        %v4128 = vpop.f32.mrb[0].mxu0
        %v4129 = vadd.f32 %v3998, %v4128
        %v4130 = vpop.f32.mrb[0].mxu0
        %4131 = vdwg.mxu0
        %v4132 = vpack.c.bf16 %v4073, %v4070
        %v4133 = vpack.c.bf16 %v4081, %v4078
        %v4134 = vpack.c.bf16 %v4089, %v4086
        %v4135 = vpack.c.bf16 %v4097, %v4094
        %v4136 = vpack.c.bf16 %v4105, %v4102
        %v4137 = vpack.c.bf16 %v4113, %v4110
        %v4138 = vpack.c.bf16 %v4121, %v4118
        %v4139 = vpack.c.bf16 %v4129, %v4126
        %4148 = vrot.lane.b32.xlu0 %v4132, 96
        %v4149 = vpop.permute.xlu0 %4148
        %4150 = vrot.lane.b32.xlu0 %v4133, 96
        %v4151 = vpop.permute.xlu0 %4150
        %4152 = vrot.lane.b32.xlu0 %v4134, 96
        %v4153 = vpop.permute.xlu0 %4152
        %4154 = vrot.lane.b32.xlu0 %v4135, 96
        %v4155 = vpop.permute.xlu0 %4154
        %4156 = vrot.lane.b32.xlu0 %v4136, 96
        %v4157 = vpop.permute.xlu0 %4156
        %4158 = vrot.lane.b32.xlu0 %v4137, 96
        %v4159 = vpop.permute.xlu0 %4158
        %4160 = vrot.lane.b32.xlu0 %v4138, 96
        %v4161 = vpop.permute.xlu0 %4160
        %4162 = vrot.lane.b32.xlu0 %v4139, 96
        %v4163 = vpop.permute.xlu0 %4162
        %v4165 = vsel %vm829, %v4132, 0
        %v4168 = vsel %vm829, %v4133, 0
        %v4171 = vsel %vm829, %v4134, 0
        %v4174 = vsel %vm829, %v4135, 0
        %v4177 = vsel %vm829, %v4136, 0
        %v4180 = vsel %vm829, %v4137, 0
        %v4183 = vsel %vm829, %v4138, 0
        %v4186 = vsel %vm829, %v4139, 0
        %v4189 = vsel %vm829, %v4149, 0
        %v4192 = vsel %vm829, %v4151, 0
        %v4195 = vsel %vm829, %v4153, 0
        %v4198 = vsel %vm829, %v4155, 0
        %v4201 = vsel %vm829, %v4157, 0
        %v4204 = vsel %vm829, %v4159, 0
        %v4207 = vsel %vm829, %v4161, 0
        %v4210 = vsel %vm829, %v4163, 0
        %4212 = vmatprep.subr.bf16.mxu0 0
        %4213 = vmatpush1.bf16.xpose.msra.mxu0 %v4189
        %4214 = vmatprep.subr.bf16.mxu0 0
        %4215 = vmatpush1.bf16.xpose.msra.mxu0 %v4192
        %4216 = vmatprep.subr.bf16.mxu0 0
        %4217 = vmatpush1.bf16.xpose.msra.mxu0 %v4195
        %4218 = vmatprep.subr.bf16.mxu0 0
        %4219 = vmatpush1.bf16.xpose.msra.mxu0 %v4198
        %4220 = vmatprep.subr.bf16.mxu0 0
        %4221 = vmatpush1.bf16.xpose.msra.mxu0 %v4201
        %4222 = vmatprep.subr.bf16.mxu0 0
        %4223 = vmatpush1.bf16.xpose.msra.mxu0 %v4204
        %4224 = vmatprep.subr.bf16.mxu0 0
        %4225 = vmatpush1.bf16.xpose.msra.mxu0 %v4207
        %4226 = vmatprep.subr.bf16.mxu0 0
        %4227 = vmatpush1.bf16.xpose.msra.mxu0 %v4210
        %4228 = vmatprep.subr.bf16.mxu0 0
        %4229 = vmatpush1.bf16.xpose.msra.mxu0 0
        %4230 = vmatprep.subr.bf16.mxu0 0
        %4231 = vmatpush1.bf16.xpose.msra.mxu0 0
        %4232 = vmatprep.subr.bf16.mxu0 0
        %4233 = vmatpush1.bf16.xpose.msra.mxu0 0
        %4234 = vmatprep.subr.bf16.mxu0 0
        %4235 = vmatpush1.bf16.xpose.msra.mxu0 0
        %4236 = vmatprep.subr.bf16.mxu0 0
        %4237 = vmatpush1.bf16.xpose.msra.mxu0 0
        %4238 = vmatprep.subr.bf16.mxu0 0
        %4239 = vmatpush1.bf16.xpose.msra.mxu0 0
        %4240 = vmatprep.subr.bf16.mxu0 0
        %4241 = vmatpush1.bf16.xpose.msra.mxu0 0
        %4242 = vmatprep.subr.bf16.mxu0 0
        %4243 = vmatpush1.bf16.xpose.msra.mxu0 0
        %4244 = vmatprep.mubr.bf16.mxu0 0
        %4245 = vmatmul.mubr.bf16.gmra.mrb[0].mxu0 %v4165
        %v4246 = vpop.f32.mrb[0].mxu0
        %v4247 = vadd.f32 %v379, %v4246
        %v4248 = vpop.f32.mrb[0].mxu0
        %v4249 = vpop.f32.mrb[0].mxu0
        %v4250 = vadd.f32 %v380, %v4249
        %v4251 = vpop.f32.mrb[0].mxu0
        %4252 = vmatprep.mubr.bf16.mxu0 0
        %4253 = vmatmul.mubr.bf16.gmra.mrb[0].mxu0 %v4168
        %v4254 = vpop.f32.mrb[0].mxu0
        %v4255 = vadd.f32 %v381, %v4254
        %v4256 = vpop.f32.mrb[0].mxu0
        %v4257 = vpop.f32.mrb[0].mxu0
        %v4258 = vadd.f32 %v382, %v4257
        %v4259 = vpop.f32.mrb[0].mxu0
        %4260 = vmatprep.mubr.bf16.mxu0 0
        %4261 = vmatmul.mubr.bf16.gmra.mrb[0].mxu0 %v4171
        %v4262 = vpop.f32.mrb[0].mxu0
        %v4263 = vadd.f32 %v383, %v4262
        %v4264 = vpop.f32.mrb[0].mxu0
        %v4265 = vpop.f32.mrb[0].mxu0
        %v4266 = vadd.f32 %v384, %v4265
        %v4267 = vpop.f32.mrb[0].mxu0
        %4268 = vmatprep.mubr.bf16.mxu0 0
        %4269 = vmatmul.mubr.bf16.gmra.mrb[0].mxu0 %v4174
        %v4270 = vpop.f32.mrb[0].mxu0
        %v4271 = vadd.f32 %v385, %v4270
        %v4272 = vpop.f32.mrb[0].mxu0
        %v4273 = vpop.f32.mrb[0].mxu0
        %v4274 = vadd.f32 %v386, %v4273
        %v4275 = vpop.f32.mrb[0].mxu0
        %4276 = vmatprep.mubr.bf16.mxu0 0
        %4277 = vmatmul.mubr.bf16.gmra.mrb[0].mxu0 %v4177
        %v4278 = vpop.f32.mrb[0].mxu0
        %v4279 = vadd.f32 %v387, %v4278
        %v4280 = vpop.f32.mrb[0].mxu0
        %v4281 = vpop.f32.mrb[0].mxu0
        %v4282 = vadd.f32 %v388, %v4281
        %v4283 = vpop.f32.mrb[0].mxu0
        %4284 = vmatprep.mubr.bf16.mxu0 0
        %4285 = vmatmul.mubr.bf16.gmra.mrb[0].mxu0 %v4180
        %v4286 = vpop.f32.mrb[0].mxu0
        %v4287 = vadd.f32 %v389, %v4286
        %v4288 = vpop.f32.mrb[0].mxu0
        %v4289 = vpop.f32.mrb[0].mxu0
        %v4290 = vadd.f32 %v390, %v4289
        %v4291 = vpop.f32.mrb[0].mxu0
        %4292 = vmatprep.mubr.bf16.mxu0 0
        %4293 = vmatmul.mubr.bf16.gmra.mrb[0].mxu0 %v4183
        %v4294 = vpop.f32.mrb[0].mxu0
        %v4295 = vadd.f32 %v391, %v4294
        %v4296 = vpop.f32.mrb[0].mxu0
        %v4297 = vpop.f32.mrb[0].mxu0
        %v4298 = vadd.f32 %v392, %v4297
        %v4299 = vpop.f32.mrb[0].mxu0
        %4300 = vmatprep.mubr.bf16.mxu0 0
        %4301 = vmatmul.mubr.bf16.gmra.mrb[0].mxu0 %v4186
        %v4302 = vpop.f32.mrb[0].mxu0
        %v4303 = vadd.f32 %v393, %v4302
        %v4304 = vpop.f32.mrb[0].mxu0
        %v4305 = vpop.f32.mrb[0].mxu0
        %v4306 = vadd.f32 %v394, %v4305
        %v4307 = vpop.f32.mrb[0].mxu0
        %4308 = vdwg.mxu0
        %4309 = vmax.xlane.f32.xlu0 %v4247
        %v4310 = vpop.xlane.xlu0 %4309
        %4311 = vmax.xlane.f32.xlu0 %v4250
        %v4312 = vpop.xlane.xlu0 %4311
        %4313 = vmax.xlane.f32.xlu0 %v4255
        %v4314 = vpop.xlane.xlu0 %4313
        %4315 = vmax.xlane.f32.xlu0 %v4258
        %v4316 = vpop.xlane.xlu0 %4315
        %4317 = vmax.xlane.f32.xlu0 %v4263
        %v4318 = vpop.xlane.xlu0 %4317
        %4319 = vmax.xlane.f32.xlu0 %v4266
        %v4320 = vpop.xlane.xlu0 %4319
        %4321 = vmax.xlane.f32.xlu0 %v4271
        %v4322 = vpop.xlane.xlu0 %4321
        %4323 = vmax.xlane.f32.xlu0 %v4274
        %v4324 = vpop.xlane.xlu0 %4323
        %4325 = vmax.xlane.f32.xlu0 %v4279
        %v4326 = vpop.xlane.xlu0 %4325
        %4327 = vmax.xlane.f32.xlu0 %v4282
        %v4328 = vpop.xlane.xlu0 %4327
        %4329 = vmax.xlane.f32.xlu0 %v4287
        %v4330 = vpop.xlane.xlu0 %4329
        %4331 = vmax.xlane.f32.xlu0 %v4290
        %v4332 = vpop.xlane.xlu0 %4331
        %4333 = vmax.xlane.f32.xlu0 %v4295
        %v4334 = vpop.xlane.xlu0 %4333
        %4335 = vmax.xlane.f32.xlu0 %v4298
        %v4336 = vpop.xlane.xlu0 %4335
        %4337 = vmax.xlane.f32.xlu0 %v4303
        %v4338 = vpop.xlane.xlu0 %4337
        %4339 = vmax.xlane.f32.xlu0 %v4306
        %v4340 = vpop.xlane.xlu0 %4339
        %v4341 = vsub.f32 %v4247, %v4310
        %v4342 = vsub.f32 %v4250, %v4312
        %v4343 = vsub.f32 %v4255, %v4314
        %v4344 = vsub.f32 %v4258, %v4316
        %v4345 = vsub.f32 %v4263, %v4318
        %v4346 = vsub.f32 %v4266, %v4320
        %v4347 = vsub.f32 %v4271, %v4322
        %v4348 = vsub.f32 %v4274, %v4324
        %v4349 = vsub.f32 %v4279, %v4326
        %v4350 = vsub.f32 %v4282, %v4328
        %v4351 = vsub.f32 %v4287, %v4330
        %v4352 = vsub.f32 %v4290, %v4332
        %v4353 = vsub.f32 %v4295, %v4334
        %v4354 = vsub.f32 %v4298, %v4336
        %v4355 = vsub.f32 %v4303, %v4338
        %v4356 = vsub.f32 %v4306, %v4340
        %v4357 = vmul.f32 %v4341, 1.442695
        %v4358 = vpow.pop %v4357
        %v4359 = vmul.f32 %v4342, 1.442695
        %v4360 = vpow.pop %v4359
        %v4361 = vmul.f32 %v4343, 1.442695
        %v4362 = vpow.pop %v4361
        %v4363 = vmul.f32 %v4344, 1.442695
        %v4364 = vpow.pop %v4363
        %v4365 = vmul.f32 %v4345, 1.442695
        %v4366 = vpow.pop %v4365
        %v4367 = vmul.f32 %v4346, 1.442695
        %v4368 = vpow.pop %v4367
        %v4369 = vmul.f32 %v4347, 1.442695
        %v4370 = vpow.pop %v4369
        %v4371 = vmul.f32 %v4348, 1.442695
        %v4372 = vpow.pop %v4371
        %v4373 = vmul.f32 %v4349, 1.442695
        %v4374 = vpow.pop %v4373
        %v4375 = vmul.f32 %v4350, 1.442695
        %v4376 = vpow.pop %v4375
        %v4377 = vmul.f32 %v4351, 1.442695
        %v4378 = vpow.pop %v4377
        %v4379 = vmul.f32 %v4352, 1.442695
        %v4380 = vpow.pop %v4379
        %v4381 = vmul.f32 %v4353, 1.442695
        %v4382 = vpow.pop %v4381
        %v4383 = vmul.f32 %v4354, 1.442695
        %v4384 = vpow.pop %v4383
        %v4385 = vmul.f32 %v4355, 1.442695
        %v4386 = vpow.pop %v4385
        %v4387 = vmul.f32 %v4356, 1.442695
        %v4388 = vpow.pop %v4387
        %4389 = vadd.xlane.f32.xlu0 %v4358
        %v4390 = vpop.xlane.xlu0 %4389
        %4391 = vadd.xlane.f32.xlu0 %v4360
        %v4392 = vpop.xlane.xlu0 %4391
        %4393 = vadd.xlane.f32.xlu0 %v4362
        %v4394 = vpop.xlane.xlu0 %4393
        %4395 = vadd.xlane.f32.xlu0 %v4364
        %v4396 = vpop.xlane.xlu0 %4395
        %4397 = vadd.xlane.f32.xlu0 %v4366
        %v4398 = vpop.xlane.xlu0 %4397
        %4399 = vadd.xlane.f32.xlu0 %v4368
        %v4400 = vpop.xlane.xlu0 %4399
        %4401 = vadd.xlane.f32.xlu0 %v4370
        %v4402 = vpop.xlane.xlu0 %4401
        %4403 = vadd.xlane.f32.xlu0 %v4372
        %v4404 = vpop.xlane.xlu0 %4403
        %4405 = vadd.xlane.f32.xlu0 %v4374
        %v4406 = vpop.xlane.xlu0 %4405
        %4407 = vadd.xlane.f32.xlu0 %v4376
        %v4408 = vpop.xlane.xlu0 %4407
        %4409 = vadd.xlane.f32.xlu0 %v4378
        %v4410 = vpop.xlane.xlu0 %4409
        %4411 = vadd.xlane.f32.xlu0 %v4380
        %v4412 = vpop.xlane.xlu0 %4411
        %4413 = vadd.xlane.f32.xlu0 %v4382
        %v4414 = vpop.xlane.xlu0 %4413
        %4415 = vadd.xlane.f32.xlu0 %v4384
        %v4416 = vpop.xlane.xlu0 %4415
        %4417 = vadd.xlane.f32.xlu0 %v4386
        %v4418 = vpop.xlane.xlu0 %4417
        %4419 = vadd.xlane.f32.xlu0 %v4388
        %v4420 = vpop.xlane.xlu0 %4419
        %v4421 = vrcp.pop %v4390
        %v4422 = vrcp.pop %v4392
        %v4423 = vrcp.pop %v4394
        %v4424 = vrcp.pop %v4396
        %v4425 = vrcp.pop %v4398
        %v4426 = vrcp.pop %v4400
        %v4427 = vrcp.pop %v4402
        %v4428 = vrcp.pop %v4404
        %v4429 = vrcp.pop %v4406
        %v4430 = vrcp.pop %v4408
        %v4431 = vrcp.pop %v4410
        %v4432 = vrcp.pop %v4412
        %v4433 = vrcp.pop %v4414
        %v4434 = vrcp.pop %v4416
        %v4435 = vrcp.pop %v4418
        %v4436 = vrcp.pop %v4420
        %v4437 = vpack.c.bf16 %v4360, %v4358
        %v4438 = vpack.c.bf16 %v4364, %v4362
        %v4439 = vpack.c.bf16 %v4368, %v4366
        %v4440 = vpack.c.bf16 %v4372, %v4370
        %v4441 = vpack.c.bf16 %v4376, %v4374
        %v4442 = vpack.c.bf16 %v4380, %v4378
        %v4443 = vpack.c.bf16 %v4384, %v4382
        %v4444 = vpack.c.bf16 %v4388, %v4386
        %4445 = vrot.lane.b32.xlu0 %v4132, 64
        %v4446 = vpop.permute.xlu0 %4445
        %4447 = vrot.lane.b32.xlu0 %v4133, 64
        %v4448 = vpop.permute.xlu0 %4447
        %4449 = vrot.lane.b32.xlu0 %v4134, 64
        %v4450 = vpop.permute.xlu0 %4449
        %4451 = vrot.lane.b32.xlu0 %v4135, 64
        %v4452 = vpop.permute.xlu0 %4451
        %4453 = vrot.lane.b32.xlu0 %v4136, 64
        %v4454 = vpop.permute.xlu0 %4453
        %4455 = vrot.lane.b32.xlu0 %v4137, 64
        %v4456 = vpop.permute.xlu0 %4455
        %4457 = vrot.lane.b32.xlu0 %v4138, 64
        %v4458 = vpop.permute.xlu0 %4457
        %4459 = vrot.lane.b32.xlu0 %v4139, 64
        %v4460 = vpop.permute.xlu0 %4459
        %4469 = vmatprep.subr.bf16.mxu0 0
        %4470 = vmatpush1.bf16.msra.mxu0 %v4446
        %4471 = vmatprep.subr.bf16.mxu0 0
        %4472 = vmatpush1.bf16.msra.mxu0 %v4448
        %4473 = vmatprep.subr.bf16.mxu0 0
        %4474 = vmatpush1.bf16.msra.mxu0 %v4450
        %4475 = vmatprep.subr.bf16.mxu0 0
        %4476 = vmatpush1.bf16.msra.mxu0 %v4452
        %4477 = vmatprep.subr.bf16.mxu0 0
        %4478 = vmatpush1.bf16.msra.mxu0 %v4454
        %4479 = vmatprep.subr.bf16.mxu0 0
        %4480 = vmatpush1.bf16.msra.mxu0 %v4456
        %4481 = vmatprep.subr.bf16.mxu0 0
        %4482 = vmatpush1.bf16.msra.mxu0 %v4458
        %4483 = vmatprep.subr.bf16.mxu0 0
        %4484 = vmatpush1.bf16.msra.mxu0 %v4460
        %4485 = vmatprep.subr.bf16.mxu0 0
        %4486 = vmatpush1.bf16.msra.mxu0 0
        %4487 = vmatprep.subr.bf16.mxu0 0
        %4488 = vmatpush1.bf16.msra.mxu0 0
        %4489 = vmatprep.subr.bf16.mxu0 0
        %4490 = vmatpush1.bf16.msra.mxu0 0
        %4491 = vmatprep.subr.bf16.mxu0 0
        %4492 = vmatpush1.bf16.msra.mxu0 0
        %4493 = vmatprep.subr.bf16.mxu0 0
        %4494 = vmatpush1.bf16.msra.mxu0 0
        %4495 = vmatprep.subr.bf16.mxu0 0
        %4496 = vmatpush1.bf16.msra.mxu0 0
        %4497 = vmatprep.subr.bf16.mxu0 0
        %4498 = vmatpush1.bf16.msra.mxu0 0
        %4499 = vmatprep.subr.bf16.mxu0 0
        %4500 = vmatpush1.bf16.msra.mxu0 0
        %4501 = vmatprep.mubr.bf16.mxu0 0
        %4502 = vmatmul.mubr.bf16.gmra.mrb[0].mxu0 %v4437
        %v4503 = vpop.f32.mrb[0].mxu0
        %v4504 = vadd.f32 0.0, %v4503
        %v4505 = vpop.f32.mrb[0].mxu0
        %v4506 = vpop.f32.mrb[0].mxu0
        %v4507 = vadd.f32 0.0, %v4506
        %v4508 = vpop.f32.mrb[0].mxu0
        %4509 = vmatprep.mubr.bf16.mxu0 0
        %4510 = vmatmul.mubr.bf16.gmra.mrb[0].mxu0 %v4438
        %v4511 = vpop.f32.mrb[0].mxu0
        %v4512 = vadd.f32 0.0, %v4511
        %v4513 = vpop.f32.mrb[0].mxu0
        %v4514 = vpop.f32.mrb[0].mxu0
        %v4515 = vadd.f32 0.0, %v4514
        %v4516 = vpop.f32.mrb[0].mxu0
        %4517 = vmatprep.mubr.bf16.mxu0 0
        %4518 = vmatmul.mubr.bf16.gmra.mrb[0].mxu0 %v4439
        %v4519 = vpop.f32.mrb[0].mxu0
        %v4520 = vadd.f32 0.0, %v4519
        %v4521 = vpop.f32.mrb[0].mxu0
        %v4522 = vpop.f32.mrb[0].mxu0
        %v4523 = vadd.f32 0.0, %v4522
        %v4524 = vpop.f32.mrb[0].mxu0
        %4525 = vmatprep.mubr.bf16.mxu0 0
        %4526 = vmatmul.mubr.bf16.gmra.mrb[0].mxu0 %v4440
        %v4527 = vpop.f32.mrb[0].mxu0
        %v4528 = vadd.f32 0.0, %v4527
        %v4529 = vpop.f32.mrb[0].mxu0
        %v4530 = vpop.f32.mrb[0].mxu0
        %v4531 = vadd.f32 0.0, %v4530
        %v4532 = vpop.f32.mrb[0].mxu0
        %4533 = vmatprep.mubr.bf16.mxu0 0
        %4534 = vmatmul.mubr.bf16.gmra.mrb[0].mxu0 %v4441
        %v4535 = vpop.f32.mrb[0].mxu0
        %v4536 = vadd.f32 0.0, %v4535
        %v4537 = vpop.f32.mrb[0].mxu0
        %v4538 = vpop.f32.mrb[0].mxu0
        %v4539 = vadd.f32 0.0, %v4538
        %v4540 = vpop.f32.mrb[0].mxu0
        %4541 = vmatprep.mubr.bf16.mxu0 0
        %4542 = vmatmul.mubr.bf16.gmra.mrb[0].mxu0 %v4442
        %v4543 = vpop.f32.mrb[0].mxu0
        %v4544 = vadd.f32 0.0, %v4543
        %v4545 = vpop.f32.mrb[0].mxu0
        %v4546 = vpop.f32.mrb[0].mxu0
        %v4547 = vadd.f32 0.0, %v4546
        %v4548 = vpop.f32.mrb[0].mxu0
        %4549 = vmatprep.mubr.bf16.mxu0 0
        %4550 = vmatmul.mubr.bf16.gmra.mrb[0].mxu0 %v4443
        %v4551 = vpop.f32.mrb[0].mxu0
        %v4552 = vadd.f32 0.0, %v4551
        %v4553 = vpop.f32.mrb[0].mxu0
        %v4554 = vpop.f32.mrb[0].mxu0
        %v4555 = vadd.f32 0.0, %v4554
        %v4556 = vpop.f32.mrb[0].mxu0
        %4557 = vmatprep.mubr.bf16.mxu0 0
        %4558 = vmatmul.mubr.bf16.gmra.mrb[0].mxu0 %v4444
        %v4559 = vpop.f32.mrb[0].mxu0
        %v4560 = vadd.f32 0.0, %v4559
        %v4561 = vpop.f32.mrb[0].mxu0
        %v4562 = vpop.f32.mrb[0].mxu0
        %v4563 = vadd.f32 0.0, %v4562
        %v4564 = vpop.f32.mrb[0].mxu0
        %4565 = vdwg.mxu0
        %v4566 = vmul.f32 %v4504, %v4421
        %v4567 = vmul.f32 %v4507, %v4422
        %v4568 = vmul.f32 %v4512, %v4423
        %v4569 = vmul.f32 %v4515, %v4424
        %v4570 = vmul.f32 %v4520, %v4425
        %v4571 = vmul.f32 %v4523, %v4426
        %v4572 = vmul.f32 %v4528, %v4427
        %v4573 = vmul.f32 %v4531, %v4428
        %v4574 = vmul.f32 %v4536, %v4429
        %v4575 = vmul.f32 %v4539, %v4430
        %v4576 = vmul.f32 %v4544, %v4431
        %v4577 = vmul.f32 %v4547, %v4432
        %v4578 = vmul.f32 %v4552, %v4433
        %v4579 = vmul.f32 %v4555, %v4434
        %v4580 = vmul.f32 %v4560, %v4435
        %v4581 = vmul.f32 %v4563, %v4436
        %4582 = vrot.lane.b32.xlu0 %v4132, 120
        %v4583 = vpop.permute.xlu0 %4582
        %4584 = vrot.lane.b32.xlu0 %v4133, 120
        %v4585 = vpop.permute.xlu0 %4584
        %4586 = vrot.lane.b32.xlu0 %v4134, 120
        %v4587 = vpop.permute.xlu0 %4586
        %4588 = vrot.lane.b32.xlu0 %v4135, 120
        %v4589 = vpop.permute.xlu0 %4588
        %4590 = vrot.lane.b32.xlu0 %v4136, 120
        %v4591 = vpop.permute.xlu0 %4590
        %4592 = vrot.lane.b32.xlu0 %v4137, 120
        %v4593 = vpop.permute.xlu0 %4592
        %4594 = vrot.lane.b32.xlu0 %v4138, 120
        %v4595 = vpop.permute.xlu0 %4594
        %4596 = vrot.lane.b32.xlu0 %v4139, 120
        %v4597 = vpop.permute.xlu0 %4596
        %4598 = vrot.lane.b32.xlu0 %v4132, 88
        %v4599 = vpop.permute.xlu0 %4598
        %4600 = vrot.lane.b32.xlu0 %v4133, 88
        %v4601 = vpop.permute.xlu0 %4600
        %4602 = vrot.lane.b32.xlu0 %v4134, 88
        %v4603 = vpop.permute.xlu0 %4602
        %4604 = vrot.lane.b32.xlu0 %v4135, 88
        %v4605 = vpop.permute.xlu0 %4604
        %4606 = vrot.lane.b32.xlu0 %v4136, 88
        %v4607 = vpop.permute.xlu0 %4606
        %4608 = vrot.lane.b32.xlu0 %v4137, 88
        %v4609 = vpop.permute.xlu0 %4608
        %4610 = vrot.lane.b32.xlu0 %v4138, 88
        %v4611 = vpop.permute.xlu0 %4610
        %4612 = vrot.lane.b32.xlu0 %v4139, 88
        %v4613 = vpop.permute.xlu0 %4612
        %v4615 = vsel %vm829, %v4583, 0
        %v4618 = vsel %vm829, %v4585, 0
        %v4621 = vsel %vm829, %v4587, 0
        %v4624 = vsel %vm829, %v4589, 0
        %v4627 = vsel %vm829, %v4591, 0
        %v4630 = vsel %vm829, %v4593, 0
        %v4633 = vsel %vm829, %v4595, 0
        %v4636 = vsel %vm829, %v4597, 0
        %v4639 = vsel %vm829, %v4599, 0
        %v4642 = vsel %vm829, %v4601, 0
        %v4645 = vsel %vm829, %v4603, 0
        %v4648 = vsel %vm829, %v4605, 0
        %v4651 = vsel %vm829, %v4607, 0
        %v4654 = vsel %vm829, %v4609, 0
        %v4657 = vsel %vm829, %v4611, 0
        %v4660 = vsel %vm829, %v4613, 0
        %4662 = vmatprep.subr.bf16.mxu0 0
        %4663 = vmatpush1.bf16.xpose.msra.mxu0 %v4639
        %4664 = vmatprep.subr.bf16.mxu0 0
        %4665 = vmatpush1.bf16.xpose.msra.mxu0 %v4642
        %4666 = vmatprep.subr.bf16.mxu0 0
        %4667 = vmatpush1.bf16.xpose.msra.mxu0 %v4645
        %4668 = vmatprep.subr.bf16.mxu0 0
        %4669 = vmatpush1.bf16.xpose.msra.mxu0 %v4648
        %4670 = vmatprep.subr.bf16.mxu0 0
        %4671 = vmatpush1.bf16.xpose.msra.mxu0 %v4651
        %4672 = vmatprep.subr.bf16.mxu0 0
        %4673 = vmatpush1.bf16.xpose.msra.mxu0 %v4654
        %4674 = vmatprep.subr.bf16.mxu0 0
        %4675 = vmatpush1.bf16.xpose.msra.mxu0 %v4657
        %4676 = vmatprep.subr.bf16.mxu0 0
        %4677 = vmatpush1.bf16.xpose.msra.mxu0 %v4660
        %4678 = vmatprep.subr.bf16.mxu0 0
        %4679 = vmatpush1.bf16.xpose.msra.mxu0 0
        %4680 = vmatprep.subr.bf16.mxu0 0
        %4681 = vmatpush1.bf16.xpose.msra.mxu0 0
        %4682 = vmatprep.subr.bf16.mxu0 0
        %4683 = vmatpush1.bf16.xpose.msra.mxu0 0
        %4684 = vmatprep.subr.bf16.mxu0 0
        %4685 = vmatpush1.bf16.xpose.msra.mxu0 0
        %4686 = vmatprep.subr.bf16.mxu0 0
        %4687 = vmatpush1.bf16.xpose.msra.mxu0 0
        %4688 = vmatprep.subr.bf16.mxu0 0
        %4689 = vmatpush1.bf16.xpose.msra.mxu0 0
        %4690 = vmatprep.subr.bf16.mxu0 0
        %4691 = vmatpush1.bf16.xpose.msra.mxu0 0
        %4692 = vmatprep.subr.bf16.mxu0 0
        %4693 = vmatpush1.bf16.xpose.msra.mxu0 0
        %4694 = vmatprep.mubr.bf16.mxu0 0
        %4695 = vmatmul.mubr.bf16.gmra.mrb[0].mxu0 %v4615
        %v4696 = vpop.f32.mrb[0].mxu0
        %v4697 = vadd.f32 %v379, %v4696
        %v4698 = vpop.f32.mrb[0].mxu0
        %v4699 = vpop.f32.mrb[0].mxu0
        %v4700 = vadd.f32 %v380, %v4699
        %v4701 = vpop.f32.mrb[0].mxu0
        %4702 = vmatprep.mubr.bf16.mxu0 0
        %4703 = vmatmul.mubr.bf16.gmra.mrb[0].mxu0 %v4618
        %v4704 = vpop.f32.mrb[0].mxu0
        %v4705 = vadd.f32 %v381, %v4704
        %v4706 = vpop.f32.mrb[0].mxu0
        %v4707 = vpop.f32.mrb[0].mxu0
        %v4708 = vadd.f32 %v382, %v4707
        %v4709 = vpop.f32.mrb[0].mxu0
        %4710 = vmatprep.mubr.bf16.mxu0 0
        %4711 = vmatmul.mubr.bf16.gmra.mrb[0].mxu0 %v4621
        %v4712 = vpop.f32.mrb[0].mxu0
        %v4713 = vadd.f32 %v383, %v4712
        %v4714 = vpop.f32.mrb[0].mxu0
        %v4715 = vpop.f32.mrb[0].mxu0
        %v4716 = vadd.f32 %v384, %v4715
        %v4717 = vpop.f32.mrb[0].mxu0
        %4718 = vmatprep.mubr.bf16.mxu0 0
        %4719 = vmatmul.mubr.bf16.gmra.mrb[0].mxu0 %v4624
        %v4720 = vpop.f32.mrb[0].mxu0
        %v4721 = vadd.f32 %v385, %v4720
        %v4722 = vpop.f32.mrb[0].mxu0
        %v4723 = vpop.f32.mrb[0].mxu0
        %v4724 = vadd.f32 %v386, %v4723
        %v4725 = vpop.f32.mrb[0].mxu0
        %4726 = vmatprep.mubr.bf16.mxu0 0
        %4727 = vmatmul.mubr.bf16.gmra.mrb[0].mxu0 %v4627
        %v4728 = vpop.f32.mrb[0].mxu0
        %v4729 = vadd.f32 %v387, %v4728
        %v4730 = vpop.f32.mrb[0].mxu0
        %v4731 = vpop.f32.mrb[0].mxu0
        %v4732 = vadd.f32 %v388, %v4731
        %v4733 = vpop.f32.mrb[0].mxu0
        %4734 = vmatprep.mubr.bf16.mxu0 0
        %4735 = vmatmul.mubr.bf16.gmra.mrb[0].mxu0 %v4630
        %v4736 = vpop.f32.mrb[0].mxu0
        %v4737 = vadd.f32 %v389, %v4736
        %v4738 = vpop.f32.mrb[0].mxu0
        %v4739 = vpop.f32.mrb[0].mxu0
        %v4740 = vadd.f32 %v390, %v4739
        %v4741 = vpop.f32.mrb[0].mxu0
        %4742 = vmatprep.mubr.bf16.mxu0 0
        %4743 = vmatmul.mubr.bf16.gmra.mrb[0].mxu0 %v4633
        %v4744 = vpop.f32.mrb[0].mxu0
        %v4745 = vadd.f32 %v391, %v4744
        %v4746 = vpop.f32.mrb[0].mxu0
        %v4747 = vpop.f32.mrb[0].mxu0
        %v4748 = vadd.f32 %v392, %v4747
        %v4749 = vpop.f32.mrb[0].mxu0
        %4750 = vmatprep.mubr.bf16.mxu0 0
        %4751 = vmatmul.mubr.bf16.gmra.mrb[0].mxu0 %v4636
        %v4752 = vpop.f32.mrb[0].mxu0
        %v4753 = vadd.f32 %v393, %v4752
        %v4754 = vpop.f32.mrb[0].mxu0
        %v4755 = vpop.f32.mrb[0].mxu0
        %v4756 = vadd.f32 %v394, %v4755
        %v4757 = vpop.f32.mrb[0].mxu0
        %4758 = vdwg.mxu0
        %4759 = vmax.xlane.f32.xlu0 %v4697
        %v4760 = vpop.xlane.xlu0 %4759
        %4761 = vmax.xlane.f32.xlu0 %v4700
        %v4762 = vpop.xlane.xlu0 %4761
        %4763 = vmax.xlane.f32.xlu0 %v4705
        %v4764 = vpop.xlane.xlu0 %4763
        %4765 = vmax.xlane.f32.xlu0 %v4708
        %v4766 = vpop.xlane.xlu0 %4765
        %4767 = vmax.xlane.f32.xlu0 %v4713
        %v4768 = vpop.xlane.xlu0 %4767
        %4769 = vmax.xlane.f32.xlu0 %v4716
        %v4770 = vpop.xlane.xlu0 %4769
        %4771 = vmax.xlane.f32.xlu0 %v4721
        %v4772 = vpop.xlane.xlu0 %4771
        %4773 = vmax.xlane.f32.xlu0 %v4724
        %v4774 = vpop.xlane.xlu0 %4773
        %4775 = vmax.xlane.f32.xlu0 %v4729
        %v4776 = vpop.xlane.xlu0 %4775
        %4777 = vmax.xlane.f32.xlu0 %v4732
        %v4778 = vpop.xlane.xlu0 %4777
        %4779 = vmax.xlane.f32.xlu0 %v4737
        %v4780 = vpop.xlane.xlu0 %4779
        %4781 = vmax.xlane.f32.xlu0 %v4740
        %v4782 = vpop.xlane.xlu0 %4781
        %4783 = vmax.xlane.f32.xlu0 %v4745
        %v4784 = vpop.xlane.xlu0 %4783
        %4785 = vmax.xlane.f32.xlu0 %v4748
        %v4786 = vpop.xlane.xlu0 %4785
        %4787 = vmax.xlane.f32.xlu0 %v4753
        %v4788 = vpop.xlane.xlu0 %4787
        %4789 = vmax.xlane.f32.xlu0 %v4756
        %v4790 = vpop.xlane.xlu0 %4789
        %v4791 = vsub.f32 %v4697, %v4760
        %v4792 = vsub.f32 %v4700, %v4762
        %v4793 = vsub.f32 %v4705, %v4764
        %v4794 = vsub.f32 %v4708, %v4766
        %v4795 = vsub.f32 %v4713, %v4768
        %v4796 = vsub.f32 %v4716, %v4770
        %v4797 = vsub.f32 %v4721, %v4772
        %v4798 = vsub.f32 %v4724, %v4774
        %v4799 = vsub.f32 %v4729, %v4776
        %v4800 = vsub.f32 %v4732, %v4778
        %v4801 = vsub.f32 %v4737, %v4780
        %v4802 = vsub.f32 %v4740, %v4782
        %v4803 = vsub.f32 %v4745, %v4784
        %v4804 = vsub.f32 %v4748, %v4786
        %v4805 = vsub.f32 %v4753, %v4788
        %v4806 = vsub.f32 %v4756, %v4790
        %v4807 = vmul.f32 %v4791, 1.442695
        %v4808 = vpow.pop %v4807
        %v4809 = vmul.f32 %v4792, 1.442695
        %v4810 = vpow.pop %v4809
        %v4811 = vmul.f32 %v4793, 1.442695
        %v4812 = vpow.pop %v4811
        %v4813 = vmul.f32 %v4794, 1.442695
        %v4814 = vpow.pop %v4813
        %v4815 = vmul.f32 %v4795, 1.442695
        %v4816 = vpow.pop %v4815
        %v4817 = vmul.f32 %v4796, 1.442695
        %v4818 = vpow.pop %v4817
        %v4819 = vmul.f32 %v4797, 1.442695
        %v4820 = vpow.pop %v4819
        %v4821 = vmul.f32 %v4798, 1.442695
        %v4822 = vpow.pop %v4821
        %v4823 = vmul.f32 %v4799, 1.442695
        %v4824 = vpow.pop %v4823
        %v4825 = vmul.f32 %v4800, 1.442695
        %v4826 = vpow.pop %v4825
        %v4827 = vmul.f32 %v4801, 1.442695
        %v4828 = vpow.pop %v4827
        %v4829 = vmul.f32 %v4802, 1.442695
        %v4830 = vpow.pop %v4829
        %v4831 = vmul.f32 %v4803, 1.442695
        %v4832 = vpow.pop %v4831
        %v4833 = vmul.f32 %v4804, 1.442695
        %v4834 = vpow.pop %v4833
        %v4835 = vmul.f32 %v4805, 1.442695
        %v4836 = vpow.pop %v4835
        %v4837 = vmul.f32 %v4806, 1.442695
        %v4838 = vpow.pop %v4837
        %4839 = vadd.xlane.f32.xlu0 %v4808
        %v4840 = vpop.xlane.xlu0 %4839
        %4841 = vadd.xlane.f32.xlu0 %v4810
        %v4842 = vpop.xlane.xlu0 %4841
        %4843 = vadd.xlane.f32.xlu0 %v4812
        %v4844 = vpop.xlane.xlu0 %4843
        %4845 = vadd.xlane.f32.xlu0 %v4814
        %v4846 = vpop.xlane.xlu0 %4845
        %4847 = vadd.xlane.f32.xlu0 %v4816
        %v4848 = vpop.xlane.xlu0 %4847
        %4849 = vadd.xlane.f32.xlu0 %v4818
        %v4850 = vpop.xlane.xlu0 %4849
        %4851 = vadd.xlane.f32.xlu0 %v4820
        %v4852 = vpop.xlane.xlu0 %4851
        %4853 = vadd.xlane.f32.xlu0 %v4822
        %v4854 = vpop.xlane.xlu0 %4853
        %4855 = vadd.xlane.f32.xlu0 %v4824
        %v4856 = vpop.xlane.xlu0 %4855
        %4857 = vadd.xlane.f32.xlu0 %v4826
        %v4858 = vpop.xlane.xlu0 %4857
        %4859 = vadd.xlane.f32.xlu0 %v4828
        %v4860 = vpop.xlane.xlu0 %4859
        %4861 = vadd.xlane.f32.xlu0 %v4830
        %v4862 = vpop.xlane.xlu0 %4861
        %4863 = vadd.xlane.f32.xlu0 %v4832
        %v4864 = vpop.xlane.xlu0 %4863
        %4865 = vadd.xlane.f32.xlu0 %v4834
        %v4866 = vpop.xlane.xlu0 %4865
        %4867 = vadd.xlane.f32.xlu0 %v4836
        %v4868 = vpop.xlane.xlu0 %4867
        %4869 = vadd.xlane.f32.xlu0 %v4838
        %v4870 = vpop.xlane.xlu0 %4869
        %v4871 = vrcp.pop %v4840
        %v4872 = vrcp.pop %v4842
        %v4873 = vrcp.pop %v4844
        %v4874 = vrcp.pop %v4846
        %v4875 = vrcp.pop %v4848
        %v4876 = vrcp.pop %v4850
        %v4877 = vrcp.pop %v4852
        %v4878 = vrcp.pop %v4854
        %v4879 = vrcp.pop %v4856
        %v4880 = vrcp.pop %v4858
        %v4881 = vrcp.pop %v4860
        %v4882 = vrcp.pop %v4862
        %v4883 = vrcp.pop %v4864
        %v4884 = vrcp.pop %v4866
        %v4885 = vrcp.pop %v4868
        %v4886 = vrcp.pop %v4870
        %v4887 = vpack.c.bf16 %v4810, %v4808
        %v4888 = vpack.c.bf16 %v4814, %v4812
        %v4889 = vpack.c.bf16 %v4818, %v4816
        %v4890 = vpack.c.bf16 %v4822, %v4820
        %v4891 = vpack.c.bf16 %v4826, %v4824
        %v4892 = vpack.c.bf16 %v4830, %v4828
        %v4893 = vpack.c.bf16 %v4834, %v4832
        %v4894 = vpack.c.bf16 %v4838, %v4836
        %4895 = vrot.lane.b32.xlu0 %v4132, 56
        %v4896 = vpop.permute.xlu0 %4895
        %4897 = vrot.lane.b32.xlu0 %v4133, 56
        %v4898 = vpop.permute.xlu0 %4897
        %4899 = vrot.lane.b32.xlu0 %v4134, 56
        %v4900 = vpop.permute.xlu0 %4899
        %4901 = vrot.lane.b32.xlu0 %v4135, 56
        %v4902 = vpop.permute.xlu0 %4901
        %4903 = vrot.lane.b32.xlu0 %v4136, 56
        %v4904 = vpop.permute.xlu0 %4903
        %4905 = vrot.lane.b32.xlu0 %v4137, 56
        %v4906 = vpop.permute.xlu0 %4905
        %4907 = vrot.lane.b32.xlu0 %v4138, 56
        %v4908 = vpop.permute.xlu0 %4907
        %4909 = vrot.lane.b32.xlu0 %v4139, 56
        %v4910 = vpop.permute.xlu0 %4909
        %4919 = vmatprep.subr.bf16.mxu0 0
        %4920 = vmatpush1.bf16.msra.mxu0 %v4896
        %4921 = vmatprep.subr.bf16.mxu0 0
        %4922 = vmatpush1.bf16.msra.mxu0 %v4898
        %4923 = vmatprep.subr.bf16.mxu0 0
        %4924 = vmatpush1.bf16.msra.mxu0 %v4900
        %4925 = vmatprep.subr.bf16.mxu0 0
        %4926 = vmatpush1.bf16.msra.mxu0 %v4902
        %4927 = vmatprep.subr.bf16.mxu0 0
        %4928 = vmatpush1.bf16.msra.mxu0 %v4904
        %4929 = vmatprep.subr.bf16.mxu0 0
        %4930 = vmatpush1.bf16.msra.mxu0 %v4906
        %4931 = vmatprep.subr.bf16.mxu0 0
        %4932 = vmatpush1.bf16.msra.mxu0 %v4908
        %4933 = vmatprep.subr.bf16.mxu0 0
        %4934 = vmatpush1.bf16.msra.mxu0 %v4910
        %4935 = vmatprep.subr.bf16.mxu0 0
        %4936 = vmatpush1.bf16.msra.mxu0 0
        %4937 = vmatprep.subr.bf16.mxu0 0
        %4938 = vmatpush1.bf16.msra.mxu0 0
        %4939 = vmatprep.subr.bf16.mxu0 0
        %4940 = vmatpush1.bf16.msra.mxu0 0
        %4941 = vmatprep.subr.bf16.mxu0 0
        %4942 = vmatpush1.bf16.msra.mxu0 0
        %4943 = vmatprep.subr.bf16.mxu0 0
        %4944 = vmatpush1.bf16.msra.mxu0 0
        %4945 = vmatprep.subr.bf16.mxu0 0
        %4946 = vmatpush1.bf16.msra.mxu0 0
        %4947 = vmatprep.subr.bf16.mxu0 0
        %4948 = vmatpush1.bf16.msra.mxu0 0
        %4949 = vmatprep.subr.bf16.mxu0 0
        %4950 = vmatpush1.bf16.msra.mxu0 0
        %4951 = vmatprep.mubr.bf16.mxu0 0
        %4952 = vmatmul.mubr.bf16.gmra.mrb[0].mxu0 %v4887
        %v4953 = vpop.f32.mrb[0].mxu0
        %v4954 = vadd.f32 0.0, %v4953
        %v4955 = vpop.f32.mrb[0].mxu0
        %v4956 = vpop.f32.mrb[0].mxu0
        %v4957 = vadd.f32 0.0, %v4956
        %v4958 = vpop.f32.mrb[0].mxu0
        %4959 = vmatprep.mubr.bf16.mxu0 0
        %4960 = vmatmul.mubr.bf16.gmra.mrb[0].mxu0 %v4888
        %v4961 = vpop.f32.mrb[0].mxu0
        %v4962 = vadd.f32 0.0, %v4961
        %v4963 = vpop.f32.mrb[0].mxu0
        %v4964 = vpop.f32.mrb[0].mxu0
        %v4965 = vadd.f32 0.0, %v4964
        %v4966 = vpop.f32.mrb[0].mxu0
        %4967 = vmatprep.mubr.bf16.mxu0 0
        %4968 = vmatmul.mubr.bf16.gmra.mrb[0].mxu0 %v4889
        %v4969 = vpop.f32.mrb[0].mxu0
        %v4970 = vadd.f32 0.0, %v4969
        %v4971 = vpop.f32.mrb[0].mxu0
        %v4972 = vpop.f32.mrb[0].mxu0
        %v4973 = vadd.f32 0.0, %v4972
        %v4974 = vpop.f32.mrb[0].mxu0
        %4975 = vmatprep.mubr.bf16.mxu0 0
        %4976 = vmatmul.mubr.bf16.gmra.mrb[0].mxu0 %v4890
        %v4977 = vpop.f32.mrb[0].mxu0
        %v4978 = vadd.f32 0.0, %v4977
        %v4979 = vpop.f32.mrb[0].mxu0
        %v4980 = vpop.f32.mrb[0].mxu0
        %v4981 = vadd.f32 0.0, %v4980
        %v4982 = vpop.f32.mrb[0].mxu0
        %4983 = vmatprep.mubr.bf16.mxu0 0
        %4984 = vmatmul.mubr.bf16.gmra.mrb[0].mxu0 %v4891
        %v4985 = vpop.f32.mrb[0].mxu0
        %v4986 = vadd.f32 0.0, %v4985
        %v4987 = vpop.f32.mrb[0].mxu0
        %v4988 = vpop.f32.mrb[0].mxu0
        %v4989 = vadd.f32 0.0, %v4988
        %v4990 = vpop.f32.mrb[0].mxu0
        %4991 = vmatprep.mubr.bf16.mxu0 0
        %4992 = vmatmul.mubr.bf16.gmra.mrb[0].mxu0 %v4892
        %v4993 = vpop.f32.mrb[0].mxu0
        %v4994 = vadd.f32 0.0, %v4993
        %v4995 = vpop.f32.mrb[0].mxu0
        %v4996 = vpop.f32.mrb[0].mxu0
        %v4997 = vadd.f32 0.0, %v4996
        %v4998 = vpop.f32.mrb[0].mxu0
        %4999 = vmatprep.mubr.bf16.mxu0 0
        %5000 = vmatmul.mubr.bf16.gmra.mrb[0].mxu0 %v4893
        %v5001 = vpop.f32.mrb[0].mxu0
        %v5002 = vadd.f32 0.0, %v5001
        %v5003 = vpop.f32.mrb[0].mxu0
        %v5004 = vpop.f32.mrb[0].mxu0
        %v5005 = vadd.f32 0.0, %v5004
        %v5006 = vpop.f32.mrb[0].mxu0
        %5007 = vmatprep.mubr.bf16.mxu0 0
        %5008 = vmatmul.mubr.bf16.gmra.mrb[0].mxu0 %v4894
        %v5009 = vpop.f32.mrb[0].mxu0
        %v5010 = vadd.f32 0.0, %v5009
        %v5011 = vpop.f32.mrb[0].mxu0
        %v5012 = vpop.f32.mrb[0].mxu0
        %v5013 = vadd.f32 0.0, %v5012
        %v5014 = vpop.f32.mrb[0].mxu0
        %5015 = vdwg.mxu0
        %v5016 = vmul.f32 %v4954, %v4871
        %v5017 = vmul.f32 %v4957, %v4872
        %v5018 = vmul.f32 %v4962, %v4873
        %v5019 = vmul.f32 %v4965, %v4874
        %v5020 = vmul.f32 %v4970, %v4875
        %v5021 = vmul.f32 %v4973, %v4876
        %v5022 = vmul.f32 %v4978, %v4877
        %v5023 = vmul.f32 %v4981, %v4878
        %v5024 = vmul.f32 %v4986, %v4879
        %v5025 = vmul.f32 %v4989, %v4880
        %v5026 = vmul.f32 %v4994, %v4881
        %v5027 = vmul.f32 %v4997, %v4882
        %v5028 = vmul.f32 %v5002, %v4883
        %v5029 = vmul.f32 %v5005, %v4884
        %v5030 = vmul.f32 %v5010, %v4885
        %v5031 = vmul.f32 %v5013, %v4886
        %5032 = vrot.lane.b32.xlu0 %v4132, 112
        %v5033 = vpop.permute.xlu0 %5032
        %5034 = vrot.lane.b32.xlu0 %v4133, 112
        %v5035 = vpop.permute.xlu0 %5034
        %5036 = vrot.lane.b32.xlu0 %v4134, 112
        %v5037 = vpop.permute.xlu0 %5036
        %5038 = vrot.lane.b32.xlu0 %v4135, 112
        %v5039 = vpop.permute.xlu0 %5038
        %5040 = vrot.lane.b32.xlu0 %v4136, 112
        %v5041 = vpop.permute.xlu0 %5040
        %5042 = vrot.lane.b32.xlu0 %v4137, 112
        %v5043 = vpop.permute.xlu0 %5042
        %5044 = vrot.lane.b32.xlu0 %v4138, 112
        %v5045 = vpop.permute.xlu0 %5044
        %5046 = vrot.lane.b32.xlu0 %v4139, 112
        %v5047 = vpop.permute.xlu0 %5046
        %5048 = vrot.lane.b32.xlu0 %v4132, 80
        %v5049 = vpop.permute.xlu0 %5048
        %5050 = vrot.lane.b32.xlu0 %v4133, 80
        %v5051 = vpop.permute.xlu0 %5050
        %5052 = vrot.lane.b32.xlu0 %v4134, 80
        %v5053 = vpop.permute.xlu0 %5052
        %5054 = vrot.lane.b32.xlu0 %v4135, 80
        %v5055 = vpop.permute.xlu0 %5054
        %5056 = vrot.lane.b32.xlu0 %v4136, 80
        %v5057 = vpop.permute.xlu0 %5056
        %5058 = vrot.lane.b32.xlu0 %v4137, 80
        %v5059 = vpop.permute.xlu0 %5058
        %5060 = vrot.lane.b32.xlu0 %v4138, 80
        %v5061 = vpop.permute.xlu0 %5060
        %5062 = vrot.lane.b32.xlu0 %v4139, 80
        %v5063 = vpop.permute.xlu0 %5062
        %v5065 = vsel %vm829, %v5033, 0
        %v5068 = vsel %vm829, %v5035, 0
        %v5071 = vsel %vm829, %v5037, 0
        %v5074 = vsel %vm829, %v5039, 0
        %v5077 = vsel %vm829, %v5041, 0
        %v5080 = vsel %vm829, %v5043, 0
        %v5083 = vsel %vm829, %v5045, 0
        %v5086 = vsel %vm829, %v5047, 0
        %v5089 = vsel %vm829, %v5049, 0
        %v5092 = vsel %vm829, %v5051, 0
        %v5095 = vsel %vm829, %v5053, 0
        %v5098 = vsel %vm829, %v5055, 0
        %v5101 = vsel %vm829, %v5057, 0
        %v5104 = vsel %vm829, %v5059, 0
        %v5107 = vsel %vm829, %v5061, 0
        %v5110 = vsel %vm829, %v5063, 0
        %5112 = vmatprep.subr.bf16.mxu0 0
        %5113 = vmatpush1.bf16.xpose.msra.mxu0 %v5089
        %5114 = vmatprep.subr.bf16.mxu0 0
        %5115 = vmatpush1.bf16.xpose.msra.mxu0 %v5092
        %5116 = vmatprep.subr.bf16.mxu0 0
        %5117 = vmatpush1.bf16.xpose.msra.mxu0 %v5095
        %5118 = vmatprep.subr.bf16.mxu0 0
        %5119 = vmatpush1.bf16.xpose.msra.mxu0 %v5098
        %5120 = vmatprep.subr.bf16.mxu0 0
        %5121 = vmatpush1.bf16.xpose.msra.mxu0 %v5101
        %5122 = vmatprep.subr.bf16.mxu0 0
        %5123 = vmatpush1.bf16.xpose.msra.mxu0 %v5104
        %5124 = vmatprep.subr.bf16.mxu0 0
        %5125 = vmatpush1.bf16.xpose.msra.mxu0 %v5107
        %5126 = vmatprep.subr.bf16.mxu0 0
        %5127 = vmatpush1.bf16.xpose.msra.mxu0 %v5110
        %5128 = vmatprep.subr.bf16.mxu0 0
        %5129 = vmatpush1.bf16.xpose.msra.mxu0 0
        %5130 = vmatprep.subr.bf16.mxu0 0
        %5131 = vmatpush1.bf16.xpose.msra.mxu0 0
        %5132 = vmatprep.subr.bf16.mxu0 0
        %5133 = vmatpush1.bf16.xpose.msra.mxu0 0
        %5134 = vmatprep.subr.bf16.mxu0 0
        %5135 = vmatpush1.bf16.xpose.msra.mxu0 0
        %5136 = vmatprep.subr.bf16.mxu0 0
        %5137 = vmatpush1.bf16.xpose.msra.mxu0 0
        %5138 = vmatprep.subr.bf16.mxu0 0
        %5139 = vmatpush1.bf16.xpose.msra.mxu0 0
        %5140 = vmatprep.subr.bf16.mxu0 0
        %5141 = vmatpush1.bf16.xpose.msra.mxu0 0
        %5142 = vmatprep.subr.bf16.mxu0 0
        %5143 = vmatpush1.bf16.xpose.msra.mxu0 0
        %5144 = vmatprep.mubr.bf16.mxu0 0
        %5145 = vmatmul.mubr.bf16.gmra.mrb[0].mxu0 %v5065
        %v5146 = vpop.f32.mrb[0].mxu0
        %v5147 = vadd.f32 %v379, %v5146
        %v5148 = vpop.f32.mrb[0].mxu0
        %v5149 = vpop.f32.mrb[0].mxu0
        %v5150 = vadd.f32 %v380, %v5149
        %v5151 = vpop.f32.mrb[0].mxu0
        %5152 = vmatprep.mubr.bf16.mxu0 0
        %5153 = vmatmul.mubr.bf16.gmra.mrb[0].mxu0 %v5068
        %v5154 = vpop.f32.mrb[0].mxu0
        %v5155 = vadd.f32 %v381, %v5154
        %v5156 = vpop.f32.mrb[0].mxu0
        %v5157 = vpop.f32.mrb[0].mxu0
        %v5158 = vadd.f32 %v382, %v5157
        %v5159 = vpop.f32.mrb[0].mxu0
        %5160 = vmatprep.mubr.bf16.mxu0 0
        %5161 = vmatmul.mubr.bf16.gmra.mrb[0].mxu0 %v5071
        %v5162 = vpop.f32.mrb[0].mxu0
        %v5163 = vadd.f32 %v383, %v5162
        %v5164 = vpop.f32.mrb[0].mxu0
        %v5165 = vpop.f32.mrb[0].mxu0
        %v5166 = vadd.f32 %v384, %v5165
        %v5167 = vpop.f32.mrb[0].mxu0
        %5168 = vmatprep.mubr.bf16.mxu0 0
        %5169 = vmatmul.mubr.bf16.gmra.mrb[0].mxu0 %v5074
        %v5170 = vpop.f32.mrb[0].mxu0
        %v5171 = vadd.f32 %v385, %v5170
        %v5172 = vpop.f32.mrb[0].mxu0
        %v5173 = vpop.f32.mrb[0].mxu0
        %v5174 = vadd.f32 %v386, %v5173
        %v5175 = vpop.f32.mrb[0].mxu0
        %5176 = vmatprep.mubr.bf16.mxu0 0
        %5177 = vmatmul.mubr.bf16.gmra.mrb[0].mxu0 %v5077
        %v5178 = vpop.f32.mrb[0].mxu0
        %v5179 = vadd.f32 %v387, %v5178
        %v5180 = vpop.f32.mrb[0].mxu0
        %v5181 = vpop.f32.mrb[0].mxu0
        %v5182 = vadd.f32 %v388, %v5181
        %v5183 = vpop.f32.mrb[0].mxu0
        %5184 = vmatprep.mubr.bf16.mxu0 0
        %5185 = vmatmul.mubr.bf16.gmra.mrb[0].mxu0 %v5080
        %v5186 = vpop.f32.mrb[0].mxu0
        %v5187 = vadd.f32 %v389, %v5186
        %v5188 = vpop.f32.mrb[0].mxu0
        %v5189 = vpop.f32.mrb[0].mxu0
        %v5190 = vadd.f32 %v390, %v5189
        %v5191 = vpop.f32.mrb[0].mxu0
        %5192 = vmatprep.mubr.bf16.mxu0 0
        %5193 = vmatmul.mubr.bf16.gmra.mrb[0].mxu0 %v5083
        %v5194 = vpop.f32.mrb[0].mxu0
        %v5195 = vadd.f32 %v391, %v5194
        %v5196 = vpop.f32.mrb[0].mxu0
        %v5197 = vpop.f32.mrb[0].mxu0
        %v5198 = vadd.f32 %v392, %v5197
        %v5199 = vpop.f32.mrb[0].mxu0
        %5200 = vmatprep.mubr.bf16.mxu0 0
        %5201 = vmatmul.mubr.bf16.gmra.mrb[0].mxu0 %v5086
        %v5202 = vpop.f32.mrb[0].mxu0
        %v5203 = vadd.f32 %v393, %v5202
        %v5204 = vpop.f32.mrb[0].mxu0
        %v5205 = vpop.f32.mrb[0].mxu0
        %v5206 = vadd.f32 %v394, %v5205
        %v5207 = vpop.f32.mrb[0].mxu0
        %5208 = vdwg.mxu0
        %5209 = vmax.xlane.f32.xlu0 %v5147
        %v5210 = vpop.xlane.xlu0 %5209
        %5211 = vmax.xlane.f32.xlu0 %v5150
        %v5212 = vpop.xlane.xlu0 %5211
        %5213 = vmax.xlane.f32.xlu0 %v5155
        %v5214 = vpop.xlane.xlu0 %5213
        %5215 = vmax.xlane.f32.xlu0 %v5158
        %v5216 = vpop.xlane.xlu0 %5215
        %5217 = vmax.xlane.f32.xlu0 %v5163
        %v5218 = vpop.xlane.xlu0 %5217
        %5219 = vmax.xlane.f32.xlu0 %v5166
        %v5220 = vpop.xlane.xlu0 %5219
        %5221 = vmax.xlane.f32.xlu0 %v5171
        %v5222 = vpop.xlane.xlu0 %5221
        %5223 = vmax.xlane.f32.xlu0 %v5174
        %v5224 = vpop.xlane.xlu0 %5223
        %5225 = vmax.xlane.f32.xlu0 %v5179
        %v5226 = vpop.xlane.xlu0 %5225
        %5227 = vmax.xlane.f32.xlu0 %v5182
        %v5228 = vpop.xlane.xlu0 %5227
        %5229 = vmax.xlane.f32.xlu0 %v5187
        %v5230 = vpop.xlane.xlu0 %5229
        %5231 = vmax.xlane.f32.xlu0 %v5190
        %v5232 = vpop.xlane.xlu0 %5231
        %5233 = vmax.xlane.f32.xlu0 %v5195
        %v5234 = vpop.xlane.xlu0 %5233
        %5235 = vmax.xlane.f32.xlu0 %v5198
        %v5236 = vpop.xlane.xlu0 %5235
        %5237 = vmax.xlane.f32.xlu0 %v5203
        %v5238 = vpop.xlane.xlu0 %5237
        %5239 = vmax.xlane.f32.xlu0 %v5206
        %v5240 = vpop.xlane.xlu0 %5239
        %v5241 = vsub.f32 %v5147, %v5210
        %v5242 = vsub.f32 %v5150, %v5212
        %v5243 = vsub.f32 %v5155, %v5214
        %v5244 = vsub.f32 %v5158, %v5216
        %v5245 = vsub.f32 %v5163, %v5218
        %v5246 = vsub.f32 %v5166, %v5220
        %v5247 = vsub.f32 %v5171, %v5222
        %v5248 = vsub.f32 %v5174, %v5224
        %v5249 = vsub.f32 %v5179, %v5226
        %v5250 = vsub.f32 %v5182, %v5228
        %v5251 = vsub.f32 %v5187, %v5230
        %v5252 = vsub.f32 %v5190, %v5232
        %v5253 = vsub.f32 %v5195, %v5234
        %v5254 = vsub.f32 %v5198, %v5236
        %v5255 = vsub.f32 %v5203, %v5238
        %v5256 = vsub.f32 %v5206, %v5240
        %v5257 = vmul.f32 %v5241, 1.442695
        %v5258 = vpow.pop %v5257
        %v5259 = vmul.f32 %v5242, 1.442695
        %v5260 = vpow.pop %v5259
        %v5261 = vmul.f32 %v5243, 1.442695
        %v5262 = vpow.pop %v5261
        %v5263 = vmul.f32 %v5244, 1.442695
        %v5264 = vpow.pop %v5263
        %v5265 = vmul.f32 %v5245, 1.442695
        %v5266 = vpow.pop %v5265
        %v5267 = vmul.f32 %v5246, 1.442695
        %v5268 = vpow.pop %v5267
        %v5269 = vmul.f32 %v5247, 1.442695
        %v5270 = vpow.pop %v5269
        %v5271 = vmul.f32 %v5248, 1.442695
        %v5272 = vpow.pop %v5271
        %v5273 = vmul.f32 %v5249, 1.442695
        %v5274 = vpow.pop %v5273
        %v5275 = vmul.f32 %v5250, 1.442695
        %v5276 = vpow.pop %v5275
        %v5277 = vmul.f32 %v5251, 1.442695
        %v5278 = vpow.pop %v5277
        %v5279 = vmul.f32 %v5252, 1.442695
        %v5280 = vpow.pop %v5279
        %v5281 = vmul.f32 %v5253, 1.442695
        %v5282 = vpow.pop %v5281
        %v5283 = vmul.f32 %v5254, 1.442695
        %v5284 = vpow.pop %v5283
        %v5285 = vmul.f32 %v5255, 1.442695
        %v5286 = vpow.pop %v5285
        %v5287 = vmul.f32 %v5256, 1.442695
        %v5288 = vpow.pop %v5287
        %5289 = vadd.xlane.f32.xlu0 %v5258
        %v5290 = vpop.xlane.xlu0 %5289
        %5291 = vadd.xlane.f32.xlu0 %v5260
        %v5292 = vpop.xlane.xlu0 %5291
        %5293 = vadd.xlane.f32.xlu0 %v5262
        %v5294 = vpop.xlane.xlu0 %5293
        %5295 = vadd.xlane.f32.xlu0 %v5264
        %v5296 = vpop.xlane.xlu0 %5295
        %5297 = vadd.xlane.f32.xlu0 %v5266
        %v5298 = vpop.xlane.xlu0 %5297
        %5299 = vadd.xlane.f32.xlu0 %v5268
        %v5300 = vpop.xlane.xlu0 %5299
        %5301 = vadd.xlane.f32.xlu0 %v5270
        %v5302 = vpop.xlane.xlu0 %5301
        %5303 = vadd.xlane.f32.xlu0 %v5272
        %v5304 = vpop.xlane.xlu0 %5303
        %5305 = vadd.xlane.f32.xlu0 %v5274
        %v5306 = vpop.xlane.xlu0 %5305
        %5307 = vadd.xlane.f32.xlu0 %v5276
        %v5308 = vpop.xlane.xlu0 %5307
        %5309 = vadd.xlane.f32.xlu0 %v5278
        %v5310 = vpop.xlane.xlu0 %5309
        %5311 = vadd.xlane.f32.xlu0 %v5280
        %v5312 = vpop.xlane.xlu0 %5311
        %5313 = vadd.xlane.f32.xlu0 %v5282
        %v5314 = vpop.xlane.xlu0 %5313
        %5315 = vadd.xlane.f32.xlu0 %v5284
        %v5316 = vpop.xlane.xlu0 %5315
        %5317 = vadd.xlane.f32.xlu0 %v5286
        %v5318 = vpop.xlane.xlu0 %5317
        %5319 = vadd.xlane.f32.xlu0 %v5288
        %v5320 = vpop.xlane.xlu0 %5319
        %v5321 = vrcp.pop %v5290
        %v5322 = vrcp.pop %v5292
        %v5323 = vrcp.pop %v5294
        %v5324 = vrcp.pop %v5296
        %v5325 = vrcp.pop %v5298
        %v5326 = vrcp.pop %v5300
        %v5327 = vrcp.pop %v5302
        %v5328 = vrcp.pop %v5304
        %v5329 = vrcp.pop %v5306
        %v5330 = vrcp.pop %v5308
        %v5331 = vrcp.pop %v5310
        %v5332 = vrcp.pop %v5312
        %v5333 = vrcp.pop %v5314
        %v5334 = vrcp.pop %v5316
        %v5335 = vrcp.pop %v5318
        %v5336 = vrcp.pop %v5320
        %v5337 = vpack.c.bf16 %v5260, %v5258
        %v5338 = vpack.c.bf16 %v5264, %v5262
        %v5339 = vpack.c.bf16 %v5268, %v5266
        %v5340 = vpack.c.bf16 %v5272, %v5270
        %v5341 = vpack.c.bf16 %v5276, %v5274
        %v5342 = vpack.c.bf16 %v5280, %v5278
        %v5343 = vpack.c.bf16 %v5284, %v5282
        %v5344 = vpack.c.bf16 %v5288, %v5286
        %5345 = vrot.lane.b32.xlu0 %v4132, 48
        %v5346 = vpop.permute.xlu0 %5345
        %5347 = vrot.lane.b32.xlu0 %v4133, 48
        %v5348 = vpop.permute.xlu0 %5347
        %5349 = vrot.lane.b32.xlu0 %v4134, 48
        %v5350 = vpop.permute.xlu0 %5349
        %5351 = vrot.lane.b32.xlu0 %v4135, 48
        %v5352 = vpop.permute.xlu0 %5351
        %5353 = vrot.lane.b32.xlu0 %v4136, 48
        %v5354 = vpop.permute.xlu0 %5353
        %5355 = vrot.lane.b32.xlu0 %v4137, 48
        %v5356 = vpop.permute.xlu0 %5355
        %5357 = vrot.lane.b32.xlu0 %v4138, 48
        %v5358 = vpop.permute.xlu0 %5357
        %5359 = vrot.lane.b32.xlu0 %v4139, 48
        %v5360 = vpop.permute.xlu0 %5359
        %5369 = vmatprep.subr.bf16.mxu0 0
        %5370 = vmatpush1.bf16.msra.mxu0 %v5346
        %5371 = vmatprep.subr.bf16.mxu0 0
        %5372 = vmatpush1.bf16.msra.mxu0 %v5348
        %5373 = vmatprep.subr.bf16.mxu0 0
        %5374 = vmatpush1.bf16.msra.mxu0 %v5350
        %5375 = vmatprep.subr.bf16.mxu0 0
        %5376 = vmatpush1.bf16.msra.mxu0 %v5352
        %5377 = vmatprep.subr.bf16.mxu0 0
        %5378 = vmatpush1.bf16.msra.mxu0 %v5354
        %5379 = vmatprep.subr.bf16.mxu0 0
        %5380 = vmatpush1.bf16.msra.mxu0 %v5356
        %5381 = vmatprep.subr.bf16.mxu0 0
        %5382 = vmatpush1.bf16.msra.mxu0 %v5358
        %5383 = vmatprep.subr.bf16.mxu0 0
        %5384 = vmatpush1.bf16.msra.mxu0 %v5360
        %5385 = vmatprep.subr.bf16.mxu0 0
        %5386 = vmatpush1.bf16.msra.mxu0 0
        %5387 = vmatprep.subr.bf16.mxu0 0
        %5388 = vmatpush1.bf16.msra.mxu0 0
        %5389 = vmatprep.subr.bf16.mxu0 0
        %5390 = vmatpush1.bf16.msra.mxu0 0
        %5391 = vmatprep.subr.bf16.mxu0 0
        %5392 = vmatpush1.bf16.msra.mxu0 0
        %5393 = vmatprep.subr.bf16.mxu0 0
        %5394 = vmatpush1.bf16.msra.mxu0 0
        %5395 = vmatprep.subr.bf16.mxu0 0
        %5396 = vmatpush1.bf16.msra.mxu0 0
        %5397 = vmatprep.subr.bf16.mxu0 0
        %5398 = vmatpush1.bf16.msra.mxu0 0
        %5399 = vmatprep.subr.bf16.mxu0 0
        %5400 = vmatpush1.bf16.msra.mxu0 0
        %5401 = vmatprep.mubr.bf16.mxu0 0
        %5402 = vmatmul.mubr.bf16.gmra.mrb[0].mxu0 %v5337
        %v5403 = vpop.f32.mrb[0].mxu0
        %v5404 = vadd.f32 0.0, %v5403
        %v5405 = vpop.f32.mrb[0].mxu0
        %v5406 = vpop.f32.mrb[0].mxu0
        %v5407 = vadd.f32 0.0, %v5406
        %v5408 = vpop.f32.mrb[0].mxu0
        %5409 = vmatprep.mubr.bf16.mxu0 0
        %5410 = vmatmul.mubr.bf16.gmra.mrb[0].mxu0 %v5338
        %v5411 = vpop.f32.mrb[0].mxu0
        %v5412 = vadd.f32 0.0, %v5411
        %v5413 = vpop.f32.mrb[0].mxu0
        %v5414 = vpop.f32.mrb[0].mxu0
        %v5415 = vadd.f32 0.0, %v5414
        %v5416 = vpop.f32.mrb[0].mxu0
        %5417 = vmatprep.mubr.bf16.mxu0 0
        %5418 = vmatmul.mubr.bf16.gmra.mrb[0].mxu0 %v5339
        %v5419 = vpop.f32.mrb[0].mxu0
        %v5420 = vadd.f32 0.0, %v5419
        %v5421 = vpop.f32.mrb[0].mxu0
        %v5422 = vpop.f32.mrb[0].mxu0
        %v5423 = vadd.f32 0.0, %v5422
        %v5424 = vpop.f32.mrb[0].mxu0
        %5425 = vmatprep.mubr.bf16.mxu0 0
        %5426 = vmatmul.mubr.bf16.gmra.mrb[0].mxu0 %v5340
        %v5427 = vpop.f32.mrb[0].mxu0
        %v5428 = vadd.f32 0.0, %v5427
        %v5429 = vpop.f32.mrb[0].mxu0
        %v5430 = vpop.f32.mrb[0].mxu0
        %v5431 = vadd.f32 0.0, %v5430
        %v5432 = vpop.f32.mrb[0].mxu0
        %5433 = vmatprep.mubr.bf16.mxu0 0
        %5434 = vmatmul.mubr.bf16.gmra.mrb[0].mxu0 %v5341
        %v5435 = vpop.f32.mrb[0].mxu0
        %v5436 = vadd.f32 0.0, %v5435
        %v5437 = vpop.f32.mrb[0].mxu0
        %v5438 = vpop.f32.mrb[0].mxu0
        %v5439 = vadd.f32 0.0, %v5438
        %v5440 = vpop.f32.mrb[0].mxu0
        %5441 = vmatprep.mubr.bf16.mxu0 0
        %5442 = vmatmul.mubr.bf16.gmra.mrb[0].mxu0 %v5342
        %v5443 = vpop.f32.mrb[0].mxu0
        %v5444 = vadd.f32 0.0, %v5443
        %v5445 = vpop.f32.mrb[0].mxu0
        %v5446 = vpop.f32.mrb[0].mxu0
        %v5447 = vadd.f32 0.0, %v5446
        %v5448 = vpop.f32.mrb[0].mxu0
        %5449 = vmatprep.mubr.bf16.mxu0 0
        %5450 = vmatmul.mubr.bf16.gmra.mrb[0].mxu0 %v5343
        %v5451 = vpop.f32.mrb[0].mxu0
        %v5452 = vadd.f32 0.0, %v5451
        %v5453 = vpop.f32.mrb[0].mxu0
        %v5454 = vpop.f32.mrb[0].mxu0
        %v5455 = vadd.f32 0.0, %v5454
        %v5456 = vpop.f32.mrb[0].mxu0
        %5457 = vmatprep.mubr.bf16.mxu0 0
        %5458 = vmatmul.mubr.bf16.gmra.mrb[0].mxu0 %v5344
        %v5459 = vpop.f32.mrb[0].mxu0
        %v5460 = vadd.f32 0.0, %v5459
        %v5461 = vpop.f32.mrb[0].mxu0
        %v5462 = vpop.f32.mrb[0].mxu0
        %v5463 = vadd.f32 0.0, %v5462
        %v5464 = vpop.f32.mrb[0].mxu0
        %5465 = vdwg.mxu0
        %v5466 = vmul.f32 %v5404, %v5321
        %v5467 = vmul.f32 %v5407, %v5322
        %v5468 = vmul.f32 %v5412, %v5323
        %v5469 = vmul.f32 %v5415, %v5324
        %v5470 = vmul.f32 %v5420, %v5325
        %v5471 = vmul.f32 %v5423, %v5326
        %v5472 = vmul.f32 %v5428, %v5327
        %v5473 = vmul.f32 %v5431, %v5328
        %v5474 = vmul.f32 %v5436, %v5329
        %v5475 = vmul.f32 %v5439, %v5330
        %v5476 = vmul.f32 %v5444, %v5331
        %v5477 = vmul.f32 %v5447, %v5332
        %v5478 = vmul.f32 %v5452, %v5333
        %v5479 = vmul.f32 %v5455, %v5334
        %v5480 = vmul.f32 %v5460, %v5335
        %v5481 = vmul.f32 %v5463, %v5336
        %5482 = vrot.lane.b32.xlu0 %v4132, 104
        %v5483 = vpop.permute.xlu0 %5482
        %5484 = vrot.lane.b32.xlu0 %v4133, 104
        %v5485 = vpop.permute.xlu0 %5484
        %5486 = vrot.lane.b32.xlu0 %v4134, 104
        %v5487 = vpop.permute.xlu0 %5486
        %5488 = vrot.lane.b32.xlu0 %v4135, 104
        %v5489 = vpop.permute.xlu0 %5488
        %5490 = vrot.lane.b32.xlu0 %v4136, 104
        %v5491 = vpop.permute.xlu0 %5490
        %5492 = vrot.lane.b32.xlu0 %v4137, 104
        %v5493 = vpop.permute.xlu0 %5492
        %5494 = vrot.lane.b32.xlu0 %v4138, 104
        %v5495 = vpop.permute.xlu0 %5494
        %5496 = vrot.lane.b32.xlu0 %v4139, 104
        %v5497 = vpop.permute.xlu0 %5496
        %5498 = vrot.lane.b32.xlu0 %v4132, 72
        %v5499 = vpop.permute.xlu0 %5498
        %5500 = vrot.lane.b32.xlu0 %v4133, 72
        %v5501 = vpop.permute.xlu0 %5500
        %5502 = vrot.lane.b32.xlu0 %v4134, 72
        %v5503 = vpop.permute.xlu0 %5502
        %5504 = vrot.lane.b32.xlu0 %v4135, 72
        %v5505 = vpop.permute.xlu0 %5504
        %5506 = vrot.lane.b32.xlu0 %v4136, 72
        %v5507 = vpop.permute.xlu0 %5506
        %5508 = vrot.lane.b32.xlu0 %v4137, 72
        %v5509 = vpop.permute.xlu0 %5508
        %5510 = vrot.lane.b32.xlu0 %v4138, 72
        %v5511 = vpop.permute.xlu0 %5510
        %5512 = vrot.lane.b32.xlu0 %v4139, 72
        %v5513 = vpop.permute.xlu0 %5512
        %v5515 = vsel %vm829, %v5483, 0
        %v5518 = vsel %vm829, %v5485, 0
        %v5521 = vsel %vm829, %v5487, 0
        %v5524 = vsel %vm829, %v5489, 0
        %v5527 = vsel %vm829, %v5491, 0
        %v5530 = vsel %vm829, %v5493, 0
        %v5533 = vsel %vm829, %v5495, 0
        %v5536 = vsel %vm829, %v5497, 0
        %v5539 = vsel %vm829, %v5499, 0
        %v5542 = vsel %vm829, %v5501, 0
        %v5545 = vsel %vm829, %v5503, 0
        %v5548 = vsel %vm829, %v5505, 0
        %v5551 = vsel %vm829, %v5507, 0
        %v5554 = vsel %vm829, %v5509, 0
        %v5557 = vsel %vm829, %v5511, 0
        %v5560 = vsel %vm829, %v5513, 0
        %5562 = vmatprep.subr.bf16.mxu0 0
        %5563 = vmatpush1.bf16.xpose.msra.mxu0 %v5539
        %5564 = vmatprep.subr.bf16.mxu0 0
        %5565 = vmatpush1.bf16.xpose.msra.mxu0 %v5542
        %5566 = vmatprep.subr.bf16.mxu0 0
        %5567 = vmatpush1.bf16.xpose.msra.mxu0 %v5545
        %5568 = vmatprep.subr.bf16.mxu0 0
        %5569 = vmatpush1.bf16.xpose.msra.mxu0 %v5548
        %5570 = vmatprep.subr.bf16.mxu0 0
        %5571 = vmatpush1.bf16.xpose.msra.mxu0 %v5551
        %5572 = vmatprep.subr.bf16.mxu0 0
        %5573 = vmatpush1.bf16.xpose.msra.mxu0 %v5554
        %5574 = vmatprep.subr.bf16.mxu0 0
        %5575 = vmatpush1.bf16.xpose.msra.mxu0 %v5557
        %5576 = vmatprep.subr.bf16.mxu0 0
        %5577 = vmatpush1.bf16.xpose.msra.mxu0 %v5560
        %5578 = vmatprep.subr.bf16.mxu0 0
        %5579 = vmatpush1.bf16.xpose.msra.mxu0 0
        %5580 = vmatprep.subr.bf16.mxu0 0
        %5581 = vmatpush1.bf16.xpose.msra.mxu0 0
        %5582 = vmatprep.subr.bf16.mxu0 0
        %5583 = vmatpush1.bf16.xpose.msra.mxu0 0
        %5584 = vmatprep.subr.bf16.mxu0 0
        %5585 = vmatpush1.bf16.xpose.msra.mxu0 0
        %5586 = vmatprep.subr.bf16.mxu0 0
        %5587 = vmatpush1.bf16.xpose.msra.mxu0 0
        %5588 = vmatprep.subr.bf16.mxu0 0
        %5589 = vmatpush1.bf16.xpose.msra.mxu0 0
        %5590 = vmatprep.subr.bf16.mxu0 0
        %5591 = vmatpush1.bf16.xpose.msra.mxu0 0
        %5592 = vmatprep.subr.bf16.mxu0 0
        %5593 = vmatpush1.bf16.xpose.msra.mxu0 0
        %5594 = vmatprep.mubr.bf16.mxu0 0
        %5595 = vmatmul.mubr.bf16.gmra.mrb[0].mxu0 %v5515
        %v5596 = vpop.f32.mrb[0].mxu0
        %v5597 = vadd.f32 %v379, %v5596
        %v5598 = vpop.f32.mrb[0].mxu0
        %v5599 = vpop.f32.mrb[0].mxu0
        %v5600 = vadd.f32 %v380, %v5599
        %v5601 = vpop.f32.mrb[0].mxu0
        %5602 = vmatprep.mubr.bf16.mxu0 0
        %5603 = vmatmul.mubr.bf16.gmra.mrb[0].mxu0 %v5518
        %v5604 = vpop.f32.mrb[0].mxu0
        %v5605 = vadd.f32 %v381, %v5604
        %v5606 = vpop.f32.mrb[0].mxu0
        %v5607 = vpop.f32.mrb[0].mxu0
        %v5608 = vadd.f32 %v382, %v5607
        %v5609 = vpop.f32.mrb[0].mxu0
        %5610 = vmatprep.mubr.bf16.mxu0 0
        %5611 = vmatmul.mubr.bf16.gmra.mrb[0].mxu0 %v5521
        %v5612 = vpop.f32.mrb[0].mxu0
        %v5613 = vadd.f32 %v383, %v5612
        %v5614 = vpop.f32.mrb[0].mxu0
        %v5615 = vpop.f32.mrb[0].mxu0
        %v5616 = vadd.f32 %v384, %v5615
        %v5617 = vpop.f32.mrb[0].mxu0
        %5618 = vmatprep.mubr.bf16.mxu0 0
        %5619 = vmatmul.mubr.bf16.gmra.mrb[0].mxu0 %v5524
        %v5620 = vpop.f32.mrb[0].mxu0
        %v5621 = vadd.f32 %v385, %v5620
        %v5622 = vpop.f32.mrb[0].mxu0
        %v5623 = vpop.f32.mrb[0].mxu0
        %v5624 = vadd.f32 %v386, %v5623
        %v5625 = vpop.f32.mrb[0].mxu0
        %5626 = vmatprep.mubr.bf16.mxu0 0
        %5627 = vmatmul.mubr.bf16.gmra.mrb[0].mxu0 %v5527
        %v5628 = vpop.f32.mrb[0].mxu0
        %v5629 = vadd.f32 %v387, %v5628
        %v5630 = vpop.f32.mrb[0].mxu0
        %v5631 = vpop.f32.mrb[0].mxu0
        %v5632 = vadd.f32 %v388, %v5631
        %v5633 = vpop.f32.mrb[0].mxu0
        %5634 = vmatprep.mubr.bf16.mxu0 0
        %5635 = vmatmul.mubr.bf16.gmra.mrb[0].mxu0 %v5530
        %v5636 = vpop.f32.mrb[0].mxu0
        %v5637 = vadd.f32 %v389, %v5636
        %v5638 = vpop.f32.mrb[0].mxu0
        %v5639 = vpop.f32.mrb[0].mxu0
        %v5640 = vadd.f32 %v390, %v5639
        %v5641 = vpop.f32.mrb[0].mxu0
        %5642 = vmatprep.mubr.bf16.mxu0 0
        %5643 = vmatmul.mubr.bf16.gmra.mrb[0].mxu0 %v5533
        %v5644 = vpop.f32.mrb[0].mxu0
        %v5645 = vadd.f32 %v391, %v5644
        %v5646 = vpop.f32.mrb[0].mxu0
        %v5647 = vpop.f32.mrb[0].mxu0
        %v5648 = vadd.f32 %v392, %v5647
        %v5649 = vpop.f32.mrb[0].mxu0
        %5650 = vmatprep.mubr.bf16.mxu0 0
        %5651 = vmatmul.mubr.bf16.gmra.mrb[0].mxu0 %v5536
        %v5652 = vpop.f32.mrb[0].mxu0
        %v5653 = vadd.f32 %v393, %v5652
        %v5654 = vpop.f32.mrb[0].mxu0
        %v5655 = vpop.f32.mrb[0].mxu0
        %v5656 = vadd.f32 %v394, %v5655
        %v5657 = vpop.f32.mrb[0].mxu0
        %5658 = vdwg.mxu0
        %5659 = vmax.xlane.f32.xlu0 %v5597
        %v5660 = vpop.xlane.xlu0 %5659
        %5661 = vmax.xlane.f32.xlu0 %v5600
        %v5662 = vpop.xlane.xlu0 %5661
        %5663 = vmax.xlane.f32.xlu0 %v5605
        %v5664 = vpop.xlane.xlu0 %5663
        %5665 = vmax.xlane.f32.xlu0 %v5608
        %v5666 = vpop.xlane.xlu0 %5665
        %5667 = vmax.xlane.f32.xlu0 %v5613
        %v5668 = vpop.xlane.xlu0 %5667
        %5669 = vmax.xlane.f32.xlu0 %v5616
        %v5670 = vpop.xlane.xlu0 %5669
        %5671 = vmax.xlane.f32.xlu0 %v5621
        %v5672 = vpop.xlane.xlu0 %5671
        %5673 = vmax.xlane.f32.xlu0 %v5624
        %v5674 = vpop.xlane.xlu0 %5673
        %5675 = vmax.xlane.f32.xlu0 %v5629
        %v5676 = vpop.xlane.xlu0 %5675
        %5677 = vmax.xlane.f32.xlu0 %v5632
        %v5678 = vpop.xlane.xlu0 %5677
        %5679 = vmax.xlane.f32.xlu0 %v5637
        %v5680 = vpop.xlane.xlu0 %5679
        %5681 = vmax.xlane.f32.xlu0 %v5640
        %v5682 = vpop.xlane.xlu0 %5681
        %5683 = vmax.xlane.f32.xlu0 %v5645
        %v5684 = vpop.xlane.xlu0 %5683
        %5685 = vmax.xlane.f32.xlu0 %v5648
        %v5686 = vpop.xlane.xlu0 %5685
        %5687 = vmax.xlane.f32.xlu0 %v5653
        %v5688 = vpop.xlane.xlu0 %5687
        %5689 = vmax.xlane.f32.xlu0 %v5656
        %v5690 = vpop.xlane.xlu0 %5689
        %v5691 = vsub.f32 %v5597, %v5660
        %v5692 = vsub.f32 %v5600, %v5662
        %v5693 = vsub.f32 %v5605, %v5664
        %v5694 = vsub.f32 %v5608, %v5666
        %v5695 = vsub.f32 %v5613, %v5668
        %v5696 = vsub.f32 %v5616, %v5670
        %v5697 = vsub.f32 %v5621, %v5672
        %v5698 = vsub.f32 %v5624, %v5674
        %v5699 = vsub.f32 %v5629, %v5676
        %v5700 = vsub.f32 %v5632, %v5678
        %v5701 = vsub.f32 %v5637, %v5680
        %v5702 = vsub.f32 %v5640, %v5682
        %v5703 = vsub.f32 %v5645, %v5684
        %v5704 = vsub.f32 %v5648, %v5686
        %v5705 = vsub.f32 %v5653, %v5688
        %v5706 = vsub.f32 %v5656, %v5690
        %v5707 = vmul.f32 %v5691, 1.442695
        %v5708 = vpow.pop %v5707
        %v5709 = vmul.f32 %v5692, 1.442695
        %v5710 = vpow.pop %v5709
        %v5711 = vmul.f32 %v5693, 1.442695
        %v5712 = vpow.pop %v5711
        %v5713 = vmul.f32 %v5694, 1.442695
        %v5714 = vpow.pop %v5713
        %v5715 = vmul.f32 %v5695, 1.442695
        %v5716 = vpow.pop %v5715
        %v5717 = vmul.f32 %v5696, 1.442695
        %v5718 = vpow.pop %v5717
        %v5719 = vmul.f32 %v5697, 1.442695
        %v5720 = vpow.pop %v5719
        %v5721 = vmul.f32 %v5698, 1.442695
        %v5722 = vpow.pop %v5721
        %v5723 = vmul.f32 %v5699, 1.442695
        %v5724 = vpow.pop %v5723
        %v5725 = vmul.f32 %v5700, 1.442695
        %v5726 = vpow.pop %v5725
        %v5727 = vmul.f32 %v5701, 1.442695
        %v5728 = vpow.pop %v5727
        %v5729 = vmul.f32 %v5702, 1.442695
        %v5730 = vpow.pop %v5729
        %v5731 = vmul.f32 %v5703, 1.442695
        %v5732 = vpow.pop %v5731
        %v5733 = vmul.f32 %v5704, 1.442695
        %v5734 = vpow.pop %v5733
        %v5735 = vmul.f32 %v5705, 1.442695
        %v5736 = vpow.pop %v5735
        %v5737 = vmul.f32 %v5706, 1.442695
        %v5738 = vpow.pop %v5737
        %5739 = vadd.xlane.f32.xlu0 %v5708
        %v5740 = vpop.xlane.xlu0 %5739
        %5741 = vadd.xlane.f32.xlu0 %v5710
        %v5742 = vpop.xlane.xlu0 %5741
        %5743 = vadd.xlane.f32.xlu0 %v5712
        %v5744 = vpop.xlane.xlu0 %5743
        %5745 = vadd.xlane.f32.xlu0 %v5714
        %v5746 = vpop.xlane.xlu0 %5745
        %5747 = vadd.xlane.f32.xlu0 %v5716
        %v5748 = vpop.xlane.xlu0 %5747
        %5749 = vadd.xlane.f32.xlu0 %v5718
        %v5750 = vpop.xlane.xlu0 %5749
        %5751 = vadd.xlane.f32.xlu0 %v5720
        %v5752 = vpop.xlane.xlu0 %5751
        %5753 = vadd.xlane.f32.xlu0 %v5722
        %v5754 = vpop.xlane.xlu0 %5753
        %5755 = vadd.xlane.f32.xlu0 %v5724
        %v5756 = vpop.xlane.xlu0 %5755
        %5757 = vadd.xlane.f32.xlu0 %v5726
        %v5758 = vpop.xlane.xlu0 %5757
        %5759 = vadd.xlane.f32.xlu0 %v5728
        %v5760 = vpop.xlane.xlu0 %5759
        %5761 = vadd.xlane.f32.xlu0 %v5730
        %v5762 = vpop.xlane.xlu0 %5761
        %5763 = vadd.xlane.f32.xlu0 %v5732
        %v5764 = vpop.xlane.xlu0 %5763
        %5765 = vadd.xlane.f32.xlu0 %v5734
        %v5766 = vpop.xlane.xlu0 %5765
        %5767 = vadd.xlane.f32.xlu0 %v5736
        %v5768 = vpop.xlane.xlu0 %5767
        %5769 = vadd.xlane.f32.xlu0 %v5738
        %v5770 = vpop.xlane.xlu0 %5769
        %v5771 = vrcp.pop %v5740
        %v5772 = vrcp.pop %v5742
        %v5773 = vrcp.pop %v5744
        %v5774 = vrcp.pop %v5746
        %v5775 = vrcp.pop %v5748
        %v5776 = vrcp.pop %v5750
        %v5777 = vrcp.pop %v5752
        %v5778 = vrcp.pop %v5754
        %v5779 = vrcp.pop %v5756
        %v5780 = vrcp.pop %v5758
        %v5781 = vrcp.pop %v5760
        %v5782 = vrcp.pop %v5762
        %v5783 = vrcp.pop %v5764
        %v5784 = vrcp.pop %v5766
        %v5785 = vrcp.pop %v5768
        %v5786 = vrcp.pop %v5770
        %v5787 = vpack.c.bf16 %v5710, %v5708
        %v5788 = vpack.c.bf16 %v5714, %v5712
        %v5789 = vpack.c.bf16 %v5718, %v5716
        %v5790 = vpack.c.bf16 %v5722, %v5720
        %v5791 = vpack.c.bf16 %v5726, %v5724
        %v5792 = vpack.c.bf16 %v5730, %v5728
        %v5793 = vpack.c.bf16 %v5734, %v5732
        %v5794 = vpack.c.bf16 %v5738, %v5736
        %5795 = vrot.lane.b32.xlu0 %v4132, 40
        %v5796 = vpop.permute.xlu0 %5795
        %5797 = vrot.lane.b32.xlu0 %v4133, 40
        %v5798 = vpop.permute.xlu0 %5797
        %5799 = vrot.lane.b32.xlu0 %v4134, 40
        %v5800 = vpop.permute.xlu0 %5799
        %5801 = vrot.lane.b32.xlu0 %v4135, 40
        %v5802 = vpop.permute.xlu0 %5801
        %5803 = vrot.lane.b32.xlu0 %v4136, 40
        %v5804 = vpop.permute.xlu0 %5803
        %5805 = vrot.lane.b32.xlu0 %v4137, 40
        %v5806 = vpop.permute.xlu0 %5805
        %5807 = vrot.lane.b32.xlu0 %v4138, 40
        %v5808 = vpop.permute.xlu0 %5807
        %5809 = vrot.lane.b32.xlu0 %v4139, 40
        %v5810 = vpop.permute.xlu0 %5809
        %5819 = vmatprep.subr.bf16.mxu0 0
        %5820 = vmatpush1.bf16.msra.mxu0 %v5796
        %5821 = vmatprep.subr.bf16.mxu0 0
        %5822 = vmatpush1.bf16.msra.mxu0 %v5798
        %5823 = vmatprep.subr.bf16.mxu0 0
        %5824 = vmatpush1.bf16.msra.mxu0 %v5800
        %5825 = vmatprep.subr.bf16.mxu0 0
        %5826 = vmatpush1.bf16.msra.mxu0 %v5802
        %5827 = vmatprep.subr.bf16.mxu0 0
        %5828 = vmatpush1.bf16.msra.mxu0 %v5804
        %5829 = vmatprep.subr.bf16.mxu0 0
        %5830 = vmatpush1.bf16.msra.mxu0 %v5806
        %5831 = vmatprep.subr.bf16.mxu0 0
        %5832 = vmatpush1.bf16.msra.mxu0 %v5808
        %5833 = vmatprep.subr.bf16.mxu0 0
        %5834 = vmatpush1.bf16.msra.mxu0 %v5810
        %5835 = vmatprep.subr.bf16.mxu0 0
        %5836 = vmatpush1.bf16.msra.mxu0 0
        %5837 = vmatprep.subr.bf16.mxu0 0
        %5838 = vmatpush1.bf16.msra.mxu0 0
        %5839 = vmatprep.subr.bf16.mxu0 0
        %5840 = vmatpush1.bf16.msra.mxu0 0
        %5841 = vmatprep.subr.bf16.mxu0 0
        %5842 = vmatpush1.bf16.msra.mxu0 0
        %5843 = vmatprep.subr.bf16.mxu0 0
        %5844 = vmatpush1.bf16.msra.mxu0 0
        %5845 = vmatprep.subr.bf16.mxu0 0
        %5846 = vmatpush1.bf16.msra.mxu0 0
        %5847 = vmatprep.subr.bf16.mxu0 0
        %5848 = vmatpush1.bf16.msra.mxu0 0
        %5849 = vmatprep.subr.bf16.mxu0 0
        %5850 = vmatpush1.bf16.msra.mxu0 0
        %5851 = vmatprep.mubr.bf16.mxu0 0
        %5852 = vmatmul.mubr.bf16.gmra.mrb[0].mxu0 %v5787
        %v5853 = vpop.f32.mrb[0].mxu0
        %v5854 = vadd.f32 0.0, %v5853
        %v5855 = vpop.f32.mrb[0].mxu0
        %v5856 = vpop.f32.mrb[0].mxu0
        %v5857 = vadd.f32 0.0, %v5856
        %v5858 = vpop.f32.mrb[0].mxu0
        %5859 = vmatprep.mubr.bf16.mxu0 0
        %5860 = vmatmul.mubr.bf16.gmra.mrb[0].mxu0 %v5788
        %v5861 = vpop.f32.mrb[0].mxu0
        %v5862 = vadd.f32 0.0, %v5861
        %v5863 = vpop.f32.mrb[0].mxu0
        %v5864 = vpop.f32.mrb[0].mxu0
        %v5865 = vadd.f32 0.0, %v5864
        %v5866 = vpop.f32.mrb[0].mxu0
        %5867 = vmatprep.mubr.bf16.mxu0 0
        %5868 = vmatmul.mubr.bf16.gmra.mrb[0].mxu0 %v5789
        %v5869 = vpop.f32.mrb[0].mxu0
        %v5870 = vadd.f32 0.0, %v5869
        %v5871 = vpop.f32.mrb[0].mxu0
        %v5872 = vpop.f32.mrb[0].mxu0
        %v5873 = vadd.f32 0.0, %v5872
        %v5874 = vpop.f32.mrb[0].mxu0
        %5875 = vmatprep.mubr.bf16.mxu0 0
        %5876 = vmatmul.mubr.bf16.gmra.mrb[0].mxu0 %v5790
        %v5877 = vpop.f32.mrb[0].mxu0
        %v5878 = vadd.f32 0.0, %v5877
        %v5879 = vpop.f32.mrb[0].mxu0
        %v5880 = vpop.f32.mrb[0].mxu0
        %v5881 = vadd.f32 0.0, %v5880
        %v5882 = vpop.f32.mrb[0].mxu0
        %5883 = vmatprep.mubr.bf16.mxu0 0
        %5884 = vmatmul.mubr.bf16.gmra.mrb[0].mxu0 %v5791
        %v5885 = vpop.f32.mrb[0].mxu0
        %v5886 = vadd.f32 0.0, %v5885
        %v5887 = vpop.f32.mrb[0].mxu0
        %v5888 = vpop.f32.mrb[0].mxu0
        %v5889 = vadd.f32 0.0, %v5888
        %v5890 = vpop.f32.mrb[0].mxu0
        %5891 = vmatprep.mubr.bf16.mxu0 0
        %5892 = vmatmul.mubr.bf16.gmra.mrb[0].mxu0 %v5792
        %v5893 = vpop.f32.mrb[0].mxu0
        %v5894 = vadd.f32 0.0, %v5893
        %v5895 = vpop.f32.mrb[0].mxu0
        %v5896 = vpop.f32.mrb[0].mxu0
        %v5897 = vadd.f32 0.0, %v5896
        %v5898 = vpop.f32.mrb[0].mxu0
        %5899 = vmatprep.mubr.bf16.mxu0 0
        %5900 = vmatmul.mubr.bf16.gmra.mrb[0].mxu0 %v5793
        %v5901 = vpop.f32.mrb[0].mxu0
        %v5902 = vadd.f32 0.0, %v5901
        %v5903 = vpop.f32.mrb[0].mxu0
        %v5904 = vpop.f32.mrb[0].mxu0
        %v5905 = vadd.f32 0.0, %v5904
        %v5906 = vpop.f32.mrb[0].mxu0
        %5907 = vmatprep.mubr.bf16.mxu0 0
        %5908 = vmatmul.mubr.bf16.gmra.mrb[0].mxu0 %v5794
        %v5909 = vpop.f32.mrb[0].mxu0
        %v5910 = vadd.f32 0.0, %v5909
        %v5911 = vpop.f32.mrb[0].mxu0
        %v5912 = vpop.f32.mrb[0].mxu0
        %v5913 = vadd.f32 0.0, %v5912
        %v5914 = vpop.f32.mrb[0].mxu0
        %5915 = vdwg.mxu0
        %v5916 = vmul.f32 %v5854, %v5771
        %v5917 = vmul.f32 %v5857, %v5772
        %v5918 = vmul.f32 %v5862, %v5773
        %v5919 = vmul.f32 %v5865, %v5774
        %v5920 = vmul.f32 %v5870, %v5775
        %v5921 = vmul.f32 %v5873, %v5776
        %v5922 = vmul.f32 %v5878, %v5777
        %v5923 = vmul.f32 %v5881, %v5778
        %v5924 = vmul.f32 %v5886, %v5779
        %v5925 = vmul.f32 %v5889, %v5780
        %v5926 = vmul.f32 %v5894, %v5781
        %v5927 = vmul.f32 %v5897, %v5782
        %v5928 = vmul.f32 %v5902, %v5783
        %v5929 = vmul.f32 %v5905, %v5784
        %v5930 = vmul.f32 %v5910, %v5785
        %v5931 = vmul.f32 %v5913, %v5786
        %5948 = vrot.lane.b32.xlu0 %v5016, 8
        %v5949 = vpop.permute.xlu0 %5948
        %5950 = vrot.lane.b32.xlu0 %v5017, 8
        %v5951 = vpop.permute.xlu0 %5950
        %5952 = vrot.lane.b32.xlu0 %v5018, 8
        %v5953 = vpop.permute.xlu0 %5952
        %5954 = vrot.lane.b32.xlu0 %v5019, 8
        %v5955 = vpop.permute.xlu0 %5954
        %5956 = vrot.lane.b32.xlu0 %v5020, 8
        %v5957 = vpop.permute.xlu0 %5956
        %5958 = vrot.lane.b32.xlu0 %v5021, 8
        %v5959 = vpop.permute.xlu0 %5958
        %5960 = vrot.lane.b32.xlu0 %v5022, 8
        %v5961 = vpop.permute.xlu0 %5960
        %5962 = vrot.lane.b32.xlu0 %v5023, 8
        %v5963 = vpop.permute.xlu0 %5962
        %5964 = vrot.lane.b32.xlu0 %v5024, 8
        %v5965 = vpop.permute.xlu0 %5964
        %5966 = vrot.lane.b32.xlu0 %v5025, 8
        %v5967 = vpop.permute.xlu0 %5966
        %5968 = vrot.lane.b32.xlu0 %v5026, 8
        %v5969 = vpop.permute.xlu0 %5968
        %5970 = vrot.lane.b32.xlu0 %v5027, 8
        %v5971 = vpop.permute.xlu0 %5970
        %5972 = vrot.lane.b32.xlu0 %v5028, 8
        %v5973 = vpop.permute.xlu0 %5972
        %5974 = vrot.lane.b32.xlu0 %v5029, 8
        %v5975 = vpop.permute.xlu0 %5974
        %5976 = vrot.lane.b32.xlu0 %v5030, 8
        %v5977 = vpop.permute.xlu0 %5976
        %5978 = vrot.lane.b32.xlu0 %v5031, 8
        %v5979 = vpop.permute.xlu0 %5978
        %6012 = vrot.lane.b32.xlu0 %v5466, 16
        %v6013 = vpop.permute.xlu0 %6012
        %6014 = vrot.lane.b32.xlu0 %v5467, 16
        %v6015 = vpop.permute.xlu0 %6014
        %6016 = vrot.lane.b32.xlu0 %v5468, 16
        %v6017 = vpop.permute.xlu0 %6016
        %6018 = vrot.lane.b32.xlu0 %v5469, 16
        %v6019 = vpop.permute.xlu0 %6018
        %6020 = vrot.lane.b32.xlu0 %v5470, 16
        %v6021 = vpop.permute.xlu0 %6020
        %6022 = vrot.lane.b32.xlu0 %v5471, 16
        %v6023 = vpop.permute.xlu0 %6022
        %6024 = vrot.lane.b32.xlu0 %v5472, 16
        %v6025 = vpop.permute.xlu0 %6024
        %6026 = vrot.lane.b32.xlu0 %v5473, 16
        %v6027 = vpop.permute.xlu0 %6026
        %6028 = vrot.lane.b32.xlu0 %v5474, 16
        %v6029 = vpop.permute.xlu0 %6028
        %6030 = vrot.lane.b32.xlu0 %v5475, 16
        %v6031 = vpop.permute.xlu0 %6030
        %6032 = vrot.lane.b32.xlu0 %v5476, 16
        %v6033 = vpop.permute.xlu0 %6032
        %6034 = vrot.lane.b32.xlu0 %v5477, 16
        %v6035 = vpop.permute.xlu0 %6034
        %6036 = vrot.lane.b32.xlu0 %v5478, 16
        %v6037 = vpop.permute.xlu0 %6036
        %6038 = vrot.lane.b32.xlu0 %v5479, 16
        %v6039 = vpop.permute.xlu0 %6038
        %6040 = vrot.lane.b32.xlu0 %v5480, 16
        %v6041 = vpop.permute.xlu0 %6040
        %6042 = vrot.lane.b32.xlu0 %v5481, 16
        %v6043 = vpop.permute.xlu0 %6042
        %6076 = vrot.lane.b32.xlu0 %v5916, 24
        %v6077 = vpop.permute.xlu0 %6076
        %6078 = vrot.lane.b32.xlu0 %v5917, 24
        %v6079 = vpop.permute.xlu0 %6078
        %6080 = vrot.lane.b32.xlu0 %v5918, 24
        %v6081 = vpop.permute.xlu0 %6080
        %6082 = vrot.lane.b32.xlu0 %v5919, 24
        %v6083 = vpop.permute.xlu0 %6082
        %6084 = vrot.lane.b32.xlu0 %v5920, 24
        %v6085 = vpop.permute.xlu0 %6084
        %6086 = vrot.lane.b32.xlu0 %v5921, 24
        %v6087 = vpop.permute.xlu0 %6086
        %6088 = vrot.lane.b32.xlu0 %v5922, 24
        %v6089 = vpop.permute.xlu0 %6088
        %6090 = vrot.lane.b32.xlu0 %v5923, 24
        %v6091 = vpop.permute.xlu0 %6090
        %6092 = vrot.lane.b32.xlu0 %v5924, 24
        %v6093 = vpop.permute.xlu0 %6092
        %6094 = vrot.lane.b32.xlu0 %v5925, 24
        %v6095 = vpop.permute.xlu0 %6094
        %6096 = vrot.lane.b32.xlu0 %v5926, 24
        %v6097 = vpop.permute.xlu0 %6096
        %6098 = vrot.lane.b32.xlu0 %v5927, 24
        %v6099 = vpop.permute.xlu0 %6098
        %6100 = vrot.lane.b32.xlu0 %v5928, 24
        %v6101 = vpop.permute.xlu0 %6100
        %6102 = vrot.lane.b32.xlu0 %v5929, 24
        %v6103 = vpop.permute.xlu0 %6102
        %6104 = vrot.lane.b32.xlu0 %v5930, 24
        %v6105 = vpop.permute.xlu0 %6104
        %6106 = vrot.lane.b32.xlu0 %v5931, 24
        %v6107 = vpop.permute.xlu0 %6106
        %v6124 = vsel %vm829, %v4566, %v5949
        %v6125 = vsel %vm829, %v4567, %v5951
        %v6126 = vsel %vm829, %v4568, %v5953
        %v6127 = vsel %vm829, %v4569, %v5955
        %v6128 = vsel %vm829, %v4570, %v5957
        %v6129 = vsel %vm829, %v4571, %v5959
        %v6130 = vsel %vm829, %v4572, %v5961
        %v6131 = vsel %vm829, %v4573, %v5963
        %v6132 = vsel %vm829, %v4574, %v5965
        %v6133 = vsel %vm829, %v4575, %v5967
        %v6134 = vsel %vm829, %v4576, %v5969
        %v6135 = vsel %vm829, %v4577, %v5971
        %v6136 = vsel %vm829, %v4578, %v5973
        %v6137 = vsel %vm829, %v4579, %v5975
        %v6138 = vsel %vm829, %v4580, %v5977
        %v6139 = vsel %vm829, %v4581, %v5979
        %v6140 = vsel %vm225, %v6124, %v6013
        %v6141 = vsel %vm225, %v6125, %v6015
        %v6142 = vsel %vm225, %v6126, %v6017
        %v6143 = vsel %vm225, %v6127, %v6019
        %v6144 = vsel %vm225, %v6128, %v6021
        %v6145 = vsel %vm225, %v6129, %v6023
        %v6146 = vsel %vm225, %v6130, %v6025
        %v6147 = vsel %vm225, %v6131, %v6027
        %v6148 = vsel %vm225, %v6132, %v6029
        %v6149 = vsel %vm225, %v6133, %v6031
        %v6150 = vsel %vm225, %v6134, %v6033
        %v6151 = vsel %vm225, %v6135, %v6035
        %v6152 = vsel %vm225, %v6136, %v6037
        %v6153 = vsel %vm225, %v6137, %v6039
        %v6154 = vsel %vm225, %v6138, %v6041
        %v6155 = vsel %vm225, %v6139, %v6043
        %v6156 = vsel %vm2822, %v6140, %v6077
        %v6157 = vsel %vm2822, %v6141, %v6079
        %v6158 = vsel %vm2822, %v6142, %v6081
        %v6159 = vsel %vm2822, %v6143, %v6083
        %v6160 = vsel %vm2822, %v6144, %v6085
        %v6161 = vsel %vm2822, %v6145, %v6087
        %v6162 = vsel %vm2822, %v6146, %v6089
        %v6163 = vsel %vm2822, %v6147, %v6091
        %v6164 = vsel %vm2822, %v6148, %v6093
        %v6165 = vsel %vm2822, %v6149, %v6095
        %v6166 = vsel %vm2822, %v6150, %v6097
        %v6167 = vsel %vm2822, %v6151, %v6099
        %v6168 = vsel %vm2822, %v6152, %v6101
        %v6169 = vsel %vm2822, %v6153, %v6103
        %v6170 = vsel %vm2822, %v6154, %v6105
        %v6171 = vsel %vm2822, %v6155, %v6107
        %v6172 = vpack.c.bf16 %v6157, %v6156
        %v6173 = vpack.c.bf16 %v6159, %v6158
        %v6174 = vpack.c.bf16 %v6161, %v6160
        %v6175 = vpack.c.bf16 %v6163, %v6162
        %v6176 = vpack.c.bf16 %v6165, %v6164
        %v6177 = vpack.c.bf16 %v6167, %v6166
        %v6178 = vpack.c.bf16 %v6169, %v6168
        %v6179 = vpack.c.bf16 %v6171, %v6170
        %v6180 = vld [vmem:[%s1 + $0x68] sm:$0xf]
        %v6181 = vld [vmem:[%s1 + $0x6c] sm:$0xf]
        %v6182 = vld [vmem:[%s1 + $0x70] sm:$0xf]
        %v6183 = vld [vmem:[%s1 + $0x74] sm:$0xf]
        %v6184 = vld [vmem:[#allocation2 + $0x160] sm:$0x1]
        %v6185 = vlaneseq
        %v6186 = vshrl.u32 %v6185, 7
        %v6187 = vsub.s32 0, %v6186
        %v6188 = vrot.slane %v6184, %v6187
        %v6193 = vunpack.c.l.b16 %v6180
        %v6194 = vunpack.c.l.b16 %v6181
        %v6195 = vunpack.c.l.b16 %v6182
        %v6196 = vunpack.c.l.b16 %v6183
        %v6197 = vpack.c.b16 %v6194, %v6193
        %v6198 = vpack.c.b16 %v6196, %v6195
        %v6202 = vsel %vm397, %v6172, 0
        %v6205 = vsel %vm397, %v6173, 0
        %v6208 = vsel %vm397, %v6174, 0
        %v6211 = vsel %vm397, %v6175, 0
        %v6214 = vsel %vm397, %v6176, 0
        %v6217 = vsel %vm397, %v6177, 0
        %v6220 = vsel %vm397, %v6178, 0
        %v6223 = vsel %vm397, %v6179, 0
        %6225 = vmatprep.subr.bf16.mxu0 0
        %6226 = vmatpush1.bf16.msra.mxu0 %v6197
        %6227 = vmatprep.subr.bf16.mxu0 0
        %6228 = vmatpush1.bf16.msra.mxu0 %v6198
        %6229 = vmatprep.subr.bf16.mxu0 0
        %6230 = vmatpush1.bf16.msra.mxu0 0
        %6231 = vmatprep.subr.bf16.mxu0 0
        %6232 = vmatpush1.bf16.msra.mxu0 0
        %6233 = vmatprep.subr.bf16.mxu0 0
        %6234 = vmatpush1.bf16.msra.mxu0 0
        %6235 = vmatprep.subr.bf16.mxu0 0
        %6236 = vmatpush1.bf16.msra.mxu0 0
        %6237 = vmatprep.subr.bf16.mxu0 0
        %6238 = vmatpush1.bf16.msra.mxu0 0
        %6239 = vmatprep.subr.bf16.mxu0 0
        %6240 = vmatpush1.bf16.msra.mxu0 0
        %6241 = vmatprep.subr.bf16.mxu0 0
        %6242 = vmatpush1.bf16.msra.mxu0 0
        %6243 = vmatprep.subr.bf16.mxu0 0
        %6244 = vmatpush1.bf16.msra.mxu0 0
        %6245 = vmatprep.subr.bf16.mxu0 0
        %6246 = vmatpush1.bf16.msra.mxu0 0
        %6247 = vmatprep.subr.bf16.mxu0 0
        %6248 = vmatpush1.bf16.msra.mxu0 0
        %6249 = vmatprep.subr.bf16.mxu0 0
        %6250 = vmatpush1.bf16.msra.mxu0 0
        %6251 = vmatprep.subr.bf16.mxu0 0
        %6252 = vmatpush1.bf16.msra.mxu0 0
        %6253 = vmatprep.subr.bf16.mxu0 0
        %6254 = vmatpush1.bf16.msra.mxu0 0
        %6255 = vmatprep.subr.bf16.mxu0 0
        %6256 = vmatpush1.bf16.msra.mxu0 0
        %6257 = vmatprep.mubr.bf16.mxu0 0
        %6258 = vmatmul.mubr.bf16.gmra.mrb[0].mxu0 %v6202
        %v6259 = vpop.f32.mrb[0].mxu0
        %v6260 = vadd.f32 %v6188, %v6259
        %v6261 = vpop.f32.mrb[0].mxu0
        %v6262 = vpop.f32.mrb[0].mxu0
        %v6263 = vadd.f32 %v6188, %v6262
        %v6264 = vpop.f32.mrb[0].mxu0
        %6265 = vmatprep.mubr.bf16.mxu0 0
        %6266 = vmatmul.mubr.bf16.gmra.mrb[0].mxu0 %v6205
        %v6267 = vpop.f32.mrb[0].mxu0
        %v6268 = vadd.f32 %v6188, %v6267
        %v6269 = vpop.f32.mrb[0].mxu0
        %v6270 = vpop.f32.mrb[0].mxu0
        %v6271 = vadd.f32 %v6188, %v6270
        %v6272 = vpop.f32.mrb[0].mxu0
        %6273 = vmatprep.mubr.bf16.mxu0 0
        %6274 = vmatmul.mubr.bf16.gmra.mrb[0].mxu0 %v6208
        %v6275 = vpop.f32.mrb[0].mxu0
        %v6276 = vadd.f32 %v6188, %v6275
        %v6277 = vpop.f32.mrb[0].mxu0
        %v6278 = vpop.f32.mrb[0].mxu0
        %v6279 = vadd.f32 %v6188, %v6278
        %v6280 = vpop.f32.mrb[0].mxu0
        %6281 = vmatprep.mubr.bf16.mxu0 0
        %6282 = vmatmul.mubr.bf16.gmra.mrb[0].mxu0 %v6211
        %v6283 = vpop.f32.mrb[0].mxu0
        %v6284 = vadd.f32 %v6188, %v6283
        %v6285 = vpop.f32.mrb[0].mxu0
        %v6286 = vpop.f32.mrb[0].mxu0
        %v6287 = vadd.f32 %v6188, %v6286
        %v6288 = vpop.f32.mrb[0].mxu0
        %6289 = vmatprep.mubr.bf16.mxu0 0
        %6290 = vmatmul.mubr.bf16.gmra.mrb[0].mxu0 %v6214
        %v6291 = vpop.f32.mrb[0].mxu0
        %v6292 = vadd.f32 %v6188, %v6291
        %v6293 = vpop.f32.mrb[0].mxu0
        %v6294 = vpop.f32.mrb[0].mxu0
        %v6295 = vadd.f32 %v6188, %v6294
        %v6296 = vpop.f32.mrb[0].mxu0
        %6297 = vmatprep.mubr.bf16.mxu0 0
        %6298 = vmatmul.mubr.bf16.gmra.mrb[0].mxu0 %v6217
        %v6299 = vpop.f32.mrb[0].mxu0
        %v6300 = vadd.f32 %v6188, %v6299
        %v6301 = vpop.f32.mrb[0].mxu0
        %v6302 = vpop.f32.mrb[0].mxu0
        %v6303 = vadd.f32 %v6188, %v6302
        %v6304 = vpop.f32.mrb[0].mxu0
        %6305 = vmatprep.mubr.bf16.mxu0 0
        %6306 = vmatmul.mubr.bf16.gmra.mrb[0].mxu0 %v6220
        %v6307 = vpop.f32.mrb[0].mxu0
        %v6308 = vadd.f32 %v6188, %v6307
        %v6309 = vpop.f32.mrb[0].mxu0
        %v6310 = vpop.f32.mrb[0].mxu0
        %v6311 = vadd.f32 %v6188, %v6310
        %v6312 = vpop.f32.mrb[0].mxu0
        %6313 = vmatprep.mubr.bf16.mxu0 0
        %6314 = vmatmul.mubr.bf16.gmra.mrb[0].mxu0 %v6223
        %v6315 = vpop.f32.mrb[0].mxu0
        %v6316 = vadd.f32 %v6188, %v6315
        %v6317 = vpop.f32.mrb[0].mxu0
        %v6318 = vpop.f32.mrb[0].mxu0
        %v6319 = vadd.f32 %v6188, %v6318
        %v6320 = vpop.f32.mrb[0].mxu0
        %6321 = vdwg.mxu0
        %v6322 = vadd.f32 %v3716, %v6260
        %v6323 = vadd.f32 %v3717, %v6263
        %v6324 = vadd.f32 %v3718, %v6268
        %v6325 = vadd.f32 %v3719, %v6271
        %v6326 = vadd.f32 %v3720, %v6276
        %v6327 = vadd.f32 %v3721, %v6279
        %v6328 = vadd.f32 %v3722, %v6284
        %v6329 = vadd.f32 %v3723, %v6287
        %v6330 = vadd.f32 %v3724, %v6292
        %v6331 = vadd.f32 %v3725, %v6295
        %v6332 = vadd.f32 %v3726, %v6300
        %v6333 = vadd.f32 %v3727, %v6303
        %v6334 = vadd.f32 %v3728, %v6308
        %v6335 = vadd.f32 %v3729, %v6311
        %v6336 = vadd.f32 %v3730, %v6316
        %v6337 = vadd.f32 %v3731, %v6319
        %v6338 = vld [vmem:[#allocation2 + $0x168] sm:$0x1]
        %v6339 = vld [vmem:[#allocation2 + $0x170] sm:$0x1]
        %v6340 = vsel %vm397, %v6322, 0.0
        %6341 = vadd.xlane.f32.xlu0 %v6340
        %v6342 = vpop.xlane.xlu0 %6341
        %v6343 = vsel %vm397, %v6323, 0.0
        %6344 = vadd.xlane.f32.xlu0 %v6343
        %v6345 = vpop.xlane.xlu0 %6344
        %v6346 = vsel %vm397, %v6324, 0.0
        %6347 = vadd.xlane.f32.xlu0 %v6346
        %v6348 = vpop.xlane.xlu0 %6347
        %v6349 = vsel %vm397, %v6325, 0.0
        %6350 = vadd.xlane.f32.xlu0 %v6349
        %v6351 = vpop.xlane.xlu0 %6350
        %v6352 = vsel %vm397, %v6326, 0.0
        %6353 = vadd.xlane.f32.xlu0 %v6352
        %v6354 = vpop.xlane.xlu0 %6353
        %v6355 = vsel %vm397, %v6327, 0.0
        %6356 = vadd.xlane.f32.xlu0 %v6355
        %v6357 = vpop.xlane.xlu0 %6356
        %v6358 = vsel %vm397, %v6328, 0.0
        %6359 = vadd.xlane.f32.xlu0 %v6358
        %v6360 = vpop.xlane.xlu0 %6359
        %v6361 = vsel %vm397, %v6329, 0.0
        %6362 = vadd.xlane.f32.xlu0 %v6361
        %v6363 = vpop.xlane.xlu0 %6362
        %v6364 = vsel %vm397, %v6330, 0.0
        %6365 = vadd.xlane.f32.xlu0 %v6364
        %v6366 = vpop.xlane.xlu0 %6365
        %v6367 = vsel %vm397, %v6331, 0.0
        %6368 = vadd.xlane.f32.xlu0 %v6367
        %v6369 = vpop.xlane.xlu0 %6368
        %v6370 = vsel %vm397, %v6332, 0.0
        %6371 = vadd.xlane.f32.xlu0 %v6370
        %v6372 = vpop.xlane.xlu0 %6371
        %v6373 = vsel %vm397, %v6333, 0.0
        %6374 = vadd.xlane.f32.xlu0 %v6373
        %v6375 = vpop.xlane.xlu0 %6374
        %v6376 = vsel %vm397, %v6334, 0.0
        %6377 = vadd.xlane.f32.xlu0 %v6376
        %v6378 = vpop.xlane.xlu0 %6377
        %v6379 = vsel %vm397, %v6335, 0.0
        %6380 = vadd.xlane.f32.xlu0 %v6379
        %v6381 = vpop.xlane.xlu0 %6380
        %v6382 = vsel %vm397, %v6336, 0.0
        %6383 = vadd.xlane.f32.xlu0 %v6382
        %v6384 = vpop.xlane.xlu0 %6383
        %v6385 = vsel %vm397, %v6337, 0.0
        %6386 = vadd.xlane.f32.xlu0 %v6385
        %v6387 = vpop.xlane.xlu0 %6386
        %v6388 = vmul.f32 %v6342, %v446
        %v6389 = vmul.f32 %v6345, %v446
        %v6390 = vmul.f32 %v6348, %v446
        %v6391 = vmul.f32 %v6351, %v446
        %v6392 = vmul.f32 %v6354, %v446
        %v6393 = vmul.f32 %v6357, %v446
        %v6394 = vmul.f32 %v6360, %v446
        %v6395 = vmul.f32 %v6363, %v446
        %v6396 = vmul.f32 %v6366, %v446
        %v6397 = vmul.f32 %v6369, %v446
        %v6398 = vmul.f32 %v6372, %v446
        %v6399 = vmul.f32 %v6375, %v446
        %v6400 = vmul.f32 %v6378, %v446
        %v6401 = vmul.f32 %v6381, %v446
        %v6402 = vmul.f32 %v6384, %v446
        %v6403 = vmul.f32 %v6387, %v446
        %v6404 = vsub.f32 %v6322, %v6388
        %v6405 = vsub.f32 %v6323, %v6389
        %v6406 = vsub.f32 %v6324, %v6390
        %v6407 = vsub.f32 %v6325, %v6391
        %v6408 = vsub.f32 %v6326, %v6392
        %v6409 = vsub.f32 %v6327, %v6393
        %v6410 = vsub.f32 %v6328, %v6394
        %v6411 = vsub.f32 %v6329, %v6395
        %v6412 = vsub.f32 %v6330, %v6396
        %v6413 = vsub.f32 %v6331, %v6397
        %v6414 = vsub.f32 %v6332, %v6398
        %v6415 = vsub.f32 %v6333, %v6399
        %v6416 = vsub.f32 %v6334, %v6400
        %v6417 = vsub.f32 %v6335, %v6401
        %v6418 = vsub.f32 %v6336, %v6402
        %v6419 = vsub.f32 %v6337, %v6403
        %v6420 = vmul.f32 %v6404, %v6404
        %v6421 = vmul.f32 %v6405, %v6405
        %v6422 = vmul.f32 %v6406, %v6406
        %v6423 = vmul.f32 %v6407, %v6407
        %v6424 = vmul.f32 %v6408, %v6408
        %v6425 = vmul.f32 %v6409, %v6409
        %v6426 = vmul.f32 %v6410, %v6410
        %v6427 = vmul.f32 %v6411, %v6411
        %v6428 = vmul.f32 %v6412, %v6412
        %v6429 = vmul.f32 %v6413, %v6413
        %v6430 = vmul.f32 %v6414, %v6414
        %v6431 = vmul.f32 %v6415, %v6415
        %v6432 = vmul.f32 %v6416, %v6416
        %v6433 = vmul.f32 %v6417, %v6417
        %v6434 = vmul.f32 %v6418, %v6418
        %v6435 = vmul.f32 %v6419, %v6419
        %v6436 = vsel %vm397, %v6420, 0.0
        %6437 = vadd.xlane.f32.xlu0 %v6436
        %v6438 = vpop.xlane.xlu0 %6437
        %v6439 = vsel %vm397, %v6421, 0.0
        %6440 = vadd.xlane.f32.xlu0 %v6439
        %v6441 = vpop.xlane.xlu0 %6440
        %v6442 = vsel %vm397, %v6422, 0.0
        %6443 = vadd.xlane.f32.xlu0 %v6442
        %v6444 = vpop.xlane.xlu0 %6443
        %v6445 = vsel %vm397, %v6423, 0.0
        %6446 = vadd.xlane.f32.xlu0 %v6445
        %v6447 = vpop.xlane.xlu0 %6446
        %v6448 = vsel %vm397, %v6424, 0.0
        %6449 = vadd.xlane.f32.xlu0 %v6448
        %v6450 = vpop.xlane.xlu0 %6449
        %v6451 = vsel %vm397, %v6425, 0.0
        %6452 = vadd.xlane.f32.xlu0 %v6451
        %v6453 = vpop.xlane.xlu0 %6452
        %v6454 = vsel %vm397, %v6426, 0.0
        %6455 = vadd.xlane.f32.xlu0 %v6454
        %v6456 = vpop.xlane.xlu0 %6455
        %v6457 = vsel %vm397, %v6427, 0.0
        %6458 = vadd.xlane.f32.xlu0 %v6457
        %v6459 = vpop.xlane.xlu0 %6458
        %v6460 = vsel %vm397, %v6428, 0.0
        %6461 = vadd.xlane.f32.xlu0 %v6460
        %v6462 = vpop.xlane.xlu0 %6461
        %v6463 = vsel %vm397, %v6429, 0.0
        %6464 = vadd.xlane.f32.xlu0 %v6463
        %v6465 = vpop.xlane.xlu0 %6464
        %v6466 = vsel %vm397, %v6430, 0.0
        %6467 = vadd.xlane.f32.xlu0 %v6466
        %v6468 = vpop.xlane.xlu0 %6467
        %v6469 = vsel %vm397, %v6431, 0.0
        %6470 = vadd.xlane.f32.xlu0 %v6469
        %v6471 = vpop.xlane.xlu0 %6470
        %v6472 = vsel %vm397, %v6432, 0.0
        %6473 = vadd.xlane.f32.xlu0 %v6472
        %v6474 = vpop.xlane.xlu0 %6473
        %v6475 = vsel %vm397, %v6433, 0.0
        %6476 = vadd.xlane.f32.xlu0 %v6475
        %v6477 = vpop.xlane.xlu0 %6476
        %v6478 = vsel %vm397, %v6434, 0.0
        %6479 = vadd.xlane.f32.xlu0 %v6478
        %v6480 = vpop.xlane.xlu0 %6479
        %v6481 = vsel %vm397, %v6435, 0.0
        %6482 = vadd.xlane.f32.xlu0 %v6481
        %v6483 = vpop.xlane.xlu0 %6482
        %v6484 = vmul.f32 %v6438, %v446
        %v6485 = vmul.f32 %v6441, %v446
        %v6486 = vmul.f32 %v6444, %v446
        %v6487 = vmul.f32 %v6447, %v446
        %v6488 = vmul.f32 %v6450, %v446
        %v6489 = vmul.f32 %v6453, %v446
        %v6490 = vmul.f32 %v6456, %v446
        %v6491 = vmul.f32 %v6459, %v446
        %v6492 = vmul.f32 %v6462, %v446
        %v6493 = vmul.f32 %v6465, %v446
        %v6494 = vmul.f32 %v6468, %v446
        %v6495 = vmul.f32 %v6471, %v446
        %v6496 = vmul.f32 %v6474, %v446
        %v6497 = vmul.f32 %v6477, %v446
        %v6498 = vmul.f32 %v6480, %v446
        %v6499 = vmul.f32 %v6483, %v446
        %v6500 = vadd.f32 %v6484, 1e-05
        %v6501 = vadd.f32 %v6485, 1e-05
        %v6502 = vadd.f32 %v6486, 1e-05
        %v6503 = vadd.f32 %v6487, 1e-05
        %v6504 = vadd.f32 %v6488, 1e-05
        %v6505 = vadd.f32 %v6489, 1e-05
        %v6506 = vadd.f32 %v6490, 1e-05
        %v6507 = vadd.f32 %v6491, 1e-05
        %v6508 = vadd.f32 %v6492, 1e-05
        %v6509 = vadd.f32 %v6493, 1e-05
        %v6510 = vadd.f32 %v6494, 1e-05
        %v6511 = vadd.f32 %v6495, 1e-05
        %v6512 = vadd.f32 %v6496, 1e-05
        %v6513 = vadd.f32 %v6497, 1e-05
        %v6514 = vadd.f32 %v6498, 1e-05
        %v6515 = vadd.f32 %v6499, 1e-05
        %v6516 = vrsqrt.pop %v6500
        %v6517 = vrsqrt.pop %v6501
        %v6518 = vrsqrt.pop %v6502
        %v6519 = vrsqrt.pop %v6503
        %v6520 = vrsqrt.pop %v6504
        %v6521 = vrsqrt.pop %v6505
        %v6522 = vrsqrt.pop %v6506
        %v6523 = vrsqrt.pop %v6507
        %v6524 = vrsqrt.pop %v6508
        %v6525 = vrsqrt.pop %v6509
        %v6526 = vrsqrt.pop %v6510
        %v6527 = vrsqrt.pop %v6511
        %v6528 = vrsqrt.pop %v6512
        %v6529 = vrsqrt.pop %v6513
        %v6530 = vrsqrt.pop %v6514
        %v6531 = vrsqrt.pop %v6515
        %v6532 = vmul.f32 %v6404, %v6516
        %v6533 = vmul.f32 %v6405, %v6517
        %v6534 = vmul.f32 %v6406, %v6518
        %v6535 = vmul.f32 %v6407, %v6519
        %v6536 = vmul.f32 %v6408, %v6520
        %v6537 = vmul.f32 %v6409, %v6521
        %v6538 = vmul.f32 %v6410, %v6522
        %v6539 = vmul.f32 %v6411, %v6523
        %v6540 = vmul.f32 %v6412, %v6524
        %v6541 = vmul.f32 %v6413, %v6525
        %v6542 = vmul.f32 %v6414, %v6526
        %v6543 = vmul.f32 %v6415, %v6527
        %v6544 = vmul.f32 %v6416, %v6528
        %v6545 = vmul.f32 %v6417, %v6529
        %v6546 = vmul.f32 %v6418, %v6530
        %v6547 = vmul.f32 %v6419, %v6531
        %v6548 = vlaneseq
        %v6549 = vshrl.u32 %v6548, 7
        %v6550 = vsub.s32 0, %v6549
        %v6551 = vrot.slane %v6338, %v6550
        %v6552 = vmul.f32 %v6532, %v6551
        %v6553 = vmul.f32 %v6533, %v6551
        %v6554 = vmul.f32 %v6534, %v6551
        %v6555 = vmul.f32 %v6535, %v6551
        %v6556 = vmul.f32 %v6536, %v6551
        %v6557 = vmul.f32 %v6537, %v6551
        %v6558 = vmul.f32 %v6538, %v6551
        %v6559 = vmul.f32 %v6539, %v6551
        %v6560 = vmul.f32 %v6540, %v6551
        %v6561 = vmul.f32 %v6541, %v6551
        %v6562 = vmul.f32 %v6542, %v6551
        %v6563 = vmul.f32 %v6543, %v6551
        %v6564 = vmul.f32 %v6544, %v6551
        %v6565 = vmul.f32 %v6545, %v6551
        %v6566 = vmul.f32 %v6546, %v6551
        %v6567 = vmul.f32 %v6547, %v6551
        %v6568 = vlaneseq
        %v6569 = vshrl.u32 %v6568, 7
        %v6570 = vsub.s32 0, %v6569
        %v6571 = vrot.slane %v6339, %v6570
        %v6572 = vadd.f32 %v6552, %v6571
        %v6573 = vadd.f32 %v6553, %v6571
        %v6574 = vadd.f32 %v6554, %v6571
        %v6575 = vadd.f32 %v6555, %v6571
        %v6576 = vadd.f32 %v6556, %v6571
        %v6577 = vadd.f32 %v6557, %v6571
        %v6578 = vadd.f32 %v6558, %v6571
        %v6579 = vadd.f32 %v6559, %v6571
        %v6580 = vadd.f32 %v6560, %v6571
        %v6581 = vadd.f32 %v6561, %v6571
        %v6582 = vadd.f32 %v6562, %v6571
        %v6583 = vadd.f32 %v6563, %v6571
        %v6584 = vadd.f32 %v6564, %v6571
        %v6585 = vadd.f32 %v6565, %v6571
        %v6586 = vadd.f32 %v6566, %v6571
        %v6587 = vadd.f32 %v6567, %v6571
        %v6588 = vpack.c.bf16 %v6573, %v6572
        %v6589 = vpack.c.bf16 %v6575, %v6574
        %v6590 = vpack.c.bf16 %v6577, %v6576
        %v6591 = vpack.c.bf16 %v6579, %v6578
        %v6592 = vpack.c.bf16 %v6581, %v6580
        %v6593 = vpack.c.bf16 %v6583, %v6582
        %v6594 = vpack.c.bf16 %v6585, %v6584
        %v6595 = vpack.c.bf16 %v6587, %v6586
        %v6596 = vld [vmem:[%s1 + $0x78] sm:$0xf]
        %v6597 = vld [vmem:[%s1 + $0x7c] sm:$0xf]
        %v6598 = vld [vmem:[%s1 + $0x80] sm:$0xf]
        %v6599 = vld [vmem:[%s1 + $0x84] sm:$0xf]
        %v6600 = vld [vmem:[#allocation2 + $0x178] sm:$0x1]
        %v6601 = vlaneseq
        %v6602 = vshrl.u32 %v6601, 7
        %v6603 = vsub.s32 0, %v6602
        %v6604 = vrot.slane %v6600, %v6603
        %v6609 = vunpack.c.l.b16 %v6596
        %v6610 = vunpack.c.l.b16 %v6597
        %v6611 = vunpack.c.l.b16 %v6598
        %v6612 = vunpack.c.l.b16 %v6599
        %v6613 = vpack.c.b16 %v6610, %v6609
        %v6614 = vpack.c.b16 %v6612, %v6611
        %v6618 = vsel %vm397, %v6588, 0
        %v6621 = vsel %vm397, %v6589, 0
        %v6624 = vsel %vm397, %v6590, 0
        %v6627 = vsel %vm397, %v6591, 0
        %v6630 = vsel %vm397, %v6592, 0
        %v6633 = vsel %vm397, %v6593, 0
        %v6636 = vsel %vm397, %v6594, 0
        %v6639 = vsel %vm397, %v6595, 0
        %6641 = vmatprep.subr.bf16.mxu0 0
        %6642 = vmatpush1.bf16.msra.mxu0 %v6613
        %6643 = vmatprep.subr.bf16.mxu0 0
        %6644 = vmatpush1.bf16.msra.mxu0 %v6614
        %6645 = vmatprep.subr.bf16.mxu0 0
        %6646 = vmatpush1.bf16.msra.mxu0 0
        %6647 = vmatprep.subr.bf16.mxu0 0
        %6648 = vmatpush1.bf16.msra.mxu0 0
        %6649 = vmatprep.subr.bf16.mxu0 0
        %6650 = vmatpush1.bf16.msra.mxu0 0
        %6651 = vmatprep.subr.bf16.mxu0 0
        %6652 = vmatpush1.bf16.msra.mxu0 0
        %6653 = vmatprep.subr.bf16.mxu0 0
        %6654 = vmatpush1.bf16.msra.mxu0 0
        %6655 = vmatprep.subr.bf16.mxu0 0
        %6656 = vmatpush1.bf16.msra.mxu0 0
        %6657 = vmatprep.subr.bf16.mxu0 0
        %6658 = vmatpush1.bf16.msra.mxu0 0
        %6659 = vmatprep.subr.bf16.mxu0 0
        %6660 = vmatpush1.bf16.msra.mxu0 0
        %6661 = vmatprep.subr.bf16.mxu0 0
        %6662 = vmatpush1.bf16.msra.mxu0 0
        %6663 = vmatprep.subr.bf16.mxu0 0
        %6664 = vmatpush1.bf16.msra.mxu0 0
        %6665 = vmatprep.subr.bf16.mxu0 0
        %6666 = vmatpush1.bf16.msra.mxu0 0
        %6667 = vmatprep.subr.bf16.mxu0 0
        %6668 = vmatpush1.bf16.msra.mxu0 0
        %6669 = vmatprep.subr.bf16.mxu0 0
        %6670 = vmatpush1.bf16.msra.mxu0 0
        %6671 = vmatprep.subr.bf16.mxu0 0
        %6672 = vmatpush1.bf16.msra.mxu0 0
        %6673 = vmatprep.mubr.bf16.mxu0 0
        %6674 = vmatmul.mubr.bf16.gmra.mrb[0].mxu0 %v6618
        %v6675 = vpop.f32.mrb[0].mxu0
        %v6676 = vadd.f32 %v6604, %v6675
        %v6677 = vpop.f32.mrb[0].mxu0
        %v6678 = vpop.f32.mrb[0].mxu0
        %v6679 = vadd.f32 %v6604, %v6678
        %v6680 = vpop.f32.mrb[0].mxu0
        %6681 = vmatprep.mubr.bf16.mxu0 0
        %6682 = vmatmul.mubr.bf16.gmra.mrb[0].mxu0 %v6621
        %v6683 = vpop.f32.mrb[0].mxu0
        %v6684 = vadd.f32 %v6604, %v6683
        %v6685 = vpop.f32.mrb[0].mxu0
        %v6686 = vpop.f32.mrb[0].mxu0
        %v6687 = vadd.f32 %v6604, %v6686
        %v6688 = vpop.f32.mrb[0].mxu0
        %6689 = vmatprep.mubr.bf16.mxu0 0
        %6690 = vmatmul.mubr.bf16.gmra.mrb[0].mxu0 %v6624
        %v6691 = vpop.f32.mrb[0].mxu0
        %v6692 = vadd.f32 %v6604, %v6691
        %v6693 = vpop.f32.mrb[0].mxu0
        %v6694 = vpop.f32.mrb[0].mxu0
        %v6695 = vadd.f32 %v6604, %v6694
        %v6696 = vpop.f32.mrb[0].mxu0
        %6697 = vmatprep.mubr.bf16.mxu0 0
        %6698 = vmatmul.mubr.bf16.gmra.mrb[0].mxu0 %v6627
        %v6699 = vpop.f32.mrb[0].mxu0
        %v6700 = vadd.f32 %v6604, %v6699
        %v6701 = vpop.f32.mrb[0].mxu0
        %v6702 = vpop.f32.mrb[0].mxu0
        %v6703 = vadd.f32 %v6604, %v6702
        %v6704 = vpop.f32.mrb[0].mxu0
        %6705 = vmatprep.mubr.bf16.mxu0 0
        %6706 = vmatmul.mubr.bf16.gmra.mrb[0].mxu0 %v6630
        %v6707 = vpop.f32.mrb[0].mxu0
        %v6708 = vadd.f32 %v6604, %v6707
        %v6709 = vpop.f32.mrb[0].mxu0
        %v6710 = vpop.f32.mrb[0].mxu0
        %v6711 = vadd.f32 %v6604, %v6710
        %v6712 = vpop.f32.mrb[0].mxu0
        %6713 = vmatprep.mubr.bf16.mxu0 0
        %6714 = vmatmul.mubr.bf16.gmra.mrb[0].mxu0 %v6633
        %v6715 = vpop.f32.mrb[0].mxu0
        %v6716 = vadd.f32 %v6604, %v6715
        %v6717 = vpop.f32.mrb[0].mxu0
        %v6718 = vpop.f32.mrb[0].mxu0
        %v6719 = vadd.f32 %v6604, %v6718
        %v6720 = vpop.f32.mrb[0].mxu0
        %6721 = vmatprep.mubr.bf16.mxu0 0
        %6722 = vmatmul.mubr.bf16.gmra.mrb[0].mxu0 %v6636
        %v6723 = vpop.f32.mrb[0].mxu0
        %v6724 = vadd.f32 %v6604, %v6723
        %v6725 = vpop.f32.mrb[0].mxu0
        %v6726 = vpop.f32.mrb[0].mxu0
        %v6727 = vadd.f32 %v6604, %v6726
        %v6728 = vpop.f32.mrb[0].mxu0
        %6729 = vmatprep.mubr.bf16.mxu0 0
        %6730 = vmatmul.mubr.bf16.gmra.mrb[0].mxu0 %v6639
        %v6731 = vpop.f32.mrb[0].mxu0
        %v6732 = vadd.f32 %v6604, %v6731
        %v6733 = vpop.f32.mrb[0].mxu0
        %v6734 = vpop.f32.mrb[0].mxu0
        %v6735 = vadd.f32 %v6604, %v6734
        %v6736 = vpop.f32.mrb[0].mxu0
        %6737 = vdwg.mxu0
        %v6738 = vmul.f32 %v6676, 0.5
        %v6739 = vmul.f32 %v6679, 0.5
        %v6740 = vmul.f32 %v6684, 0.5
        %v6741 = vmul.f32 %v6687, 0.5
        %v6742 = vmul.f32 %v6692, 0.5
        %v6743 = vmul.f32 %v6695, 0.5
        %v6744 = vmul.f32 %v6700, 0.5
        %v6745 = vmul.f32 %v6703, 0.5
        %v6746 = vmul.f32 %v6708, 0.5
        %v6747 = vmul.f32 %v6711, 0.5
        %v6748 = vmul.f32 %v6716, 0.5
        %v6749 = vmul.f32 %v6719, 0.5
        %v6750 = vmul.f32 %v6724, 0.5
        %v6751 = vmul.f32 %v6727, 0.5
        %v6752 = vmul.f32 %v6732, 0.5
        %v6753 = vmul.f32 %v6735, 0.5
        %v6754 = vmul.f32 %v6676, 0.044715
        %v6755 = vmul.f32 %v6679, 0.044715
        %v6756 = vmul.f32 %v6684, 0.044715
        %v6757 = vmul.f32 %v6687, 0.044715
        %v6758 = vmul.f32 %v6692, 0.044715
        %v6759 = vmul.f32 %v6695, 0.044715
        %v6760 = vmul.f32 %v6700, 0.044715
        %v6761 = vmul.f32 %v6703, 0.044715
        %v6762 = vmul.f32 %v6708, 0.044715
        %v6763 = vmul.f32 %v6711, 0.044715
        %v6764 = vmul.f32 %v6716, 0.044715
        %v6765 = vmul.f32 %v6719, 0.044715
        %v6766 = vmul.f32 %v6724, 0.044715
        %v6767 = vmul.f32 %v6727, 0.044715
        %v6768 = vmul.f32 %v6732, 0.044715
        %v6769 = vmul.f32 %v6735, 0.044715
        %v6770 = vmul.f32 %v6754, %v6676
        %v6771 = vmul.f32 %v6755, %v6679
        %v6772 = vmul.f32 %v6756, %v6684
        %v6773 = vmul.f32 %v6757, %v6687
        %v6774 = vmul.f32 %v6758, %v6692
        %v6775 = vmul.f32 %v6759, %v6695
        %v6776 = vmul.f32 %v6760, %v6700
        %v6777 = vmul.f32 %v6761, %v6703
        %v6778 = vmul.f32 %v6762, %v6708
        %v6779 = vmul.f32 %v6763, %v6711
        %v6780 = vmul.f32 %v6764, %v6716
        %v6781 = vmul.f32 %v6765, %v6719
        %v6782 = vmul.f32 %v6766, %v6724
        %v6783 = vmul.f32 %v6767, %v6727
        %v6784 = vmul.f32 %v6768, %v6732
        %v6785 = vmul.f32 %v6769, %v6735
        %v6786 = vmul.f32 %v6770, %v6676
        %v6787 = vmul.f32 %v6771, %v6679
        %v6788 = vmul.f32 %v6772, %v6684
        %v6789 = vmul.f32 %v6773, %v6687
        %v6790 = vmul.f32 %v6774, %v6692
        %v6791 = vmul.f32 %v6775, %v6695
        %v6792 = vmul.f32 %v6776, %v6700
        %v6793 = vmul.f32 %v6777, %v6703
        %v6794 = vmul.f32 %v6778, %v6708
        %v6795 = vmul.f32 %v6779, %v6711
        %v6796 = vmul.f32 %v6780, %v6716
        %v6797 = vmul.f32 %v6781, %v6719
        %v6798 = vmul.f32 %v6782, %v6724
        %v6799 = vmul.f32 %v6783, %v6727
        %v6800 = vmul.f32 %v6784, %v6732
        %v6801 = vmul.f32 %v6785, %v6735
        %v6802 = vadd.f32 %v6676, %v6786
        %v6803 = vadd.f32 %v6679, %v6787
        %v6804 = vadd.f32 %v6684, %v6788
        %v6805 = vadd.f32 %v6687, %v6789
        %v6806 = vadd.f32 %v6692, %v6790
        %v6807 = vadd.f32 %v6695, %v6791
        %v6808 = vadd.f32 %v6700, %v6792
        %v6809 = vadd.f32 %v6703, %v6793
        %v6810 = vadd.f32 %v6708, %v6794
        %v6811 = vadd.f32 %v6711, %v6795
        %v6812 = vadd.f32 %v6716, %v6796
        %v6813 = vadd.f32 %v6719, %v6797
        %v6814 = vadd.f32 %v6724, %v6798
        %v6815 = vadd.f32 %v6727, %v6799
        %v6816 = vadd.f32 %v6732, %v6800
        %v6817 = vadd.f32 %v6735, %v6801
        %v6818 = vmul.f32 %v6802, 0.7978846
        %v6819 = vmul.f32 %v6803, 0.7978846
        %v6820 = vmul.f32 %v6804, 0.7978846
        %v6821 = vmul.f32 %v6805, 0.7978846
        %v6822 = vmul.f32 %v6806, 0.7978846
        %v6823 = vmul.f32 %v6807, 0.7978846
        %v6824 = vmul.f32 %v6808, 0.7978846
        %v6825 = vmul.f32 %v6809, 0.7978846
        %v6826 = vmul.f32 %v6810, 0.7978846
        %v6827 = vmul.f32 %v6811, 0.7978846
        %v6828 = vmul.f32 %v6812, 0.7978846
        %v6829 = vmul.f32 %v6813, 0.7978846
        %v6830 = vmul.f32 %v6814, 0.7978846
        %v6831 = vmul.f32 %v6815, 0.7978846
        %v6832 = vmul.f32 %v6816, 0.7978846
        %v6833 = vmul.f32 %v6817, 0.7978846
        %v6834 = vtanh.pop %v6818
        %v6835 = vtanh.pop %v6819
        %v6836 = vtanh.pop %v6820
        %v6837 = vtanh.pop %v6821
        %v6838 = vtanh.pop %v6822
        %v6839 = vtanh.pop %v6823
        %v6840 = vtanh.pop %v6824
        %v6841 = vtanh.pop %v6825
        %v6842 = vtanh.pop %v6826
        %v6843 = vtanh.pop %v6827
        %v6844 = vtanh.pop %v6828
        %v6845 = vtanh.pop %v6829
        %v6846 = vtanh.pop %v6830
        %v6847 = vtanh.pop %v6831
        %v6848 = vtanh.pop %v6832
        %v6849 = vtanh.pop %v6833
        %v6850 = vadd.f32 %v6834, 1.0
        %v6851 = vadd.f32 %v6835, 1.0
        %v6852 = vadd.f32 %v6836, 1.0
        %v6853 = vadd.f32 %v6837, 1.0
        %v6854 = vadd.f32 %v6838, 1.0
        %v6855 = vadd.f32 %v6839, 1.0
        %v6856 = vadd.f32 %v6840, 1.0
        %v6857 = vadd.f32 %v6841, 1.0
        %v6858 = vadd.f32 %v6842, 1.0
        %v6859 = vadd.f32 %v6843, 1.0
        %v6860 = vadd.f32 %v6844, 1.0
        %v6861 = vadd.f32 %v6845, 1.0
        %v6862 = vadd.f32 %v6846, 1.0
        %v6863 = vadd.f32 %v6847, 1.0
        %v6864 = vadd.f32 %v6848, 1.0
        %v6865 = vadd.f32 %v6849, 1.0
        %v6866 = vmul.f32 %v6738, %v6850
        %v6867 = vmul.f32 %v6739, %v6851
        %v6868 = vmul.f32 %v6740, %v6852
        %v6869 = vmul.f32 %v6741, %v6853
        %v6870 = vmul.f32 %v6742, %v6854
        %v6871 = vmul.f32 %v6743, %v6855
        %v6872 = vmul.f32 %v6744, %v6856
        %v6873 = vmul.f32 %v6745, %v6857
        %v6874 = vmul.f32 %v6746, %v6858
        %v6875 = vmul.f32 %v6747, %v6859
        %v6876 = vmul.f32 %v6748, %v6860
        %v6877 = vmul.f32 %v6749, %v6861
        %v6878 = vmul.f32 %v6750, %v6862
        %v6879 = vmul.f32 %v6751, %v6863
        %v6880 = vmul.f32 %v6752, %v6864
        %v6881 = vmul.f32 %v6753, %v6865
        %v6882 = vpack.c.bf16 %v6867, %v6866
        %v6883 = vpack.c.bf16 %v6869, %v6868
        %v6884 = vpack.c.bf16 %v6871, %v6870
        %v6885 = vpack.c.bf16 %v6873, %v6872
        %v6886 = vpack.c.bf16 %v6875, %v6874
        %v6887 = vpack.c.bf16 %v6877, %v6876
        %v6888 = vpack.c.bf16 %v6879, %v6878
        %v6889 = vpack.c.bf16 %v6881, %v6880
        %v6890 = vld [vmem:[%s1 + $0x88] sm:$0xf]
        %v6891 = vld [vmem:[%s1 + $0x8c] sm:$0xf]
        %v6892 = vld [vmem:[%s1 + $0x90] sm:$0xf]
        %v6893 = vld [vmem:[%s1 + $0x94] sm:$0xf]
        %v6894 = vld [vmem:[%s1 + $0x98] sm:$0xf]
        %v6895 = vld [vmem:[%s1 + $0x9c] sm:$0xf]
        %v6896 = vld [vmem:[%s1 + $0xa0] sm:$0xf]
        %v6897 = vld [vmem:[%s1 + $0xa4] sm:$0xf]
        %v6898 = vld [vmem:[#allocation2 + $0x180] sm:$0x1]
        %v6899 = vlaneseq
        %v6900 = vshrl.u32 %v6899, 7
        %v6901 = vsub.s32 0, %v6900
        %v6902 = vrot.slane %v6898, %v6901
        %v6911 = vunpack.c.l.b16 %v6890
        %v6912 = vunpack.c.l.b16 %v6891
        %v6913 = vunpack.c.l.b16 %v6892
        %v6914 = vunpack.c.l.b16 %v6893
        %v6915 = vunpack.c.l.b16 %v6894
        %v6916 = vunpack.c.l.b16 %v6895
        %v6917 = vunpack.c.l.b16 %v6896
        %v6918 = vunpack.c.l.b16 %v6897
        %v6919 = vpack.c.b16 %v6912, %v6911
        %v6920 = vpack.c.b16 %v6914, %v6913
        %v6921 = vpack.c.b16 %v6916, %v6915
        %v6922 = vpack.c.b16 %v6918, %v6917
        %v6928 = vsel %vm3594, %v6882, 0
        %v6931 = vsel %vm3594, %v6883, 0
        %v6934 = vsel %vm3594, %v6884, 0
        %v6937 = vsel %vm3594, %v6885, 0
        %v6940 = vsel %vm3594, %v6886, 0
        %v6943 = vsel %vm3594, %v6887, 0
        %v6946 = vsel %vm3594, %v6888, 0
        %v6949 = vsel %vm3594, %v6889, 0
        %6951 = vmatprep.subr.bf16.mxu0 0
        %6952 = vmatpush1.bf16.msra.mxu0 %v6919
        %6953 = vmatprep.subr.bf16.mxu0 0
        %6954 = vmatpush1.bf16.msra.mxu0 %v6920
        %6955 = vmatprep.subr.bf16.mxu0 0
        %6956 = vmatpush1.bf16.msra.mxu0 %v6921
        %6957 = vmatprep.subr.bf16.mxu0 0
        %6958 = vmatpush1.bf16.msra.mxu0 %v6922
        %6959 = vmatprep.subr.bf16.mxu0 0
        %6960 = vmatpush1.bf16.msra.mxu0 0
        %6961 = vmatprep.subr.bf16.mxu0 0
        %6962 = vmatpush1.bf16.msra.mxu0 0
        %6963 = vmatprep.subr.bf16.mxu0 0
        %6964 = vmatpush1.bf16.msra.mxu0 0
        %6965 = vmatprep.subr.bf16.mxu0 0
        %6966 = vmatpush1.bf16.msra.mxu0 0
        %6967 = vmatprep.subr.bf16.mxu0 0
        %6968 = vmatpush1.bf16.msra.mxu0 0
        %6969 = vmatprep.subr.bf16.mxu0 0
        %6970 = vmatpush1.bf16.msra.mxu0 0
        %6971 = vmatprep.subr.bf16.mxu0 0
        %6972 = vmatpush1.bf16.msra.mxu0 0
        %6973 = vmatprep.subr.bf16.mxu0 0
        %6974 = vmatpush1.bf16.msra.mxu0 0
        %6975 = vmatprep.subr.bf16.mxu0 0
        %6976 = vmatpush1.bf16.msra.mxu0 0
        %6977 = vmatprep.subr.bf16.mxu0 0
        %6978 = vmatpush1.bf16.msra.mxu0 0
        %6979 = vmatprep.subr.bf16.mxu0 0
        %6980 = vmatpush1.bf16.msra.mxu0 0
        %6981 = vmatprep.subr.bf16.mxu0 0
        %6982 = vmatpush1.bf16.msra.mxu0 0
        %6983 = vmatprep.mubr.bf16.mxu0 0
        %6984 = vmatmul.mubr.bf16.gmra.mrb[0].mxu0 %v6928
        %v6985 = vpop.f32.mrb[0].mxu0
        %v6986 = vadd.f32 %v6902, %v6985
        %v6987 = vpop.f32.mrb[0].mxu0
        %v6988 = vpop.f32.mrb[0].mxu0
        %v6989 = vadd.f32 %v6902, %v6988
        %v6990 = vpop.f32.mrb[0].mxu0
        %6991 = vmatprep.mubr.bf16.mxu0 0
        %6992 = vmatmul.mubr.bf16.gmra.mrb[0].mxu0 %v6931
        %v6993 = vpop.f32.mrb[0].mxu0
        %v6994 = vadd.f32 %v6902, %v6993
        %v6995 = vpop.f32.mrb[0].mxu0
        %v6996 = vpop.f32.mrb[0].mxu0
        %v6997 = vadd.f32 %v6902, %v6996
        %v6998 = vpop.f32.mrb[0].mxu0
        %6999 = vmatprep.mubr.bf16.mxu0 0
        %7000 = vmatmul.mubr.bf16.gmra.mrb[0].mxu0 %v6934
        %v7001 = vpop.f32.mrb[0].mxu0
        %v7002 = vadd.f32 %v6902, %v7001
        %v7003 = vpop.f32.mrb[0].mxu0
        %v7004 = vpop.f32.mrb[0].mxu0
        %v7005 = vadd.f32 %v6902, %v7004
        %v7006 = vpop.f32.mrb[0].mxu0
        %7007 = vmatprep.mubr.bf16.mxu0 0
        %7008 = vmatmul.mubr.bf16.gmra.mrb[0].mxu0 %v6937
        %v7009 = vpop.f32.mrb[0].mxu0
        %v7010 = vadd.f32 %v6902, %v7009
        %v7011 = vpop.f32.mrb[0].mxu0
        %v7012 = vpop.f32.mrb[0].mxu0
        %v7013 = vadd.f32 %v6902, %v7012
        %v7014 = vpop.f32.mrb[0].mxu0
        %7015 = vmatprep.mubr.bf16.mxu0 0
        %7016 = vmatmul.mubr.bf16.gmra.mrb[0].mxu0 %v6940
        %v7017 = vpop.f32.mrb[0].mxu0
        %v7018 = vadd.f32 %v6902, %v7017
        %v7019 = vpop.f32.mrb[0].mxu0
        %v7020 = vpop.f32.mrb[0].mxu0
        %v7021 = vadd.f32 %v6902, %v7020
        %v7022 = vpop.f32.mrb[0].mxu0
        %7023 = vmatprep.mubr.bf16.mxu0 0
        %7024 = vmatmul.mubr.bf16.gmra.mrb[0].mxu0 %v6943
        %v7025 = vpop.f32.mrb[0].mxu0
        %v7026 = vadd.f32 %v6902, %v7025
        %v7027 = vpop.f32.mrb[0].mxu0
        %v7028 = vpop.f32.mrb[0].mxu0
        %v7029 = vadd.f32 %v6902, %v7028
        %v7030 = vpop.f32.mrb[0].mxu0
        %7031 = vmatprep.mubr.bf16.mxu0 0
        %7032 = vmatmul.mubr.bf16.gmra.mrb[0].mxu0 %v6946
        %v7033 = vpop.f32.mrb[0].mxu0
        %v7034 = vadd.f32 %v6902, %v7033
        %v7035 = vpop.f32.mrb[0].mxu0
        %v7036 = vpop.f32.mrb[0].mxu0
        %v7037 = vadd.f32 %v6902, %v7036
        %v7038 = vpop.f32.mrb[0].mxu0
        %7039 = vmatprep.mubr.bf16.mxu0 0
        %7040 = vmatmul.mubr.bf16.gmra.mrb[0].mxu0 %v6949
        %v7041 = vpop.f32.mrb[0].mxu0
        %v7042 = vadd.f32 %v6902, %v7041
        %v7043 = vpop.f32.mrb[0].mxu0
        %v7044 = vpop.f32.mrb[0].mxu0
        %v7045 = vadd.f32 %v6902, %v7044
        %v7046 = vpop.f32.mrb[0].mxu0
        %7047 = vdwg.mxu0
        %v7048 = vadd.f32 %v6322, %v6986
        %v7049 = vadd.f32 %v6323, %v6989
        %v7050 = vadd.f32 %v6324, %v6994
        %v7051 = vadd.f32 %v6325, %v6997
        %v7052 = vadd.f32 %v6326, %v7002
        %v7053 = vadd.f32 %v6327, %v7005
        %v7054 = vadd.f32 %v6328, %v7010
        %v7055 = vadd.f32 %v6329, %v7013
        %v7056 = vadd.f32 %v6330, %v7018
        %v7057 = vadd.f32 %v6331, %v7021
        %v7058 = vadd.f32 %v6332, %v7026
        %v7059 = vadd.f32 %v6333, %v7029
        %v7060 = vadd.f32 %v6334, %v7034
        %v7061 = vadd.f32 %v6335, %v7037
        %v7062 = vadd.f32 %v6336, %v7042
        %v7063 = vadd.f32 %v6337, %v7045
        %v7064 = vld [vmem:[#allocation2 + $0x188] sm:$0x1]
        %v7065 = vld [vmem:[#allocation2 + $0x190] sm:$0x1]
        %v7066 = vsel %vm397, %v7048, 0.0
        %7067 = vadd.xlane.f32.xlu0 %v7066
        %v7068 = vpop.xlane.xlu0 %7067
        %v7069 = vsel %vm397, %v7049, 0.0
        %7070 = vadd.xlane.f32.xlu0 %v7069
        %v7071 = vpop.xlane.xlu0 %7070
        %v7072 = vsel %vm397, %v7050, 0.0
        %7073 = vadd.xlane.f32.xlu0 %v7072
        %v7074 = vpop.xlane.xlu0 %7073
        %v7075 = vsel %vm397, %v7051, 0.0
        %7076 = vadd.xlane.f32.xlu0 %v7075
        %v7077 = vpop.xlane.xlu0 %7076
        %v7078 = vsel %vm397, %v7052, 0.0
        %7079 = vadd.xlane.f32.xlu0 %v7078
        %v7080 = vpop.xlane.xlu0 %7079
        %v7081 = vsel %vm397, %v7053, 0.0
        %7082 = vadd.xlane.f32.xlu0 %v7081
        %v7083 = vpop.xlane.xlu0 %7082
        %v7084 = vsel %vm397, %v7054, 0.0
        %7085 = vadd.xlane.f32.xlu0 %v7084
        %v7086 = vpop.xlane.xlu0 %7085
        %v7087 = vsel %vm397, %v7055, 0.0
        %7088 = vadd.xlane.f32.xlu0 %v7087
        %v7089 = vpop.xlane.xlu0 %7088
        %v7090 = vsel %vm397, %v7056, 0.0
        %7091 = vadd.xlane.f32.xlu0 %v7090
        %v7092 = vpop.xlane.xlu0 %7091
        %v7093 = vsel %vm397, %v7057, 0.0
        %7094 = vadd.xlane.f32.xlu0 %v7093
        %v7095 = vpop.xlane.xlu0 %7094
        %v7096 = vsel %vm397, %v7058, 0.0
        %7097 = vadd.xlane.f32.xlu0 %v7096
        %v7098 = vpop.xlane.xlu0 %7097
        %v7099 = vsel %vm397, %v7059, 0.0
        %7100 = vadd.xlane.f32.xlu0 %v7099
        %v7101 = vpop.xlane.xlu0 %7100
        %v7102 = vsel %vm397, %v7060, 0.0
        %7103 = vadd.xlane.f32.xlu0 %v7102
        %v7104 = vpop.xlane.xlu0 %7103
        %v7105 = vsel %vm397, %v7061, 0.0
        %7106 = vadd.xlane.f32.xlu0 %v7105
        %v7107 = vpop.xlane.xlu0 %7106
        %v7108 = vsel %vm397, %v7062, 0.0
        %7109 = vadd.xlane.f32.xlu0 %v7108
        %v7110 = vpop.xlane.xlu0 %7109
        %v7111 = vsel %vm397, %v7063, 0.0
        %7112 = vadd.xlane.f32.xlu0 %v7111
        %v7113 = vpop.xlane.xlu0 %7112
        %v7114 = vmul.f32 %v7068, %v446
        %v7115 = vmul.f32 %v7071, %v446
        %v7116 = vmul.f32 %v7074, %v446
        %v7117 = vmul.f32 %v7077, %v446
        %v7118 = vmul.f32 %v7080, %v446
        %v7119 = vmul.f32 %v7083, %v446
        %v7120 = vmul.f32 %v7086, %v446
        %v7121 = vmul.f32 %v7089, %v446
        %v7122 = vmul.f32 %v7092, %v446
        %v7123 = vmul.f32 %v7095, %v446
        %v7124 = vmul.f32 %v7098, %v446
        %v7125 = vmul.f32 %v7101, %v446
        %v7126 = vmul.f32 %v7104, %v446
        %v7127 = vmul.f32 %v7107, %v446
        %v7128 = vmul.f32 %v7110, %v446
        %v7129 = vmul.f32 %v7113, %v446
        %v7130 = vsub.f32 %v7048, %v7114
        %v7131 = vsub.f32 %v7049, %v7115
        %v7132 = vsub.f32 %v7050, %v7116
        %v7133 = vsub.f32 %v7051, %v7117
        %v7134 = vsub.f32 %v7052, %v7118
        %v7135 = vsub.f32 %v7053, %v7119
        %v7136 = vsub.f32 %v7054, %v7120
        %v7137 = vsub.f32 %v7055, %v7121
        %v7138 = vsub.f32 %v7056, %v7122
        %v7139 = vsub.f32 %v7057, %v7123
        %v7140 = vsub.f32 %v7058, %v7124
        %v7141 = vsub.f32 %v7059, %v7125
        %v7142 = vsub.f32 %v7060, %v7126
        %v7143 = vsub.f32 %v7061, %v7127
        %v7144 = vsub.f32 %v7062, %v7128
        %v7145 = vsub.f32 %v7063, %v7129
        %v7146 = vmul.f32 %v7130, %v7130
        %v7147 = vmul.f32 %v7131, %v7131
        %v7148 = vmul.f32 %v7132, %v7132
        %v7149 = vmul.f32 %v7133, %v7133
        %v7150 = vmul.f32 %v7134, %v7134
        %v7151 = vmul.f32 %v7135, %v7135
        %v7152 = vmul.f32 %v7136, %v7136
        %v7153 = vmul.f32 %v7137, %v7137
        %v7154 = vmul.f32 %v7138, %v7138
        %v7155 = vmul.f32 %v7139, %v7139
        %v7156 = vmul.f32 %v7140, %v7140
        %v7157 = vmul.f32 %v7141, %v7141
        %v7158 = vmul.f32 %v7142, %v7142
        %v7159 = vmul.f32 %v7143, %v7143
        %v7160 = vmul.f32 %v7144, %v7144
        %v7161 = vmul.f32 %v7145, %v7145
        %v7162 = vsel %vm397, %v7146, 0.0
        %7163 = vadd.xlane.f32.xlu0 %v7162
        %v7164 = vpop.xlane.xlu0 %7163
        %v7165 = vsel %vm397, %v7147, 0.0
        %7166 = vadd.xlane.f32.xlu0 %v7165
        %v7167 = vpop.xlane.xlu0 %7166
        %v7168 = vsel %vm397, %v7148, 0.0
        %7169 = vadd.xlane.f32.xlu0 %v7168
        %v7170 = vpop.xlane.xlu0 %7169
        %v7171 = vsel %vm397, %v7149, 0.0
        %7172 = vadd.xlane.f32.xlu0 %v7171
        %v7173 = vpop.xlane.xlu0 %7172
        %v7174 = vsel %vm397, %v7150, 0.0
        %7175 = vadd.xlane.f32.xlu0 %v7174
        %v7176 = vpop.xlane.xlu0 %7175
        %v7177 = vsel %vm397, %v7151, 0.0
        %7178 = vadd.xlane.f32.xlu0 %v7177
        %v7179 = vpop.xlane.xlu0 %7178
        %v7180 = vsel %vm397, %v7152, 0.0
        %7181 = vadd.xlane.f32.xlu0 %v7180
        %v7182 = vpop.xlane.xlu0 %7181
        %v7183 = vsel %vm397, %v7153, 0.0
        %7184 = vadd.xlane.f32.xlu0 %v7183
        %v7185 = vpop.xlane.xlu0 %7184
        %v7186 = vsel %vm397, %v7154, 0.0
        %7187 = vadd.xlane.f32.xlu0 %v7186
        %v7188 = vpop.xlane.xlu0 %7187
        %v7189 = vsel %vm397, %v7155, 0.0
        %7190 = vadd.xlane.f32.xlu0 %v7189
        %v7191 = vpop.xlane.xlu0 %7190
        %v7192 = vsel %vm397, %v7156, 0.0
        %7193 = vadd.xlane.f32.xlu0 %v7192
        %v7194 = vpop.xlane.xlu0 %7193
        %v7195 = vsel %vm397, %v7157, 0.0
        %7196 = vadd.xlane.f32.xlu0 %v7195
        %v7197 = vpop.xlane.xlu0 %7196
        %v7198 = vsel %vm397, %v7158, 0.0
        %7199 = vadd.xlane.f32.xlu0 %v7198
        %v7200 = vpop.xlane.xlu0 %7199
        %v7201 = vsel %vm397, %v7159, 0.0
        %7202 = vadd.xlane.f32.xlu0 %v7201
        %v7203 = vpop.xlane.xlu0 %7202
        %v7204 = vsel %vm397, %v7160, 0.0
        %7205 = vadd.xlane.f32.xlu0 %v7204
        %v7206 = vpop.xlane.xlu0 %7205
        %v7207 = vsel %vm397, %v7161, 0.0
        %7208 = vadd.xlane.f32.xlu0 %v7207
        %v7209 = vpop.xlane.xlu0 %7208
        %v7210 = vmul.f32 %v7164, %v446
        %v7211 = vmul.f32 %v7167, %v446
        %v7212 = vmul.f32 %v7170, %v446
        %v7213 = vmul.f32 %v7173, %v446
        %v7214 = vmul.f32 %v7176, %v446
        %v7215 = vmul.f32 %v7179, %v446
        %v7216 = vmul.f32 %v7182, %v446
        %v7217 = vmul.f32 %v7185, %v446
        %v7218 = vmul.f32 %v7188, %v446
        %v7219 = vmul.f32 %v7191, %v446
        %v7220 = vmul.f32 %v7194, %v446
        %v7221 = vmul.f32 %v7197, %v446
        %v7222 = vmul.f32 %v7200, %v446
        %v7223 = vmul.f32 %v7203, %v446
        %v7224 = vmul.f32 %v7206, %v446
        %v7225 = vmul.f32 %v7209, %v446
        %v7226 = vadd.f32 %v7210, 1e-05
        %v7227 = vadd.f32 %v7211, 1e-05
        %v7228 = vadd.f32 %v7212, 1e-05
        %v7229 = vadd.f32 %v7213, 1e-05
        %v7230 = vadd.f32 %v7214, 1e-05
        %v7231 = vadd.f32 %v7215, 1e-05
        %v7232 = vadd.f32 %v7216, 1e-05
        %v7233 = vadd.f32 %v7217, 1e-05
        %v7234 = vadd.f32 %v7218, 1e-05
        %v7235 = vadd.f32 %v7219, 1e-05
        %v7236 = vadd.f32 %v7220, 1e-05
        %v7237 = vadd.f32 %v7221, 1e-05
        %v7238 = vadd.f32 %v7222, 1e-05
        %v7239 = vadd.f32 %v7223, 1e-05
        %v7240 = vadd.f32 %v7224, 1e-05
        %v7241 = vadd.f32 %v7225, 1e-05
        %v7242 = vrsqrt.pop %v7226
        %v7243 = vrsqrt.pop %v7227
        %v7244 = vrsqrt.pop %v7228
        %v7245 = vrsqrt.pop %v7229
        %v7246 = vrsqrt.pop %v7230
        %v7247 = vrsqrt.pop %v7231
        %v7248 = vrsqrt.pop %v7232
        %v7249 = vrsqrt.pop %v7233
        %v7250 = vrsqrt.pop %v7234
        %v7251 = vrsqrt.pop %v7235
        %v7252 = vrsqrt.pop %v7236
        %v7253 = vrsqrt.pop %v7237
        %v7254 = vrsqrt.pop %v7238
        %v7255 = vrsqrt.pop %v7239
        %v7256 = vrsqrt.pop %v7240
        %v7257 = vrsqrt.pop %v7241
        %v7258 = vmul.f32 %v7130, %v7242
        %v7259 = vmul.f32 %v7131, %v7243
        %v7260 = vmul.f32 %v7132, %v7244
        %v7261 = vmul.f32 %v7133, %v7245
        %v7262 = vmul.f32 %v7134, %v7246
        %v7263 = vmul.f32 %v7135, %v7247
        %v7264 = vmul.f32 %v7136, %v7248
        %v7265 = vmul.f32 %v7137, %v7249
        %v7266 = vmul.f32 %v7138, %v7250
        %v7267 = vmul.f32 %v7139, %v7251
        %v7268 = vmul.f32 %v7140, %v7252
        %v7269 = vmul.f32 %v7141, %v7253
        %v7270 = vmul.f32 %v7142, %v7254
        %v7271 = vmul.f32 %v7143, %v7255
        %v7272 = vmul.f32 %v7144, %v7256
        %v7273 = vmul.f32 %v7145, %v7257
        %v7274 = vlaneseq
        %v7275 = vshrl.u32 %v7274, 7
        %v7276 = vsub.s32 0, %v7275
        %v7277 = vrot.slane %v7064, %v7276
        %v7278 = vmul.f32 %v7258, %v7277
        %v7279 = vmul.f32 %v7259, %v7277
        %v7280 = vmul.f32 %v7260, %v7277
        %v7281 = vmul.f32 %v7261, %v7277
        %v7282 = vmul.f32 %v7262, %v7277
        %v7283 = vmul.f32 %v7263, %v7277
        %v7284 = vmul.f32 %v7264, %v7277
        %v7285 = vmul.f32 %v7265, %v7277
        %v7286 = vmul.f32 %v7266, %v7277
        %v7287 = vmul.f32 %v7267, %v7277
        %v7288 = vmul.f32 %v7268, %v7277
        %v7289 = vmul.f32 %v7269, %v7277
        %v7290 = vmul.f32 %v7270, %v7277
        %v7291 = vmul.f32 %v7271, %v7277
        %v7292 = vmul.f32 %v7272, %v7277
        %v7293 = vmul.f32 %v7273, %v7277
        %v7294 = vlaneseq
        %v7295 = vshrl.u32 %v7294, 7
        %v7296 = vsub.s32 0, %v7295
        %v7297 = vrot.slane %v7065, %v7296
        %v7298 = vadd.f32 %v7278, %v7297
        %v7299 = vadd.f32 %v7279, %v7297
        %v7300 = vadd.f32 %v7280, %v7297
        %v7301 = vadd.f32 %v7281, %v7297
        %v7302 = vadd.f32 %v7282, %v7297
        %v7303 = vadd.f32 %v7283, %v7297
        %v7304 = vadd.f32 %v7284, %v7297
        %v7305 = vadd.f32 %v7285, %v7297
        %v7306 = vadd.f32 %v7286, %v7297
        %v7307 = vadd.f32 %v7287, %v7297
        %v7308 = vadd.f32 %v7288, %v7297
        %v7309 = vadd.f32 %v7289, %v7297
        %v7310 = vadd.f32 %v7290, %v7297
        %v7311 = vadd.f32 %v7291, %v7297
        %v7312 = vadd.f32 %v7292, %v7297
        %v7313 = vadd.f32 %v7293, %v7297
        %v7314 = vpack.c.bf16 %v7299, %v7298
        %v7315 = vpack.c.bf16 %v7301, %v7300
        %v7316 = vpack.c.bf16 %v7303, %v7302
        %v7317 = vpack.c.bf16 %v7305, %v7304
        %v7318 = vpack.c.bf16 %v7307, %v7306
        %v7319 = vpack.c.bf16 %v7309, %v7308
        %v7320 = vpack.c.bf16 %v7311, %v7310
        %v7321 = vpack.c.bf16 %v7313, %v7312
        %v7322 = vld [vmem:[%s1 + $0xa8] sm:$0xf]
        %v7323 = vld [vmem:[%s1 + $0xac] sm:$0xf]
        %v7324 = vld [vmem:[%s1 + $0xb0] sm:$0xf]
        %v7325 = vld [vmem:[%s1 + $0xb4] sm:$0xf]
        %v7326 = vld [vmem:[#allocation2 + $0x198] sm:$0x1]
        %v7327 = vlaneseq
        %v7328 = vshrl.u32 %v7327, 7
        %v7329 = vsub.s32 0, %v7328
        %v7330 = vrot.slane %v7326, %v7329
        %v7335 = vunpack.c.l.b16 %v7322
        %v7336 = vunpack.c.l.b16 %v7323
        %v7337 = vunpack.c.l.b16 %v7324
        %v7338 = vunpack.c.l.b16 %v7325
        %v7339 = vpack.c.b16 %v7336, %v7335
        %v7340 = vpack.c.b16 %v7338, %v7337
        %v7344 = vsel %vm397, %v7314, 0
        %v7347 = vsel %vm397, %v7315, 0
        %v7350 = vsel %vm397, %v7316, 0
        %v7353 = vsel %vm397, %v7317, 0
        %v7356 = vsel %vm397, %v7318, 0
        %v7359 = vsel %vm397, %v7319, 0
        %v7362 = vsel %vm397, %v7320, 0
        %v7365 = vsel %vm397, %v7321, 0
        %7367 = vmatprep.subr.bf16.mxu0 0
        %7368 = vmatpush1.bf16.msra.mxu0 %v7339
        %7369 = vmatprep.subr.bf16.mxu0 0
        %7370 = vmatpush1.bf16.msra.mxu0 %v7340
        %7371 = vmatprep.subr.bf16.mxu0 0
        %7372 = vmatpush1.bf16.msra.mxu0 0
        %7373 = vmatprep.subr.bf16.mxu0 0
        %7374 = vmatpush1.bf16.msra.mxu0 0
        %7375 = vmatprep.subr.bf16.mxu0 0
        %7376 = vmatpush1.bf16.msra.mxu0 0
        %7377 = vmatprep.subr.bf16.mxu0 0
        %7378 = vmatpush1.bf16.msra.mxu0 0
        %7379 = vmatprep.subr.bf16.mxu0 0
        %7380 = vmatpush1.bf16.msra.mxu0 0
        %7381 = vmatprep.subr.bf16.mxu0 0
        %7382 = vmatpush1.bf16.msra.mxu0 0
        %7383 = vmatprep.subr.bf16.mxu0 0
        %7384 = vmatpush1.bf16.msra.mxu0 0
        %7385 = vmatprep.subr.bf16.mxu0 0
        %7386 = vmatpush1.bf16.msra.mxu0 0
        %7387 = vmatprep.subr.bf16.mxu0 0
        %7388 = vmatpush1.bf16.msra.mxu0 0
        %7389 = vmatprep.subr.bf16.mxu0 0
        %7390 = vmatpush1.bf16.msra.mxu0 0
        %7391 = vmatprep.subr.bf16.mxu0 0
        %7392 = vmatpush1.bf16.msra.mxu0 0
        %7393 = vmatprep.subr.bf16.mxu0 0
        %7394 = vmatpush1.bf16.msra.mxu0 0
        %7395 = vmatprep.subr.bf16.mxu0 0
        %7396 = vmatpush1.bf16.msra.mxu0 0
        %7397 = vmatprep.subr.bf16.mxu0 0
        %7398 = vmatpush1.bf16.msra.mxu0 0
        %7399 = vmatprep.mubr.bf16.mxu0 0
        %7400 = vmatmul.mubr.bf16.gmra.mrb[0].mxu0 %v7344
        %v7401 = vpop.f32.mrb[0].mxu0
        %v7402 = vadd.f32 %v7330, %v7401
        %v7403 = vpop.f32.mrb[0].mxu0
        %v7404 = vpop.f32.mrb[0].mxu0
        %v7405 = vadd.f32 %v7330, %v7404
        %v7406 = vpop.f32.mrb[0].mxu0
        %7407 = vmatprep.mubr.bf16.mxu0 0
        %7408 = vmatmul.mubr.bf16.gmra.mrb[0].mxu0 %v7347
        %v7409 = vpop.f32.mrb[0].mxu0
        %v7410 = vadd.f32 %v7330, %v7409
        %v7411 = vpop.f32.mrb[0].mxu0
        %v7412 = vpop.f32.mrb[0].mxu0
        %v7413 = vadd.f32 %v7330, %v7412
        %v7414 = vpop.f32.mrb[0].mxu0
        %7415 = vmatprep.mubr.bf16.mxu0 0
        %7416 = vmatmul.mubr.bf16.gmra.mrb[0].mxu0 %v7350
        %v7417 = vpop.f32.mrb[0].mxu0
        %v7418 = vadd.f32 %v7330, %v7417
        %v7419 = vpop.f32.mrb[0].mxu0
        %v7420 = vpop.f32.mrb[0].mxu0
        %v7421 = vadd.f32 %v7330, %v7420
        %v7422 = vpop.f32.mrb[0].mxu0
        %7423 = vmatprep.mubr.bf16.mxu0 0
        %7424 = vmatmul.mubr.bf16.gmra.mrb[0].mxu0 %v7353
        %v7425 = vpop.f32.mrb[0].mxu0
        %v7426 = vadd.f32 %v7330, %v7425
        %v7427 = vpop.f32.mrb[0].mxu0
        %v7428 = vpop.f32.mrb[0].mxu0
        %v7429 = vadd.f32 %v7330, %v7428
        %v7430 = vpop.f32.mrb[0].mxu0
        %7431 = vmatprep.mubr.bf16.mxu0 0
        %7432 = vmatmul.mubr.bf16.gmra.mrb[0].mxu0 %v7356
        %v7433 = vpop.f32.mrb[0].mxu0
        %v7434 = vadd.f32 %v7330, %v7433
        %v7435 = vpop.f32.mrb[0].mxu0
        %v7436 = vpop.f32.mrb[0].mxu0
        %v7437 = vadd.f32 %v7330, %v7436
        %v7438 = vpop.f32.mrb[0].mxu0
        %7439 = vmatprep.mubr.bf16.mxu0 0
        %7440 = vmatmul.mubr.bf16.gmra.mrb[0].mxu0 %v7359
        %v7441 = vpop.f32.mrb[0].mxu0
        %v7442 = vadd.f32 %v7330, %v7441
        %v7443 = vpop.f32.mrb[0].mxu0
        %v7444 = vpop.f32.mrb[0].mxu0
        %v7445 = vadd.f32 %v7330, %v7444
        %v7446 = vpop.f32.mrb[0].mxu0
        %7447 = vmatprep.mubr.bf16.mxu0 0
        %7448 = vmatmul.mubr.bf16.gmra.mrb[0].mxu0 %v7362
        %v7449 = vpop.f32.mrb[0].mxu0
        %v7450 = vadd.f32 %v7330, %v7449
        %v7451 = vpop.f32.mrb[0].mxu0
        %v7452 = vpop.f32.mrb[0].mxu0
        %v7453 = vadd.f32 %v7330, %v7452
        %v7454 = vpop.f32.mrb[0].mxu0
        %7455 = vmatprep.mubr.bf16.mxu0 0
        %7456 = vmatmul.mubr.bf16.gmra.mrb[0].mxu0 %v7365
        %v7457 = vpop.f32.mrb[0].mxu0
        %v7458 = vadd.f32 %v7330, %v7457
        %v7459 = vpop.f32.mrb[0].mxu0
        %v7460 = vpop.f32.mrb[0].mxu0
        %v7461 = vadd.f32 %v7330, %v7460
        %v7462 = vpop.f32.mrb[0].mxu0
        %7463 = vdwg.mxu0
        %7464 = vst [vmem:[%s179] sm:$0xff] %v7402
        %7465 = vst [vmem:[%s179 + $0x8] sm:$0xff] %v7405
        %7466 = vst [vmem:[%s179 + $0x10] sm:$0xff] %v7410
        %7467 = vst [vmem:[%s179 + $0x18] sm:$0xff] %v7413
        %7468 = vst [vmem:[%s179 + $0x20] sm:$0xff] %v7418
        %7469 = vst [vmem:[%s179 + $0x28] sm:$0xff] %v7421
        %7470 = vst [vmem:[%s179 + $0x30] sm:$0xff] %v7426
        %7471 = vst [vmem:[%s179 + $0x38] sm:$0xff] %v7429
        %7472 = vst [vmem:[%s179 + $0x40] sm:$0xff] %v7434
        %7473 = vst [vmem:[%s179 + $0x48] sm:$0xff] %v7437
        %7474 = vst [vmem:[%s179 + $0x50] sm:$0xff] %v7442
        %7475 = vst [vmem:[%s179 + $0x58] sm:$0xff] %v7445
        %7476 = vst [vmem:[%s179 + $0x60] sm:$0xff] %v7450
        %7477 = vst [vmem:[%s179 + $0x68] sm:$0xff] %v7453
        %7478 = vst [vmem:[%s179 + $0x70] sm:$0xff] %v7458
        %7479 = vst [vmem:[%s179 + $0x78] sm:$0xff] %v7461
        %s7480 = sand.u32 %s94, 1
        %s7481 = scalar_lea.sflag [#allocation4], %s7480
        %s7482 = sand.u32 %s94, 1
        %s7483 = smul.addr %s7482, 128
        %s7484 = scalar_lea.vmem [#allocation5], %s7483
        // Predicated region
        $region37: #{tpu_custom_call.1} parent=31 // pred_check
          %p7485 = pneg %p104
        $region38: #{tpu_custom_call.1} parent=31 // pred_check_branch
          %7487 = sbr.rel (%p7485) target = $region40
        $region39: #{tpu_custom_call.1} parent=31 // pred_region
          %s7488 = smul.u32 16, %s18
          %s7490 = ssub.s32 2048, 2048
          %7491 = vsyncadd %s7481, %s7490
          %s7492 = smul.addr %s7488, 128
          %s7493 = scalar_lea.hbm %s3, %s7492
          %s7494 = sshll.u32 %s7484, 4
          %s7495 = int_to_ptr.vmem [resolvable:$true] %s7494
          %7500 = dma.vmem_to_hbm [thread:$0]  %s7495, 2048, %s7493, %s7481, 128, 128, 8
        $region40: #{tpu_custom_call.1} parent=31 // pred_fallthru
          _
      $region32: #{tpu_custom_call.1} parent=5 // pred_fallthru
        _
      %p7501 = scmp.le.s32.totalorder 2, %s13
      // Predicated region
      $region41: #{tpu_custom_call.1} parent=5 // pred_check
        %p7502 = pneg %p7501
      $region42: #{tpu_custom_call.1} parent=5 // pred_check_branch
        %7504 = sbr.rel (%p7502) target = $region44
      $region43: #{tpu_custom_call.1} parent=5 // pred_region
        %s7505 = ssub.s32 %s13, 2
        // Predicated region
        $region45: #{tpu_custom_call.1} parent=43 // pred_check
          %p7506 = pneg %p110
        $region46: #{tpu_custom_call.1} parent=43 // pred_check_branch
          %7508 = sbr.rel (%p7506) target = $region48
        $region47: #{tpu_custom_call.1} parent=43 // pred_region
          %s7509 = sand.u32 %s95, 1
          %s7510 = scalar_lea.sflag [#allocation4], %s7509
          %s7511 = sand.u32 %s95, 1
          %s7512 = smul.addr %s7511, 128
          %s7513 = scalar_lea.vmem [#allocation5], %s7512
          %7514 = dma.done %s7510, 2048
        $region48: #{tpu_custom_call.1} parent=43 // pred_fallthru
          _
      $region44: #{tpu_custom_call.1} parent=5 // pred_fallthru
        _
    $region6: #{tpu_custom_call.1} parent=1 // loop_footer
      %s17 = sadd.s32 1, %s13
    $region7: #{tpu_custom_call.1} parent=1 // loop_footer_branch
      %12 = sbr.rel target = $region3
    $region8: #{tpu_custom_call.1} parent=1 // loop_exit
      _
    %7515 = vsyncpa [#allocation3], 1
    %s7516 = scalar_lea.sflag [#allocation3], 1
    %7517 = vsyncpa %s7516, 1
    %7518 = vsyncpa [#allocation4], 1
    %s7519 = scalar_lea.sflag [#allocation4], 1
    %7520 = vsyncpa %s7519, 1

</llo_original>
